<compile_context>
chip_gen: v6e
topology: v6e:2x2x1
jax: 0.10.0
libtpu: 0.0.40
codegen_flags: <defaults>
</compile_context>

<pallas_src>
import jax
import jax.numpy as jnp
from jax.experimental import pallas as pl
from jax.experimental.pallas import tpu as pltpu

EPS = 1e-5
LANES = 128
_TAPS = tuple((ky, kx) for ky in range(3) for kx in range(3))


def _compiler_params():
    return pltpu.CompilerParams(
        dimension_semantics=("parallel",),          # shard batch across TCs
        vmem_limit_bytes=32 * 1024 * 1024,          # explicit, safe on v5e..v7x
    )


# --------------------------- in-kernel conv helper ---------------------------

def _conv3x3(act_scr, w_ref, b_ref, H, W, CP):
    """3x3 conv (+bias) from a zero-halo bf16 scratch tile.

    act_scr : (H+2, W+2, CP) bf16   activation with zero halo
    w_ref   : (9, CP, CP)    bf16   conv taps, index = ky*3 + kx
    b_ref   : (1, CP)        f32    conv bias
    returns : (H*W, CP)      f32
    """
    acc = jnp.zeros((H * W, CP), jnp.float32)
    for t, (ky, kx) in enumerate(_TAPS):
        xs = act_scr[ky:ky + H, kx:kx + W, :].reshape(H * W, CP)
        acc = acc + jnp.dot(xs, w_ref[t], preferred_element_type=jnp.float32)
    return acc + b_ref[...]


# ----------------------------- Pallas kernels ------------------------------

def _conv1_kernel(x_ref, w_ref, b_ref, y_ref, st_ref, act_scr):
    """Conv1 (+bias) on one image + per-image BN1 partial sums.

    x_ref   : (1, H, W, CP)    f32   input image (channel-padded)
    w_ref   : (9, CP, CP)      bf16  conv1 taps
    b_ref   : (1, CP)          f32   conv1 bias
    y_ref   : (1, H, W, CP)    bf16  conv1 output (pre-BN1)
    st_ref  : (1, 2, CP)       f32   [sum, sum_sq] over this image's pixels
    act_scr : (H+2, W+2, CP)   bf16  VMEM scratch: input with zero halo
    """
    H, W, CP = x_ref.shape[1], x_ref.shape[2], x_ref.shape[3]

    # Scratch persists across grid iterations (and the batch axis may be
    # sharded across cores) -> re-zero the halo every step.  The whole-tile
    # zero is tiny compared to the matmuls and keeps lowering simple.
    act_scr[...] = jnp.zeros_like(act_scr)
    act_scr[1:H + 1, 1:W + 1, :] = x_ref[0].astype(jnp.bfloat16)

    y = _conv3x3(act_scr, w_ref, b_ref, H, W, CP)          # (H*W, CP) f32

    # BN statistics from the f32 accumulator (exact), output stored bf16.
    st_ref[0, 0:1, :] = jnp.sum(y, axis=0, keepdims=True)
    st_ref[0, 1:2, :] = jnp.sum(y * y, axis=0, keepdims=True)
    y_ref[0] = y.reshape(H, W, CP).astype(jnp.bfloat16)


def _bn1_prelu_conv2_kernel(y1_ref, w_ref, b_ref, sc_ref, sh_ref, alpha_ref,
                            y2_ref, st_ref, act_scr):
    """BN1 (precomputed affine) + PReLU + conv2 (+bias) + BN2 partial sums.

    y1_ref    : (1, H, W, CP)  bf16  conv1 output
    w_ref     : (9, CP, CP)    bf16  conv2 taps
    b_ref     : (1, CP)        f32   conv2 bias
    sc_ref    : (1, CP)        f32   BN1 scale  = gamma1 * rsqrt(var1 + eps)
    sh_ref    : (1, CP)        f32   BN1 shift  = beta1 - mean1 * scale
    alpha_ref : (1,)           f32   PReLU slope (SMEM scalar)
    y2_ref    : (1, H, W, CP)  bf16  conv2 output (pre-BN2)
    st_ref    : (1, 2, CP)     f32   [sum, sum_sq] for BN2
    act_scr   : (H+2, W+2, CP) bf16  VMEM scratch: activation with zero halo
    """
    H, W, CP = y1_ref.shape[1], y1_ref.shape[2], y1_ref.shape[3]

    sc = sc_ref[...].reshape(1, 1, CP)
    sh = sh_ref[...].reshape(1, 1, CP)
    alpha = alpha_ref[0]

    act = y1_ref[0].astype(jnp.float32) * sc + sh    # BatchNorm1 (affine form)
    act = jnp.where(act > 0, act, alpha * act)       # PReLU

    act_scr[...] = jnp.zeros_like(act_scr)
    act_scr[1:H + 1, 1:W + 1, :] = act.astype(jnp.bfloat16)

    y2 = _conv3x3(act_scr, w_ref, b_ref, H, W, CP)          # (H*W, CP) f32

    st_ref[0, 0:1, :] = jnp.sum(y2, axis=0, keepdims=True)
    st_ref[0, 1:2, :] = jnp.sum(y2 * y2, axis=0, keepdims=True)
    y2_ref[0] = y2.reshape(H, W, CP).astype(jnp.bfloat16)


def _bn2_residual_kernel(y2_ref, x_ref, sc_ref, sh_ref, o_ref):
    """BN2 (precomputed affine) + residual add.  All blocks (1, H, W, CP)."""
    CP = y2_ref.shape[3]
    sc = sc_ref[...].reshape(1, 1, 1, CP)
    sh = sh_ref[...].reshape(1, 1, 1, CP)
    o_ref[...] = x_ref[...] + y2_ref[...].astype(jnp.float32) * sc + sh


# ------------------------------ host-side glue ------------------------------

def _pad_last(a, target):
    c = a.shape[-1]
    if c == target:
        return a
    pad = [(0, 0)] * (a.ndim - 1) + [(0, target - c)]
    return jnp.pad(a, pad)


def _prep_conv_weight(w_hwio, cp):
    """(3,3,Cin,Cout) HWIO -> zero-pad channels -> (9, CP, CP) bf16."""
    w = jnp.pad(w_hwio, ((0, 0), (0, 0),
                         (0, cp - w_hwio.shape[2]),
                         (0, cp - w_hwio.shape[3])))
    return w.reshape(9, cp, cp).astype(jnp.bfloat16)


def _bn_scale_shift(stats, count, gamma, beta):
    """Reduce per-image (sum, sum_sq) -> affine BN scale/shift, shape (1, CP)."""
    s = jnp.sum(stats.astype(jnp.float32), axis=0)          # (2, CP)
    mean = s[0] / count
    var = jnp.maximum(s[1] / count - mean * mean, 0.0)       # biased variance
    scale = gamma * jax.lax.rsqrt(var + EPS)                 # gamma pad = 0
    shift = beta - mean * scale
    return scale.reshape(1, -1), shift.reshape(1, -1)


@jax.jit
def bottleneck_forward(x_nchw, params):
    """Pallas implementation of Bottleneck.forward (shortcut=True, e=1).

    BatchNorm is evaluated in training mode (batch statistics), matching the
    PyTorch module's default forward behaviour during training.
    """
    N, C, H, W = x_nchw.shape
    cmid = params["w1"].shape[-1]
    cout = params["w2"].shape[-1]
    CP = ((max(C, cmid, cout) + LANES - 1) // LANES) * LANES
    M = N * H * W

    # --- layout prep (cheap host glue; channel pad only, no spatial copies) ---
    x_nhwc = jnp.transpose(x_nchw, (0, 2, 3, 1)).astype(jnp.float32)
    x_cp = _pad_last(x_nhwc, CP)                                   # (N,H,W,CP)

    w1 = _prep_conv_weight(params["w1"], CP)
    w2 = _prep_conv_weight(params["w2"], CP)
    b1 = _pad_last(params["b1"], CP).reshape(1, CP).astype(jnp.float32)
    b2 = _pad_last(params["b2"], CP).reshape(1, CP).astype(jnp.float32)
    g1 = _pad_last(params["g1"], CP).astype(jnp.float32)    # gamma padded w/ 0
    g2 = _pad_last(params["g2"], CP).astype(jnp.float32)
    be1 = _pad_last(params["be1"], CP).astype(jnp.float32)
    be2 = _pad_last(params["be2"], CP).astype(jnp.float32)
    alpha = params["alpha"].reshape(1).astype(jnp.float32)

    img_spec = pl.BlockSpec((1, H, W, CP), lambda i: (i, 0, 0, 0))
    w_spec = pl.BlockSpec((9, CP, CP), lambda i: (0, 0, 0))
    vec_spec = pl.BlockSpec((1, CP), lambda i: (0, 0))
    st_spec = pl.BlockSpec((1, 2, CP), lambda i: (i, 0, 0))
    smem_spec = pl.BlockSpec(memory_space=pltpu.MemorySpace.SMEM)
    halo_scr = pltpu.VMEM((H + 2, W + 2, CP), jnp.bfloat16)

    # ---- pass 1: conv1 + bias, per-image BN1 partial sums ----
    y1, st1 = pl.pallas_call(
        _conv1_kernel,
        grid=(N,),
        in_specs=[img_spec, w_spec, vec_spec],
        out_specs=(img_spec, st_spec),
        out_shape=(jax.ShapeDtypeStruct((N, H, W, CP), jnp.bfloat16),
                   jax.ShapeDtypeStruct((N, 2, CP), jnp.float32)),
        scratch_shapes=[halo_scr],
        compiler_params=_compiler_params(),
    )(x_cp, w1, b1)

    scale1, shift1 = _bn_scale_shift(st1, M, g1, be1)

    # ---- pass 2: BN1 + PReLU + conv2 + bias, per-image BN2 partial sums ----
    y2, st2 = pl.pallas_call(
        _bn1_prelu_conv2_kernel,
        grid=(N,),
        in_specs=[img_spec, w_spec, vec_spec, vec_spec, vec_spec, smem_spec],
        out_specs=(img_spec, st_spec),
        out_shape=(jax.ShapeDtypeStruct((N, H, W, CP), jnp.bfloat16),
                   jax.ShapeDtypeStruct((N, 2, CP), jnp.float32)),
        scratch_shapes=[halo_scr],
        compiler_params=_compiler_params(),
    )(y1, w2, b2, scale1, shift1, alpha)

    scale2, shift2 = _bn_scale_shift(st2, M, g2, be2)

    # ---- pass 3: BN2 + residual add ----
    out = pl.pallas_call(
        _bn2_residual_kernel,
        grid=(N,),
        in_specs=[img_spec, img_spec, vec_spec, vec_spec],
        out_specs=img_spec,
        out_shape=jax.ShapeDtypeStruct((N, H, W, CP), jnp.float32),
        compiler_params=_compiler_params(),
    )(y2, x_cp, scale2, shift2)

    out = out[..., :cout]                                  # drop channel padding
    return jnp.transpose(out, (0, 3, 1, 2))                # back to NCHW


# ------------------------- pure-JAX reference (check) ------------------------

def bottleneck_reference(x_nchw, params):
    x = jnp.transpose(x_nchw, (0, 2, 3, 1)).astype(jnp.float32)

    def conv(h, w, b):
        y = jax.lax.conv_general_dilated(
            h, w, (1, 1), "SAME", dimension_numbers=("NHWC", "HWIO", "NHWC"))
        return y + b

    def bn(y, g, be):
        m = jnp.mean(y, axis=(0, 1, 2), keepdims=True)
        v = jnp.mean((y - m) ** 2, axis=(0, 1, 2), keepdims=True)
        return (y - m) * jax.lax.rsqrt(v + EPS) * g + be

    y = conv(x, params["w1"], params["b1"])
    y = bn(y, params["g1"], params["be1"])
    y = jnp.where(y > 0, y, params["alpha"] * y)
    y = conv(y, params["w2"], params["b2"])
    y = bn(y, params["g2"], params["be2"])
    out = x + y
    return jnp.transpose(out, (0, 3, 1, 2))


# ----------------------------------- main -----------------------------------

if __name__ == "__main__":
    # Small shapes consistent with the module: in_channels=out_channels=4, e=1.
    N, Cin, H, W = 2, 4, 16, 16
    Cout = Cin
    Cmid = int(Cout * 1)

    key = jax.random.PRNGKey(0)
    ks = jax.random.split(key, 10)
    x = jax.random.normal(ks[0], (N, Cin, H, W), jnp.float32)

    params = {
        # conv weights in HWIO layout (3,3,Cin,Cout)
        "w1": 0.1 * jax.random.normal(ks[1], (3, 3, Cin, Cmid), jnp.float32),
        "b1": 0.1 * jax.random.normal(ks[2], (Cmid,), jnp.float32),
        "g1": 1.0 + 0.1 * jax.random.normal(ks[3], (Cmid,), jnp.float32),
        "be1": 0.1 * jax.random.normal(ks[4], (Cmid,), jnp.float32),
        "alpha": jnp.array([0.25], jnp.float32),          # nn.PReLU() default
        "w2": 0.1 * jax.random.normal(ks[5], (3, 3, Cmid, Cout), jnp.float32),
        "b2": 0.1 * jax.random.normal(ks[6], (Cout,), jnp.float32),
        "g2": 1.0 + 0.1 * jax.random.normal(ks[7], (Cout,), jnp.float32),
        "be2": 0.1 * jax.random.normal(ks[8], (Cout,), jnp.float32),
    }

    out = jax.block_until_ready(bottleneck_forward(x, params))
    ref = jax.block_until_ready(bottleneck_reference(x, params))

    assert out.shape == (N, Cout, H, W)
    max_err = float(jnp.max(jnp.abs(out - ref)))
    # bf16 MXU operands + bf16 inter-pass intermediates (f32 accumulation /
    # f32 BN statistics) vs an all-f32 reference -> a few 1e-2 worst case.
    assert jnp.allclose(out, ref, rtol=5e-2, atol=5e-2), f"max abs err {max_err}"
    print("KERNEL_OK")
</pallas_src>

<mosaic_0001>
module attributes {stable_mosaic.version = 11 : i64} {
  func.func @_conv1_kernel(%arg0: i32, %arg1: memref<1x16x16x128xf32, #tpu.memory_space<vmem>>, %arg2: memref<9x128x128xbf16, #tpu.memory_space<vmem>>, %arg3: memref<1x128xf32, #tpu.memory_space<vmem>>, %arg4: memref<1x16x16x128xbf16, #tpu.memory_space<vmem>>, %arg5: memref<1x2x128xf32, #tpu.memory_space<vmem>>, %arg6: memref<18x18x128xbf16, #tpu.memory_space<vmem>>) attributes {dimension_semantics = [#tpu.dimension_semantics<parallel>], iteration_bounds = array<i64: 2>, scalar_prefetch = 0 : i64, scratch_operands = 1 : i64, tpu.core_type = #tpu.core_type<tc>, window_params = [{transform_indices = @transform_0, window_bounds = array<i64: 1, 16, 16, 128>}, {pipeline_mode = #tpu.pipeline_mode<synchronous>, transform_indices = @transform_1, window_bounds = array<i64: 9, 128, 128>}, {pipeline_mode = #tpu.pipeline_mode<synchronous>, transform_indices = @transform_2, window_bounds = array<i64: 1, 128>}, {transform_indices = @transform_3, window_bounds = array<i64: 1, 16, 16, 128>}, {transform_indices = @transform_4, window_bounds = array<i64: 1, 2, 128>}]} {
    %cst = arith.constant 0.000000e+00 : bf16
    %0 = vector.broadcast %cst : bf16 to vector<18x18x128xbf16>
    %c0 = arith.constant 0 : index
    %c0_0 = arith.constant 0 : index
    %c0_1 = arith.constant 0 : index
    %1 = vector.load %arg6[%c0, %c0_0, %c0_1] : memref<18x18x128xbf16, #tpu.memory_space<vmem>>, vector<18x18x128xbf16>
    tpu.vector_store %arg6[%c0, %c0_0, %c0_1], %0 {strides = array<i32>} : memref<18x18x128xbf16, #tpu.memory_space<vmem>>, vector<18x18x128xbf16>,
    %c0_2 = arith.constant 0 : index
    %c0_3 = arith.constant 0 : index
    %c0_4 = arith.constant 0 : index
    %c0_5 = arith.constant 0 : index
    %2 = vector.load %arg1[%c0_2, %c0_3, %c0_4, %c0_5] : memref<1x16x16x128xf32, #tpu.memory_space<vmem>>, vector<1x16x16x128xf32>
    %3 = vector.shape_cast %2 : vector<1x16x16x128xf32> to vector<16x16x128xf32>
    %4 = arith.truncf %3 : vector<16x16x128xf32> to vector<16x16x128xbf16>
    %c1 = arith.constant 1 : index
    %c1_6 = arith.constant 1 : index
    %c0_7 = arith.constant 0 : index
    %5 = vector.load %arg6[%c1, %c1_6, %c0_7] : memref<18x18x128xbf16, #tpu.memory_space<vmem>>, vector<16x16x128xbf16>
    tpu.vector_store %arg6[%c1, %c1_6, %c0_7], %4 {strides = array<i32>} : memref<18x18x128xbf16, #tpu.memory_space<vmem>>, vector<16x16x128xbf16>,
    %cst_8 = arith.constant 0.000000e+00 : f32
    %6 = vector.broadcast %cst_8 : f32 to vector<256x128xf32>
    %c0_9 = arith.constant 0 : index
    %c0_10 = arith.constant 0 : index
    %c0_11 = arith.constant 0 : index
    %7 = vector.load %arg6[%c0_9, %c0_10, %c0_11] : memref<18x18x128xbf16, #tpu.memory_space<vmem>>, vector<16x16x128xbf16>
    %8 = vector.shape_cast %7 : vector<16x16x128xbf16> to vector<256x128xbf16>
    %c0_12 = arith.constant 0 : index
    %c0_13 = arith.constant 0 : index
    %c0_14 = arith.constant 0 : index
    %9 = vector.load %arg2[%c0_12, %c0_13, %c0_14] : memref<9x128x128xbf16, #tpu.memory_space<vmem>>, vector<1x128x128xbf16>
    %10 = vector.shape_cast %9 : vector<1x128x128xbf16> to vector<128x128xbf16>
    %cst_15 = arith.constant dense<0.000000e+00> : vector<256x128xf32>
    %11 = tpu.matmul %8, %10, %cst_15 {dimension_numbers = #tpu.dot_dimension_numbers<[1], [0], [0], [1], [0, 0, 1, 1], [], []>} : vector<256x128xbf16>, vector<128x128xbf16>, vector<256x128xf32> -> vector<256x128xf32>
    %12 = arith.addf %6, %11 : vector<256x128xf32>
    %c0_16 = arith.constant 0 : index
    %c1_17 = arith.constant 1 : index
    %c0_18 = arith.constant 0 : index
    %13 = vector.load %arg6[%c0_16, %c1_17, %c0_18] : memref<18x18x128xbf16, #tpu.memory_space<vmem>>, vector<16x16x128xbf16>
    %14 = vector.shape_cast %13 : vector<16x16x128xbf16> to vector<256x128xbf16>
    %c1_19 = arith.constant 1 : index
    %c0_20 = arith.constant 0 : index
    %c0_21 = arith.constant 0 : index
    %15 = vector.load %arg2[%c1_19, %c0_20, %c0_21] : memref<9x128x128xbf16, #tpu.memory_space<vmem>>, vector<1x128x128xbf16>
    %16 = vector.shape_cast %15 : vector<1x128x128xbf16> to vector<128x128xbf16>
    %cst_22 = arith.constant dense<0.000000e+00> : vector<256x128xf32>
    %17 = tpu.matmul %14, %16, %cst_22 {dimension_numbers = #tpu.dot_dimension_numbers<[1], [0], [0], [1], [0, 0, 1, 1], [], []>} : vector<256x128xbf16>, vector<128x128xbf16>, vector<256x128xf32> -> vector<256x128xf32>
    %18 = arith.addf %12, %17 : vector<256x128xf32>
    %c0_23 = arith.constant 0 : index
    %c2 = arith.constant 2 : index
    %c0_24 = arith.constant 0 : index
    %19 = vector.load %arg6[%c0_23, %c2, %c0_24] : memref<18x18x128xbf16, #tpu.memory_space<vmem>>, vector<16x16x128xbf16>
    %20 = vector.shape_cast %19 : vector<16x16x128xbf16> to vector<256x128xbf16>
    %c2_25 = arith.constant 2 : index
    %c0_26 = arith.constant 0 : index
    %c0_27 = arith.constant 0 : index
    %21 = vector.load %arg2[%c2_25, %c0_26, %c0_27] : memref<9x128x128xbf16, #tpu.memory_space<vmem>>, vector<1x128x128xbf16>
    %22 = vector.shape_cast %21 : vector<1x128x128xbf16> to vector<128x128xbf16>
    %cst_28 = arith.constant dense<0.000000e+00> : vector<256x128xf32>
    %23 = tpu.matmul %20, %22, %cst_28 {dimension_numbers = #tpu.dot_dimension_numbers<[1], [0], [0], [1], [0, 0, 1, 1], [], []>} : vector<256x128xbf16>, vector<128x128xbf16>, vector<256x128xf32> -> vector<256x128xf32>
    %24 = arith.addf %18, %23 : vector<256x128xf32>
    %c1_29 = arith.constant 1 : index
    %c0_30 = arith.constant 0 : index
    %c0_31 = arith.constant 0 : index
    %25 = vector.load %arg6[%c1_29, %c0_30, %c0_31] : memref<18x18x128xbf16, #tpu.memory_space<vmem>>, vector<16x16x128xbf16>
    %26 = vector.shape_cast %25 : vector<16x16x128xbf16> to vector<256x128xbf16>
    %c3 = arith.constant 3 : index
    %c0_32 = arith.constant 0 : index
    %c0_33 = arith.constant 0 : index
    %27 = vector.load %arg2[%c3, %c0_32, %c0_33] : memref<9x128x128xbf16, #tpu.memory_space<vmem>>, vector<1x128x128xbf16>
    %28 = vector.shape_cast %27 : vector<1x128x128xbf16> to vector<128x128xbf16>
    %cst_34 = arith.constant dense<0.000000e+00> : vector<256x128xf32>
    %29 = tpu.matmul %26, %28, %cst_34 {dimension_numbers = #tpu.dot_dimension_numbers<[1], [0], [0], [1], [0, 0, 1, 1], [], []>} : vector<256x128xbf16>, vector<128x128xbf16>, vector<256x128xf32> -> vector<256x128xf32>
    %30 = arith.addf %24, %29 : vector<256x128xf32>
    %c1_35 = arith.constant 1 : index
    %c1_36 = arith.constant 1 : index
    %c0_37 = arith.constant 0 : index
    %31 = vector.load %arg6[%c1_35, %c1_36, %c0_37] : memref<18x18x128xbf16, #tpu.memory_space<vmem>>, vector<16x16x128xbf16>
    %32 = vector.shape_cast %31 : vector<16x16x128xbf16> to vector<256x128xbf16>
    %c4 = arith.constant 4 : index
    %c0_38 = arith.constant 0 : index
    %c0_39 = arith.constant 0 : index
    %33 = vector.load %arg2[%c4, %c0_38, %c0_39] : memref<9x128x128xbf16, #tpu.memory_space<vmem>>, vector<1x128x128xbf16>
    %34 = vector.shape_cast %33 : vector<1x128x128xbf16> to vector<128x128xbf16>
    %cst_40 = arith.constant dense<0.000000e+00> : vector<256x128xf32>
    %35 = tpu.matmul %32, %34, %cst_40 {dimension_numbers = #tpu.dot_dimension_numbers<[1], [0], [0], [1], [0, 0, 1, 1], [], []>} : vector<256x128xbf16>, vector<128x128xbf16>, vector<256x128xf32> -> vector<256x128xf32>
    %36 = arith.addf %30, %35 : vector<256x128xf32>
    %c1_41 = arith.constant 1 : index
    %c2_42 = arith.constant 2 : index
    %c0_43 = arith.constant 0 : index
    %37 = vector.load %arg6[%c1_41, %c2_42, %c0_43] : memref<18x18x128xbf16, #tpu.memory_space<vmem>>, vector<16x16x128xbf16>
    %38 = vector.shape_cast %37 : vector<16x16x128xbf16> to vector<256x128xbf16>
    %c5 = arith.constant 5 : index
    %c0_44 = arith.constant 0 : index
    %c0_45 = arith.constant 0 : index
    %39 = vector.load %arg2[%c5, %c0_44, %c0_45] : memref<9x128x128xbf16, #tpu.memory_space<vmem>>, vector<1x128x128xbf16>
    %40 = vector.shape_cast %39 : vector<1x128x128xbf16> to vector<128x128xbf16>
    %cst_46 = arith.constant dense<0.000000e+00> : vector<256x128xf32>
    %41 = tpu.matmul %38, %40, %cst_46 {dimension_numbers = #tpu.dot_dimension_numbers<[1], [0], [0], [1], [0, 0, 1, 1], [], []>} : vector<256x128xbf16>, vector<128x128xbf16>, vector<256x128xf32> -> vector<256x128xf32>
    %42 = arith.addf %36, %41 : vector<256x128xf32>
    %c2_47 = arith.constant 2 : index
    %c0_48 = arith.constant 0 : index
    %c0_49 = arith.constant 0 : index
    %43 = vector.load %arg6[%c2_47, %c0_48, %c0_49] : memref<18x18x128xbf16, #tpu.memory_space<vmem>>, vector<16x16x128xbf16>
    %44 = vector.shape_cast %43 : vector<16x16x128xbf16> to vector<256x128xbf16>
    %c6 = arith.constant 6 : index
    %c0_50 = arith.constant 0 : index
    %c0_51 = arith.constant 0 : index
    %45 = vector.load %arg2[%c6, %c0_50, %c0_51] : memref<9x128x128xbf16, #tpu.memory_space<vmem>>, vector<1x128x128xbf16>
    %46 = vector.shape_cast %45 : vector<1x128x128xbf16> to vector<128x128xbf16>
    %cst_52 = arith.constant dense<0.000000e+00> : vector<256x128xf32>
    %47 = tpu.matmul %44, %46, %cst_52 {dimension_numbers = #tpu.dot_dimension_numbers<[1], [0], [0], [1], [0, 0, 1, 1], [], []>} : vector<256x128xbf16>, vector<128x128xbf16>, vector<256x128xf32> -> vector<256x128xf32>
    %48 = arith.addf %42, %47 : vector<256x128xf32>
    %c2_53 = arith.constant 2 : index
    %c1_54 = arith.constant 1 : index
    %c0_55 = arith.constant 0 : index
    %49 = vector.load %arg6[%c2_53, %c1_54, %c0_55] : memref<18x18x128xbf16, #tpu.memory_space<vmem>>, vector<16x16x128xbf16>
    %50 = vector.shape_cast %49 : vector<16x16x128xbf16> to vector<256x128xbf16>
    %c7 = arith.constant 7 : index
    %c0_56 = arith.constant 0 : index
    %c0_57 = arith.constant 0 : index
    %51 = vector.load %arg2[%c7, %c0_56, %c0_57] : memref<9x128x128xbf16, #tpu.memory_space<vmem>>, vector<1x128x128xbf16>
    %52 = vector.shape_cast %51 : vector<1x128x128xbf16> to vector<128x128xbf16>
    %cst_58 = arith.constant dense<0.000000e+00> : vector<256x128xf32>
    %53 = tpu.matmul %50, %52, %cst_58 {dimension_numbers = #tpu.dot_dimension_numbers<[1], [0], [0], [1], [0, 0, 1, 1], [], []>} : vector<256x128xbf16>, vector<128x128xbf16>, vector<256x128xf32> -> vector<256x128xf32>
    %54 = arith.addf %48, %53 : vector<256x128xf32>
    %c2_59 = arith.constant 2 : index
    %c2_60 = arith.constant 2 : index
    %c0_61 = arith.constant 0 : index
    %55 = vector.load %arg6[%c2_59, %c2_60, %c0_61] : memref<18x18x128xbf16, #tpu.memory_space<vmem>>, vector<16x16x128xbf16>
    %56 = vector.shape_cast %55 : vector<16x16x128xbf16> to vector<256x128xbf16>
    %c8 = arith.constant 8 : index
    %c0_62 = arith.constant 0 : index
    %c0_63 = arith.constant 0 : index
    %57 = vector.load %arg2[%c8, %c0_62, %c0_63] : memref<9x128x128xbf16, #tpu.memory_space<vmem>>, vector<1x128x128xbf16>
    %58 = vector.shape_cast %57 : vector<1x128x128xbf16> to vector<128x128xbf16>
    %cst_64 = arith.constant dense<0.000000e+00> : vector<256x128xf32>
    %59 = tpu.matmul %56, %58, %cst_64 {dimension_numbers = #tpu.dot_dimension_numbers<[1], [0], [0], [1], [0, 0, 1, 1], [], []>} : vector<256x128xbf16>, vector<128x128xbf16>, vector<256x128xf32> -> vector<256x128xf32>
    %60 = arith.addf %54, %59 : vector<256x128xf32>
    %c0_65 = arith.constant 0 : index
    %c0_66 = arith.constant 0 : index
    %61 = vector.load %arg3[%c0_65, %c0_66] : memref<1x128xf32, #tpu.memory_space<vmem>>, vector<1x128xf32>
    %62 = vector.broadcast %61 : vector<1x128xf32> to vector<256x128xf32>
    %63 = arith.addf %60, %62 : vector<256x128xf32>
    %cst_67 = arith.constant dense<0.000000e+00> : vector<128xf32>
    %64 = vector.multi_reduction <add>, %63, %cst_67 [0] : vector<256x128xf32> to vector<128xf32>
    %65 = vector.shape_cast %64 : vector<128xf32> to vector<1x128xf32>
    %c0_68 = arith.constant 0 : index
    %c0_69 = arith.constant 0 : index
    %c0_70 = arith.constant 0 : index
    %66 = vector.load %arg5[%c0_68, %c0_69, %c0_70] : memref<1x2x128xf32, #tpu.memory_space<vmem>>, vector<1x1x128xf32>
    %67 = vector.shape_cast %66 : vector<1x1x128xf32> to vector<1x128xf32>
    %68 = vector.shape_cast %65 : vector<1x128xf32> to vector<1x1x128xf32>
    tpu.vector_store %arg5[%c0_68, %c0_69, %c0_70], %68 {strides = array<i32>} : memref<1x2x128xf32, #tpu.memory_space<vmem>>, vector<1x1x128xf32>,
    %69 = arith.mulf %63, %63 : vector<256x128xf32>
    %cst_71 = arith.constant dense<0.000000e+00> : vector<128xf32>
    %70 = vector.multi_reduction <add>, %69, %cst_71 [0] : vector<256x128xf32> to vector<128xf32>
    %71 = vector.shape_cast %70 : vector<128xf32> to vector<1x128xf32>
    %c0_72 = arith.constant 0 : index
    %c1_73 = arith.constant 1 : index
    %c0_74 = arith.constant 0 : index
    %72 = vector.load %arg5[%c0_72, %c1_73, %c0_74] : memref<1x2x128xf32, #tpu.memory_space<vmem>>, vector<1x1x128xf32>
    %73 = vector.shape_cast %72 : vector<1x1x128xf32> to vector<1x128xf32>
    %74 = vector.shape_cast %71 : vector<1x128xf32> to vector<1x1x128xf32>
    tpu.vector_store %arg5[%c0_72, %c1_73, %c0_74], %74 {strides = array<i32>} : memref<1x2x128xf32, #tpu.memory_space<vmem>>, vector<1x1x128xf32>,
    %75 = vector.shape_cast %63 : vector<256x128xf32> to vector<16x16x128xf32>
    %76 = arith.truncf %75 : vector<16x16x128xf32> to vector<16x16x128xbf16>
    %c0_75 = arith.constant 0 : index
    %c0_76 = arith.constant 0 : index
    %c0_77 = arith.constant 0 : index
    %c0_78 = arith.constant 0 : index
    %77 = vector.load %arg4[%c0_75, %c0_76, %c0_77, %c0_78] : memref<1x16x16x128xbf16, #tpu.memory_space<vmem>>, vector<1x16x16x128xbf16>
    %78 = vector.shape_cast %77 : vector<1x16x16x128xbf16> to vector<16x16x128xbf16>
    %79 = vector.shape_cast %76 : vector<16x16x128xbf16> to vector<1x16x16x128xbf16>
    tpu.vector_store %arg4[%c0_75, %c0_76, %c0_77, %c0_78], %79 {strides = array<i32>} : memref<1x16x16x128xbf16, #tpu.memory_space<vmem>>, vector<1x16x16x128xbf16>,
    return
  }
  func.func @transform_0(%arg0: i32) -> (i32, i32, i32, i32) {
    %c0_i32 = arith.constant 0 : i32
    %c0_i32_0 = arith.constant 0 : i32
    %c0_i32_1 = arith.constant 0 : i32
    %c0_i32_2 = arith.constant 0 : i32
    return %arg0, %c0_i32, %c0_i32_0, %c0_i32_1 : i32, i32, i32, i32
  }
  func.func @transform_1(%arg0: i32) -> (i32, i32, i32) {
    %c0_i32 = arith.constant 0 : i32
    %c0_i32_0 = arith.constant 0 : i32
    %c0_i32_1 = arith.constant 0 : i32
    %c0_i32_2 = arith.constant 0 : i32
    return %c0_i32, %c0_i32_0, %c0_i32_1 : i32, i32, i32
  }
  func.func @transform_2(%arg0: i32) -> (i32, i32) {
    %c0_i32 = arith.constant 0 : i32
    %c0_i32_0 = arith.constant 0 : i32
    %c0_i32_1 = arith.constant 0 : i32
    return %c0_i32, %c0_i32_0 : i32, i32
  }
  func.func @transform_3(%arg0: i32) -> (i32, i32, i32, i32) {
    %c0_i32 = arith.constant 0 : i32
    %c0_i32_0 = arith.constant 0 : i32
    %c0_i32_1 = arith.constant 0 : i32
    %c0_i32_2 = arith.constant 0 : i32
    return %arg0, %c0_i32, %c0_i32_0, %c0_i32_1 : i32, i32, i32, i32
  }
  func.func @transform_4(%arg0: i32) -> (i32, i32, i32) {
    %c0_i32 = arith.constant 0 : i32
    %c0_i32_0 = arith.constant 0 : i32
    %c0_i32_1 = arith.constant 0 : i32
    return %arg0, %c0_i32, %c0_i32_0 : i32, i32, i32
  }
}

module attributes {stable_mosaic.version = 11 : i64} {
  func.func @_bn2_residual_kernel(%arg0: i32, %arg1: memref<1x16x16x128xbf16, #tpu.memory_space<vmem>>, %arg2: memref<1x16x16x128xf32, #tpu.memory_space<vmem>>, %arg3: memref<1x128xf32, #tpu.memory_space<vmem>>, %arg4: memref<1x128xf32, #tpu.memory_space<vmem>>, %arg5: memref<1x16x16x128xf32, #tpu.memory_space<vmem>>) attributes {dimension_semantics = [#tpu.dimension_semantics<parallel>], iteration_bounds = array<i64: 2>, scalar_prefetch = 0 : i64, scratch_operands = 0 : i64, tpu.core_type = #tpu.core_type<tc>, window_params = [{transform_indices = @transform_0, window_bounds = array<i64: 1, 16, 16, 128>}, {transform_indices = @transform_1, window_bounds = array<i64: 1, 16, 16, 128>}, {pipeline_mode = #tpu.pipeline_mode<synchronous>, transform_indices = @transform_2, window_bounds = array<i64: 1, 128>}, {pipeline_mode = #tpu.pipeline_mode<synchronous>, transform_indices = @transform_3, window_bounds = array<i64: 1, 128>}, {transform_indices = @transform_4, window_bounds = array<i64: 1, 16, 16, 128>}]} {
    %c0 = arith.constant 0 : index
    %c0_0 = arith.constant 0 : index
    %0 = vector.load %arg3[%c0, %c0_0] : memref<1x128xf32, #tpu.memory_space<vmem>>, vector<1x128xf32>
    %1 = vector.shape_cast %0 : vector<1x128xf32> to vector<1x1x1x128xf32>
    %c0_1 = arith.constant 0 : index
    %c0_2 = arith.constant 0 : index
    %2 = vector.load %arg4[%c0_1, %c0_2] : memref<1x128xf32, #tpu.memory_space<vmem>>, vector<1x128xf32>
    %3 = vector.shape_cast %2 : vector<1x128xf32> to vector<1x1x1x128xf32>
    %c0_3 = arith.constant 0 : index
    %c0_4 = arith.constant 0 : index
    %c0_5 = arith.constant 0 : index
    %c0_6 = arith.constant 0 : index
    %4 = vector.load %arg2[%c0_3, %c0_4, %c0_5, %c0_6] : memref<1x16x16x128xf32, #tpu.memory_space<vmem>>, vector<1x16x16x128xf32>
    %c0_7 = arith.constant 0 : index
    %c0_8 = arith.constant 0 : index
    %c0_9 = arith.constant 0 : index
    %c0_10 = arith.constant 0 : index
    %5 = vector.load %arg1[%c0_7, %c0_8, %c0_9, %c0_10] : memref<1x16x16x128xbf16, #tpu.memory_space<vmem>>, vector<1x16x16x128xbf16>
    %6 = arith.extf %5 : vector<1x16x16x128xbf16> to vector<1x16x16x128xf32>
    %7 = vector.broadcast %1 : vector<1x1x1x128xf32> to vector<1x16x16x128xf32>
    %8 = arith.mulf %6, %7 : vector<1x16x16x128xf32>
    %9 = arith.addf %4, %8 : vector<1x16x16x128xf32>
    %10 = vector.broadcast %3 : vector<1x1x1x128xf32> to vector<1x16x16x128xf32>
    %11 = arith.addf %9, %10 : vector<1x16x16x128xf32>
    %c0_11 = arith.constant 0 : index
    %c0_12 = arith.constant 0 : index
    %c0_13 = arith.constant 0 : index
    %c0_14 = arith.constant 0 : index
    %12 = vector.load %arg5[%c0_11, %c0_12, %c0_13, %c0_14] : memref<1x16x16x128xf32, #tpu.memory_space<vmem>>, vector<1x16x16x128xf32>
    tpu.vector_store %arg5[%c0_11, %c0_12, %c0_13, %c0_14], %11 {strides = array<i32>} : memref<1x16x16x128xf32, #tpu.memory_space<vmem>>, vector<1x16x16x128xf32>,
    return
  }
  func.func @transform_0(%arg0: i32) -> (i32, i32, i32, i32) {
    %c0_i32 = arith.constant 0 : i32
    %c0_i32_0 = arith.constant 0 : i32
    %c0_i32_1 = arith.constant 0 : i32
    %c0_i32_2 = arith.constant 0 : i32
    return %arg0, %c0_i32, %c0_i32_0, %c0_i32_1 : i32, i32, i32, i32
  }
  func.func @transform_1(%arg0: i32) -> (i32, i32, i32, i32) {
    %c0_i32 = arith.constant 0 : i32
    %c0_i32_0 = arith.constant 0 : i32
    %c0_i32_1 = arith.constant 0 : i32
    %c0_i32_2 = arith.constant 0 : i32
    return %arg0, %c0_i32, %c0_i32_0, %c0_i32_1 : i32, i32, i32, i32
  }
  func.func @transform_2(%arg0: i32) -> (i32, i32) {
    %c0_i32 = arith.constant 0 : i32
    %c0_i32_0 = arith.constant 0 : i32
    %c0_i32_1 = arith.constant 0 : i32
    return %c0_i32, %c0_i32_0 : i32, i32
  }
  func.func @transform_3(%arg0: i32) -> (i32, i32) {
    %c0_i32 = arith.constant 0 : i32
    %c0_i32_0 = arith.constant 0 : i32
    %c0_i32_1 = arith.constant 0 : i32
    return %c0_i32, %c0_i32_0 : i32, i32
  }
  func.func @transform_4(%arg0: i32) -> (i32, i32, i32, i32) {
    %c0_i32 = arith.constant 0 : i32
    %c0_i32_0 = arith.constant 0 : i32
    %c0_i32_1 = arith.constant 0 : i32
    %c0_i32_2 = arith.constant 0 : i32
    return %arg0, %c0_i32, %c0_i32_0, %c0_i32_1 : i32, i32, i32, i32
  }
}

module attributes {stable_mosaic.version = 11 : i64} {
  func.func @_bn1_prelu_conv2_kernel(%arg0: i32, %arg1: memref<1x16x16x128xbf16, #tpu.memory_space<vmem>>, %arg2: memref<9x128x128xbf16, #tpu.memory_space<vmem>>, %arg3: memref<1x128xf32, #tpu.memory_space<vmem>>, %arg4: memref<1x128xf32, #tpu.memory_space<vmem>>, %arg5: memref<1x128xf32, #tpu.memory_space<vmem>>, %arg6: memref<1xf32, #tpu.memory_space<smem>>, %arg7: memref<1x16x16x128xbf16, #tpu.memory_space<vmem>>, %arg8: memref<1x2x128xf32, #tpu.memory_space<vmem>>, %arg9: memref<18x18x128xbf16, #tpu.memory_space<vmem>>) attributes {dimension_semantics = [#tpu.dimension_semantics<parallel>], iteration_bounds = array<i64: 2>, scalar_prefetch = 0 : i64, scratch_operands = 1 : i64, tpu.core_type = #tpu.core_type<tc>, window_params = [{transform_indices = @transform_0, window_bounds = array<i64: 1, 16, 16, 128>}, {pipeline_mode = #tpu.pipeline_mode<synchronous>, transform_indices = @transform_1, window_bounds = array<i64: 9, 128, 128>}, {pipeline_mode = #tpu.pipeline_mode<synchronous>, transform_indices = @transform_2, window_bounds = array<i64: 1, 128>}, {pipeline_mode = #tpu.pipeline_mode<synchronous>, transform_indices = @transform_3, window_bounds = array<i64: 1, 128>}, {pipeline_mode = #tpu.pipeline_mode<synchronous>, transform_indices = @transform_4, window_bounds = array<i64: 1, 128>}, {transform_indices = @transform_5, window_bounds = array<i64: 1>}, {transform_indices = @transform_6, window_bounds = array<i64: 1, 16, 16, 128>}, {transform_indices = @transform_7, window_bounds = array<i64: 1, 2, 128>}]} {
    %c0 = arith.constant 0 : index
    %c0_0 = arith.constant 0 : index
    %0 = vector.load %arg4[%c0, %c0_0] : memref<1x128xf32, #tpu.memory_space<vmem>>, vector<1x128xf32>
    %1 = vector.shape_cast %0 : vector<1x128xf32> to vector<1x1x128xf32>
    %c0_1 = arith.constant 0 : index
    %c0_2 = arith.constant 0 : index
    %2 = vector.load %arg5[%c0_1, %c0_2] : memref<1x128xf32, #tpu.memory_space<vmem>>, vector<1x128xf32>
    %3 = vector.shape_cast %2 : vector<1x128xf32> to vector<1x1x128xf32>
    %c0_3 = arith.constant 0 : index
    %4 = memref.load %arg6[%c0_3] : memref<1xf32, #tpu.memory_space<smem>>
    %c0_4 = arith.constant 0 : index
    %c0_5 = arith.constant 0 : index
    %c0_6 = arith.constant 0 : index
    %c0_7 = arith.constant 0 : index
    %5 = vector.load %arg1[%c0_4, %c0_5, %c0_6, %c0_7] : memref<1x16x16x128xbf16, #tpu.memory_space<vmem>>, vector<1x16x16x128xbf16>
    %6 = vector.shape_cast %5 : vector<1x16x16x128xbf16> to vector<16x16x128xbf16>
    %7 = arith.extf %6 : vector<16x16x128xbf16> to vector<16x16x128xf32>
    %8 = vector.broadcast %1 : vector<1x1x128xf32> to vector<16x16x128xf32>
    %9 = arith.mulf %7, %8 : vector<16x16x128xf32>
    %10 = vector.broadcast %3 : vector<1x1x128xf32> to vector<16x16x128xf32>
    %11 = arith.addf %9, %10 : vector<16x16x128xf32>
    %cst = arith.constant 0.000000e+00 : f32
    %12 = vector.broadcast %cst : f32 to vector<16x16x128xf32>
    %13 = arith.cmpf ogt, %11, %12 : vector<16x16x128xf32>
    %14 = vector.broadcast %4 : f32 to vector<16x16x128xf32>
    %15 = arith.mulf %14, %11 : vector<16x16x128xf32>
    %16 = arith.select %13, %11, %15 : vector<16x16x128xi1>, vector<16x16x128xf32>
    %cst_8 = arith.constant 0.000000e+00 : bf16
    %17 = vector.broadcast %cst_8 : bf16 to vector<18x18x128xbf16>
    %c0_9 = arith.constant 0 : index
    %c0_10 = arith.constant 0 : index
    %c0_11 = arith.constant 0 : index
    %18 = vector.load %arg9[%c0_9, %c0_10, %c0_11] : memref<18x18x128xbf16, #tpu.memory_space<vmem>>, vector<18x18x128xbf16>
    tpu.vector_store %arg9[%c0_9, %c0_10, %c0_11], %17 {strides = array<i32>} : memref<18x18x128xbf16, #tpu.memory_space<vmem>>, vector<18x18x128xbf16>,
    %19 = arith.truncf %16 : vector<16x16x128xf32> to vector<16x16x128xbf16>
    %c1 = arith.constant 1 : index
    %c1_12 = arith.constant 1 : index
    %c0_13 = arith.constant 0 : index
    %20 = vector.load %arg9[%c1, %c1_12, %c0_13] : memref<18x18x128xbf16, #tpu.memory_space<vmem>>, vector<16x16x128xbf16>
    tpu.vector_store %arg9[%c1, %c1_12, %c0_13], %19 {strides = array<i32>} : memref<18x18x128xbf16, #tpu.memory_space<vmem>>, vector<16x16x128xbf16>,
    %cst_14 = arith.constant 0.000000e+00 : f32
    %21 = vector.broadcast %cst_14 : f32 to vector<256x128xf32>
    %c0_15 = arith.constant 0 : index
    %c0_16 = arith.constant 0 : index
    %c0_17 = arith.constant 0 : index
    %22 = vector.load %arg9[%c0_15, %c0_16, %c0_17] : memref<18x18x128xbf16, #tpu.memory_space<vmem>>, vector<16x16x128xbf16>
    %23 = vector.shape_cast %22 : vector<16x16x128xbf16> to vector<256x128xbf16>
    %c0_18 = arith.constant 0 : index
    %c0_19 = arith.constant 0 : index
    %c0_20 = arith.constant 0 : index
    %24 = vector.load %arg2[%c0_18, %c0_19, %c0_20] : memref<9x128x128xbf16, #tpu.memory_space<vmem>>, vector<1x128x128xbf16>
    %25 = vector.shape_cast %24 : vector<1x128x128xbf16> to vector<128x128xbf16>
    %cst_21 = arith.constant dense<0.000000e+00> : vector<256x128xf32>
    %26 = tpu.matmul %23, %25, %cst_21 {dimension_numbers = #tpu.dot_dimension_numbers<[1], [0], [0], [1], [0, 0, 1, 1], [], []>} : vector<256x128xbf16>, vector<128x128xbf16>, vector<256x128xf32> -> vector<256x128xf32>
    %27 = arith.addf %21, %26 : vector<256x128xf32>
    %c0_22 = arith.constant 0 : index
    %c1_23 = arith.constant 1 : index
    %c0_24 = arith.constant 0 : index
    %28 = vector.load %arg9[%c0_22, %c1_23, %c0_24] : memref<18x18x128xbf16, #tpu.memory_space<vmem>>, vector<16x16x128xbf16>
    %29 = vector.shape_cast %28 : vector<16x16x128xbf16> to vector<256x128xbf16>
    %c1_25 = arith.constant 1 : index
    %c0_26 = arith.constant 0 : index
    %c0_27 = arith.constant 0 : index
    %30 = vector.load %arg2[%c1_25, %c0_26, %c0_27] : memref<9x128x128xbf16, #tpu.memory_space<vmem>>, vector<1x128x128xbf16>
    %31 = vector.shape_cast %30 : vector<1x128x128xbf16> to vector<128x128xbf16>
    %cst_28 = arith.constant dense<0.000000e+00> : vector<256x128xf32>
    %32 = tpu.matmul %29, %31, %cst_28 {dimension_numbers = #tpu.dot_dimension_numbers<[1], [0], [0], [1], [0, 0, 1, 1], [], []>} : vector<256x128xbf16>, vector<128x128xbf16>, vector<256x128xf32> -> vector<256x128xf32>
    %33 = arith.addf %27, %32 : vector<256x128xf32>
    %c0_29 = arith.constant 0 : index
    %c2 = arith.constant 2 : index
    %c0_30 = arith.constant 0 : index
    %34 = vector.load %arg9[%c0_29, %c2, %c0_30] : memref<18x18x128xbf16, #tpu.memory_space<vmem>>, vector<16x16x128xbf16>
    %35 = vector.shape_cast %34 : vector<16x16x128xbf16> to vector<256x128xbf16>
    %c2_31 = arith.constant 2 : index
    %c0_32 = arith.constant 0 : index
    %c0_33 = arith.constant 0 : index
    %36 = vector.load %arg2[%c2_31, %c0_32, %c0_33] : memref<9x128x128xbf16, #tpu.memory_space<vmem>>, vector<1x128x128xbf16>
    %37 = vector.shape_cast %36 : vector<1x128x128xbf16> to vector<128x128xbf16>
    %cst_34 = arith.constant dense<0.000000e+00> : vector<256x128xf32>
    %38 = tpu.matmul %35, %37, %cst_34 {dimension_numbers = #tpu.dot_dimension_numbers<[1], [0], [0], [1], [0, 0, 1, 1], [], []>} : vector<256x128xbf16>, vector<128x128xbf16>, vector<256x128xf32> -> vector<256x128xf32>
    %39 = arith.addf %33, %38 : vector<256x128xf32>
    %c1_35 = arith.constant 1 : index
    %c0_36 = arith.constant 0 : index
    %c0_37 = arith.constant 0 : index
    %40 = vector.load %arg9[%c1_35, %c0_36, %c0_37] : memref<18x18x128xbf16, #tpu.memory_space<vmem>>, vector<16x16x128xbf16>
    %41 = vector.shape_cast %40 : vector<16x16x128xbf16> to vector<256x128xbf16>
    %c3 = arith.constant 3 : index
    %c0_38 = arith.constant 0 : index
    %c0_39 = arith.constant 0 : index
    %42 = vector.load %arg2[%c3, %c0_38, %c0_39] : memref<9x128x128xbf16, #tpu.memory_space<vmem>>, vector<1x128x128xbf16>
    %43 = vector.shape_cast %42 : vector<1x128x128xbf16> to vector<128x128xbf16>
    %cst_40 = arith.constant dense<0.000000e+00> : vector<256x128xf32>
    %44 = tpu.matmul %41, %43, %cst_40 {dimension_numbers = #tpu.dot_dimension_numbers<[1], [0], [0], [1], [0, 0, 1, 1], [], []>} : vector<256x128xbf16>, vector<128x128xbf16>, vector<256x128xf32> -> vector<256x128xf32>
    %45 = arith.addf %39, %44 : vector<256x128xf32>
    %c1_41 = arith.constant 1 : index
    %c1_42 = arith.constant 1 : index
    %c0_43 = arith.constant 0 : index
    %46 = vector.load %arg9[%c1_41, %c1_42, %c0_43] : memref<18x18x128xbf16, #tpu.memory_space<vmem>>, vector<16x16x128xbf16>
    %47 = vector.shape_cast %46 : vector<16x16x128xbf16> to vector<256x128xbf16>
    %c4 = arith.constant 4 : index
    %c0_44 = arith.constant 0 : index
    %c0_45 = arith.constant 0 : index
    %48 = vector.load %arg2[%c4, %c0_44, %c0_45] : memref<9x128x128xbf16, #tpu.memory_space<vmem>>, vector<1x128x128xbf16>
    %49 = vector.shape_cast %48 : vector<1x128x128xbf16> to vector<128x128xbf16>
    %cst_46 = arith.constant dense<0.000000e+00> : vector<256x128xf32>
    %50 = tpu.matmul %47, %49, %cst_46 {dimension_numbers = #tpu.dot_dimension_numbers<[1], [0], [0], [1], [0, 0, 1, 1], [], []>} : vector<256x128xbf16>, vector<128x128xbf16>, vector<256x128xf32> -> vector<256x128xf32>
    %51 = arith.addf %45, %50 : vector<256x128xf32>
    %c1_47 = arith.constant 1 : index
    %c2_48 = arith.constant 2 : index
    %c0_49 = arith.constant 0 : index
    %52 = vector.load %arg9[%c1_47, %c2_48, %c0_49] : memref<18x18x128xbf16, #tpu.memory_space<vmem>>, vector<16x16x128xbf16>
    %53 = vector.shape_cast %52 : vector<16x16x128xbf16> to vector<256x128xbf16>
    %c5 = arith.constant 5 : index
    %c0_50 = arith.constant 0 : index
    %c0_51 = arith.constant 0 : index
    %54 = vector.load %arg2[%c5, %c0_50, %c0_51] : memref<9x128x128xbf16, #tpu.memory_space<vmem>>, vector<1x128x128xbf16>
    %55 = vector.shape_cast %54 : vector<1x128x128xbf16> to vector<128x128xbf16>
    %cst_52 = arith.constant dense<0.000000e+00> : vector<256x128xf32>
    %56 = tpu.matmul %53, %55, %cst_52 {dimension_numbers = #tpu.dot_dimension_numbers<[1], [0], [0], [1], [0, 0, 1, 1], [], []>} : vector<256x128xbf16>, vector<128x128xbf16>, vector<256x128xf32> -> vector<256x128xf32>
    %57 = arith.addf %51, %56 : vector<256x128xf32>
    %c2_53 = arith.constant 2 : index
    %c0_54 = arith.constant 0 : index
    %c0_55 = arith.constant 0 : index
    %58 = vector.load %arg9[%c2_53, %c0_54, %c0_55] : memref<18x18x128xbf16, #tpu.memory_space<vmem>>, vector<16x16x128xbf16>
    %59 = vector.shape_cast %58 : vector<16x16x128xbf16> to vector<256x128xbf16>
    %c6 = arith.constant 6 : index
    %c0_56 = arith.constant 0 : index
    %c0_57 = arith.constant 0 : index
    %60 = vector.load %arg2[%c6, %c0_56, %c0_57] : memref<9x128x128xbf16, #tpu.memory_space<vmem>>, vector<1x128x128xbf16>
    %61 = vector.shape_cast %60 : vector<1x128x128xbf16> to vector<128x128xbf16>
    %cst_58 = arith.constant dense<0.000000e+00> : vector<256x128xf32>
    %62 = tpu.matmul %59, %61, %cst_58 {dimension_numbers = #tpu.dot_dimension_numbers<[1], [0], [0], [1], [0, 0, 1, 1], [], []>} : vector<256x128xbf16>, vector<128x128xbf16>, vector<256x128xf32> -> vector<256x128xf32>
    %63 = arith.addf %57, %62 : vector<256x128xf32>
    %c2_59 = arith.constant 2 : index
    %c1_60 = arith.constant 1 : index
    %c0_61 = arith.constant 0 : index
    %64 = vector.load %arg9[%c2_59, %c1_60, %c0_61] : memref<18x18x128xbf16, #tpu.memory_space<vmem>>, vector<16x16x128xbf16>
    %65 = vector.shape_cast %64 : vector<16x16x128xbf16> to vector<256x128xbf16>
    %c7 = arith.constant 7 : index
    %c0_62 = arith.constant 0 : index
    %c0_63 = arith.constant 0 : index
    %66 = vector.load %arg2[%c7, %c0_62, %c0_63] : memref<9x128x128xbf16, #tpu.memory_space<vmem>>, vector<1x128x128xbf16>
    %67 = vector.shape_cast %66 : vector<1x128x128xbf16> to vector<128x128xbf16>
    %cst_64 = arith.constant dense<0.000000e+00> : vector<256x128xf32>
    %68 = tpu.matmul %65, %67, %cst_64 {dimension_numbers = #tpu.dot_dimension_numbers<[1], [0], [0], [1], [0, 0, 1, 1], [], []>} : vector<256x128xbf16>, vector<128x128xbf16>, vector<256x128xf32> -> vector<256x128xf32>
    %69 = arith.addf %63, %68 : vector<256x128xf32>
    %c2_65 = arith.constant 2 : index
    %c2_66 = arith.constant 2 : index
    %c0_67 = arith.constant 0 : index
    %70 = vector.load %arg9[%c2_65, %c2_66, %c0_67] : memref<18x18x128xbf16, #tpu.memory_space<vmem>>, vector<16x16x128xbf16>
    %71 = vector.shape_cast %70 : vector<16x16x128xbf16> to vector<256x128xbf16>
    %c8 = arith.constant 8 : index
    %c0_68 = arith.constant 0 : index
    %c0_69 = arith.constant 0 : index
    %72 = vector.load %arg2[%c8, %c0_68, %c0_69] : memref<9x128x128xbf16, #tpu.memory_space<vmem>>, vector<1x128x128xbf16>
    %73 = vector.shape_cast %72 : vector<1x128x128xbf16> to vector<128x128xbf16>
    %cst_70 = arith.constant dense<0.000000e+00> : vector<256x128xf32>
    %74 = tpu.matmul %71, %73, %cst_70 {dimension_numbers = #tpu.dot_dimension_numbers<[1], [0], [0], [1], [0, 0, 1, 1], [], []>} : vector<256x128xbf16>, vector<128x128xbf16>, vector<256x128xf32> -> vector<256x128xf32>
    %75 = arith.addf %69, %74 : vector<256x128xf32>
    %c0_71 = arith.constant 0 : index
    %c0_72 = arith.constant 0 : index
    %76 = vector.load %arg3[%c0_71, %c0_72] : memref<1x128xf32, #tpu.memory_space<vmem>>, vector<1x128xf32>
    %77 = vector.broadcast %76 : vector<1x128xf32> to vector<256x128xf32>
    %78 = arith.addf %75, %77 : vector<256x128xf32>
    %cst_73 = arith.constant dense<0.000000e+00> : vector<128xf32>
    %79 = vector.multi_reduction <add>, %78, %cst_73 [0] : vector<256x128xf32> to vector<128xf32>
    %80 = vector.shape_cast %79 : vector<128xf32> to vector<1x128xf32>
    %c0_74 = arith.constant 0 : index
    %c0_75 = arith.constant 0 : index
    %c0_76 = arith.constant 0 : index
    %81 = vector.load %arg8[%c0_74, %c0_75, %c0_76] : memref<1x2x128xf32, #tpu.memory_space<vmem>>, vector<1x1x128xf32>
    %82 = vector.shape_cast %81 : vector<1x1x128xf32> to vector<1x128xf32>
    %83 = vector.shape_cast %80 : vector<1x128xf32> to vector<1x1x128xf32>
    tpu.vector_store %arg8[%c0_74, %c0_75, %c0_76], %83 {strides = array<i32>} : memref<1x2x128xf32, #tpu.memory_space<vmem>>, vector<1x1x128xf32>,
    %84 = arith.mulf %78, %78 : vector<256x128xf32>
    %cst_77 = arith.constant dense<0.000000e+00> : vector<128xf32>
    %85 = vector.multi_reduction <add>, %84, %cst_77 [0] : vector<256x128xf32> to vector<128xf32>
    %86 = vector.shape_cast %85 : vector<128xf32> to vector<1x128xf32>
    %c0_78 = arith.constant 0 : index
    %c1_79 = arith.constant 1 : index
    %c0_80 = arith.constant 0 : index
    %87 = vector.load %arg8[%c0_78, %c1_79, %c0_80] : memref<1x2x128xf32, #tpu.memory_space<vmem>>, vector<1x1x128xf32>
    %88 = vector.shape_cast %87 : vector<1x1x128xf32> to vector<1x128xf32>
    %89 = vector.shape_cast %86 : vector<1x128xf32> to vector<1x1x128xf32>
    tpu.vector_store %arg8[%c0_78, %c1_79, %c0_80], %89 {strides = array<i32>} : memref<1x2x128xf32, #tpu.memory_space<vmem>>, vector<1x1x128xf32>,
    %90 = vector.shape_cast %78 : vector<256x128xf32> to vector<16x16x128xf32>
    %91 = arith.truncf %90 : vector<16x16x128xf32> to vector<16x16x128xbf16>
    %c0_81 = arith.constant 0 : index
    %c0_82 = arith.constant 0 : index
    %c0_83 = arith.constant 0 : index
    %c0_84 = arith.constant 0 : index
    %92 = vector.load %arg7[%c0_81, %c0_82, %c0_83, %c0_84] : memref<1x16x16x128xbf16, #tpu.memory_space<vmem>>, vector<1x16x16x128xbf16>
    %93 = vector.shape_cast %92 : vector<1x16x16x128xbf16> to vector<16x16x128xbf16>
    %94 = vector.shape_cast %91 : vector<16x16x128xbf16> to vector<1x16x16x128xbf16>
    tpu.vector_store %arg7[%c0_81, %c0_82, %c0_83, %c0_84], %94 {strides = array<i32>} : memref<1x16x16x128xbf16, #tpu.memory_space<vmem>>, vector<1x16x16x128xbf16>,
    return
  }
  func.func @transform_0(%arg0: i32) -> (i32, i32, i32, i32) {
    %c0_i32 = arith.constant 0 : i32
    %c0_i32_0 = arith.constant 0 : i32
    %c0_i32_1 = arith.constant 0 : i32
    %c0_i32_2 = arith.constant 0 : i32
    return %arg0, %c0_i32, %c0_i32_0, %c0_i32_1 : i32, i32, i32, i32
  }
  func.func @transform_1(%arg0: i32) -> (i32, i32, i32) {
    %c0_i32 = arith.constant 0 : i32
    %c0_i32_0 = arith.constant 0 : i32
    %c0_i32_1 = arith.constant 0 : i32
    %c0_i32_2 = arith.constant 0 : i32
    return %c0_i32, %c0_i32_0, %c0_i32_1 : i32, i32, i32
  }
  func.func @transform_2(%arg0: i32) -> (i32, i32) {
    %c0_i32 = arith.constant 0 : i32
    %c0_i32_0 = arith.constant 0 : i32
    %c0_i32_1 = arith.constant 0 : i32
    return %c0_i32, %c0_i32_0 : i32, i32
  }
  func.func @transform_3(%arg0: i32) -> (i32, i32) {
    %c0_i32 = arith.constant 0 : i32
    %c0_i32_0 = arith.constant 0 : i32
    %c0_i32_1 = arith.constant 0 : i32
    return %c0_i32, %c0_i32_0 : i32, i32
  }
  func.func @transform_4(%arg0: i32) -> (i32, i32) {
    %c0_i32 = arith.constant 0 : i32
    %c0_i32_0 = arith.constant 0 : i32
    %c0_i32_1 = arith.constant 0 : i32
    return %c0_i32, %c0_i32_0 : i32, i32
  }
  func.func @transform_5(%arg0: i32) -> i32 {
    %c0_i32 = arith.constant 0 : i32
    %c0_i32_0 = arith.constant 0 : i32
    return %c0_i32 : i32
  }
  func.func @transform_6(%arg0: i32) -> (i32, i32, i32, i32) {
    %c0_i32 = arith.constant 0 : i32
    %c0_i32_0 = arith.constant 0 : i32
    %c0_i32_1 = arith.constant 0 : i32
    %c0_i32_2 = arith.constant 0 : i32
    return %arg0, %c0_i32, %c0_i32_0, %c0_i32_1 : i32, i32, i32, i32
  }
  func.func @transform_7(%arg0: i32) -> (i32, i32, i32) {
    %c0_i32 = arith.constant 0 : i32
    %c0_i32_0 = arith.constant 0 : i32
    %c0_i32_1 = arith.constant 0 : i32
    return %arg0, %c0_i32, %c0_i32_0 : i32, i32, i32
  }
}

</mosaic_0001>

<llo_original>
// kernel: bottleneck_forward.5
$region0: #{bottleneck_forward.5}
  #allocation0 [shape = 'u32[]', space=smem, size = 0x4, offset = 0x4, fixed_abs, tag = 'smem constant byte address 0x4 - core index']
  #allocation1 [shape = 'u32[144,128]{1,0:T(1,128)}', space=vmem, size = 0x12000, scoped, tag = 'internal scratch']
  %s0 = inlined_call_operand.vmem [shape: bf16[2,16,16,128], index: 0, kind: input, shape index: {}]
  %s1 = inlined_call_operand.vmem [shape: f32[2,16,16,128], index: 1, kind: input, shape index: {}]
  %s2 = inlined_call_operand.vmem [shape: f32[1,128], index: 2, kind: input, shape index: {}]
  %s3 = inlined_call_operand.vmem [shape: f32[1,128], index: 3, kind: input, shape index: {}]
  %s4 = inlined_call_operand.vmem [shape: f32[2,16,16,128], index: 4, kind: output, shape index: {}]
  %s5 = sld [smem:[#allocation0]]
  $region49: #{bottleneck_forward.5} parent=0
    _
  %s7 = ssub.s32 1, %s5
  %s8 = scalar_select 0, %s7, %s5
  loop: start=0, step=1, limit=4
  $region2: #{bottleneck_forward.5} parent=0 // loop_pre_header
    _
  $region3: #{bottleneck_forward.5} parent=0 // loop_header
    %s10 = sphi 0, %s14
    %p11 = scmp.ge.s32.totalorder %s10, 4
    %s20 = sphi 0, %s22
    %s23 = sphi 0, %s20
    %s24 = sphi 0, %s23
    %s40 = sphi 0, %s24
    %s46 = sphi 0, %s48
    %s49 = sphi 0, %s46
    %s50 = sphi 0, %s49
    %s66 = sphi 0, %s50
    %s70 = sphi 0, %s70
    %s72 = sphi 0, %s70
    %s73 = sphi 0, %s72
    %s87 = sphi 0, %s73
    %s91 = sphi 0, %s91
    %s93 = sphi 0, %s91
    %s94 = sphi 0, %s93
    %s108 = sphi 0, %s94
    %s114 = sphi 0, %s116
    %s117 = sphi 0, %s114
    %s118 = sphi 0, %s117
    %s134 = sphi 0, %s118
  $region4: #{bottleneck_forward.5} parent=0 // loop_header_branch
    %13 = sbr.rel (%p11) target = $region8
  $region5: #{bottleneck_forward.5} parent=0 // loop_body
    %s15 = ssub.s32 %s10, 1
    %s16 = ssub.s32 %s10, 2
    %s17 = sadd.s32 %s10, 1
    %s18 = ssub.s32 %s10, %s17
    %p19 = scmp.eq.s32.totalorder %s18, 0
    %s21 = sadd.s32 %s20, 1
    %s22 = scalar_select %p19, %s20, %s21
    %p25 = pneg %p19
    %p26 = scmp.eq.s32.totalorder %s10, 1
    %p27 = por %p25, %p26
    %p28 = scmp.ne.s32.totalorder %s20, %s23
    %p29 = scmp.eq.s32.totalorder %s10, 0
    %p30 = por %p28, %p29
    %p31 = scmp.ne.s32.totalorder %s20, %s23
    %p32 = scmp.eq.s32.totalorder %s15, 1
    %p33 = por %p31, %p32
    %p34 = scmp.ne.s32.totalorder %s23, %s24
    %p35 = scmp.eq.s32.totalorder %s15, 0
    %p36 = por %p34, %p35
    %p37 = scmp.ne.s32.totalorder %s23, %s24
    %p38 = scmp.eq.s32.totalorder %s16, 1
    %p39 = por %p37, %p38
    %p41 = scmp.ne.s32.totalorder %s24, %s40
    %p42 = scmp.eq.s32.totalorder %s16, 0
    %p43 = por %p41, %p42
    %s44 = ssub.s32 %s10, %s17
    %p45 = scmp.eq.s32.totalorder %s44, 0
    %s47 = sadd.s32 %s46, 1
    %s48 = scalar_select %p45, %s46, %s47
    %p51 = pneg %p45
    %p52 = scmp.eq.s32.totalorder %s10, 1
    %p53 = por %p51, %p52
    %p54 = scmp.ne.s32.totalorder %s46, %s49
    %p55 = scmp.eq.s32.totalorder %s10, 0
    %p56 = por %p54, %p55
    %p57 = scmp.ne.s32.totalorder %s46, %s49
    %p58 = scmp.eq.s32.totalorder %s15, 1
    %p59 = por %p57, %p58
    %p60 = scmp.ne.s32.totalorder %s49, %s50
    %p61 = scmp.eq.s32.totalorder %s15, 0
    %p62 = por %p60, %p61
    %p63 = scmp.ne.s32.totalorder %s49, %s50
    %p64 = scmp.eq.s32.totalorder %s16, 1
    %p65 = por %p63, %p64
    %p67 = scmp.ne.s32.totalorder %s50, %s66
    %p68 = scmp.eq.s32.totalorder %s16, 0
    %p69 = por %p67, %p68
    %s71 = sadd.s32 %s70, 1
    %p74 = scmp.eq.s32.totalorder %s10, 1
    %p75 = scmp.ne.s32.totalorder %s70, %s72
    %p76 = scmp.eq.s32.totalorder %s10, 0
    %p77 = por %p75, %p76
    %p78 = scmp.ne.s32.totalorder %s70, %s72
    %p79 = scmp.eq.s32.totalorder %s15, 1
    %p80 = por %p78, %p79
    %p81 = scmp.ne.s32.totalorder %s72, %s73
    %p82 = scmp.eq.s32.totalorder %s15, 0
    %p83 = por %p81, %p82
    %p84 = scmp.ne.s32.totalorder %s72, %s73
    %p85 = scmp.eq.s32.totalorder %s16, 1
    %p86 = por %p84, %p85
    %p88 = scmp.ne.s32.totalorder %s73, %s87
    %p89 = scmp.eq.s32.totalorder %s16, 0
    %p90 = por %p88, %p89
    %s92 = sadd.s32 %s91, 1
    %p95 = scmp.eq.s32.totalorder %s10, 1
    %p96 = scmp.ne.s32.totalorder %s91, %s93
    %p97 = scmp.eq.s32.totalorder %s10, 0
    %p98 = por %p96, %p97
    %p99 = scmp.ne.s32.totalorder %s91, %s93
    %p100 = scmp.eq.s32.totalorder %s15, 1
    %p101 = por %p99, %p100
    %p102 = scmp.ne.s32.totalorder %s93, %s94
    %p103 = scmp.eq.s32.totalorder %s15, 0
    %p104 = por %p102, %p103
    %p105 = scmp.ne.s32.totalorder %s93, %s94
    %p106 = scmp.eq.s32.totalorder %s16, 1
    %p107 = por %p105, %p106
    %p109 = scmp.ne.s32.totalorder %s94, %s108
    %p110 = scmp.eq.s32.totalorder %s16, 0
    %p111 = por %p109, %p110
    %s112 = ssub.s32 %s10, %s17
    %p113 = scmp.eq.s32.totalorder %s112, 0
    %s115 = sadd.s32 %s114, 1
    %s116 = scalar_select %p113, %s114, %s115
    %p119 = pneg %p113
    %p120 = scmp.eq.s32.totalorder %s10, 1
    %p121 = por %p119, %p120
    %p122 = scmp.ne.s32.totalorder %s114, %s117
    %p123 = scmp.eq.s32.totalorder %s10, 0
    %p124 = por %p122, %p123
    %p125 = scmp.ne.s32.totalorder %s114, %s117
    %p126 = scmp.eq.s32.totalorder %s15, 1
    %p127 = por %p125, %p126
    %p128 = scmp.ne.s32.totalorder %s117, %s118
    %p129 = scmp.eq.s32.totalorder %s15, 0
    %p130 = por %p128, %p129
    %p131 = scmp.ne.s32.totalorder %s117, %s118
    %p132 = scmp.eq.s32.totalorder %s16, 1
    %p133 = por %p131, %p132
    %p135 = scmp.ne.s32.totalorder %s118, %s134
    %p136 = scmp.eq.s32.totalorder %s16, 0
    %p137 = por %p135, %p136
    %p138 = scmp.le.s32.totalorder 1, %s10
    %p139 = scmp.lt.s32.totalorder %s10, 3
    %p140 = pnand %p138, %p139
    %p141 = pneg %p140
    // Predicated region
    $region9: #{bottleneck_forward.5} parent=5 // pred_check
      _
    $region10: #{bottleneck_forward.5} parent=5 // pred_check_branch
      %143 = sbr.rel (%p140) target = $region12
    $region11: #{bottleneck_forward.5} parent=5 // pred_region
      %s144 = ssub.s32 %s10, 1
      // Predicated region
      $region13: #{bottleneck_forward.5} parent=11 // pred_check
        %p145 = pneg %p83
      $region14: #{bottleneck_forward.5} parent=11 // pred_check_branch
        %147 = sbr.rel (%p145) target = $region16
      $region15: #{bottleneck_forward.5} parent=11 // pred_region
        _
      $region16: #{bottleneck_forward.5} parent=11 // pred_fallthru
        _
      // Predicated region
      $region17: #{bottleneck_forward.5} parent=11 // pred_check
        %p148 = pneg %p104
      $region18: #{bottleneck_forward.5} parent=11 // pred_check_branch
        %150 = sbr.rel (%p148) target = $region20
      $region19: #{bottleneck_forward.5} parent=11 // pred_region
        _
      $region20: #{bottleneck_forward.5} parent=11 // pred_fallthru
        _
    $region12: #{bottleneck_forward.5} parent=5 // pred_fallthru
      _
    %p151 = scmp.lt.s32.totalorder %s10, 2
    // Predicated region
    $region21: #{bottleneck_forward.5} parent=5 // pred_check
      %p152 = pneg %p151
    $region22: #{bottleneck_forward.5} parent=5 // pred_check_branch
      %154 = sbr.rel (%p152) target = $region24
    $region23: #{bottleneck_forward.5} parent=5 // pred_region
      // Predicated region
      $region25: #{bottleneck_forward.5} parent=23 // pred_check
        %p155 = pneg %p30
      $region26: #{bottleneck_forward.5} parent=23 // pred_check_branch
        %157 = sbr.rel (%p155) target = $region28
      $region27: #{bottleneck_forward.5} parent=23 // pred_region
        %p158 = scmp.lt.s32.totalorder %s10, 1
        %s159 = scalar_select %p158, %s10, 1
        %s160 = smul.addr %s159, 32
        %s161 = smul.addr %s160, 4
        %s162 = scalar_lea.vmem %s0, %s161
      $region28: #{bottleneck_forward.5} parent=23 // pred_fallthru
        _
      // Predicated region
      $region29: #{bottleneck_forward.5} parent=23 // pred_check
        %p163 = pneg %p56
      $region30: #{bottleneck_forward.5} parent=23 // pred_check_branch
        %165 = sbr.rel (%p163) target = $region32
      $region31: #{bottleneck_forward.5} parent=23 // pred_region
        %p166 = scmp.lt.s32.totalorder %s10, 1
        %s167 = scalar_select %p166, %s10, 1
        %s168 = smul.addr %s167, 32
        %s169 = smul.addr %s168, 8
        %s170 = scalar_lea.vmem %s1, %s169
      $region32: #{bottleneck_forward.5} parent=23 // pred_fallthru
        _
    $region24: #{bottleneck_forward.5} parent=5 // pred_fallthru
      _
    %p171 = scmp.le.s32.totalorder 1, %s10
    %p172 = scmp.lt.s32.totalorder %s10, 3
    %p173 = pnand %p171, %p172
    %p174 = pneg %p173
    // Predicated region
    $region33: #{bottleneck_forward.5} parent=5 // pred_check
      _
    $region34: #{bottleneck_forward.5} parent=5 // pred_check_branch
      %176 = sbr.rel (%p173) target = $region36
    $region35: #{bottleneck_forward.5} parent=5 // pred_region
      %s177 = ssub.s32 %s10, 1
      %p178 = scmp.lt.s32.totalorder %s15, 1
      %s179 = scalar_select %p178, %s15, 1
      %s180 = smul.addr %s179, 32
      %s181 = smul.addr %s180, 4
      %s182 = scalar_lea.vmem %s0, %s181
      %p183 = pneg %p36
      %p184 = pneg %p33
      %p185 = scmp.lt.s32.totalorder %s15, 1
      %s186 = scalar_select %p185, %s15, 1
      %s187 = smul.addr %s186, 32
      %s188 = smul.addr %s187, 8
      %s189 = scalar_lea.vmem %s1, %s188
      %p190 = pneg %p62
      %p191 = pneg %p59
      %p192 = pneg %p83
      %p193 = pneg %p80
      %p194 = pneg %p104
      %p195 = pneg %p101
      %p196 = pneg %p130
      %p197 = pneg %p127
      %p198 = scmp.lt.s32.totalorder %s15, 1
      %s199 = scalar_select %p198, %s15, 1
      %s200 = smul.addr %s199, 32
      %s201 = smul.addr %s200, 8
      %s202 = scalar_lea.vmem %s4, %s201
      %p203 = scmp.lt.s32.totalorder %s15, 1
      %s204 = scalar_select %p203, %s15, 1
      %s205 = smul.addr %s204, 32
      %s206 = smul.addr %s205, 4
      %s207 = scalar_lea.vmem %s0, %s206
      %p208 = scmp.lt.s32.totalorder %s15, 1
      %s209 = scalar_select %p208, %s15, 1
      %s210 = smul.addr %s209, 32
      %s211 = smul.addr %s210, 8
      %s212 = scalar_lea.vmem %s1, %s211
      %p213 = scmp.lt.s32.totalorder %s15, 1
      %s214 = scalar_select %p213, %s15, 1
      %s215 = smul.addr %s214, 32
      %s216 = smul.addr %s215, 8
      %s217 = scalar_lea.vmem %s4, %s216
      %v218 = vld [vmem:[%s2] sm:$0x1]
      %v219 = vld [vmem:[%s3] sm:$0x1]
      %v220 = vld [vmem:[%s212] sm:$0xff]
      %v221 = vld [vmem:[%s212 + $0x8] sm:$0xff]
      %v222 = vld [vmem:[%s212 + $0x10] sm:$0xff]
      %v223 = vld [vmem:[%s212 + $0x18] sm:$0xff]
      %v224 = vld [vmem:[%s212 + $0x20] sm:$0xff]
      %v225 = vld [vmem:[%s212 + $0x28] sm:$0xff]
      %v226 = vld [vmem:[%s212 + $0x30] sm:$0xff]
      %v227 = vld [vmem:[%s212 + $0x38] sm:$0xff]
      %v228 = vld [vmem:[%s212 + $0x40] sm:$0xff]
      %v229 = vld [vmem:[%s212 + $0x48] sm:$0xff]
      %v230 = vld [vmem:[%s212 + $0x50] sm:$0xff]
      %v231 = vld [vmem:[%s212 + $0x58] sm:$0xff]
      %v232 = vld [vmem:[%s212 + $0x60] sm:$0xff]
      %v233 = vld [vmem:[%s212 + $0x68] sm:$0xff]
      %v234 = vld [vmem:[%s212 + $0x70] sm:$0xff]
      %v235 = vld [vmem:[%s212 + $0x78] sm:$0xff]
      %v236 = vld [vmem:[%s212 + $0x80] sm:$0xff]
      %v237 = vld [vmem:[%s212 + $0x88] sm:$0xff]
      %v238 = vld [vmem:[%s212 + $0x90] sm:$0xff]
      %v239 = vld [vmem:[%s212 + $0x98] sm:$0xff]
      %v240 = vld [vmem:[%s212 + $0xa0] sm:$0xff]
      %v241 = vld [vmem:[%s212 + $0xa8] sm:$0xff]
      %v242 = vld [vmem:[%s212 + $0xb0] sm:$0xff]
      %v243 = vld [vmem:[%s212 + $0xb8] sm:$0xff]
      %v244 = vld [vmem:[%s212 + $0xc0] sm:$0xff]
      %v245 = vld [vmem:[%s212 + $0xc8] sm:$0xff]
      %v246 = vld [vmem:[%s212 + $0xd0] sm:$0xff]
      %v247 = vld [vmem:[%s212 + $0xd8] sm:$0xff]
      %v248 = vld [vmem:[%s212 + $0xe0] sm:$0xff]
      %v249 = vld [vmem:[%s212 + $0xe8] sm:$0xff]
      %v250 = vld [vmem:[%s212 + $0xf0] sm:$0xff]
      %v251 = vld [vmem:[%s212 + $0xf8] sm:$0xff]
      %v252 = vld [vmem:[%s207] sm:$0xf]
      %v253 = vld [vmem:[%s207 + $0x4] sm:$0xf]
      %v254 = vld [vmem:[%s207 + $0x8] sm:$0xf]
      %v255 = vld [vmem:[%s207 + $0xc] sm:$0xf]
      %v256 = vld [vmem:[%s207 + $0x10] sm:$0xf]
      %v257 = vld [vmem:[%s207 + $0x14] sm:$0xf]
      %v258 = vld [vmem:[%s207 + $0x18] sm:$0xf]
      %v259 = vld [vmem:[%s207 + $0x1c] sm:$0xf]
      %v260 = vld [vmem:[%s207 + $0x20] sm:$0xf]
      %v261 = vld [vmem:[%s207 + $0x24] sm:$0xf]
      %v262 = vld [vmem:[%s207 + $0x28] sm:$0xf]
      %v263 = vld [vmem:[%s207 + $0x2c] sm:$0xf]
      %v264 = vld [vmem:[%s207 + $0x30] sm:$0xf]
      %v265 = vld [vmem:[%s207 + $0x34] sm:$0xf]
      %v266 = vld [vmem:[%s207 + $0x38] sm:$0xf]
      %v267 = vld [vmem:[%s207 + $0x3c] sm:$0xf]
      %v268 = vld [vmem:[%s207 + $0x40] sm:$0xf]
      %v269 = vld [vmem:[%s207 + $0x44] sm:$0xf]
      %v270 = vld [vmem:[%s207 + $0x48] sm:$0xf]
      %v271 = vld [vmem:[%s207 + $0x4c] sm:$0xf]
      %v272 = vld [vmem:[%s207 + $0x50] sm:$0xf]
      %v273 = vld [vmem:[%s207 + $0x54] sm:$0xf]
      %v274 = vld [vmem:[%s207 + $0x58] sm:$0xf]
      %v275 = vld [vmem:[%s207 + $0x5c] sm:$0xf]
      %v276 = vld [vmem:[%s207 + $0x60] sm:$0xf]
      %v277 = vld [vmem:[%s207 + $0x64] sm:$0xf]
      %v278 = vld [vmem:[%s207 + $0x68] sm:$0xf]
      %v279 = vld [vmem:[%s207 + $0x6c] sm:$0xf]
      %v280 = vld [vmem:[%s207 + $0x70] sm:$0xf]
      %v281 = vld [vmem:[%s207 + $0x74] sm:$0xf]
      %v282 = vld [vmem:[%s207 + $0x78] sm:$0xf]
      %v283 = vld [vmem:[%s207 + $0x7c] sm:$0xf]
      %v284 = vunpack.c.l.bf16 %v252
      %v285 = vunpack.c.l.bf16 %v253
      %v286 = vunpack.c.l.bf16 %v254
      %v287 = vunpack.c.l.bf16 %v255
      %v288 = vunpack.c.l.bf16 %v256
      %v289 = vunpack.c.l.bf16 %v257
      %v290 = vunpack.c.l.bf16 %v258
      %v291 = vunpack.c.l.bf16 %v259
      %v292 = vunpack.c.l.bf16 %v260
      %v293 = vunpack.c.l.bf16 %v261
      %v294 = vunpack.c.l.bf16 %v262
      %v295 = vunpack.c.l.bf16 %v263
      %v296 = vunpack.c.l.bf16 %v264
      %v297 = vunpack.c.l.bf16 %v265
      %v298 = vunpack.c.l.bf16 %v266
      %v299 = vunpack.c.l.bf16 %v267
      %v300 = vunpack.c.l.bf16 %v268
      %v301 = vunpack.c.l.bf16 %v269
      %v302 = vunpack.c.l.bf16 %v270
      %v303 = vunpack.c.l.bf16 %v271
      %v304 = vunpack.c.l.bf16 %v272
      %v305 = vunpack.c.l.bf16 %v273
      %v306 = vunpack.c.l.bf16 %v274
      %v307 = vunpack.c.l.bf16 %v275
      %v308 = vunpack.c.l.bf16 %v276
      %v309 = vunpack.c.l.bf16 %v277
      %v310 = vunpack.c.l.bf16 %v278
      %v311 = vunpack.c.l.bf16 %v279
      %v312 = vunpack.c.l.bf16 %v280
      %v313 = vunpack.c.l.bf16 %v281
      %v314 = vunpack.c.l.bf16 %v282
      %v315 = vunpack.c.l.bf16 %v283
      %v317 = vlaneseq
      %v318 = vshrl.u32 %v317, 7
      %v319 = vsub.s32 0, %v318
      %v320 = vrot.slane %v218, %v319
      %v322 = vmul.f32 %v284, %v320
      %v323 = vmul.f32 %v285, %v320
      %v324 = vmul.f32 %v286, %v320
      %v325 = vmul.f32 %v287, %v320
      %v326 = vmul.f32 %v288, %v320
      %v327 = vmul.f32 %v289, %v320
      %v328 = vmul.f32 %v290, %v320
      %v329 = vmul.f32 %v291, %v320
      %v330 = vmul.f32 %v292, %v320
      %v331 = vmul.f32 %v293, %v320
      %v332 = vmul.f32 %v294, %v320
      %v333 = vmul.f32 %v295, %v320
      %v334 = vmul.f32 %v296, %v320
      %v335 = vmul.f32 %v297, %v320
      %v336 = vmul.f32 %v298, %v320
      %v337 = vmul.f32 %v299, %v320
      %v338 = vmul.f32 %v300, %v320
      %v339 = vmul.f32 %v301, %v320
      %v340 = vmul.f32 %v302, %v320
      %v341 = vmul.f32 %v303, %v320
      %v342 = vmul.f32 %v304, %v320
      %v343 = vmul.f32 %v305, %v320
      %v344 = vmul.f32 %v306, %v320
      %v345 = vmul.f32 %v307, %v320
      %v346 = vmul.f32 %v308, %v320
      %v347 = vmul.f32 %v309, %v320
      %v348 = vmul.f32 %v310, %v320
      %v349 = vmul.f32 %v311, %v320
      %v350 = vmul.f32 %v312, %v320
      %v351 = vmul.f32 %v313, %v320
      %v352 = vmul.f32 %v314, %v320
      %v353 = vmul.f32 %v315, %v320
      %v354 = vadd.f32 %v220, %v322
      %v355 = vadd.f32 %v221, %v323
      %v356 = vadd.f32 %v222, %v324
      %v357 = vadd.f32 %v223, %v325
      %v358 = vadd.f32 %v224, %v326
      %v359 = vadd.f32 %v225, %v327
      %v360 = vadd.f32 %v226, %v328
      %v361 = vadd.f32 %v227, %v329
      %v362 = vadd.f32 %v228, %v330
      %v363 = vadd.f32 %v229, %v331
      %v364 = vadd.f32 %v230, %v332
      %v365 = vadd.f32 %v231, %v333
      %v366 = vadd.f32 %v232, %v334
      %v367 = vadd.f32 %v233, %v335
      %v368 = vadd.f32 %v234, %v336
      %v369 = vadd.f32 %v235, %v337
      %v370 = vadd.f32 %v236, %v338
      %v371 = vadd.f32 %v237, %v339
      %v372 = vadd.f32 %v238, %v340
      %v373 = vadd.f32 %v239, %v341
      %v374 = vadd.f32 %v240, %v342
      %v375 = vadd.f32 %v241, %v343
      %v376 = vadd.f32 %v242, %v344
      %v377 = vadd.f32 %v243, %v345
      %v378 = vadd.f32 %v244, %v346
      %v379 = vadd.f32 %v245, %v347
      %v380 = vadd.f32 %v246, %v348
      %v381 = vadd.f32 %v247, %v349
      %v382 = vadd.f32 %v248, %v350
      %v383 = vadd.f32 %v249, %v351
      %v384 = vadd.f32 %v250, %v352
      %v385 = vadd.f32 %v251, %v353
      %v387 = vlaneseq
      %v388 = vshrl.u32 %v387, 7
      %v389 = vsub.s32 0, %v388
      %v390 = vrot.slane %v219, %v389
      %v392 = vadd.f32 %v354, %v390
      %v393 = vadd.f32 %v355, %v390
      %v394 = vadd.f32 %v356, %v390
      %v395 = vadd.f32 %v357, %v390
      %v396 = vadd.f32 %v358, %v390
      %v397 = vadd.f32 %v359, %v390
      %v398 = vadd.f32 %v360, %v390
      %v399 = vadd.f32 %v361, %v390
      %v400 = vadd.f32 %v362, %v390
      %v401 = vadd.f32 %v363, %v390
      %v402 = vadd.f32 %v364, %v390
      %v403 = vadd.f32 %v365, %v390
      %v404 = vadd.f32 %v366, %v390
      %v405 = vadd.f32 %v367, %v390
      %v406 = vadd.f32 %v368, %v390
      %v407 = vadd.f32 %v369, %v390
      %v408 = vadd.f32 %v370, %v390
      %v409 = vadd.f32 %v371, %v390
      %v410 = vadd.f32 %v372, %v390
      %v411 = vadd.f32 %v373, %v390
      %v412 = vadd.f32 %v374, %v390
      %v413 = vadd.f32 %v375, %v390
      %v414 = vadd.f32 %v376, %v390
      %v415 = vadd.f32 %v377, %v390
      %v416 = vadd.f32 %v378, %v390
      %v417 = vadd.f32 %v379, %v390
      %v418 = vadd.f32 %v380, %v390
      %v419 = vadd.f32 %v381, %v390
      %v420 = vadd.f32 %v382, %v390
      %v421 = vadd.f32 %v383, %v390
      %v422 = vadd.f32 %v384, %v390
      %v423 = vadd.f32 %v385, %v390
      %424 = vst [vmem:[%s217] sm:$0xff] %v392
      %425 = vst [vmem:[%s217 + $0x8] sm:$0xff] %v393
      %426 = vst [vmem:[%s217 + $0x10] sm:$0xff] %v394
      %427 = vst [vmem:[%s217 + $0x18] sm:$0xff] %v395
      %428 = vst [vmem:[%s217 + $0x20] sm:$0xff] %v396
      %429 = vst [vmem:[%s217 + $0x28] sm:$0xff] %v397
      %430 = vst [vmem:[%s217 + $0x30] sm:$0xff] %v398
      %431 = vst [vmem:[%s217 + $0x38] sm:$0xff] %v399
      %432 = vst [vmem:[%s217 + $0x40] sm:$0xff] %v400
      %433 = vst [vmem:[%s217 + $0x48] sm:$0xff] %v401
      %434 = vst [vmem:[%s217 + $0x50] sm:$0xff] %v402
      %435 = vst [vmem:[%s217 + $0x58] sm:$0xff] %v403
      %436 = vst [vmem:[%s217 + $0x60] sm:$0xff] %v404
      %437 = vst [vmem:[%s217 + $0x68] sm:$0xff] %v405
      %438 = vst [vmem:[%s217 + $0x70] sm:$0xff] %v406
      %439 = vst [vmem:[%s217 + $0x78] sm:$0xff] %v407
      %440 = vst [vmem:[%s217 + $0x80] sm:$0xff] %v408
      %441 = vst [vmem:[%s217 + $0x88] sm:$0xff] %v409
      %442 = vst [vmem:[%s217 + $0x90] sm:$0xff] %v410
      %443 = vst [vmem:[%s217 + $0x98] sm:$0xff] %v411
      %444 = vst [vmem:[%s217 + $0xa0] sm:$0xff] %v412
      %445 = vst [vmem:[%s217 + $0xa8] sm:$0xff] %v413
      %446 = vst [vmem:[%s217 + $0xb0] sm:$0xff] %v414
      %447 = vst [vmem:[%s217 + $0xb8] sm:$0xff] %v415
      %448 = vst [vmem:[%s217 + $0xc0] sm:$0xff] %v416
      %449 = vst [vmem:[%s217 + $0xc8] sm:$0xff] %v417
      %450 = vst [vmem:[%s217 + $0xd0] sm:$0xff] %v418
      %451 = vst [vmem:[%s217 + $0xd8] sm:$0xff] %v419
      %452 = vst [vmem:[%s217 + $0xe0] sm:$0xff] %v420
      %453 = vst [vmem:[%s217 + $0xe8] sm:$0xff] %v421
      %454 = vst [vmem:[%s217 + $0xf0] sm:$0xff] %v422
      %455 = vst [vmem:[%s217 + $0xf8] sm:$0xff] %v423
      %p456 = scmp.lt.s32.totalorder %s15, 1
      %s457 = scalar_select %p456, %s15, 1
      %s458 = smul.addr %s457, 32
      %s459 = smul.addr %s458, 8
      %s460 = scalar_lea.vmem %s4, %s459
      // Predicated region
      $region37: #{bottleneck_forward.5} parent=35 // pred_check
        %p461 = pneg %p127
      $region38: #{bottleneck_forward.5} parent=35 // pred_check_branch
        %463 = sbr.rel (%p461) target = $region40
      $region39: #{bottleneck_forward.5} parent=35 // pred_region
        _
      $region40: #{bottleneck_forward.5} parent=35 // pred_fallthru
        _
    $region36: #{bottleneck_forward.5} parent=5 // pred_fallthru
      _
    %p464 = scmp.le.s32.totalorder 2, %s10
    // Predicated region
    $region41: #{bottleneck_forward.5} parent=5 // pred_check
      %p465 = pneg %p464
    $region42: #{bottleneck_forward.5} parent=5 // pred_check_branch
      %467 = sbr.rel (%p465) target = $region44
    $region43: #{bottleneck_forward.5} parent=5 // pred_region
      %s468 = ssub.s32 %s10, 2
      // Predicated region
      $region45: #{bottleneck_forward.5} parent=43 // pred_check
        %p469 = pneg %p133
      $region46: #{bottleneck_forward.5} parent=43 // pred_check_branch
        %471 = sbr.rel (%p469) target = $region48
      $region47: #{bottleneck_forward.5} parent=43 // pred_region
        %p472 = scmp.lt.s32.totalorder %s16, 1
        %s473 = scalar_select %p472, %s16, 1
        %s474 = smul.addr %s473, 32
        %s475 = smul.addr %s474, 8
        %s476 = scalar_lea.vmem %s4, %s475
      $region48: #{bottleneck_forward.5} parent=43 // pred_fallthru
        _
    $region44: #{bottleneck_forward.5} parent=5 // pred_fallthru
      _
  $region6: #{bottleneck_forward.5} parent=0 // loop_footer
    %s14 = sadd.s32 1, %s10
  $region7: #{bottleneck_forward.5} parent=0 // loop_footer_branch
    %9 = sbr.rel target = $region3
  $region8: #{bottleneck_forward.5} parent=0 // loop_exit
    _

// kernel: bottleneck_forward.3
$region0: #{bottleneck_forward.3}
  #allocation0 [shape = 'u32[]', space=smem, size = 0x4, offset = 0x4, fixed_abs, tag = 'smem constant byte address 0x4 - core index']
  #allocation1 [shape = 'u32[144,128]{1,0:T(1,128)}', space=vmem, size = 0x12000, scoped, tag = 'internal scratch']
  #allocation2 [shape = 'bf16[18,18,128]{2,1,0:T(8,128)(2,1)}', space=vmem, size = 0x1b000, scoped, tag = 'scratch operand']
  %s0 = inlined_call_operand.vmem [shape: f32[2,16,16,128], index: 0, kind: input, shape index: {}]
  %s1 = inlined_call_operand.vmem [shape: bf16[9,128,128], index: 1, kind: input, shape index: {}]
  %s2 = inlined_call_operand.vmem [shape: f32[1,128], index: 2, kind: input, shape index: {}]
  %s3 = inlined_call_operand.vmem [shape: bf16[2,16,16,128], index: 3, kind: output, shape index: {0}]
  %s4 = inlined_call_operand.vmem [shape: f32[2,2,128], index: 4, kind: output, shape index: {1}]
  %5 = xla_tuple %s3, %s4
  %s6 = sld [smem:[#allocation0]]
  $region53: #{bottleneck_forward.3} parent=0
    _
  %s8 = ssub.s32 1, %s6
  %s9 = scalar_select 0, %s8, %s6
  loop: start=0, step=1, limit=4
  $region2: #{bottleneck_forward.3} parent=0 // loop_pre_header
    _
  $region3: #{bottleneck_forward.3} parent=0 // loop_header
    %s11 = sphi 0, %s15
    %p12 = scmp.ge.s32.totalorder %s11, 4
    %s21 = sphi 0, %s23
    %s24 = sphi 0, %s21
    %s25 = sphi 0, %s24
    %s41 = sphi 0, %s25
    %s45 = sphi 0, %s45
    %s47 = sphi 0, %s45
    %s48 = sphi 0, %s47
    %s62 = sphi 0, %s48
    %s66 = sphi 0, %s66
    %s68 = sphi 0, %s66
    %s69 = sphi 0, %s68
    %s83 = sphi 0, %s69
    %s89 = sphi 0, %s91
    %s92 = sphi 0, %s89
    %s93 = sphi 0, %s92
    %s109 = sphi 0, %s93
    %s115 = sphi 0, %s117
    %s118 = sphi 0, %s115
    %s119 = sphi 0, %s118
    %s135 = sphi 0, %s119
  $region4: #{bottleneck_forward.3} parent=0 // loop_header_branch
    %14 = sbr.rel (%p12) target = $region8
  $region5: #{bottleneck_forward.3} parent=0 // loop_body
    %s16 = ssub.s32 %s11, 1
    %s17 = ssub.s32 %s11, 2
    %s18 = sadd.s32 %s11, 1
    %s19 = ssub.s32 %s11, %s18
    %p20 = scmp.eq.s32.totalorder %s19, 0
    %s22 = sadd.s32 %s21, 1
    %s23 = scalar_select %p20, %s21, %s22
    %p26 = pneg %p20
    %p27 = scmp.eq.s32.totalorder %s11, 1
    %p28 = por %p26, %p27
    %p29 = scmp.ne.s32.totalorder %s21, %s24
    %p30 = scmp.eq.s32.totalorder %s11, 0
    %p31 = por %p29, %p30
    %p32 = scmp.ne.s32.totalorder %s21, %s24
    %p33 = scmp.eq.s32.totalorder %s16, 1
    %p34 = por %p32, %p33
    %p35 = scmp.ne.s32.totalorder %s24, %s25
    %p36 = scmp.eq.s32.totalorder %s16, 0
    %p37 = por %p35, %p36
    %p38 = scmp.ne.s32.totalorder %s24, %s25
    %p39 = scmp.eq.s32.totalorder %s17, 1
    %p40 = por %p38, %p39
    %p42 = scmp.ne.s32.totalorder %s25, %s41
    %p43 = scmp.eq.s32.totalorder %s17, 0
    %p44 = por %p42, %p43
    %s46 = sadd.s32 %s45, 1
    %p49 = scmp.eq.s32.totalorder %s11, 1
    %p50 = scmp.ne.s32.totalorder %s45, %s47
    %p51 = scmp.eq.s32.totalorder %s11, 0
    %p52 = por %p50, %p51
    %p53 = scmp.ne.s32.totalorder %s45, %s47
    %p54 = scmp.eq.s32.totalorder %s16, 1
    %p55 = por %p53, %p54
    %p56 = scmp.ne.s32.totalorder %s47, %s48
    %p57 = scmp.eq.s32.totalorder %s16, 0
    %p58 = por %p56, %p57
    %p59 = scmp.ne.s32.totalorder %s47, %s48
    %p60 = scmp.eq.s32.totalorder %s17, 1
    %p61 = por %p59, %p60
    %p63 = scmp.ne.s32.totalorder %s48, %s62
    %p64 = scmp.eq.s32.totalorder %s17, 0
    %p65 = por %p63, %p64
    %s67 = sadd.s32 %s66, 1
    %p70 = scmp.eq.s32.totalorder %s11, 1
    %p71 = scmp.ne.s32.totalorder %s66, %s68
    %p72 = scmp.eq.s32.totalorder %s11, 0
    %p73 = por %p71, %p72
    %p74 = scmp.ne.s32.totalorder %s66, %s68
    %p75 = scmp.eq.s32.totalorder %s16, 1
    %p76 = por %p74, %p75
    %p77 = scmp.ne.s32.totalorder %s68, %s69
    %p78 = scmp.eq.s32.totalorder %s16, 0
    %p79 = por %p77, %p78
    %p80 = scmp.ne.s32.totalorder %s68, %s69
    %p81 = scmp.eq.s32.totalorder %s17, 1
    %p82 = por %p80, %p81
    %p84 = scmp.ne.s32.totalorder %s69, %s83
    %p85 = scmp.eq.s32.totalorder %s17, 0
    %p86 = por %p84, %p85
    %s87 = ssub.s32 %s11, %s18
    %p88 = scmp.eq.s32.totalorder %s87, 0
    %s90 = sadd.s32 %s89, 1
    %s91 = scalar_select %p88, %s89, %s90
    %p94 = pneg %p88
    %p95 = scmp.eq.s32.totalorder %s11, 1
    %p96 = por %p94, %p95
    %p97 = scmp.ne.s32.totalorder %s89, %s92
    %p98 = scmp.eq.s32.totalorder %s11, 0
    %p99 = por %p97, %p98
    %p100 = scmp.ne.s32.totalorder %s89, %s92
    %p101 = scmp.eq.s32.totalorder %s16, 1
    %p102 = por %p100, %p101
    %p103 = scmp.ne.s32.totalorder %s92, %s93
    %p104 = scmp.eq.s32.totalorder %s16, 0
    %p105 = por %p103, %p104
    %p106 = scmp.ne.s32.totalorder %s92, %s93
    %p107 = scmp.eq.s32.totalorder %s17, 1
    %p108 = por %p106, %p107
    %p110 = scmp.ne.s32.totalorder %s93, %s109
    %p111 = scmp.eq.s32.totalorder %s17, 0
    %p112 = por %p110, %p111
    %s113 = ssub.s32 %s11, %s18
    %p114 = scmp.eq.s32.totalorder %s113, 0
    %s116 = sadd.s32 %s115, 1
    %s117 = scalar_select %p114, %s115, %s116
    %p120 = pneg %p114
    %p121 = scmp.eq.s32.totalorder %s11, 1
    %p122 = por %p120, %p121
    %p123 = scmp.ne.s32.totalorder %s115, %s118
    %p124 = scmp.eq.s32.totalorder %s11, 0
    %p125 = por %p123, %p124
    %p126 = scmp.ne.s32.totalorder %s115, %s118
    %p127 = scmp.eq.s32.totalorder %s16, 1
    %p128 = por %p126, %p127
    %p129 = scmp.ne.s32.totalorder %s118, %s119
    %p130 = scmp.eq.s32.totalorder %s16, 0
    %p131 = por %p129, %p130
    %p132 = scmp.ne.s32.totalorder %s118, %s119
    %p133 = scmp.eq.s32.totalorder %s17, 1
    %p134 = por %p132, %p133
    %p136 = scmp.ne.s32.totalorder %s119, %s135
    %p137 = scmp.eq.s32.totalorder %s17, 0
    %p138 = por %p136, %p137
    %p139 = scmp.le.s32.totalorder 1, %s11
    %p140 = scmp.lt.s32.totalorder %s11, 3
    %p141 = pnand %p139, %p140
    %p142 = pneg %p141
    // Predicated region
    $region9: #{bottleneck_forward.3} parent=5 // pred_check
      _
    $region10: #{bottleneck_forward.3} parent=5 // pred_check_branch
      %144 = sbr.rel (%p141) target = $region12
    $region11: #{bottleneck_forward.3} parent=5 // pred_region
      %s145 = ssub.s32 %s11, 1
      // Predicated region
      $region13: #{bottleneck_forward.3} parent=11 // pred_check
        %p146 = pneg %p58
      $region14: #{bottleneck_forward.3} parent=11 // pred_check_branch
        %148 = sbr.rel (%p146) target = $region16
      $region15: #{bottleneck_forward.3} parent=11 // pred_region
        _
      $region16: #{bottleneck_forward.3} parent=11 // pred_fallthru
        _
      // Predicated region
      $region17: #{bottleneck_forward.3} parent=11 // pred_check
        %p149 = pneg %p79
      $region18: #{bottleneck_forward.3} parent=11 // pred_check_branch
        %151 = sbr.rel (%p149) target = $region20
      $region19: #{bottleneck_forward.3} parent=11 // pred_region
        _
      $region20: #{bottleneck_forward.3} parent=11 // pred_fallthru
        _
    $region12: #{bottleneck_forward.3} parent=5 // pred_fallthru
      _
    %p152 = scmp.lt.s32.totalorder %s11, 2
    // Predicated region
    $region21: #{bottleneck_forward.3} parent=5 // pred_check
      %p153 = pneg %p152
    $region22: #{bottleneck_forward.3} parent=5 // pred_check_branch
      %155 = sbr.rel (%p153) target = $region24
    $region23: #{bottleneck_forward.3} parent=5 // pred_region
      // Predicated region
      $region25: #{bottleneck_forward.3} parent=23 // pred_check
        %p156 = pneg %p31
      $region26: #{bottleneck_forward.3} parent=23 // pred_check_branch
        %158 = sbr.rel (%p156) target = $region28
      $region27: #{bottleneck_forward.3} parent=23 // pred_region
        %p159 = scmp.lt.s32.totalorder %s11, 1
        %s160 = scalar_select %p159, %s11, 1
        %s161 = smul.addr %s160, 32
        %s162 = smul.addr %s161, 8
        %s163 = scalar_lea.vmem %s0, %s162
      $region28: #{bottleneck_forward.3} parent=23 // pred_fallthru
        _
    $region24: #{bottleneck_forward.3} parent=5 // pred_fallthru
      _
    %p164 = scmp.le.s32.totalorder 1, %s11
    %p165 = scmp.lt.s32.totalorder %s11, 3
    %p166 = pnand %p164, %p165
    %p167 = pneg %p166
    // Predicated region
    $region29: #{bottleneck_forward.3} parent=5 // pred_check
      _
    $region30: #{bottleneck_forward.3} parent=5 // pred_check_branch
      %169 = sbr.rel (%p166) target = $region32
    $region31: #{bottleneck_forward.3} parent=5 // pred_region
      %s170 = ssub.s32 %s11, 1
      %p171 = scmp.lt.s32.totalorder %s16, 1
      %s172 = scalar_select %p171, %s16, 1
      %s173 = smul.addr %s172, 32
      %s174 = smul.addr %s173, 8
      %s175 = scalar_lea.vmem %s0, %s174
      %p176 = pneg %p37
      %p177 = pneg %p34
      %p178 = pneg %p58
      %p179 = pneg %p55
      %p180 = pneg %p79
      %p181 = pneg %p76
      %p182 = pneg %p105
      %p183 = pneg %p102
      %p184 = scmp.lt.s32.totalorder %s16, 1
      %s185 = scalar_select %p184, %s16, 1
      %s186 = smul.addr %s185, 32
      %s187 = smul.addr %s186, 4
      %s188 = scalar_lea.vmem %s3, %s187
      %p189 = pneg %p131
      %p190 = pneg %p128
      %p191 = scmp.lt.s32.totalorder %s16, 1
      %s192 = scalar_select %p191, %s16, 1
      %s193 = smul.addr %s192, 2
      %s194 = scalar_lea.vmem %s4, %s193
      %p195 = scmp.lt.s32.totalorder %s16, 1
      %s196 = scalar_select %p195, %s16, 1
      %s197 = smul.addr %s196, 32
      %s198 = smul.addr %s197, 8
      %s199 = scalar_lea.vmem %s0, %s198
      %p200 = scmp.lt.s32.totalorder %s16, 1
      %s201 = scalar_select %p200, %s16, 1
      %s202 = smul.addr %s201, 32
      %s203 = smul.addr %s202, 4
      %s204 = scalar_lea.vmem %s3, %s203
      %p205 = scmp.lt.s32.totalorder %s16, 1
      %s206 = scalar_select %p205, %s16, 1
      %s207 = smul.addr %s206, 2
      %s208 = scalar_lea.vmem %s4, %s207
      %210 = vst [vmem:[#allocation2] sm:$0xf] 0
      %211 = vst [vmem:[#allocation2 + $0x4] sm:$0xf] 0
      %212 = vst [vmem:[#allocation2 + $0x8] sm:$0x1] 0
      %213 = vst [vmem:[#allocation2 + $0xc] sm:$0xf] 0
      %214 = vst [vmem:[#allocation2 + $0x10] sm:$0xf] 0
      %215 = vst [vmem:[#allocation2 + $0x14] sm:$0x1] 0
      %216 = vst [vmem:[#allocation2 + $0x18] sm:$0xf] 0
      %217 = vst [vmem:[#allocation2 + $0x1c] sm:$0xf] 0
      %218 = vst [vmem:[#allocation2 + $0x20] sm:$0x1] 0
      %219 = vst [vmem:[#allocation2 + $0x24] sm:$0xf] 0
      %220 = vst [vmem:[#allocation2 + $0x28] sm:$0xf] 0
      %221 = vst [vmem:[#allocation2 + $0x2c] sm:$0x1] 0
      %222 = vst [vmem:[#allocation2 + $0x30] sm:$0xf] 0
      %223 = vst [vmem:[#allocation2 + $0x34] sm:$0xf] 0
      %224 = vst [vmem:[#allocation2 + $0x38] sm:$0x1] 0
      %225 = vst [vmem:[#allocation2 + $0x3c] sm:$0xf] 0
      %226 = vst [vmem:[#allocation2 + $0x40] sm:$0xf] 0
      %227 = vst [vmem:[#allocation2 + $0x44] sm:$0x1] 0
      %228 = vst [vmem:[#allocation2 + $0x48] sm:$0xf] 0
      %229 = vst [vmem:[#allocation2 + $0x4c] sm:$0xf] 0
      %230 = vst [vmem:[#allocation2 + $0x50] sm:$0x1] 0
      %231 = vst [vmem:[#allocation2 + $0x54] sm:$0xf] 0
      %232 = vst [vmem:[#allocation2 + $0x58] sm:$0xf] 0
      %233 = vst [vmem:[#allocation2 + $0x5c] sm:$0x1] 0
      %234 = vst [vmem:[#allocation2 + $0x60] sm:$0xf] 0
      %235 = vst [vmem:[#allocation2 + $0x64] sm:$0xf] 0
      %236 = vst [vmem:[#allocation2 + $0x68] sm:$0x1] 0
      %237 = vst [vmem:[#allocation2 + $0x6c] sm:$0xf] 0
      %238 = vst [vmem:[#allocation2 + $0x70] sm:$0xf] 0
      %239 = vst [vmem:[#allocation2 + $0x74] sm:$0x1] 0
      %240 = vst [vmem:[#allocation2 + $0x78] sm:$0xf] 0
      %241 = vst [vmem:[#allocation2 + $0x7c] sm:$0xf] 0
      %242 = vst [vmem:[#allocation2 + $0x80] sm:$0x1] 0
      %243 = vst [vmem:[#allocation2 + $0x84] sm:$0xf] 0
      %244 = vst [vmem:[#allocation2 + $0x88] sm:$0xf] 0
      %245 = vst [vmem:[#allocation2 + $0x8c] sm:$0x1] 0
      %246 = vst [vmem:[#allocation2 + $0x90] sm:$0xf] 0
      %247 = vst [vmem:[#allocation2 + $0x94] sm:$0xf] 0
      %248 = vst [vmem:[#allocation2 + $0x98] sm:$0x1] 0
      %249 = vst [vmem:[#allocation2 + $0x9c] sm:$0xf] 0
      %250 = vst [vmem:[#allocation2 + $0xa0] sm:$0xf] 0
      %251 = vst [vmem:[#allocation2 + $0xa4] sm:$0x1] 0
      %252 = vst [vmem:[#allocation2 + $0xa8] sm:$0xf] 0
      %253 = vst [vmem:[#allocation2 + $0xac] sm:$0xf] 0
      %254 = vst [vmem:[#allocation2 + $0xb0] sm:$0x1] 0
      %255 = vst [vmem:[#allocation2 + $0xb4] sm:$0xf] 0
      %256 = vst [vmem:[#allocation2 + $0xb8] sm:$0xf] 0
      %257 = vst [vmem:[#allocation2 + $0xbc] sm:$0x1] 0
      %258 = vst [vmem:[#allocation2 + $0xc0] sm:$0xf] 0
      %259 = vst [vmem:[#allocation2 + $0xc4] sm:$0xf] 0
      %260 = vst [vmem:[#allocation2 + $0xc8] sm:$0x1] 0
      %261 = vst [vmem:[#allocation2 + $0xcc] sm:$0xf] 0
      %262 = vst [vmem:[#allocation2 + $0xd0] sm:$0xf] 0
      %263 = vst [vmem:[#allocation2 + $0xd4] sm:$0x1] 0
      %v264 = vld [vmem:[%s199] sm:$0xff]
      %v265 = vld [vmem:[%s199 + $0x8] sm:$0xff]
      %v266 = vld [vmem:[%s199 + $0x10] sm:$0xff]
      %v267 = vld [vmem:[%s199 + $0x18] sm:$0xff]
      %v268 = vld [vmem:[%s199 + $0x20] sm:$0xff]
      %v269 = vld [vmem:[%s199 + $0x28] sm:$0xff]
      %v270 = vld [vmem:[%s199 + $0x30] sm:$0xff]
      %v271 = vld [vmem:[%s199 + $0x38] sm:$0xff]
      %v272 = vld [vmem:[%s199 + $0x40] sm:$0xff]
      %v273 = vld [vmem:[%s199 + $0x48] sm:$0xff]
      %v274 = vld [vmem:[%s199 + $0x50] sm:$0xff]
      %v275 = vld [vmem:[%s199 + $0x58] sm:$0xff]
      %v276 = vld [vmem:[%s199 + $0x60] sm:$0xff]
      %v277 = vld [vmem:[%s199 + $0x68] sm:$0xff]
      %v278 = vld [vmem:[%s199 + $0x70] sm:$0xff]
      %v279 = vld [vmem:[%s199 + $0x78] sm:$0xff]
      %v280 = vld [vmem:[%s199 + $0x80] sm:$0xff]
      %v281 = vld [vmem:[%s199 + $0x88] sm:$0xff]
      %v282 = vld [vmem:[%s199 + $0x90] sm:$0xff]
      %v283 = vld [vmem:[%s199 + $0x98] sm:$0xff]
      %v284 = vld [vmem:[%s199 + $0xa0] sm:$0xff]
      %v285 = vld [vmem:[%s199 + $0xa8] sm:$0xff]
      %v286 = vld [vmem:[%s199 + $0xb0] sm:$0xff]
      %v287 = vld [vmem:[%s199 + $0xb8] sm:$0xff]
      %v288 = vld [vmem:[%s199 + $0xc0] sm:$0xff]
      %v289 = vld [vmem:[%s199 + $0xc8] sm:$0xff]
      %v290 = vld [vmem:[%s199 + $0xd0] sm:$0xff]
      %v291 = vld [vmem:[%s199 + $0xd8] sm:$0xff]
      %v292 = vld [vmem:[%s199 + $0xe0] sm:$0xff]
      %v293 = vld [vmem:[%s199 + $0xe8] sm:$0xff]
      %v294 = vld [vmem:[%s199 + $0xf0] sm:$0xff]
      %v295 = vld [vmem:[%s199 + $0xf8] sm:$0xff]
      %v296 = vpack.c.bf16 %v265, %v264
      %v297 = vpack.c.bf16 %v267, %v266
      %v298 = vpack.c.bf16 %v269, %v268
      %v299 = vpack.c.bf16 %v271, %v270
      %v300 = vpack.c.bf16 %v273, %v272
      %v301 = vpack.c.bf16 %v275, %v274
      %v302 = vpack.c.bf16 %v277, %v276
      %v303 = vpack.c.bf16 %v279, %v278
      %v304 = vpack.c.bf16 %v281, %v280
      %v305 = vpack.c.bf16 %v283, %v282
      %v306 = vpack.c.bf16 %v285, %v284
      %v307 = vpack.c.bf16 %v287, %v286
      %v308 = vpack.c.bf16 %v289, %v288
      %v309 = vpack.c.bf16 %v291, %v290
      %v310 = vpack.c.bf16 %v293, %v292
      %v311 = vpack.c.bf16 %v295, %v294
      %v328 = vunpack.c.l.b16 %v296
      %v329 = vunpack.c.h.b16 %v296
      %v330 = vunpack.c.l.b16 %v297
      %v331 = vunpack.c.h.b16 %v297
      %v332 = vunpack.c.l.b16 %v298
      %v333 = vunpack.c.h.b16 %v298
      %v334 = vunpack.c.l.b16 %v299
      %v335 = vunpack.c.h.b16 %v299
      %v336 = vunpack.c.l.b16 %v300
      %v337 = vunpack.c.h.b16 %v300
      %v338 = vunpack.c.l.b16 %v301
      %v339 = vunpack.c.h.b16 %v301
      %v340 = vunpack.c.l.b16 %v302
      %v341 = vunpack.c.h.b16 %v302
      %v342 = vunpack.c.l.b16 %v303
      %v343 = vunpack.c.h.b16 %v303
      %v344 = vunpack.c.l.b16 %v304
      %v345 = vunpack.c.h.b16 %v304
      %v346 = vunpack.c.l.b16 %v305
      %v347 = vunpack.c.h.b16 %v305
      %v348 = vunpack.c.l.b16 %v306
      %v349 = vunpack.c.h.b16 %v306
      %v350 = vunpack.c.l.b16 %v307
      %v351 = vunpack.c.h.b16 %v307
      %v352 = vunpack.c.l.b16 %v308
      %v353 = vunpack.c.h.b16 %v308
      %v354 = vunpack.c.l.b16 %v309
      %v355 = vunpack.c.h.b16 %v309
      %v356 = vunpack.c.l.b16 %v310
      %v357 = vunpack.c.h.b16 %v310
      %v358 = vunpack.c.l.b16 %v311
      %v359 = vunpack.c.h.b16 %v311
      %v360 = vpack.c.b16 %v328, %v328
      %v361 = vpack.c.b16 %v329, %v329
      %v362 = vpack.c.b16 %v330, %v330
      %v363 = vpack.c.b16 %v331, %v331
      %v364 = vpack.c.b16 %v332, %v332
      %v365 = vpack.c.b16 %v333, %v333
      %v366 = vpack.c.b16 %v334, %v334
      %v367 = vpack.c.b16 %v335, %v335
      %v368 = vpack.c.b16 %v336, %v336
      %v369 = vpack.c.b16 %v337, %v337
      %v370 = vpack.c.b16 %v338, %v338
      %v371 = vpack.c.b16 %v339, %v339
      %v372 = vpack.c.b16 %v340, %v340
      %v373 = vpack.c.b16 %v341, %v341
      %v374 = vpack.c.b16 %v342, %v342
      %v375 = vpack.c.b16 %v343, %v343
      %v376 = vpack.c.b16 %v344, %v344
      %v377 = vpack.c.b16 %v345, %v345
      %v378 = vpack.c.b16 %v346, %v346
      %v379 = vpack.c.b16 %v347, %v347
      %v380 = vpack.c.b16 %v348, %v348
      %v381 = vpack.c.b16 %v349, %v349
      %v382 = vpack.c.b16 %v350, %v350
      %v383 = vpack.c.b16 %v351, %v351
      %v384 = vpack.c.b16 %v352, %v352
      %v385 = vpack.c.b16 %v353, %v353
      %v386 = vpack.c.b16 %v354, %v354
      %v387 = vpack.c.b16 %v355, %v355
      %v388 = vpack.c.b16 %v356, %v356
      %v389 = vpack.c.b16 %v357, %v357
      %v390 = vpack.c.b16 %v358, %v358
      %v391 = vpack.c.b16 %v359, %v359
      %vm392 = vsmask.f32 256
      %vm393 = vsmask.f32 4368
      %vm394 = vmor %vm392, %vm393
      %v396 = vshrl.u32 %v360, 16
      %v398 = vrot.slane %v396, 7
      %v399 = vshll.u32 %v360, 16
      %v401 = vor.u32 %v398, %v399
      %v402 = vrot.slane %v398, 4
      %v404 = vshrl.u32 %v361, 16
      %v406 = vrot.slane %v404, 7
      %v407 = vshll.u32 %v361, 16
      %v409 = vor.u32 %v406, %v407
      %v410 = vsel %vm394, %v402, %v409
      %v411 = vrot.slane %v406, 4
      %v413 = vshrl.u32 %v362, 16
      %v415 = vrot.slane %v413, 7
      %v416 = vshll.u32 %v362, 16
      %v418 = vor.u32 %v415, %v416
      %v419 = vrot.slane %v415, 4
      %v421 = vshrl.u32 %v363, 16
      %v423 = vrot.slane %v421, 7
      %v424 = vshll.u32 %v363, 16
      %v426 = vor.u32 %v423, %v424
      %v427 = vsel %vm394, %v419, %v426
      %v428 = vrot.slane %v423, 4
      %v430 = vshrl.u32 %v364, 16
      %v432 = vrot.slane %v430, 7
      %v433 = vshll.u32 %v364, 16
      %v435 = vor.u32 %v432, %v433
      %v436 = vrot.slane %v432, 4
      %v438 = vshrl.u32 %v365, 16
      %v440 = vrot.slane %v438, 7
      %v441 = vshll.u32 %v365, 16
      %v443 = vor.u32 %v440, %v441
      %v444 = vsel %vm394, %v436, %v443
      %v445 = vrot.slane %v440, 4
      %v447 = vshrl.u32 %v366, 16
      %v449 = vrot.slane %v447, 7
      %v450 = vshll.u32 %v366, 16
      %v452 = vor.u32 %v449, %v450
      %v453 = vrot.slane %v449, 4
      %v455 = vshrl.u32 %v367, 16
      %v457 = vrot.slane %v455, 7
      %v458 = vshll.u32 %v367, 16
      %v460 = vor.u32 %v457, %v458
      %v461 = vsel %vm394, %v453, %v460
      %v462 = vrot.slane %v457, 4
      %v464 = vshrl.u32 %v368, 16
      %v466 = vrot.slane %v464, 7
      %v467 = vshll.u32 %v368, 16
      %v469 = vor.u32 %v466, %v467
      %v470 = vrot.slane %v466, 4
      %v472 = vshrl.u32 %v369, 16
      %v474 = vrot.slane %v472, 7
      %v475 = vshll.u32 %v369, 16
      %v477 = vor.u32 %v474, %v475
      %v478 = vsel %vm394, %v470, %v477
      %v479 = vrot.slane %v474, 4
      %v481 = vshrl.u32 %v370, 16
      %v483 = vrot.slane %v481, 7
      %v484 = vshll.u32 %v370, 16
      %v486 = vor.u32 %v483, %v484
      %v487 = vrot.slane %v483, 4
      %v489 = vshrl.u32 %v371, 16
      %v491 = vrot.slane %v489, 7
      %v492 = vshll.u32 %v371, 16
      %v494 = vor.u32 %v491, %v492
      %v495 = vsel %vm394, %v487, %v494
      %v496 = vrot.slane %v491, 4
      %v498 = vshrl.u32 %v372, 16
      %v500 = vrot.slane %v498, 7
      %v501 = vshll.u32 %v372, 16
      %v503 = vor.u32 %v500, %v501
      %v504 = vrot.slane %v500, 4
      %v506 = vshrl.u32 %v373, 16
      %v508 = vrot.slane %v506, 7
      %v509 = vshll.u32 %v373, 16
      %v511 = vor.u32 %v508, %v509
      %v512 = vsel %vm394, %v504, %v511
      %v513 = vrot.slane %v508, 4
      %v515 = vshrl.u32 %v374, 16
      %v517 = vrot.slane %v515, 7
      %v518 = vshll.u32 %v374, 16
      %v520 = vor.u32 %v517, %v518
      %v521 = vrot.slane %v517, 4
      %v523 = vshrl.u32 %v375, 16
      %v525 = vrot.slane %v523, 7
      %v526 = vshll.u32 %v375, 16
      %v528 = vor.u32 %v525, %v526
      %v529 = vsel %vm394, %v521, %v528
      %v530 = vrot.slane %v525, 4
      %v532 = vshrl.u32 %v376, 16
      %v534 = vrot.slane %v532, 7
      %v535 = vshll.u32 %v376, 16
      %v537 = vor.u32 %v534, %v535
      %v538 = vrot.slane %v534, 4
      %v540 = vshrl.u32 %v377, 16
      %v542 = vrot.slane %v540, 7
      %v543 = vshll.u32 %v377, 16
      %v545 = vor.u32 %v542, %v543
      %v546 = vsel %vm394, %v538, %v545
      %v547 = vrot.slane %v542, 4
      %v549 = vshrl.u32 %v378, 16
      %v551 = vrot.slane %v549, 7
      %v552 = vshll.u32 %v378, 16
      %v554 = vor.u32 %v551, %v552
      %v555 = vrot.slane %v551, 4
      %v557 = vshrl.u32 %v379, 16
      %v559 = vrot.slane %v557, 7
      %v560 = vshll.u32 %v379, 16
      %v562 = vor.u32 %v559, %v560
      %v563 = vsel %vm394, %v555, %v562
      %v564 = vrot.slane %v559, 4
      %v566 = vshrl.u32 %v380, 16
      %v568 = vrot.slane %v566, 7
      %v569 = vshll.u32 %v380, 16
      %v571 = vor.u32 %v568, %v569
      %v572 = vrot.slane %v568, 4
      %v574 = vshrl.u32 %v381, 16
      %v576 = vrot.slane %v574, 7
      %v577 = vshll.u32 %v381, 16
      %v579 = vor.u32 %v576, %v577
      %v580 = vsel %vm394, %v572, %v579
      %v581 = vrot.slane %v576, 4
      %v583 = vshrl.u32 %v382, 16
      %v585 = vrot.slane %v583, 7
      %v586 = vshll.u32 %v382, 16
      %v588 = vor.u32 %v585, %v586
      %v589 = vrot.slane %v585, 4
      %v591 = vshrl.u32 %v383, 16
      %v593 = vrot.slane %v591, 7
      %v594 = vshll.u32 %v383, 16
      %v596 = vor.u32 %v593, %v594
      %v597 = vsel %vm394, %v589, %v596
      %v598 = vrot.slane %v593, 4
      %v600 = vshrl.u32 %v384, 16
      %v602 = vrot.slane %v600, 7
      %v603 = vshll.u32 %v384, 16
      %v605 = vor.u32 %v602, %v603
      %v606 = vrot.slane %v602, 4
      %v608 = vshrl.u32 %v385, 16
      %v610 = vrot.slane %v608, 7
      %v611 = vshll.u32 %v385, 16
      %v613 = vor.u32 %v610, %v611
      %v614 = vsel %vm394, %v606, %v613
      %v615 = vrot.slane %v610, 4
      %v617 = vshrl.u32 %v386, 16
      %v619 = vrot.slane %v617, 7
      %v620 = vshll.u32 %v386, 16
      %v622 = vor.u32 %v619, %v620
      %v623 = vrot.slane %v619, 4
      %v625 = vshrl.u32 %v387, 16
      %v627 = vrot.slane %v625, 7
      %v628 = vshll.u32 %v387, 16
      %v630 = vor.u32 %v627, %v628
      %v631 = vsel %vm394, %v623, %v630
      %v632 = vrot.slane %v627, 4
      %v634 = vshrl.u32 %v388, 16
      %v636 = vrot.slane %v634, 7
      %v637 = vshll.u32 %v388, 16
      %v639 = vor.u32 %v636, %v637
      %v640 = vrot.slane %v636, 4
      %v642 = vshrl.u32 %v389, 16
      %v644 = vrot.slane %v642, 7
      %v645 = vshll.u32 %v389, 16
      %v647 = vor.u32 %v644, %v645
      %v648 = vsel %vm394, %v640, %v647
      %v649 = vrot.slane %v644, 4
      %v651 = vshrl.u32 %v390, 16
      %v653 = vrot.slane %v651, 7
      %v654 = vshll.u32 %v390, 16
      %v656 = vor.u32 %v653, %v654
      %v657 = vrot.slane %v653, 4
      %v659 = vshrl.u32 %v391, 16
      %v661 = vrot.slane %v659, 7
      %v662 = vshll.u32 %v391, 16
      %v664 = vor.u32 %v661, %v662
      %v665 = vsel %vm394, %v657, %v664
      %v666 = vrot.slane %v661, 4
      %s715 = scalar_lea.vmem [#allocation2], 12
      %vm716 = vcmask 1043456
      %vm717 = vsmask.f32 7938
      %vm718 = vmand %vm716, %vm717
      %v719 = vld [vmem:[%s715] sm:$0xf]
      %v720 = vsel %vm718, %v401, %v719
      %721 = vst [vmem:[%s715] sm:$0xf] %v720
      %722 = vst [vmem:[%s715 + $0x4] sm:$0xf] %v410
      %vm723 = vcmask 1040384
      %vm724 = vmand %vm723, %vm392
      %v725 = vld [vmem:[%s715 + $0x8] sm:$0x1]
      %v726 = vsel %vm724, %v411, %v725
      %727 = vst [vmem:[%s715 + $0x8] sm:$0x1] %v726
      %v728 = vld [vmem:[%s715 + $0xc] sm:$0xf]
      %v729 = vsel %vm718, %v418, %v728
      %730 = vst [vmem:[%s715 + $0xc] sm:$0xf] %v729
      %731 = vst [vmem:[%s715 + $0x10] sm:$0xf] %v427
      %v732 = vld [vmem:[%s715 + $0x14] sm:$0x1]
      %v733 = vsel %vm724, %v428, %v732
      %734 = vst [vmem:[%s715 + $0x14] sm:$0x1] %v733
      %v735 = vld [vmem:[%s715 + $0x18] sm:$0xf]
      %v736 = vsel %vm718, %v435, %v735
      %737 = vst [vmem:[%s715 + $0x18] sm:$0xf] %v736
      %738 = vst [vmem:[%s715 + $0x1c] sm:$0xf] %v444
      %v739 = vld [vmem:[%s715 + $0x20] sm:$0x1]
      %v740 = vsel %vm724, %v445, %v739
      %741 = vst [vmem:[%s715 + $0x20] sm:$0x1] %v740
      %v742 = vld [vmem:[%s715 + $0x24] sm:$0xf]
      %v743 = vsel %vm718, %v452, %v742
      %744 = vst [vmem:[%s715 + $0x24] sm:$0xf] %v743
      %745 = vst [vmem:[%s715 + $0x28] sm:$0xf] %v461
      %v746 = vld [vmem:[%s715 + $0x2c] sm:$0x1]
      %v747 = vsel %vm724, %v462, %v746
      %748 = vst [vmem:[%s715 + $0x2c] sm:$0x1] %v747
      %v749 = vld [vmem:[%s715 + $0x30] sm:$0xf]
      %v750 = vsel %vm718, %v469, %v749
      %751 = vst [vmem:[%s715 + $0x30] sm:$0xf] %v750
      %752 = vst [vmem:[%s715 + $0x34] sm:$0xf] %v478
      %v753 = vld [vmem:[%s715 + $0x38] sm:$0x1]
      %v754 = vsel %vm724, %v479, %v753
      %755 = vst [vmem:[%s715 + $0x38] sm:$0x1] %v754
      %v756 = vld [vmem:[%s715 + $0x3c] sm:$0xf]
      %v757 = vsel %vm718, %v486, %v756
      %758 = vst [vmem:[%s715 + $0x3c] sm:$0xf] %v757
      %759 = vst [vmem:[%s715 + $0x40] sm:$0xf] %v495
      %v760 = vld [vmem:[%s715 + $0x44] sm:$0x1]
      %v761 = vsel %vm724, %v496, %v760
      %762 = vst [vmem:[%s715 + $0x44] sm:$0x1] %v761
      %v763 = vld [vmem:[%s715 + $0x48] sm:$0xf]
      %v764 = vsel %vm718, %v503, %v763
      %765 = vst [vmem:[%s715 + $0x48] sm:$0xf] %v764
      %766 = vst [vmem:[%s715 + $0x4c] sm:$0xf] %v512
      %v767 = vld [vmem:[%s715 + $0x50] sm:$0x1]
      %v768 = vsel %vm724, %v513, %v767
      %769 = vst [vmem:[%s715 + $0x50] sm:$0x1] %v768
      %v770 = vld [vmem:[%s715 + $0x54] sm:$0xf]
      %v771 = vsel %vm718, %v520, %v770
      %772 = vst [vmem:[%s715 + $0x54] sm:$0xf] %v771
      %773 = vst [vmem:[%s715 + $0x58] sm:$0xf] %v529
      %v774 = vld [vmem:[%s715 + $0x5c] sm:$0x1]
      %v775 = vsel %vm724, %v530, %v774
      %776 = vst [vmem:[%s715 + $0x5c] sm:$0x1] %v775
      %v777 = vld [vmem:[%s715 + $0x60] sm:$0xf]
      %v778 = vsel %vm718, %v537, %v777
      %779 = vst [vmem:[%s715 + $0x60] sm:$0xf] %v778
      %780 = vst [vmem:[%s715 + $0x64] sm:$0xf] %v546
      %v781 = vld [vmem:[%s715 + $0x68] sm:$0x1]
      %v782 = vsel %vm724, %v547, %v781
      %783 = vst [vmem:[%s715 + $0x68] sm:$0x1] %v782
      %v784 = vld [vmem:[%s715 + $0x6c] sm:$0xf]
      %v785 = vsel %vm718, %v554, %v784
      %786 = vst [vmem:[%s715 + $0x6c] sm:$0xf] %v785
      %787 = vst [vmem:[%s715 + $0x70] sm:$0xf] %v563
      %v788 = vld [vmem:[%s715 + $0x74] sm:$0x1]
      %v789 = vsel %vm724, %v564, %v788
      %790 = vst [vmem:[%s715 + $0x74] sm:$0x1] %v789
      %v791 = vld [vmem:[%s715 + $0x78] sm:$0xf]
      %v792 = vsel %vm718, %v571, %v791
      %793 = vst [vmem:[%s715 + $0x78] sm:$0xf] %v792
      %794 = vst [vmem:[%s715 + $0x7c] sm:$0xf] %v580
      %v795 = vld [vmem:[%s715 + $0x80] sm:$0x1]
      %v796 = vsel %vm724, %v581, %v795
      %797 = vst [vmem:[%s715 + $0x80] sm:$0x1] %v796
      %v798 = vld [vmem:[%s715 + $0x84] sm:$0xf]
      %v799 = vsel %vm718, %v588, %v798
      %800 = vst [vmem:[%s715 + $0x84] sm:$0xf] %v799
      %801 = vst [vmem:[%s715 + $0x88] sm:$0xf] %v597
      %v802 = vld [vmem:[%s715 + $0x8c] sm:$0x1]
      %v803 = vsel %vm724, %v598, %v802
      %804 = vst [vmem:[%s715 + $0x8c] sm:$0x1] %v803
      %v805 = vld [vmem:[%s715 + $0x90] sm:$0xf]
      %v806 = vsel %vm718, %v605, %v805
      %807 = vst [vmem:[%s715 + $0x90] sm:$0xf] %v806
      %808 = vst [vmem:[%s715 + $0x94] sm:$0xf] %v614
      %v809 = vld [vmem:[%s715 + $0x98] sm:$0x1]
      %v810 = vsel %vm724, %v615, %v809
      %811 = vst [vmem:[%s715 + $0x98] sm:$0x1] %v810
      %v812 = vld [vmem:[%s715 + $0x9c] sm:$0xf]
      %v813 = vsel %vm718, %v622, %v812
      %814 = vst [vmem:[%s715 + $0x9c] sm:$0xf] %v813
      %815 = vst [vmem:[%s715 + $0xa0] sm:$0xf] %v631
      %v816 = vld [vmem:[%s715 + $0xa4] sm:$0x1]
      %v817 = vsel %vm724, %v632, %v816
      %818 = vst [vmem:[%s715 + $0xa4] sm:$0x1] %v817
      %v819 = vld [vmem:[%s715 + $0xa8] sm:$0xf]
      %v820 = vsel %vm718, %v639, %v819
      %821 = vst [vmem:[%s715 + $0xa8] sm:$0xf] %v820
      %822 = vst [vmem:[%s715 + $0xac] sm:$0xf] %v648
      %v823 = vld [vmem:[%s715 + $0xb0] sm:$0x1]
      %v824 = vsel %vm724, %v649, %v823
      %825 = vst [vmem:[%s715 + $0xb0] sm:$0x1] %v824
      %v826 = vld [vmem:[%s715 + $0xb4] sm:$0xf]
      %v827 = vsel %vm718, %v656, %v826
      %828 = vst [vmem:[%s715 + $0xb4] sm:$0xf] %v827
      %829 = vst [vmem:[%s715 + $0xb8] sm:$0xf] %v665
      %v830 = vld [vmem:[%s715 + $0xbc] sm:$0x1]
      %v831 = vsel %vm724, %v666, %v830
      %832 = vst [vmem:[%s715 + $0xbc] sm:$0x1] %v831
      %v833 = vld [vmem:[#allocation2] sm:$0xf]
      %v834 = vld [vmem:[#allocation2 + $0x4] sm:$0xf]
      %v835 = vld [vmem:[#allocation2 + $0xc] sm:$0xf]
      %v836 = vld [vmem:[#allocation2 + $0x10] sm:$0xf]
      %v837 = vld [vmem:[#allocation2 + $0x18] sm:$0xf]
      %v838 = vld [vmem:[#allocation2 + $0x1c] sm:$0xf]
      %v839 = vld [vmem:[#allocation2 + $0x24] sm:$0xf]
      %v840 = vld [vmem:[#allocation2 + $0x28] sm:$0xf]
      %v841 = vld [vmem:[#allocation2 + $0x30] sm:$0xf]
      %v842 = vld [vmem:[#allocation2 + $0x34] sm:$0xf]
      %v843 = vld [vmem:[#allocation2 + $0x3c] sm:$0xf]
      %v844 = vld [vmem:[#allocation2 + $0x40] sm:$0xf]
      %v845 = vld [vmem:[#allocation2 + $0x48] sm:$0xf]
      %v846 = vld [vmem:[#allocation2 + $0x4c] sm:$0xf]
      %v847 = vld [vmem:[#allocation2 + $0x54] sm:$0xf]
      %v848 = vld [vmem:[#allocation2 + $0x58] sm:$0xf]
      %v849 = vld [vmem:[#allocation2 + $0x60] sm:$0xf]
      %v850 = vld [vmem:[#allocation2 + $0x64] sm:$0xf]
      %v851 = vld [vmem:[#allocation2 + $0x6c] sm:$0xf]
      %v852 = vld [vmem:[#allocation2 + $0x70] sm:$0xf]
      %v853 = vld [vmem:[#allocation2 + $0x78] sm:$0xf]
      %v854 = vld [vmem:[#allocation2 + $0x7c] sm:$0xf]
      %v855 = vld [vmem:[#allocation2 + $0x84] sm:$0xf]
      %v856 = vld [vmem:[#allocation2 + $0x88] sm:$0xf]
      %v857 = vld [vmem:[#allocation2 + $0x90] sm:$0xf]
      %v858 = vld [vmem:[#allocation2 + $0x94] sm:$0xf]
      %v859 = vld [vmem:[#allocation2 + $0x9c] sm:$0xf]
      %v860 = vld [vmem:[#allocation2 + $0xa0] sm:$0xf]
      %v861 = vld [vmem:[#allocation2 + $0xa8] sm:$0xf]
      %v862 = vld [vmem:[#allocation2 + $0xac] sm:$0xf]
      %v863 = vld [vmem:[#allocation2 + $0xb4] sm:$0xf]
      %v864 = vld [vmem:[#allocation2 + $0xb8] sm:$0xf]
      %v865 = vld [vmem:[%s1] sm:$0xf]
      %v866 = vld [vmem:[%s1 + $0x4] sm:$0xf]
      %v867 = vld [vmem:[%s1 + $0x8] sm:$0xf]
      %v868 = vld [vmem:[%s1 + $0xc] sm:$0xf]
      %v869 = vld [vmem:[%s1 + $0x10] sm:$0xf]
      %v870 = vld [vmem:[%s1 + $0x14] sm:$0xf]
      %v871 = vld [vmem:[%s1 + $0x18] sm:$0xf]
      %v872 = vld [vmem:[%s1 + $0x1c] sm:$0xf]
      %v873 = vld [vmem:[%s1 + $0x20] sm:$0xf]
      %v874 = vld [vmem:[%s1 + $0x24] sm:$0xf]
      %v875 = vld [vmem:[%s1 + $0x28] sm:$0xf]
      %v876 = vld [vmem:[%s1 + $0x2c] sm:$0xf]
      %v877 = vld [vmem:[%s1 + $0x30] sm:$0xf]
      %v878 = vld [vmem:[%s1 + $0x34] sm:$0xf]
      %v879 = vld [vmem:[%s1 + $0x38] sm:$0xf]
      %v880 = vld [vmem:[%s1 + $0x3c] sm:$0xf]
      %v881 = vld [vmem:[#allocation2 + $0x8] sm:$0x1]
      %v882 = vld [vmem:[#allocation2 + $0x14] sm:$0x1]
      %v883 = vld [vmem:[#allocation2 + $0x20] sm:$0x1]
      %v884 = vld [vmem:[#allocation2 + $0x2c] sm:$0x1]
      %v885 = vld [vmem:[#allocation2 + $0x38] sm:$0x1]
      %v886 = vld [vmem:[#allocation2 + $0x44] sm:$0x1]
      %v887 = vld [vmem:[#allocation2 + $0x50] sm:$0x1]
      %v888 = vld [vmem:[#allocation2 + $0x5c] sm:$0x1]
      %v889 = vld [vmem:[#allocation2 + $0x68] sm:$0x1]
      %v890 = vld [vmem:[#allocation2 + $0x74] sm:$0x1]
      %v891 = vld [vmem:[#allocation2 + $0x80] sm:$0x1]
      %v892 = vld [vmem:[#allocation2 + $0x8c] sm:$0x1]
      %v893 = vld [vmem:[#allocation2 + $0x98] sm:$0x1]
      %v894 = vld [vmem:[#allocation2 + $0xa4] sm:$0x1]
      %v895 = vld [vmem:[#allocation2 + $0xb0] sm:$0x1]
      %v896 = vld [vmem:[#allocation2 + $0xbc] sm:$0x1]
      %vm897 = vsmask.f32 3328
      %vm898 = vsmask.f32 7440
      %vm899 = vmor %vm897, %vm898
      %v901 = vshrl.u32 %v833, 16
      %v903 = vrot.slane %v901, 4
      %v904 = vshll.u32 %v833, 16
      %v906 = vrot.slane %v904, 5
      %v907 = vor.u32 %v903, %v906
      %v908 = vrot.slane %v907, 4
      %v910 = vshll.u32 %v834, 16
      %v912 = vrot.slane %v910, 5
      %v913 = vsel %vm899, %v908, %v912
      %v914 = vshrl.u32 %v834, 16
      %v916 = vrot.slane %v914, 4
      %v917 = vor.u32 %v916, %v912
      %v918 = vrot.slane %v917, 4
      %v920 = vshll.u32 %v881, 16
      %v922 = vrot.slane %v920, 5
      %v923 = vsel %vm899, %v918, %v922
      %v925 = vshrl.u32 %v835, 16
      %v927 = vrot.slane %v925, 4
      %v928 = vshll.u32 %v835, 16
      %v930 = vrot.slane %v928, 5
      %v931 = vor.u32 %v927, %v930
      %v932 = vrot.slane %v931, 4
      %v934 = vshll.u32 %v836, 16
      %v936 = vrot.slane %v934, 5
      %v937 = vsel %vm899, %v932, %v936
      %v938 = vshrl.u32 %v836, 16
      %v940 = vrot.slane %v938, 4
      %v941 = vor.u32 %v940, %v936
      %v942 = vrot.slane %v941, 4
      %v944 = vshll.u32 %v882, 16
      %v946 = vrot.slane %v944, 5
      %v947 = vsel %vm899, %v942, %v946
      %v949 = vshrl.u32 %v837, 16
      %v951 = vrot.slane %v949, 4
      %v952 = vshll.u32 %v837, 16
      %v954 = vrot.slane %v952, 5
      %v955 = vor.u32 %v951, %v954
      %v956 = vrot.slane %v955, 4
      %v958 = vshll.u32 %v838, 16
      %v960 = vrot.slane %v958, 5
      %v961 = vsel %vm899, %v956, %v960
      %v962 = vshrl.u32 %v838, 16
      %v964 = vrot.slane %v962, 4
      %v965 = vor.u32 %v964, %v960
      %v966 = vrot.slane %v965, 4
      %v968 = vshll.u32 %v883, 16
      %v970 = vrot.slane %v968, 5
      %v971 = vsel %vm899, %v966, %v970
      %v973 = vshrl.u32 %v839, 16
      %v975 = vrot.slane %v973, 4
      %v976 = vshll.u32 %v839, 16
      %v978 = vrot.slane %v976, 5
      %v979 = vor.u32 %v975, %v978
      %v980 = vrot.slane %v979, 4
      %v982 = vshll.u32 %v840, 16
      %v984 = vrot.slane %v982, 5
      %v985 = vsel %vm899, %v980, %v984
      %v986 = vshrl.u32 %v840, 16
      %v988 = vrot.slane %v986, 4
      %v989 = vor.u32 %v988, %v984
      %v990 = vrot.slane %v989, 4
      %v992 = vshll.u32 %v884, 16
      %v994 = vrot.slane %v992, 5
      %v995 = vsel %vm899, %v990, %v994
      %v997 = vshrl.u32 %v841, 16
      %v999 = vrot.slane %v997, 4
      %v1000 = vshll.u32 %v841, 16
      %v1002 = vrot.slane %v1000, 5
      %v1003 = vor.u32 %v999, %v1002
      %v1004 = vrot.slane %v1003, 4
      %v1006 = vshll.u32 %v842, 16
      %v1008 = vrot.slane %v1006, 5
      %v1009 = vsel %vm899, %v1004, %v1008
      %v1010 = vshrl.u32 %v842, 16
      %v1012 = vrot.slane %v1010, 4
      %v1013 = vor.u32 %v1012, %v1008
      %v1014 = vrot.slane %v1013, 4
      %v1016 = vshll.u32 %v885, 16
      %v1018 = vrot.slane %v1016, 5
      %v1019 = vsel %vm899, %v1014, %v1018
      %v1021 = vshrl.u32 %v843, 16
      %v1023 = vrot.slane %v1021, 4
      %v1024 = vshll.u32 %v843, 16
      %v1026 = vrot.slane %v1024, 5
      %v1027 = vor.u32 %v1023, %v1026
      %v1028 = vrot.slane %v1027, 4
      %v1030 = vshll.u32 %v844, 16
      %v1032 = vrot.slane %v1030, 5
      %v1033 = vsel %vm899, %v1028, %v1032
      %v1034 = vshrl.u32 %v844, 16
      %v1036 = vrot.slane %v1034, 4
      %v1037 = vor.u32 %v1036, %v1032
      %v1038 = vrot.slane %v1037, 4
      %v1040 = vshll.u32 %v886, 16
      %v1042 = vrot.slane %v1040, 5
      %v1043 = vsel %vm899, %v1038, %v1042
      %v1045 = vshrl.u32 %v845, 16
      %v1047 = vrot.slane %v1045, 4
      %v1048 = vshll.u32 %v845, 16
      %v1050 = vrot.slane %v1048, 5
      %v1051 = vor.u32 %v1047, %v1050
      %v1052 = vrot.slane %v1051, 4
      %v1054 = vshll.u32 %v846, 16
      %v1056 = vrot.slane %v1054, 5
      %v1057 = vsel %vm899, %v1052, %v1056
      %v1058 = vshrl.u32 %v846, 16
      %v1060 = vrot.slane %v1058, 4
      %v1061 = vor.u32 %v1060, %v1056
      %v1062 = vrot.slane %v1061, 4
      %v1064 = vshll.u32 %v887, 16
      %v1066 = vrot.slane %v1064, 5
      %v1067 = vsel %vm899, %v1062, %v1066
      %v1069 = vshrl.u32 %v847, 16
      %v1071 = vrot.slane %v1069, 4
      %v1072 = vshll.u32 %v847, 16
      %v1074 = vrot.slane %v1072, 5
      %v1075 = vor.u32 %v1071, %v1074
      %v1076 = vrot.slane %v1075, 4
      %v1078 = vshll.u32 %v848, 16
      %v1080 = vrot.slane %v1078, 5
      %v1081 = vsel %vm899, %v1076, %v1080
      %v1082 = vshrl.u32 %v848, 16
      %v1084 = vrot.slane %v1082, 4
      %v1085 = vor.u32 %v1084, %v1080
      %v1086 = vrot.slane %v1085, 4
      %v1088 = vshll.u32 %v888, 16
      %v1090 = vrot.slane %v1088, 5
      %v1091 = vsel %vm899, %v1086, %v1090
      %v1093 = vshrl.u32 %v849, 16
      %v1095 = vrot.slane %v1093, 4
      %v1096 = vshll.u32 %v849, 16
      %v1098 = vrot.slane %v1096, 5
      %v1099 = vor.u32 %v1095, %v1098
      %v1100 = vrot.slane %v1099, 4
      %v1102 = vshll.u32 %v850, 16
      %v1104 = vrot.slane %v1102, 5
      %v1105 = vsel %vm899, %v1100, %v1104
      %v1106 = vshrl.u32 %v850, 16
      %v1108 = vrot.slane %v1106, 4
      %v1109 = vor.u32 %v1108, %v1104
      %v1110 = vrot.slane %v1109, 4
      %v1112 = vshll.u32 %v889, 16
      %v1114 = vrot.slane %v1112, 5
      %v1115 = vsel %vm899, %v1110, %v1114
      %v1117 = vshrl.u32 %v851, 16
      %v1119 = vrot.slane %v1117, 4
      %v1120 = vshll.u32 %v851, 16
      %v1122 = vrot.slane %v1120, 5
      %v1123 = vor.u32 %v1119, %v1122
      %v1124 = vrot.slane %v1123, 4
      %v1126 = vshll.u32 %v852, 16
      %v1128 = vrot.slane %v1126, 5
      %v1129 = vsel %vm899, %v1124, %v1128
      %v1130 = vshrl.u32 %v852, 16
      %v1132 = vrot.slane %v1130, 4
      %v1133 = vor.u32 %v1132, %v1128
      %v1134 = vrot.slane %v1133, 4
      %v1136 = vshll.u32 %v890, 16
      %v1138 = vrot.slane %v1136, 5
      %v1139 = vsel %vm899, %v1134, %v1138
      %v1141 = vshrl.u32 %v853, 16
      %v1143 = vrot.slane %v1141, 4
      %v1144 = vshll.u32 %v853, 16
      %v1146 = vrot.slane %v1144, 5
      %v1147 = vor.u32 %v1143, %v1146
      %v1148 = vrot.slane %v1147, 4
      %v1150 = vshll.u32 %v854, 16
      %v1152 = vrot.slane %v1150, 5
      %v1153 = vsel %vm899, %v1148, %v1152
      %v1154 = vshrl.u32 %v854, 16
      %v1156 = vrot.slane %v1154, 4
      %v1157 = vor.u32 %v1156, %v1152
      %v1158 = vrot.slane %v1157, 4
      %v1160 = vshll.u32 %v891, 16
      %v1162 = vrot.slane %v1160, 5
      %v1163 = vsel %vm899, %v1158, %v1162
      %v1165 = vshrl.u32 %v855, 16
      %v1167 = vrot.slane %v1165, 4
      %v1168 = vshll.u32 %v855, 16
      %v1170 = vrot.slane %v1168, 5
      %v1171 = vor.u32 %v1167, %v1170
      %v1172 = vrot.slane %v1171, 4
      %v1174 = vshll.u32 %v856, 16
      %v1176 = vrot.slane %v1174, 5
      %v1177 = vsel %vm899, %v1172, %v1176
      %v1178 = vshrl.u32 %v856, 16
      %v1180 = vrot.slane %v1178, 4
      %v1181 = vor.u32 %v1180, %v1176
      %v1182 = vrot.slane %v1181, 4
      %v1184 = vshll.u32 %v892, 16
      %v1186 = vrot.slane %v1184, 5
      %v1187 = vsel %vm899, %v1182, %v1186
      %v1189 = vshrl.u32 %v857, 16
      %v1191 = vrot.slane %v1189, 4
      %v1192 = vshll.u32 %v857, 16
      %v1194 = vrot.slane %v1192, 5
      %v1195 = vor.u32 %v1191, %v1194
      %v1196 = vrot.slane %v1195, 4
      %v1198 = vshll.u32 %v858, 16
      %v1200 = vrot.slane %v1198, 5
      %v1201 = vsel %vm899, %v1196, %v1200
      %v1202 = vshrl.u32 %v858, 16
      %v1204 = vrot.slane %v1202, 4
      %v1205 = vor.u32 %v1204, %v1200
      %v1206 = vrot.slane %v1205, 4
      %v1208 = vshll.u32 %v893, 16
      %v1210 = vrot.slane %v1208, 5
      %v1211 = vsel %vm899, %v1206, %v1210
      %v1213 = vshrl.u32 %v859, 16
      %v1215 = vrot.slane %v1213, 4
      %v1216 = vshll.u32 %v859, 16
      %v1218 = vrot.slane %v1216, 5
      %v1219 = vor.u32 %v1215, %v1218
      %v1220 = vrot.slane %v1219, 4
      %v1222 = vshll.u32 %v860, 16
      %v1224 = vrot.slane %v1222, 5
      %v1225 = vsel %vm899, %v1220, %v1224
      %v1226 = vshrl.u32 %v860, 16
      %v1228 = vrot.slane %v1226, 4
      %v1229 = vor.u32 %v1228, %v1224
      %v1230 = vrot.slane %v1229, 4
      %v1232 = vshll.u32 %v894, 16
      %v1234 = vrot.slane %v1232, 5
      %v1235 = vsel %vm899, %v1230, %v1234
      %v1237 = vshrl.u32 %v861, 16
      %v1239 = vrot.slane %v1237, 4
      %v1240 = vshll.u32 %v861, 16
      %v1242 = vrot.slane %v1240, 5
      %v1243 = vor.u32 %v1239, %v1242
      %v1244 = vrot.slane %v1243, 4
      %v1246 = vshll.u32 %v862, 16
      %v1248 = vrot.slane %v1246, 5
      %v1249 = vsel %vm899, %v1244, %v1248
      %v1250 = vshrl.u32 %v862, 16
      %v1252 = vrot.slane %v1250, 4
      %v1253 = vor.u32 %v1252, %v1248
      %v1254 = vrot.slane %v1253, 4
      %v1256 = vshll.u32 %v895, 16
      %v1258 = vrot.slane %v1256, 5
      %v1259 = vsel %vm899, %v1254, %v1258
      %v1261 = vshrl.u32 %v863, 16
      %v1263 = vrot.slane %v1261, 4
      %v1264 = vshll.u32 %v863, 16
      %v1266 = vrot.slane %v1264, 5
      %v1267 = vor.u32 %v1263, %v1266
      %v1268 = vrot.slane %v1267, 4
      %v1270 = vshll.u32 %v864, 16
      %v1272 = vrot.slane %v1270, 5
      %v1273 = vsel %vm899, %v1268, %v1272
      %v1274 = vshrl.u32 %v864, 16
      %v1276 = vrot.slane %v1274, 4
      %v1277 = vor.u32 %v1276, %v1272
      %v1278 = vrot.slane %v1277, 4
      %v1280 = vshll.u32 %v896, 16
      %v1282 = vrot.slane %v1280, 5
      %v1283 = vsel %vm899, %v1278, %v1282
      %s1284 = scalar_lea.vmem %s1, 64
      %v1285 = vld [vmem:[%s1284] sm:$0xf]
      %v1286 = vld [vmem:[%s1284 + $0x4] sm:$0xf]
      %v1287 = vld [vmem:[%s1284 + $0x8] sm:$0xf]
      %v1288 = vld [vmem:[%s1284 + $0xc] sm:$0xf]
      %v1289 = vld [vmem:[%s1284 + $0x10] sm:$0xf]
      %v1290 = vld [vmem:[%s1284 + $0x14] sm:$0xf]
      %v1291 = vld [vmem:[%s1284 + $0x18] sm:$0xf]
      %v1292 = vld [vmem:[%s1284 + $0x1c] sm:$0xf]
      %v1293 = vld [vmem:[%s1284 + $0x20] sm:$0xf]
      %v1294 = vld [vmem:[%s1284 + $0x24] sm:$0xf]
      %v1295 = vld [vmem:[%s1284 + $0x28] sm:$0xf]
      %v1296 = vld [vmem:[%s1284 + $0x2c] sm:$0xf]
      %v1297 = vld [vmem:[%s1284 + $0x30] sm:$0xf]
      %v1298 = vld [vmem:[%s1284 + $0x34] sm:$0xf]
      %v1299 = vld [vmem:[%s1284 + $0x38] sm:$0xf]
      %v1300 = vld [vmem:[%s1284 + $0x3c] sm:$0xf]
      %v1301 = vunpack.c.l.b16 %v913
      %v1302 = vunpack.c.l.b16 %v923
      %v1303 = vunpack.c.l.b16 %v937
      %v1304 = vunpack.c.l.b16 %v947
      %v1305 = vunpack.c.l.b16 %v961
      %v1306 = vunpack.c.l.b16 %v971
      %v1307 = vunpack.c.l.b16 %v985
      %v1308 = vunpack.c.l.b16 %v995
      %v1309 = vunpack.c.l.b16 %v1009
      %v1310 = vunpack.c.l.b16 %v1019
      %v1311 = vunpack.c.l.b16 %v1033
      %v1312 = vunpack.c.l.b16 %v1043
      %v1313 = vunpack.c.l.b16 %v1057
      %v1314 = vunpack.c.l.b16 %v1067
      %v1315 = vunpack.c.l.b16 %v1081
      %v1316 = vunpack.c.l.b16 %v1091
      %v1317 = vunpack.c.l.b16 %v1105
      %v1318 = vunpack.c.l.b16 %v1115
      %v1319 = vunpack.c.l.b16 %v1129
      %v1320 = vunpack.c.l.b16 %v1139
      %v1321 = vunpack.c.l.b16 %v1153
      %v1322 = vunpack.c.l.b16 %v1163
      %v1323 = vunpack.c.l.b16 %v1177
      %v1324 = vunpack.c.l.b16 %v1187
      %v1325 = vunpack.c.l.b16 %v1201
      %v1326 = vunpack.c.l.b16 %v1211
      %v1327 = vunpack.c.l.b16 %v1225
      %v1328 = vunpack.c.l.b16 %v1235
      %v1329 = vunpack.c.l.b16 %v1249
      %v1330 = vunpack.c.l.b16 %v1259
      %v1331 = vunpack.c.l.b16 %v1273
      %v1332 = vunpack.c.l.b16 %v1283
      %v1333 = vpack.c.b16 %v1302, %v1301
      %v1334 = vpack.c.b16 %v1304, %v1303
      %v1335 = vpack.c.b16 %v1306, %v1305
      %v1336 = vpack.c.b16 %v1308, %v1307
      %v1337 = vpack.c.b16 %v1310, %v1309
      %v1338 = vpack.c.b16 %v1312, %v1311
      %v1339 = vpack.c.b16 %v1314, %v1313
      %v1340 = vpack.c.b16 %v1316, %v1315
      %v1341 = vpack.c.b16 %v1318, %v1317
      %v1342 = vpack.c.b16 %v1320, %v1319
      %v1343 = vpack.c.b16 %v1322, %v1321
      %v1344 = vpack.c.b16 %v1324, %v1323
      %v1345 = vpack.c.b16 %v1326, %v1325
      %v1346 = vpack.c.b16 %v1328, %v1327
      %v1347 = vpack.c.b16 %v1330, %v1329
      %v1348 = vpack.c.b16 %v1332, %v1331
      %v1381 = vunpack.c.l.b16 %v1285
      %v1382 = vunpack.c.l.b16 %v1286
      %v1383 = vunpack.c.l.b16 %v1287
      %v1384 = vunpack.c.l.b16 %v1288
      %v1385 = vunpack.c.l.b16 %v1289
      %v1386 = vunpack.c.l.b16 %v1290
      %v1387 = vunpack.c.l.b16 %v1291
      %v1388 = vunpack.c.l.b16 %v1292
      %v1389 = vunpack.c.l.b16 %v1293
      %v1390 = vunpack.c.l.b16 %v1294
      %v1391 = vunpack.c.l.b16 %v1295
      %v1392 = vunpack.c.l.b16 %v1296
      %v1393 = vunpack.c.l.b16 %v1297
      %v1394 = vunpack.c.l.b16 %v1298
      %v1395 = vunpack.c.l.b16 %v1299
      %v1396 = vunpack.c.l.b16 %v1300
      %v1397 = vpack.c.b16 %v1382, %v1381
      %v1398 = vpack.c.b16 %v1384, %v1383
      %v1399 = vpack.c.b16 %v1386, %v1385
      %v1400 = vpack.c.b16 %v1388, %v1387
      %v1401 = vpack.c.b16 %v1390, %v1389
      %v1402 = vpack.c.b16 %v1392, %v1391
      %v1403 = vpack.c.b16 %v1394, %v1393
      %v1404 = vpack.c.b16 %v1396, %v1395
      %1413 = vmatprep.subr.bf16.mxu0 0
      %1414 = vmatpush1.bf16.msra.mxu0 %v1404
      %1415 = vmatprep.subr.bf16.mxu0 0
      %1416 = vmatpush1.bf16.msra.mxu0 %v1403
      %1417 = vmatprep.subr.bf16.mxu0 0
      %1418 = vmatpush1.bf16.msra.mxu0 %v1402
      %1419 = vmatprep.subr.bf16.mxu0 0
      %1420 = vmatpush1.bf16.msra.mxu0 %v1401
      %1421 = vmatprep.subr.bf16.mxu0 0
      %1422 = vmatpush1.bf16.msra.mxu0 %v1400
      %1423 = vmatprep.subr.bf16.mxu0 0
      %1424 = vmatpush1.bf16.msra.mxu0 %v1399
      %1425 = vmatprep.subr.bf16.mxu0 0
      %1426 = vmatpush1.bf16.msra.mxu0 %v1398
      %1427 = vmatprep.subr.bf16.mxu0 0
      %1428 = vmatpush1.bf16.msra.mxu0 %v1397
      %1429 = vmatprep.subr.bf16.mxu0 0
      %1430 = vmatpush2.bf16.msra.mxu0 0
      %1431 = vmatprep.subr.bf16.mxu0 0
      %1432 = vmatpush2.bf16.msra.mxu0 0
      %1433 = vmatprep.subr.bf16.mxu0 0
      %1434 = vmatpush2.bf16.msra.mxu0 0
      %1435 = vmatprep.subr.bf16.mxu0 0
      %1436 = vmatpush2.bf16.msra.mxu0 0
      %1437 = vmatprep.subr.bf16.mxu0 0
      %1438 = vmatpush2.bf16.msra.mxu0 0
      %1439 = vmatprep.subr.bf16.mxu0 0
      %1440 = vmatpush2.bf16.msra.mxu0 0
      %1441 = vmatprep.subr.bf16.mxu0 0
      %1442 = vmatpush2.bf16.msra.mxu0 0
      %1443 = vmatprep.subr.bf16.mxu0 0
      %1444 = vmatpush2.bf16.msra.mxu0 0
      %1445 = vmatprep.mubr.bf16.mxu0 0
      %1446 = vmatmul.mubr.bf16.gmra.mxu0 %v1333
      %v1447 = vpop.f32.mrf.mxu0
      %v1448 = vadd.f32 0.0, %v1447
      %v1449 = vpop.f32.mrf.mxu0
      %v1450 = vpop.f32.mrf.mxu0
      %v1451 = vadd.f32 0.0, %v1450
      %v1452 = vpop.f32.mrf.mxu0
      %1453 = vmatprep.mubr.bf16.mxu0 0
      %1454 = vmatmul.mubr.bf16.gmra.mxu0 %v1334
      %v1455 = vpop.f32.mrf.mxu0
      %v1456 = vadd.f32 0.0, %v1455
      %v1457 = vpop.f32.mrf.mxu0
      %v1458 = vpop.f32.mrf.mxu0
      %v1459 = vadd.f32 0.0, %v1458
      %v1460 = vpop.f32.mrf.mxu0
      %1461 = vmatprep.mubr.bf16.mxu0 0
      %1462 = vmatmul.mubr.bf16.gmra.mxu0 %v1335
      %v1463 = vpop.f32.mrf.mxu0
      %v1464 = vadd.f32 0.0, %v1463
      %v1465 = vpop.f32.mrf.mxu0
      %v1466 = vpop.f32.mrf.mxu0
      %v1467 = vadd.f32 0.0, %v1466
      %v1468 = vpop.f32.mrf.mxu0
      %1469 = vmatprep.mubr.bf16.mxu0 0
      %1470 = vmatmul.mubr.bf16.gmra.mxu0 %v1336
      %v1471 = vpop.f32.mrf.mxu0
      %v1472 = vadd.f32 0.0, %v1471
      %v1473 = vpop.f32.mrf.mxu0
      %v1474 = vpop.f32.mrf.mxu0
      %v1475 = vadd.f32 0.0, %v1474
      %v1476 = vpop.f32.mrf.mxu0
      %1477 = vmatprep.mubr.bf16.mxu0 0
      %1478 = vmatmul.mubr.bf16.gmra.mxu0 %v1337
      %v1479 = vpop.f32.mrf.mxu0
      %v1480 = vadd.f32 0.0, %v1479
      %v1481 = vpop.f32.mrf.mxu0
      %v1482 = vpop.f32.mrf.mxu0
      %v1483 = vadd.f32 0.0, %v1482
      %v1484 = vpop.f32.mrf.mxu0
      %1485 = vmatprep.mubr.bf16.mxu0 0
      %1486 = vmatmul.mubr.bf16.gmra.mxu0 %v1338
      %v1487 = vpop.f32.mrf.mxu0
      %v1488 = vadd.f32 0.0, %v1487
      %v1489 = vpop.f32.mrf.mxu0
      %v1490 = vpop.f32.mrf.mxu0
      %v1491 = vadd.f32 0.0, %v1490
      %v1492 = vpop.f32.mrf.mxu0
      %1493 = vmatprep.mubr.bf16.mxu0 0
      %1494 = vmatmul.mubr.bf16.gmra.mxu0 %v1339
      %v1495 = vpop.f32.mrf.mxu0
      %v1496 = vadd.f32 0.0, %v1495
      %v1497 = vpop.f32.mrf.mxu0
      %v1498 = vpop.f32.mrf.mxu0
      %v1499 = vadd.f32 0.0, %v1498
      %v1500 = vpop.f32.mrf.mxu0
      %1501 = vmatprep.mubr.bf16.mxu0 0
      %1502 = vmatmul.mubr.bf16.gmra.mxu0 %v1340
      %v1503 = vpop.f32.mrf.mxu0
      %v1504 = vadd.f32 0.0, %v1503
      %v1505 = vpop.f32.mrf.mxu0
      %v1506 = vpop.f32.mrf.mxu0
      %v1507 = vadd.f32 0.0, %v1506
      %v1508 = vpop.f32.mrf.mxu0
      %1509 = vmatprep.mubr.bf16.mxu0 0
      %1510 = vmatmul.mubr.bf16.gmra.mxu0 %v1341
      %v1511 = vpop.f32.mrf.mxu0
      %v1512 = vadd.f32 0.0, %v1511
      %v1513 = vpop.f32.mrf.mxu0
      %v1514 = vpop.f32.mrf.mxu0
      %v1515 = vadd.f32 0.0, %v1514
      %v1516 = vpop.f32.mrf.mxu0
      %1517 = vmatprep.mubr.bf16.mxu0 0
      %1518 = vmatmul.mubr.bf16.gmra.mxu0 %v1342
      %v1519 = vpop.f32.mrf.mxu0
      %v1520 = vadd.f32 0.0, %v1519
      %v1521 = vpop.f32.mrf.mxu0
      %v1522 = vpop.f32.mrf.mxu0
      %v1523 = vadd.f32 0.0, %v1522
      %v1524 = vpop.f32.mrf.mxu0
      %1525 = vmatprep.mubr.bf16.mxu0 0
      %1526 = vmatmul.mubr.bf16.gmra.mxu0 %v1343
      %v1527 = vpop.f32.mrf.mxu0
      %v1528 = vadd.f32 0.0, %v1527
      %v1529 = vpop.f32.mrf.mxu0
      %v1530 = vpop.f32.mrf.mxu0
      %v1531 = vadd.f32 0.0, %v1530
      %v1532 = vpop.f32.mrf.mxu0
      %1533 = vmatprep.mubr.bf16.mxu0 0
      %1534 = vmatmul.mubr.bf16.gmra.mxu0 %v1344
      %v1535 = vpop.f32.mrf.mxu0
      %v1536 = vadd.f32 0.0, %v1535
      %v1537 = vpop.f32.mrf.mxu0
      %v1538 = vpop.f32.mrf.mxu0
      %v1539 = vadd.f32 0.0, %v1538
      %v1540 = vpop.f32.mrf.mxu0
      %1541 = vmatprep.mubr.bf16.mxu0 0
      %1542 = vmatmul.mubr.bf16.gmra.mxu0 %v1345
      %v1543 = vpop.f32.mrf.mxu0
      %v1544 = vadd.f32 0.0, %v1543
      %v1545 = vpop.f32.mrf.mxu0
      %v1546 = vpop.f32.mrf.mxu0
      %v1547 = vadd.f32 0.0, %v1546
      %v1548 = vpop.f32.mrf.mxu0
      %1549 = vmatprep.mubr.bf16.mxu0 0
      %1550 = vmatmul.mubr.bf16.gmra.mxu0 %v1346
      %v1551 = vpop.f32.mrf.mxu0
      %v1552 = vadd.f32 0.0, %v1551
      %v1553 = vpop.f32.mrf.mxu0
      %v1554 = vpop.f32.mrf.mxu0
      %v1555 = vadd.f32 0.0, %v1554
      %v1556 = vpop.f32.mrf.mxu0
      %1557 = vmatprep.mubr.bf16.mxu0 0
      %1558 = vmatmul.mubr.bf16.gmra.mxu0 %v1347
      %v1559 = vpop.f32.mrf.mxu0
      %v1560 = vadd.f32 0.0, %v1559
      %v1561 = vpop.f32.mrf.mxu0
      %v1562 = vpop.f32.mrf.mxu0
      %v1563 = vadd.f32 0.0, %v1562
      %v1564 = vpop.f32.mrf.mxu0
      %1565 = vmatprep.mubr.bf16.mxu0 0
      %1566 = vmatmul.mubr.bf16.gmra.mxu0 %v1348
      %v1567 = vpop.f32.mrf.mxu0
      %v1568 = vadd.f32 0.0, %v1567
      %v1569 = vpop.f32.mrf.mxu0
      %v1570 = vpop.f32.mrf.mxu0
      %v1571 = vadd.f32 0.0, %v1570
      %v1572 = vpop.f32.mrf.mxu0
      %1573 = vdwg.mxu0
      %v1606 = vunpack.c.l.b16 %v833
      %v1607 = vunpack.c.l.b16 %v834
      %v1608 = vunpack.c.l.b16 %v835
      %v1609 = vunpack.c.l.b16 %v836
      %v1610 = vunpack.c.l.b16 %v837
      %v1611 = vunpack.c.l.b16 %v838
      %v1612 = vunpack.c.l.b16 %v839
      %v1613 = vunpack.c.l.b16 %v840
      %v1614 = vunpack.c.l.b16 %v841
      %v1615 = vunpack.c.l.b16 %v842
      %v1616 = vunpack.c.l.b16 %v843
      %v1617 = vunpack.c.l.b16 %v844
      %v1618 = vunpack.c.l.b16 %v845
      %v1619 = vunpack.c.l.b16 %v846
      %v1620 = vunpack.c.l.b16 %v847
      %v1621 = vunpack.c.l.b16 %v848
      %v1622 = vunpack.c.l.b16 %v849
      %v1623 = vunpack.c.l.b16 %v850
      %v1624 = vunpack.c.l.b16 %v851
      %v1625 = vunpack.c.l.b16 %v852
      %v1626 = vunpack.c.l.b16 %v853
      %v1627 = vunpack.c.l.b16 %v854
      %v1628 = vunpack.c.l.b16 %v855
      %v1629 = vunpack.c.l.b16 %v856
      %v1630 = vunpack.c.l.b16 %v857
      %v1631 = vunpack.c.l.b16 %v858
      %v1632 = vunpack.c.l.b16 %v859
      %v1633 = vunpack.c.l.b16 %v860
      %v1634 = vunpack.c.l.b16 %v861
      %v1635 = vunpack.c.l.b16 %v862
      %v1636 = vunpack.c.l.b16 %v863
      %v1637 = vunpack.c.l.b16 %v864
      %v1638 = vpack.c.b16 %v1607, %v1606
      %v1639 = vpack.c.b16 %v1609, %v1608
      %v1640 = vpack.c.b16 %v1611, %v1610
      %v1641 = vpack.c.b16 %v1613, %v1612
      %v1642 = vpack.c.b16 %v1615, %v1614
      %v1643 = vpack.c.b16 %v1617, %v1616
      %v1644 = vpack.c.b16 %v1619, %v1618
      %v1645 = vpack.c.b16 %v1621, %v1620
      %v1646 = vpack.c.b16 %v1623, %v1622
      %v1647 = vpack.c.b16 %v1625, %v1624
      %v1648 = vpack.c.b16 %v1627, %v1626
      %v1649 = vpack.c.b16 %v1629, %v1628
      %v1650 = vpack.c.b16 %v1631, %v1630
      %v1651 = vpack.c.b16 %v1633, %v1632
      %v1652 = vpack.c.b16 %v1635, %v1634
      %v1653 = vpack.c.b16 %v1637, %v1636
      %v1686 = vunpack.c.l.b16 %v865
      %v1687 = vunpack.c.l.b16 %v866
      %v1688 = vunpack.c.l.b16 %v867
      %v1689 = vunpack.c.l.b16 %v868
      %v1690 = vunpack.c.l.b16 %v869
      %v1691 = vunpack.c.l.b16 %v870
      %v1692 = vunpack.c.l.b16 %v871
      %v1693 = vunpack.c.l.b16 %v872
      %v1694 = vunpack.c.l.b16 %v873
      %v1695 = vunpack.c.l.b16 %v874
      %v1696 = vunpack.c.l.b16 %v875
      %v1697 = vunpack.c.l.b16 %v876
      %v1698 = vunpack.c.l.b16 %v877
      %v1699 = vunpack.c.l.b16 %v878
      %v1700 = vunpack.c.l.b16 %v879
      %v1701 = vunpack.c.l.b16 %v880
      %v1702 = vpack.c.b16 %v1687, %v1686
      %v1703 = vpack.c.b16 %v1689, %v1688
      %v1704 = vpack.c.b16 %v1691, %v1690
      %v1705 = vpack.c.b16 %v1693, %v1692
      %v1706 = vpack.c.b16 %v1695, %v1694
      %v1707 = vpack.c.b16 %v1697, %v1696
      %v1708 = vpack.c.b16 %v1699, %v1698
      %v1709 = vpack.c.b16 %v1701, %v1700
      %1718 = vmatprep.subr.bf16.mxu0 0
      %1719 = vmatpush1.bf16.msra.mxu0 %v1709
      %1720 = vmatprep.subr.bf16.mxu0 0
      %1721 = vmatpush1.bf16.msra.mxu0 %v1708
      %1722 = vmatprep.subr.bf16.mxu0 0
      %1723 = vmatpush1.bf16.msra.mxu0 %v1707
      %1724 = vmatprep.subr.bf16.mxu0 0
      %1725 = vmatpush1.bf16.msra.mxu0 %v1706
      %1726 = vmatprep.subr.bf16.mxu0 0
      %1727 = vmatpush1.bf16.msra.mxu0 %v1705
      %1728 = vmatprep.subr.bf16.mxu0 0
      %1729 = vmatpush1.bf16.msra.mxu0 %v1704
      %1730 = vmatprep.subr.bf16.mxu0 0
      %1731 = vmatpush1.bf16.msra.mxu0 %v1703
      %1732 = vmatprep.subr.bf16.mxu0 0
      %1733 = vmatpush1.bf16.msra.mxu0 %v1702
      %1734 = vmatprep.subr.bf16.mxu0 0
      %1735 = vmatpush2.bf16.msra.mxu0 0
      %1736 = vmatprep.subr.bf16.mxu0 0
      %1737 = vmatpush2.bf16.msra.mxu0 0
      %1738 = vmatprep.subr.bf16.mxu0 0
      %1739 = vmatpush2.bf16.msra.mxu0 0
      %1740 = vmatprep.subr.bf16.mxu0 0
      %1741 = vmatpush2.bf16.msra.mxu0 0
      %1742 = vmatprep.subr.bf16.mxu0 0
      %1743 = vmatpush2.bf16.msra.mxu0 0
      %1744 = vmatprep.subr.bf16.mxu0 0
      %1745 = vmatpush2.bf16.msra.mxu0 0
      %1746 = vmatprep.subr.bf16.mxu0 0
      %1747 = vmatpush2.bf16.msra.mxu0 0
      %1748 = vmatprep.subr.bf16.mxu0 0
      %1749 = vmatpush2.bf16.msra.mxu0 0
      %1750 = vmatprep.mubr.bf16.mxu0 0
      %1751 = vmatmul.mubr.bf16.gmra.mxu0 %v1638
      %v1752 = vpop.f32.mrf.mxu0
      %v1753 = vadd.f32 %v1448, %v1752
      %v1754 = vpop.f32.mrf.mxu0
      %v1755 = vpop.f32.mrf.mxu0
      %v1756 = vadd.f32 %v1451, %v1755
      %v1757 = vpop.f32.mrf.mxu0
      %1758 = vmatprep.mubr.bf16.mxu0 0
      %1759 = vmatmul.mubr.bf16.gmra.mxu0 %v1639
      %v1760 = vpop.f32.mrf.mxu0
      %v1761 = vadd.f32 %v1456, %v1760
      %v1762 = vpop.f32.mrf.mxu0
      %v1763 = vpop.f32.mrf.mxu0
      %v1764 = vadd.f32 %v1459, %v1763
      %v1765 = vpop.f32.mrf.mxu0
      %1766 = vmatprep.mubr.bf16.mxu0 0
      %1767 = vmatmul.mubr.bf16.gmra.mxu0 %v1640
      %v1768 = vpop.f32.mrf.mxu0
      %v1769 = vadd.f32 %v1464, %v1768
      %v1770 = vpop.f32.mrf.mxu0
      %v1771 = vpop.f32.mrf.mxu0
      %v1772 = vadd.f32 %v1467, %v1771
      %v1773 = vpop.f32.mrf.mxu0
      %1774 = vmatprep.mubr.bf16.mxu0 0
      %1775 = vmatmul.mubr.bf16.gmra.mxu0 %v1641
      %v1776 = vpop.f32.mrf.mxu0
      %v1777 = vadd.f32 %v1472, %v1776
      %v1778 = vpop.f32.mrf.mxu0
      %v1779 = vpop.f32.mrf.mxu0
      %v1780 = vadd.f32 %v1475, %v1779
      %v1781 = vpop.f32.mrf.mxu0
      %1782 = vmatprep.mubr.bf16.mxu0 0
      %1783 = vmatmul.mubr.bf16.gmra.mxu0 %v1642
      %v1784 = vpop.f32.mrf.mxu0
      %v1785 = vadd.f32 %v1480, %v1784
      %v1786 = vpop.f32.mrf.mxu0
      %v1787 = vpop.f32.mrf.mxu0
      %v1788 = vadd.f32 %v1483, %v1787
      %v1789 = vpop.f32.mrf.mxu0
      %1790 = vmatprep.mubr.bf16.mxu0 0
      %1791 = vmatmul.mubr.bf16.gmra.mxu0 %v1643
      %v1792 = vpop.f32.mrf.mxu0
      %v1793 = vadd.f32 %v1488, %v1792
      %v1794 = vpop.f32.mrf.mxu0
      %v1795 = vpop.f32.mrf.mxu0
      %v1796 = vadd.f32 %v1491, %v1795
      %v1797 = vpop.f32.mrf.mxu0
      %1798 = vmatprep.mubr.bf16.mxu0 0
      %1799 = vmatmul.mubr.bf16.gmra.mxu0 %v1644
      %v1800 = vpop.f32.mrf.mxu0
      %v1801 = vadd.f32 %v1496, %v1800
      %v1802 = vpop.f32.mrf.mxu0
      %v1803 = vpop.f32.mrf.mxu0
      %v1804 = vadd.f32 %v1499, %v1803
      %v1805 = vpop.f32.mrf.mxu0
      %1806 = vmatprep.mubr.bf16.mxu0 0
      %1807 = vmatmul.mubr.bf16.gmra.mxu0 %v1645
      %v1808 = vpop.f32.mrf.mxu0
      %v1809 = vadd.f32 %v1504, %v1808
      %v1810 = vpop.f32.mrf.mxu0
      %v1811 = vpop.f32.mrf.mxu0
      %v1812 = vadd.f32 %v1507, %v1811
      %v1813 = vpop.f32.mrf.mxu0
      %1814 = vmatprep.mubr.bf16.mxu0 0
      %1815 = vmatmul.mubr.bf16.gmra.mxu0 %v1646
      %v1816 = vpop.f32.mrf.mxu0
      %v1817 = vadd.f32 %v1512, %v1816
      %v1818 = vpop.f32.mrf.mxu0
      %v1819 = vpop.f32.mrf.mxu0
      %v1820 = vadd.f32 %v1515, %v1819
      %v1821 = vpop.f32.mrf.mxu0
      %1822 = vmatprep.mubr.bf16.mxu0 0
      %1823 = vmatmul.mubr.bf16.gmra.mxu0 %v1647
      %v1824 = vpop.f32.mrf.mxu0
      %v1825 = vadd.f32 %v1520, %v1824
      %v1826 = vpop.f32.mrf.mxu0
      %v1827 = vpop.f32.mrf.mxu0
      %v1828 = vadd.f32 %v1523, %v1827
      %v1829 = vpop.f32.mrf.mxu0
      %1830 = vmatprep.mubr.bf16.mxu0 0
      %1831 = vmatmul.mubr.bf16.gmra.mxu0 %v1648
      %v1832 = vpop.f32.mrf.mxu0
      %v1833 = vadd.f32 %v1528, %v1832
      %v1834 = vpop.f32.mrf.mxu0
      %v1835 = vpop.f32.mrf.mxu0
      %v1836 = vadd.f32 %v1531, %v1835
      %v1837 = vpop.f32.mrf.mxu0
      %1838 = vmatprep.mubr.bf16.mxu0 0
      %1839 = vmatmul.mubr.bf16.gmra.mxu0 %v1649
      %v1840 = vpop.f32.mrf.mxu0
      %v1841 = vadd.f32 %v1536, %v1840
      %v1842 = vpop.f32.mrf.mxu0
      %v1843 = vpop.f32.mrf.mxu0
      %v1844 = vadd.f32 %v1539, %v1843
      %v1845 = vpop.f32.mrf.mxu0
      %1846 = vmatprep.mubr.bf16.mxu0 0
      %1847 = vmatmul.mubr.bf16.gmra.mxu0 %v1650
      %v1848 = vpop.f32.mrf.mxu0
      %v1849 = vadd.f32 %v1544, %v1848
      %v1850 = vpop.f32.mrf.mxu0
      %v1851 = vpop.f32.mrf.mxu0
      %v1852 = vadd.f32 %v1547, %v1851
      %v1853 = vpop.f32.mrf.mxu0
      %1854 = vmatprep.mubr.bf16.mxu0 0
      %1855 = vmatmul.mubr.bf16.gmra.mxu0 %v1651
      %v1856 = vpop.f32.mrf.mxu0
      %v1857 = vadd.f32 %v1552, %v1856
      %v1858 = vpop.f32.mrf.mxu0
      %v1859 = vpop.f32.mrf.mxu0
      %v1860 = vadd.f32 %v1555, %v1859
      %v1861 = vpop.f32.mrf.mxu0
      %1862 = vmatprep.mubr.bf16.mxu0 0
      %1863 = vmatmul.mubr.bf16.gmra.mxu0 %v1652
      %v1864 = vpop.f32.mrf.mxu0
      %v1865 = vadd.f32 %v1560, %v1864
      %v1866 = vpop.f32.mrf.mxu0
      %v1867 = vpop.f32.mrf.mxu0
      %v1868 = vadd.f32 %v1563, %v1867
      %v1869 = vpop.f32.mrf.mxu0
      %1870 = vmatprep.mubr.bf16.mxu0 0
      %1871 = vmatmul.mubr.bf16.gmra.mxu0 %v1653
      %v1872 = vpop.f32.mrf.mxu0
      %v1873 = vadd.f32 %v1568, %v1872
      %v1874 = vpop.f32.mrf.mxu0
      %v1875 = vpop.f32.mrf.mxu0
      %v1876 = vadd.f32 %v1571, %v1875
      %v1877 = vpop.f32.mrf.mxu0
      %1878 = vdwg.mxu0
      %v1879 = vld [vmem:[#allocation2] sm:$0xe]
      %v1880 = vld [vmem:[#allocation2 + $0xc] sm:$0xe]
      %v1881 = vld [vmem:[#allocation2 + $0x18] sm:$0xe]
      %v1882 = vld [vmem:[#allocation2 + $0x24] sm:$0xe]
      %v1883 = vld [vmem:[#allocation2 + $0x30] sm:$0xe]
      %v1884 = vld [vmem:[#allocation2 + $0x3c] sm:$0xe]
      %v1885 = vld [vmem:[#allocation2 + $0x48] sm:$0xe]
      %v1886 = vld [vmem:[#allocation2 + $0x54] sm:$0xe]
      %v1887 = vld [vmem:[#allocation2 + $0x60] sm:$0xe]
      %v1888 = vld [vmem:[#allocation2 + $0x6c] sm:$0xe]
      %v1889 = vld [vmem:[#allocation2 + $0x78] sm:$0xe]
      %v1890 = vld [vmem:[#allocation2 + $0x84] sm:$0xe]
      %v1891 = vld [vmem:[#allocation2 + $0x90] sm:$0xe]
      %v1892 = vld [vmem:[#allocation2 + $0x9c] sm:$0xe]
      %v1893 = vld [vmem:[#allocation2 + $0xa8] sm:$0xe]
      %v1894 = vld [vmem:[#allocation2 + $0xb4] sm:$0xe]
      %vm1927 = vcmask 1042432
      %vm1928 = vcmask 1046532
      %vm1929 = vmor %vm1927, %vm1928
      %v1930 = vrot.slane %v1879, 5
      %v1931 = vrot.slane %v1930, 4
      %v1932 = vrot.slane %v834, 5
      %v1933 = vsel %vm1929, %v1931, %v1932
      %v1934 = vrot.slane %v1932, 4
      %v1935 = vrot.slane %v881, 5
      %v1936 = vsel %vm1929, %v1934, %v1935
      %v1937 = vrot.slane %v1880, 5
      %v1938 = vrot.slane %v1937, 4
      %v1939 = vrot.slane %v836, 5
      %v1940 = vsel %vm1929, %v1938, %v1939
      %v1941 = vrot.slane %v1939, 4
      %v1942 = vrot.slane %v882, 5
      %v1943 = vsel %vm1929, %v1941, %v1942
      %v1944 = vrot.slane %v1881, 5
      %v1945 = vrot.slane %v1944, 4
      %v1946 = vrot.slane %v838, 5
      %v1947 = vsel %vm1929, %v1945, %v1946
      %v1948 = vrot.slane %v1946, 4
      %v1949 = vrot.slane %v883, 5
      %v1950 = vsel %vm1929, %v1948, %v1949
      %v1951 = vrot.slane %v1882, 5
      %v1952 = vrot.slane %v1951, 4
      %v1953 = vrot.slane %v840, 5
      %v1954 = vsel %vm1929, %v1952, %v1953
      %v1955 = vrot.slane %v1953, 4
      %v1956 = vrot.slane %v884, 5
      %v1957 = vsel %vm1929, %v1955, %v1956
      %v1958 = vrot.slane %v1883, 5
      %v1959 = vrot.slane %v1958, 4
      %v1960 = vrot.slane %v842, 5
      %v1961 = vsel %vm1929, %v1959, %v1960
      %v1962 = vrot.slane %v1960, 4
      %v1963 = vrot.slane %v885, 5
      %v1964 = vsel %vm1929, %v1962, %v1963
      %v1965 = vrot.slane %v1884, 5
      %v1966 = vrot.slane %v1965, 4
      %v1967 = vrot.slane %v844, 5
      %v1968 = vsel %vm1929, %v1966, %v1967
      %v1969 = vrot.slane %v1967, 4
      %v1970 = vrot.slane %v886, 5
      %v1971 = vsel %vm1929, %v1969, %v1970
      %v1972 = vrot.slane %v1885, 5
      %v1973 = vrot.slane %v1972, 4
      %v1974 = vrot.slane %v846, 5
      %v1975 = vsel %vm1929, %v1973, %v1974
      %v1976 = vrot.slane %v1974, 4
      %v1977 = vrot.slane %v887, 5
      %v1978 = vsel %vm1929, %v1976, %v1977
      %v1979 = vrot.slane %v1886, 5
      %v1980 = vrot.slane %v1979, 4
      %v1981 = vrot.slane %v848, 5
      %v1982 = vsel %vm1929, %v1980, %v1981
      %v1983 = vrot.slane %v1981, 4
      %v1984 = vrot.slane %v888, 5
      %v1985 = vsel %vm1929, %v1983, %v1984
      %v1986 = vrot.slane %v1887, 5
      %v1987 = vrot.slane %v1986, 4
      %v1988 = vrot.slane %v850, 5
      %v1989 = vsel %vm1929, %v1987, %v1988
      %v1990 = vrot.slane %v1988, 4
      %v1991 = vrot.slane %v889, 5
      %v1992 = vsel %vm1929, %v1990, %v1991
      %v1993 = vrot.slane %v1888, 5
      %v1994 = vrot.slane %v1993, 4
      %v1995 = vrot.slane %v852, 5
      %v1996 = vsel %vm1929, %v1994, %v1995
      %v1997 = vrot.slane %v1995, 4
      %v1998 = vrot.slane %v890, 5
      %v1999 = vsel %vm1929, %v1997, %v1998
      %v2000 = vrot.slane %v1889, 5
      %v2001 = vrot.slane %v2000, 4
      %v2002 = vrot.slane %v854, 5
      %v2003 = vsel %vm1929, %v2001, %v2002
      %v2004 = vrot.slane %v2002, 4
      %v2005 = vrot.slane %v891, 5
      %v2006 = vsel %vm1929, %v2004, %v2005
      %v2007 = vrot.slane %v1890, 5
      %v2008 = vrot.slane %v2007, 4
      %v2009 = vrot.slane %v856, 5
      %v2010 = vsel %vm1929, %v2008, %v2009
      %v2011 = vrot.slane %v2009, 4
      %v2012 = vrot.slane %v892, 5
      %v2013 = vsel %vm1929, %v2011, %v2012
      %v2014 = vrot.slane %v1891, 5
      %v2015 = vrot.slane %v2014, 4
      %v2016 = vrot.slane %v858, 5
      %v2017 = vsel %vm1929, %v2015, %v2016
      %v2018 = vrot.slane %v2016, 4
      %v2019 = vrot.slane %v893, 5
      %v2020 = vsel %vm1929, %v2018, %v2019
      %v2021 = vrot.slane %v1892, 5
      %v2022 = vrot.slane %v2021, 4
      %v2023 = vrot.slane %v860, 5
      %v2024 = vsel %vm1929, %v2022, %v2023
      %v2025 = vrot.slane %v2023, 4
      %v2026 = vrot.slane %v894, 5
      %v2027 = vsel %vm1929, %v2025, %v2026
      %v2028 = vrot.slane %v1893, 5
      %v2029 = vrot.slane %v2028, 4
      %v2030 = vrot.slane %v862, 5
      %v2031 = vsel %vm1929, %v2029, %v2030
      %v2032 = vrot.slane %v2030, 4
      %v2033 = vrot.slane %v895, 5
      %v2034 = vsel %vm1929, %v2032, %v2033
      %v2035 = vrot.slane %v1894, 5
      %v2036 = vrot.slane %v2035, 4
      %v2037 = vrot.slane %v864, 5
      %v2038 = vsel %vm1929, %v2036, %v2037
      %v2039 = vrot.slane %v2037, 4
      %v2040 = vrot.slane %v896, 5
      %v2041 = vsel %vm1929, %v2039, %v2040
      %s2042 = scalar_lea.vmem %s1, 128
      %v2043 = vld [vmem:[%s2042] sm:$0xf]
      %v2044 = vld [vmem:[%s2042 + $0x4] sm:$0xf]
      %v2045 = vld [vmem:[%s2042 + $0x8] sm:$0xf]
      %v2046 = vld [vmem:[%s2042 + $0xc] sm:$0xf]
      %v2047 = vld [vmem:[%s2042 + $0x10] sm:$0xf]
      %v2048 = vld [vmem:[%s2042 + $0x14] sm:$0xf]
      %v2049 = vld [vmem:[%s2042 + $0x18] sm:$0xf]
      %v2050 = vld [vmem:[%s2042 + $0x1c] sm:$0xf]
      %v2051 = vld [vmem:[%s2042 + $0x20] sm:$0xf]
      %v2052 = vld [vmem:[%s2042 + $0x24] sm:$0xf]
      %v2053 = vld [vmem:[%s2042 + $0x28] sm:$0xf]
      %v2054 = vld [vmem:[%s2042 + $0x2c] sm:$0xf]
      %v2055 = vld [vmem:[%s2042 + $0x30] sm:$0xf]
      %v2056 = vld [vmem:[%s2042 + $0x34] sm:$0xf]
      %v2057 = vld [vmem:[%s2042 + $0x38] sm:$0xf]
      %v2058 = vld [vmem:[%s2042 + $0x3c] sm:$0xf]
      %v2059 = vunpack.c.l.b16 %v1933
      %v2060 = vunpack.c.l.b16 %v1936
      %v2061 = vunpack.c.l.b16 %v1940
      %v2062 = vunpack.c.l.b16 %v1943
      %v2063 = vunpack.c.l.b16 %v1947
      %v2064 = vunpack.c.l.b16 %v1950
      %v2065 = vunpack.c.l.b16 %v1954
      %v2066 = vunpack.c.l.b16 %v1957
      %v2067 = vunpack.c.l.b16 %v1961
      %v2068 = vunpack.c.l.b16 %v1964
      %v2069 = vunpack.c.l.b16 %v1968
      %v2070 = vunpack.c.l.b16 %v1971
      %v2071 = vunpack.c.l.b16 %v1975
      %v2072 = vunpack.c.l.b16 %v1978
      %v2073 = vunpack.c.l.b16 %v1982
      %v2074 = vunpack.c.l.b16 %v1985
      %v2075 = vunpack.c.l.b16 %v1989
      %v2076 = vunpack.c.l.b16 %v1992
      %v2077 = vunpack.c.l.b16 %v1996
      %v2078 = vunpack.c.l.b16 %v1999
      %v2079 = vunpack.c.l.b16 %v2003
      %v2080 = vunpack.c.l.b16 %v2006
      %v2081 = vunpack.c.l.b16 %v2010
      %v2082 = vunpack.c.l.b16 %v2013
      %v2083 = vunpack.c.l.b16 %v2017
      %v2084 = vunpack.c.l.b16 %v2020
      %v2085 = vunpack.c.l.b16 %v2024
      %v2086 = vunpack.c.l.b16 %v2027
      %v2087 = vunpack.c.l.b16 %v2031
      %v2088 = vunpack.c.l.b16 %v2034
      %v2089 = vunpack.c.l.b16 %v2038
      %v2090 = vunpack.c.l.b16 %v2041
      %v2091 = vpack.c.b16 %v2060, %v2059
      %v2092 = vpack.c.b16 %v2062, %v2061
      %v2093 = vpack.c.b16 %v2064, %v2063
      %v2094 = vpack.c.b16 %v2066, %v2065
      %v2095 = vpack.c.b16 %v2068, %v2067
      %v2096 = vpack.c.b16 %v2070, %v2069
      %v2097 = vpack.c.b16 %v2072, %v2071
      %v2098 = vpack.c.b16 %v2074, %v2073
      %v2099 = vpack.c.b16 %v2076, %v2075
      %v2100 = vpack.c.b16 %v2078, %v2077
      %v2101 = vpack.c.b16 %v2080, %v2079
      %v2102 = vpack.c.b16 %v2082, %v2081
      %v2103 = vpack.c.b16 %v2084, %v2083
      %v2104 = vpack.c.b16 %v2086, %v2085
      %v2105 = vpack.c.b16 %v2088, %v2087
      %v2106 = vpack.c.b16 %v2090, %v2089
      %v2139 = vunpack.c.l.b16 %v2043
      %v2140 = vunpack.c.l.b16 %v2044
      %v2141 = vunpack.c.l.b16 %v2045
      %v2142 = vunpack.c.l.b16 %v2046
      %v2143 = vunpack.c.l.b16 %v2047
      %v2144 = vunpack.c.l.b16 %v2048
      %v2145 = vunpack.c.l.b16 %v2049
      %v2146 = vunpack.c.l.b16 %v2050
      %v2147 = vunpack.c.l.b16 %v2051
      %v2148 = vunpack.c.l.b16 %v2052
      %v2149 = vunpack.c.l.b16 %v2053
      %v2150 = vunpack.c.l.b16 %v2054
      %v2151 = vunpack.c.l.b16 %v2055
      %v2152 = vunpack.c.l.b16 %v2056
      %v2153 = vunpack.c.l.b16 %v2057
      %v2154 = vunpack.c.l.b16 %v2058
      %v2155 = vpack.c.b16 %v2140, %v2139
      %v2156 = vpack.c.b16 %v2142, %v2141
      %v2157 = vpack.c.b16 %v2144, %v2143
      %v2158 = vpack.c.b16 %v2146, %v2145
      %v2159 = vpack.c.b16 %v2148, %v2147
      %v2160 = vpack.c.b16 %v2150, %v2149
      %v2161 = vpack.c.b16 %v2152, %v2151
      %v2162 = vpack.c.b16 %v2154, %v2153
      %2171 = vmatprep.subr.bf16.mxu0 0
      %2172 = vmatpush1.bf16.msra.mxu0 %v2162
      %2173 = vmatprep.subr.bf16.mxu0 0
      %2174 = vmatpush1.bf16.msra.mxu0 %v2161
      %2175 = vmatprep.subr.bf16.mxu0 0
      %2176 = vmatpush1.bf16.msra.mxu0 %v2160
      %2177 = vmatprep.subr.bf16.mxu0 0
      %2178 = vmatpush1.bf16.msra.mxu0 %v2159
      %2179 = vmatprep.subr.bf16.mxu0 0
      %2180 = vmatpush1.bf16.msra.mxu0 %v2158
      %2181 = vmatprep.subr.bf16.mxu0 0
      %2182 = vmatpush1.bf16.msra.mxu0 %v2157
      %2183 = vmatprep.subr.bf16.mxu0 0
      %2184 = vmatpush1.bf16.msra.mxu0 %v2156
      %2185 = vmatprep.subr.bf16.mxu0 0
      %2186 = vmatpush1.bf16.msra.mxu0 %v2155
      %2187 = vmatprep.subr.bf16.mxu0 0
      %2188 = vmatpush2.bf16.msra.mxu0 0
      %2189 = vmatprep.subr.bf16.mxu0 0
      %2190 = vmatpush2.bf16.msra.mxu0 0
      %2191 = vmatprep.subr.bf16.mxu0 0
      %2192 = vmatpush2.bf16.msra.mxu0 0
      %2193 = vmatprep.subr.bf16.mxu0 0
      %2194 = vmatpush2.bf16.msra.mxu0 0
      %2195 = vmatprep.subr.bf16.mxu0 0
      %2196 = vmatpush2.bf16.msra.mxu0 0
      %2197 = vmatprep.subr.bf16.mxu0 0
      %2198 = vmatpush2.bf16.msra.mxu0 0
      %2199 = vmatprep.subr.bf16.mxu0 0
      %2200 = vmatpush2.bf16.msra.mxu0 0
      %2201 = vmatprep.subr.bf16.mxu0 0
      %2202 = vmatpush2.bf16.msra.mxu0 0
      %2203 = vmatprep.mubr.bf16.mxu0 0
      %2204 = vmatmul.mubr.bf16.gmra.mxu0 %v2091
      %v2205 = vpop.f32.mrf.mxu0
      %v2206 = vadd.f32 0.0, %v2205
      %v2207 = vpop.f32.mrf.mxu0
      %v2208 = vpop.f32.mrf.mxu0
      %v2209 = vadd.f32 0.0, %v2208
      %v2210 = vpop.f32.mrf.mxu0
      %2211 = vmatprep.mubr.bf16.mxu0 0
      %2212 = vmatmul.mubr.bf16.gmra.mxu0 %v2092
      %v2213 = vpop.f32.mrf.mxu0
      %v2214 = vadd.f32 0.0, %v2213
      %v2215 = vpop.f32.mrf.mxu0
      %v2216 = vpop.f32.mrf.mxu0
      %v2217 = vadd.f32 0.0, %v2216
      %v2218 = vpop.f32.mrf.mxu0
      %2219 = vmatprep.mubr.bf16.mxu0 0
      %2220 = vmatmul.mubr.bf16.gmra.mxu0 %v2093
      %v2221 = vpop.f32.mrf.mxu0
      %v2222 = vadd.f32 0.0, %v2221
      %v2223 = vpop.f32.mrf.mxu0
      %v2224 = vpop.f32.mrf.mxu0
      %v2225 = vadd.f32 0.0, %v2224
      %v2226 = vpop.f32.mrf.mxu0
      %2227 = vmatprep.mubr.bf16.mxu0 0
      %2228 = vmatmul.mubr.bf16.gmra.mxu0 %v2094
      %v2229 = vpop.f32.mrf.mxu0
      %v2230 = vadd.f32 0.0, %v2229
      %v2231 = vpop.f32.mrf.mxu0
      %v2232 = vpop.f32.mrf.mxu0
      %v2233 = vadd.f32 0.0, %v2232
      %v2234 = vpop.f32.mrf.mxu0
      %2235 = vmatprep.mubr.bf16.mxu0 0
      %2236 = vmatmul.mubr.bf16.gmra.mxu0 %v2095
      %v2237 = vpop.f32.mrf.mxu0
      %v2238 = vadd.f32 0.0, %v2237
      %v2239 = vpop.f32.mrf.mxu0
      %v2240 = vpop.f32.mrf.mxu0
      %v2241 = vadd.f32 0.0, %v2240
      %v2242 = vpop.f32.mrf.mxu0
      %2243 = vmatprep.mubr.bf16.mxu0 0
      %2244 = vmatmul.mubr.bf16.gmra.mxu0 %v2096
      %v2245 = vpop.f32.mrf.mxu0
      %v2246 = vadd.f32 0.0, %v2245
      %v2247 = vpop.f32.mrf.mxu0
      %v2248 = vpop.f32.mrf.mxu0
      %v2249 = vadd.f32 0.0, %v2248
      %v2250 = vpop.f32.mrf.mxu0
      %2251 = vmatprep.mubr.bf16.mxu0 0
      %2252 = vmatmul.mubr.bf16.gmra.mxu0 %v2097
      %v2253 = vpop.f32.mrf.mxu0
      %v2254 = vadd.f32 0.0, %v2253
      %v2255 = vpop.f32.mrf.mxu0
      %v2256 = vpop.f32.mrf.mxu0
      %v2257 = vadd.f32 0.0, %v2256
      %v2258 = vpop.f32.mrf.mxu0
      %2259 = vmatprep.mubr.bf16.mxu0 0
      %2260 = vmatmul.mubr.bf16.gmra.mxu0 %v2098
      %v2261 = vpop.f32.mrf.mxu0
      %v2262 = vadd.f32 0.0, %v2261
      %v2263 = vpop.f32.mrf.mxu0
      %v2264 = vpop.f32.mrf.mxu0
      %v2265 = vadd.f32 0.0, %v2264
      %v2266 = vpop.f32.mrf.mxu0
      %2267 = vmatprep.mubr.bf16.mxu0 0
      %2268 = vmatmul.mubr.bf16.gmra.mxu0 %v2099
      %v2269 = vpop.f32.mrf.mxu0
      %v2270 = vadd.f32 0.0, %v2269
      %v2271 = vpop.f32.mrf.mxu0
      %v2272 = vpop.f32.mrf.mxu0
      %v2273 = vadd.f32 0.0, %v2272
      %v2274 = vpop.f32.mrf.mxu0
      %2275 = vmatprep.mubr.bf16.mxu0 0
      %2276 = vmatmul.mubr.bf16.gmra.mxu0 %v2100
      %v2277 = vpop.f32.mrf.mxu0
      %v2278 = vadd.f32 0.0, %v2277
      %v2279 = vpop.f32.mrf.mxu0
      %v2280 = vpop.f32.mrf.mxu0
      %v2281 = vadd.f32 0.0, %v2280
      %v2282 = vpop.f32.mrf.mxu0
      %2283 = vmatprep.mubr.bf16.mxu0 0
      %2284 = vmatmul.mubr.bf16.gmra.mxu0 %v2101
      %v2285 = vpop.f32.mrf.mxu0
      %v2286 = vadd.f32 0.0, %v2285
      %v2287 = vpop.f32.mrf.mxu0
      %v2288 = vpop.f32.mrf.mxu0
      %v2289 = vadd.f32 0.0, %v2288
      %v2290 = vpop.f32.mrf.mxu0
      %2291 = vmatprep.mubr.bf16.mxu0 0
      %2292 = vmatmul.mubr.bf16.gmra.mxu0 %v2102
      %v2293 = vpop.f32.mrf.mxu0
      %v2294 = vadd.f32 0.0, %v2293
      %v2295 = vpop.f32.mrf.mxu0
      %v2296 = vpop.f32.mrf.mxu0
      %v2297 = vadd.f32 0.0, %v2296
      %v2298 = vpop.f32.mrf.mxu0
      %2299 = vmatprep.mubr.bf16.mxu0 0
      %2300 = vmatmul.mubr.bf16.gmra.mxu0 %v2103
      %v2301 = vpop.f32.mrf.mxu0
      %v2302 = vadd.f32 0.0, %v2301
      %v2303 = vpop.f32.mrf.mxu0
      %v2304 = vpop.f32.mrf.mxu0
      %v2305 = vadd.f32 0.0, %v2304
      %v2306 = vpop.f32.mrf.mxu0
      %2307 = vmatprep.mubr.bf16.mxu0 0
      %2308 = vmatmul.mubr.bf16.gmra.mxu0 %v2104
      %v2309 = vpop.f32.mrf.mxu0
      %v2310 = vadd.f32 0.0, %v2309
      %v2311 = vpop.f32.mrf.mxu0
      %v2312 = vpop.f32.mrf.mxu0
      %v2313 = vadd.f32 0.0, %v2312
      %v2314 = vpop.f32.mrf.mxu0
      %2315 = vmatprep.mubr.bf16.mxu0 0
      %2316 = vmatmul.mubr.bf16.gmra.mxu0 %v2105
      %v2317 = vpop.f32.mrf.mxu0
      %v2318 = vadd.f32 0.0, %v2317
      %v2319 = vpop.f32.mrf.mxu0
      %v2320 = vpop.f32.mrf.mxu0
      %v2321 = vadd.f32 0.0, %v2320
      %v2322 = vpop.f32.mrf.mxu0
      %2323 = vmatprep.mubr.bf16.mxu0 0
      %2324 = vmatmul.mubr.bf16.gmra.mxu0 %v2106
      %v2325 = vpop.f32.mrf.mxu0
      %v2326 = vadd.f32 0.0, %v2325
      %v2327 = vpop.f32.mrf.mxu0
      %v2328 = vpop.f32.mrf.mxu0
      %v2329 = vadd.f32 0.0, %v2328
      %v2330 = vpop.f32.mrf.mxu0
      %2331 = vdwg.mxu0
      %v2332 = vadd.f32 %v1753, %v2206
      %v2333 = vadd.f32 %v1756, %v2209
      %v2334 = vadd.f32 %v1761, %v2214
      %v2335 = vadd.f32 %v1764, %v2217
      %v2336 = vadd.f32 %v1769, %v2222
      %v2337 = vadd.f32 %v1772, %v2225
      %v2338 = vadd.f32 %v1777, %v2230
      %v2339 = vadd.f32 %v1780, %v2233
      %v2340 = vadd.f32 %v1785, %v2238
      %v2341 = vadd.f32 %v1788, %v2241
      %v2342 = vadd.f32 %v1793, %v2246
      %v2343 = vadd.f32 %v1796, %v2249
      %v2344 = vadd.f32 %v1801, %v2254
      %v2345 = vadd.f32 %v1804, %v2257
      %v2346 = vadd.f32 %v1809, %v2262
      %v2347 = vadd.f32 %v1812, %v2265
      %v2348 = vadd.f32 %v1817, %v2270
      %v2349 = vadd.f32 %v1820, %v2273
      %v2350 = vadd.f32 %v1825, %v2278
      %v2351 = vadd.f32 %v1828, %v2281
      %v2352 = vadd.f32 %v1833, %v2286
      %v2353 = vadd.f32 %v1836, %v2289
      %v2354 = vadd.f32 %v1841, %v2294
      %v2355 = vadd.f32 %v1844, %v2297
      %v2356 = vadd.f32 %v1849, %v2302
      %v2357 = vadd.f32 %v1852, %v2305
      %v2358 = vadd.f32 %v1857, %v2310
      %v2359 = vadd.f32 %v1860, %v2313
      %v2360 = vadd.f32 %v1865, %v2318
      %v2361 = vadd.f32 %v1868, %v2321
      %v2362 = vadd.f32 %v1873, %v2326
      %v2363 = vadd.f32 %v1876, %v2329
      %v2364 = vld [vmem:[%s715] sm:$0xf]
      %v2365 = vld [vmem:[%s715 + $0x4] sm:$0xf]
      %v2366 = vld [vmem:[%s715 + $0xc] sm:$0xf]
      %v2367 = vld [vmem:[%s715 + $0x10] sm:$0xf]
      %v2368 = vld [vmem:[%s715 + $0x18] sm:$0xf]
      %v2369 = vld [vmem:[%s715 + $0x1c] sm:$0xf]
      %v2370 = vld [vmem:[%s715 + $0x24] sm:$0xf]
      %v2371 = vld [vmem:[%s715 + $0x28] sm:$0xf]
      %v2372 = vld [vmem:[%s715 + $0x30] sm:$0xf]
      %v2373 = vld [vmem:[%s715 + $0x34] sm:$0xf]
      %v2374 = vld [vmem:[%s715 + $0x3c] sm:$0xf]
      %v2375 = vld [vmem:[%s715 + $0x40] sm:$0xf]
      %v2376 = vld [vmem:[%s715 + $0x48] sm:$0xf]
      %v2377 = vld [vmem:[%s715 + $0x4c] sm:$0xf]
      %v2378 = vld [vmem:[%s715 + $0x54] sm:$0xf]
      %v2379 = vld [vmem:[%s715 + $0x58] sm:$0xf]
      %v2380 = vld [vmem:[%s715 + $0x60] sm:$0xf]
      %v2381 = vld [vmem:[%s715 + $0x64] sm:$0xf]
      %v2382 = vld [vmem:[%s715 + $0x6c] sm:$0xf]
      %v2383 = vld [vmem:[%s715 + $0x70] sm:$0xf]
      %v2384 = vld [vmem:[%s715 + $0x78] sm:$0xf]
      %v2385 = vld [vmem:[%s715 + $0x7c] sm:$0xf]
      %v2386 = vld [vmem:[%s715 + $0x84] sm:$0xf]
      %v2387 = vld [vmem:[%s715 + $0x88] sm:$0xf]
      %v2388 = vld [vmem:[%s715 + $0x90] sm:$0xf]
      %v2389 = vld [vmem:[%s715 + $0x94] sm:$0xf]
      %v2390 = vld [vmem:[%s715 + $0x9c] sm:$0xf]
      %v2391 = vld [vmem:[%s715 + $0xa0] sm:$0xf]
      %v2392 = vld [vmem:[%s715 + $0xa8] sm:$0xf]
      %v2393 = vld [vmem:[%s715 + $0xac] sm:$0xf]
      %v2394 = vld [vmem:[%s715 + $0xb4] sm:$0xf]
      %v2395 = vld [vmem:[%s715 + $0xb8] sm:$0xf]
      %s2396 = scalar_lea.vmem %s1, 192
      %v2397 = vld [vmem:[%s2396] sm:$0xf]
      %v2398 = vld [vmem:[%s2396 + $0x4] sm:$0xf]
      %v2399 = vld [vmem:[%s2396 + $0x8] sm:$0xf]
      %v2400 = vld [vmem:[%s2396 + $0xc] sm:$0xf]
      %v2401 = vld [vmem:[%s2396 + $0x10] sm:$0xf]
      %v2402 = vld [vmem:[%s2396 + $0x14] sm:$0xf]
      %v2403 = vld [vmem:[%s2396 + $0x18] sm:$0xf]
      %v2404 = vld [vmem:[%s2396 + $0x1c] sm:$0xf]
      %v2405 = vld [vmem:[%s2396 + $0x20] sm:$0xf]
      %v2406 = vld [vmem:[%s2396 + $0x24] sm:$0xf]
      %v2407 = vld [vmem:[%s2396 + $0x28] sm:$0xf]
      %v2408 = vld [vmem:[%s2396 + $0x2c] sm:$0xf]
      %v2409 = vld [vmem:[%s2396 + $0x30] sm:$0xf]
      %v2410 = vld [vmem:[%s2396 + $0x34] sm:$0xf]
      %v2411 = vld [vmem:[%s2396 + $0x38] sm:$0xf]
      %v2412 = vld [vmem:[%s2396 + $0x3c] sm:$0xf]
      %v2445 = vunpack.c.l.b16 %v2364
      %v2446 = vunpack.c.l.b16 %v2365
      %v2447 = vunpack.c.l.b16 %v2366
      %v2448 = vunpack.c.l.b16 %v2367
      %v2449 = vunpack.c.l.b16 %v2368
      %v2450 = vunpack.c.l.b16 %v2369
      %v2451 = vunpack.c.l.b16 %v2370
      %v2452 = vunpack.c.l.b16 %v2371
      %v2453 = vunpack.c.l.b16 %v2372
      %v2454 = vunpack.c.l.b16 %v2373
      %v2455 = vunpack.c.l.b16 %v2374
      %v2456 = vunpack.c.l.b16 %v2375
      %v2457 = vunpack.c.l.b16 %v2376
      %v2458 = vunpack.c.l.b16 %v2377
      %v2459 = vunpack.c.l.b16 %v2378
      %v2460 = vunpack.c.l.b16 %v2379
      %v2461 = vunpack.c.l.b16 %v2380
      %v2462 = vunpack.c.l.b16 %v2381
      %v2463 = vunpack.c.l.b16 %v2382
      %v2464 = vunpack.c.l.b16 %v2383
      %v2465 = vunpack.c.l.b16 %v2384
      %v2466 = vunpack.c.l.b16 %v2385
      %v2467 = vunpack.c.l.b16 %v2386
      %v2468 = vunpack.c.l.b16 %v2387
      %v2469 = vunpack.c.l.b16 %v2388
      %v2470 = vunpack.c.l.b16 %v2389
      %v2471 = vunpack.c.l.b16 %v2390
      %v2472 = vunpack.c.l.b16 %v2391
      %v2473 = vunpack.c.l.b16 %v2392
      %v2474 = vunpack.c.l.b16 %v2393
      %v2475 = vunpack.c.l.b16 %v2394
      %v2476 = vunpack.c.l.b16 %v2395
      %v2477 = vpack.c.b16 %v2446, %v2445
      %v2478 = vpack.c.b16 %v2448, %v2447
      %v2479 = vpack.c.b16 %v2450, %v2449
      %v2480 = vpack.c.b16 %v2452, %v2451
      %v2481 = vpack.c.b16 %v2454, %v2453
      %v2482 = vpack.c.b16 %v2456, %v2455
      %v2483 = vpack.c.b16 %v2458, %v2457
      %v2484 = vpack.c.b16 %v2460, %v2459
      %v2485 = vpack.c.b16 %v2462, %v2461
      %v2486 = vpack.c.b16 %v2464, %v2463
      %v2487 = vpack.c.b16 %v2466, %v2465
      %v2488 = vpack.c.b16 %v2468, %v2467
      %v2489 = vpack.c.b16 %v2470, %v2469
      %v2490 = vpack.c.b16 %v2472, %v2471
      %v2491 = vpack.c.b16 %v2474, %v2473
      %v2492 = vpack.c.b16 %v2476, %v2475
      %v2525 = vunpack.c.l.b16 %v2397
      %v2526 = vunpack.c.l.b16 %v2398
      %v2527 = vunpack.c.l.b16 %v2399
      %v2528 = vunpack.c.l.b16 %v2400
      %v2529 = vunpack.c.l.b16 %v2401
      %v2530 = vunpack.c.l.b16 %v2402
      %v2531 = vunpack.c.l.b16 %v2403
      %v2532 = vunpack.c.l.b16 %v2404
      %v2533 = vunpack.c.l.b16 %v2405
      %v2534 = vunpack.c.l.b16 %v2406
      %v2535 = vunpack.c.l.b16 %v2407
      %v2536 = vunpack.c.l.b16 %v2408
      %v2537 = vunpack.c.l.b16 %v2409
      %v2538 = vunpack.c.l.b16 %v2410
      %v2539 = vunpack.c.l.b16 %v2411
      %v2540 = vunpack.c.l.b16 %v2412
      %v2541 = vpack.c.b16 %v2526, %v2525
      %v2542 = vpack.c.b16 %v2528, %v2527
      %v2543 = vpack.c.b16 %v2530, %v2529
      %v2544 = vpack.c.b16 %v2532, %v2531
      %v2545 = vpack.c.b16 %v2534, %v2533
      %v2546 = vpack.c.b16 %v2536, %v2535
      %v2547 = vpack.c.b16 %v2538, %v2537
      %v2548 = vpack.c.b16 %v2540, %v2539
      %2557 = vmatprep.subr.bf16.mxu0 0
      %2558 = vmatpush1.bf16.msra.mxu0 %v2548
      %2559 = vmatprep.subr.bf16.mxu0 0
      %2560 = vmatpush1.bf16.msra.mxu0 %v2547
      %2561 = vmatprep.subr.bf16.mxu0 0
      %2562 = vmatpush1.bf16.msra.mxu0 %v2546
      %2563 = vmatprep.subr.bf16.mxu0 0
      %2564 = vmatpush1.bf16.msra.mxu0 %v2545
      %2565 = vmatprep.subr.bf16.mxu0 0
      %2566 = vmatpush1.bf16.msra.mxu0 %v2544
      %2567 = vmatprep.subr.bf16.mxu0 0
      %2568 = vmatpush1.bf16.msra.mxu0 %v2543
      %2569 = vmatprep.subr.bf16.mxu0 0
      %2570 = vmatpush1.bf16.msra.mxu0 %v2542
      %2571 = vmatprep.subr.bf16.mxu0 0
      %2572 = vmatpush1.bf16.msra.mxu0 %v2541
      %2573 = vmatprep.subr.bf16.mxu0 0
      %2574 = vmatpush2.bf16.msra.mxu0 0
      %2575 = vmatprep.subr.bf16.mxu0 0
      %2576 = vmatpush2.bf16.msra.mxu0 0
      %2577 = vmatprep.subr.bf16.mxu0 0
      %2578 = vmatpush2.bf16.msra.mxu0 0
      %2579 = vmatprep.subr.bf16.mxu0 0
      %2580 = vmatpush2.bf16.msra.mxu0 0
      %2581 = vmatprep.subr.bf16.mxu0 0
      %2582 = vmatpush2.bf16.msra.mxu0 0
      %2583 = vmatprep.subr.bf16.mxu0 0
      %2584 = vmatpush2.bf16.msra.mxu0 0
      %2585 = vmatprep.subr.bf16.mxu0 0
      %2586 = vmatpush2.bf16.msra.mxu0 0
      %2587 = vmatprep.subr.bf16.mxu0 0
      %2588 = vmatpush2.bf16.msra.mxu0 0
      %2589 = vmatprep.mubr.bf16.mxu0 0
      %2590 = vmatmul.mubr.bf16.gmra.mxu0 %v2477
      %v2591 = vpop.f32.mrf.mxu0
      %v2592 = vadd.f32 0.0, %v2591
      %v2593 = vpop.f32.mrf.mxu0
      %v2594 = vpop.f32.mrf.mxu0
      %v2595 = vadd.f32 0.0, %v2594
      %v2596 = vpop.f32.mrf.mxu0
      %2597 = vmatprep.mubr.bf16.mxu0 0
      %2598 = vmatmul.mubr.bf16.gmra.mxu0 %v2478
      %v2599 = vpop.f32.mrf.mxu0
      %v2600 = vadd.f32 0.0, %v2599
      %v2601 = vpop.f32.mrf.mxu0
      %v2602 = vpop.f32.mrf.mxu0
      %v2603 = vadd.f32 0.0, %v2602
      %v2604 = vpop.f32.mrf.mxu0
      %2605 = vmatprep.mubr.bf16.mxu0 0
      %2606 = vmatmul.mubr.bf16.gmra.mxu0 %v2479
      %v2607 = vpop.f32.mrf.mxu0
      %v2608 = vadd.f32 0.0, %v2607
      %v2609 = vpop.f32.mrf.mxu0
      %v2610 = vpop.f32.mrf.mxu0
      %v2611 = vadd.f32 0.0, %v2610
      %v2612 = vpop.f32.mrf.mxu0
      %2613 = vmatprep.mubr.bf16.mxu0 0
      %2614 = vmatmul.mubr.bf16.gmra.mxu0 %v2480
      %v2615 = vpop.f32.mrf.mxu0
      %v2616 = vadd.f32 0.0, %v2615
      %v2617 = vpop.f32.mrf.mxu0
      %v2618 = vpop.f32.mrf.mxu0
      %v2619 = vadd.f32 0.0, %v2618
      %v2620 = vpop.f32.mrf.mxu0
      %2621 = vmatprep.mubr.bf16.mxu0 0
      %2622 = vmatmul.mubr.bf16.gmra.mxu0 %v2481
      %v2623 = vpop.f32.mrf.mxu0
      %v2624 = vadd.f32 0.0, %v2623
      %v2625 = vpop.f32.mrf.mxu0
      %v2626 = vpop.f32.mrf.mxu0
      %v2627 = vadd.f32 0.0, %v2626
      %v2628 = vpop.f32.mrf.mxu0
      %2629 = vmatprep.mubr.bf16.mxu0 0
      %2630 = vmatmul.mubr.bf16.gmra.mxu0 %v2482
      %v2631 = vpop.f32.mrf.mxu0
      %v2632 = vadd.f32 0.0, %v2631
      %v2633 = vpop.f32.mrf.mxu0
      %v2634 = vpop.f32.mrf.mxu0
      %v2635 = vadd.f32 0.0, %v2634
      %v2636 = vpop.f32.mrf.mxu0
      %2637 = vmatprep.mubr.bf16.mxu0 0
      %2638 = vmatmul.mubr.bf16.gmra.mxu0 %v2483
      %v2639 = vpop.f32.mrf.mxu0
      %v2640 = vadd.f32 0.0, %v2639
      %v2641 = vpop.f32.mrf.mxu0
      %v2642 = vpop.f32.mrf.mxu0
      %v2643 = vadd.f32 0.0, %v2642
      %v2644 = vpop.f32.mrf.mxu0
      %2645 = vmatprep.mubr.bf16.mxu0 0
      %2646 = vmatmul.mubr.bf16.gmra.mxu0 %v2484
      %v2647 = vpop.f32.mrf.mxu0
      %v2648 = vadd.f32 0.0, %v2647
      %v2649 = vpop.f32.mrf.mxu0
      %v2650 = vpop.f32.mrf.mxu0
      %v2651 = vadd.f32 0.0, %v2650
      %v2652 = vpop.f32.mrf.mxu0
      %2653 = vmatprep.mubr.bf16.mxu0 0
      %2654 = vmatmul.mubr.bf16.gmra.mxu0 %v2485
      %v2655 = vpop.f32.mrf.mxu0
      %v2656 = vadd.f32 0.0, %v2655
      %v2657 = vpop.f32.mrf.mxu0
      %v2658 = vpop.f32.mrf.mxu0
      %v2659 = vadd.f32 0.0, %v2658
      %v2660 = vpop.f32.mrf.mxu0
      %2661 = vmatprep.mubr.bf16.mxu0 0
      %2662 = vmatmul.mubr.bf16.gmra.mxu0 %v2486
      %v2663 = vpop.f32.mrf.mxu0
      %v2664 = vadd.f32 0.0, %v2663
      %v2665 = vpop.f32.mrf.mxu0
      %v2666 = vpop.f32.mrf.mxu0
      %v2667 = vadd.f32 0.0, %v2666
      %v2668 = vpop.f32.mrf.mxu0
      %2669 = vmatprep.mubr.bf16.mxu0 0
      %2670 = vmatmul.mubr.bf16.gmra.mxu0 %v2487
      %v2671 = vpop.f32.mrf.mxu0
      %v2672 = vadd.f32 0.0, %v2671
      %v2673 = vpop.f32.mrf.mxu0
      %v2674 = vpop.f32.mrf.mxu0
      %v2675 = vadd.f32 0.0, %v2674
      %v2676 = vpop.f32.mrf.mxu0
      %2677 = vmatprep.mubr.bf16.mxu0 0
      %2678 = vmatmul.mubr.bf16.gmra.mxu0 %v2488
      %v2679 = vpop.f32.mrf.mxu0
      %v2680 = vadd.f32 0.0, %v2679
      %v2681 = vpop.f32.mrf.mxu0
      %v2682 = vpop.f32.mrf.mxu0
      %v2683 = vadd.f32 0.0, %v2682
      %v2684 = vpop.f32.mrf.mxu0
      %2685 = vmatprep.mubr.bf16.mxu0 0
      %2686 = vmatmul.mubr.bf16.gmra.mxu0 %v2489
      %v2687 = vpop.f32.mrf.mxu0
      %v2688 = vadd.f32 0.0, %v2687
      %v2689 = vpop.f32.mrf.mxu0
      %v2690 = vpop.f32.mrf.mxu0
      %v2691 = vadd.f32 0.0, %v2690
      %v2692 = vpop.f32.mrf.mxu0
      %2693 = vmatprep.mubr.bf16.mxu0 0
      %2694 = vmatmul.mubr.bf16.gmra.mxu0 %v2490
      %v2695 = vpop.f32.mrf.mxu0
      %v2696 = vadd.f32 0.0, %v2695
      %v2697 = vpop.f32.mrf.mxu0
      %v2698 = vpop.f32.mrf.mxu0
      %v2699 = vadd.f32 0.0, %v2698
      %v2700 = vpop.f32.mrf.mxu0
      %2701 = vmatprep.mubr.bf16.mxu0 0
      %2702 = vmatmul.mubr.bf16.gmra.mxu0 %v2491
      %v2703 = vpop.f32.mrf.mxu0
      %v2704 = vadd.f32 0.0, %v2703
      %v2705 = vpop.f32.mrf.mxu0
      %v2706 = vpop.f32.mrf.mxu0
      %v2707 = vadd.f32 0.0, %v2706
      %v2708 = vpop.f32.mrf.mxu0
      %2709 = vmatprep.mubr.bf16.mxu0 0
      %2710 = vmatmul.mubr.bf16.gmra.mxu0 %v2492
      %v2711 = vpop.f32.mrf.mxu0
      %v2712 = vadd.f32 0.0, %v2711
      %v2713 = vpop.f32.mrf.mxu0
      %v2714 = vpop.f32.mrf.mxu0
      %v2715 = vadd.f32 0.0, %v2714
      %v2716 = vpop.f32.mrf.mxu0
      %2717 = vdwg.mxu0
      %v2718 = vadd.f32 %v2332, %v2592
      %v2719 = vadd.f32 %v2333, %v2595
      %v2720 = vadd.f32 %v2334, %v2600
      %v2721 = vadd.f32 %v2335, %v2603
      %v2722 = vadd.f32 %v2336, %v2608
      %v2723 = vadd.f32 %v2337, %v2611
      %v2724 = vadd.f32 %v2338, %v2616
      %v2725 = vadd.f32 %v2339, %v2619
      %v2726 = vadd.f32 %v2340, %v2624
      %v2727 = vadd.f32 %v2341, %v2627
      %v2728 = vadd.f32 %v2342, %v2632
      %v2729 = vadd.f32 %v2343, %v2635
      %v2730 = vadd.f32 %v2344, %v2640
      %v2731 = vadd.f32 %v2345, %v2643
      %v2732 = vadd.f32 %v2346, %v2648
      %v2733 = vadd.f32 %v2347, %v2651
      %v2734 = vadd.f32 %v2348, %v2656
      %v2735 = vadd.f32 %v2349, %v2659
      %v2736 = vadd.f32 %v2350, %v2664
      %v2737 = vadd.f32 %v2351, %v2667
      %v2738 = vadd.f32 %v2352, %v2672
      %v2739 = vadd.f32 %v2353, %v2675
      %v2740 = vadd.f32 %v2354, %v2680
      %v2741 = vadd.f32 %v2355, %v2683
      %v2742 = vadd.f32 %v2356, %v2688
      %v2743 = vadd.f32 %v2357, %v2691
      %v2744 = vadd.f32 %v2358, %v2696
      %v2745 = vadd.f32 %v2359, %v2699
      %v2746 = vadd.f32 %v2360, %v2704
      %v2747 = vadd.f32 %v2361, %v2707
      %v2748 = vadd.f32 %v2362, %v2712
      %v2749 = vadd.f32 %v2363, %v2715
      %v2750 = vld [vmem:[%s715] sm:$0xf]
      %v2751 = vld [vmem:[%s715 + $0x4] sm:$0xf]
      %v2752 = vld [vmem:[%s715 + $0x8] sm:$0x1]
      %v2753 = vld [vmem:[%s715 + $0xc] sm:$0xf]
      %v2754 = vld [vmem:[%s715 + $0x10] sm:$0xf]
      %v2755 = vld [vmem:[%s715 + $0x14] sm:$0x1]
      %v2756 = vld [vmem:[%s715 + $0x18] sm:$0xf]
      %v2757 = vld [vmem:[%s715 + $0x1c] sm:$0xf]
      %v2758 = vld [vmem:[%s715 + $0x20] sm:$0x1]
      %v2759 = vld [vmem:[%s715 + $0x24] sm:$0xf]
      %v2760 = vld [vmem:[%s715 + $0x28] sm:$0xf]
      %v2761 = vld [vmem:[%s715 + $0x2c] sm:$0x1]
      %v2762 = vld [vmem:[%s715 + $0x30] sm:$0xf]
      %v2763 = vld [vmem:[%s715 + $0x34] sm:$0xf]
      %v2764 = vld [vmem:[%s715 + $0x38] sm:$0x1]
      %v2765 = vld [vmem:[%s715 + $0x3c] sm:$0xf]
      %v2766 = vld [vmem:[%s715 + $0x40] sm:$0xf]
      %v2767 = vld [vmem:[%s715 + $0x44] sm:$0x1]
      %v2768 = vld [vmem:[%s715 + $0x48] sm:$0xf]
      %v2769 = vld [vmem:[%s715 + $0x4c] sm:$0xf]
      %v2770 = vld [vmem:[%s715 + $0x50] sm:$0x1]
      %v2771 = vld [vmem:[%s715 + $0x54] sm:$0xf]
      %v2772 = vld [vmem:[%s715 + $0x58] sm:$0xf]
      %v2773 = vld [vmem:[%s715 + $0x5c] sm:$0x1]
      %v2774 = vld [vmem:[%s715 + $0x60] sm:$0xf]
      %v2775 = vld [vmem:[%s715 + $0x64] sm:$0xf]
      %v2776 = vld [vmem:[%s715 + $0x68] sm:$0x1]
      %v2777 = vld [vmem:[%s715 + $0x6c] sm:$0xf]
      %v2778 = vld [vmem:[%s715 + $0x70] sm:$0xf]
      %v2779 = vld [vmem:[%s715 + $0x74] sm:$0x1]
      %v2780 = vld [vmem:[%s715 + $0x78] sm:$0xf]
      %v2781 = vld [vmem:[%s715 + $0x7c] sm:$0xf]
      %v2782 = vld [vmem:[%s715 + $0x80] sm:$0x1]
      %v2783 = vld [vmem:[%s715 + $0x84] sm:$0xf]
      %v2784 = vld [vmem:[%s715 + $0x88] sm:$0xf]
      %v2785 = vld [vmem:[%s715 + $0x8c] sm:$0x1]
      %v2786 = vld [vmem:[%s715 + $0x90] sm:$0xf]
      %v2787 = vld [vmem:[%s715 + $0x94] sm:$0xf]
      %v2788 = vld [vmem:[%s715 + $0x98] sm:$0x1]
      %v2789 = vld [vmem:[%s715 + $0x9c] sm:$0xf]
      %v2790 = vld [vmem:[%s715 + $0xa0] sm:$0xf]
      %v2791 = vld [vmem:[%s715 + $0xa4] sm:$0x1]
      %v2792 = vld [vmem:[%s715 + $0xa8] sm:$0xf]
      %v2793 = vld [vmem:[%s715 + $0xac] sm:$0xf]
      %v2794 = vld [vmem:[%s715 + $0xb0] sm:$0x1]
      %v2795 = vld [vmem:[%s715 + $0xb4] sm:$0xf]
      %v2796 = vld [vmem:[%s715 + $0xb8] sm:$0xf]
      %v2797 = vld [vmem:[%s715 + $0xbc] sm:$0x1]
      %v2799 = vshrl.u32 %v2750, 16
      %v2801 = vrot.slane %v2799, 4
      %v2802 = vshll.u32 %v2750, 16
      %v2804 = vrot.slane %v2802, 5
      %v2805 = vor.u32 %v2801, %v2804
      %v2806 = vrot.slane %v2805, 4
      %v2808 = vshll.u32 %v2751, 16
      %v2810 = vrot.slane %v2808, 5
      %v2811 = vsel %vm899, %v2806, %v2810
      %v2812 = vshrl.u32 %v2751, 16
      %v2814 = vrot.slane %v2812, 4
      %v2815 = vor.u32 %v2814, %v2810
      %v2816 = vrot.slane %v2815, 4
      %v2818 = vshll.u32 %v2752, 16
      %v2820 = vrot.slane %v2818, 5
      %v2821 = vsel %vm899, %v2816, %v2820
      %v2823 = vshrl.u32 %v2753, 16
      %v2825 = vrot.slane %v2823, 4
      %v2826 = vshll.u32 %v2753, 16
      %v2828 = vrot.slane %v2826, 5
      %v2829 = vor.u32 %v2825, %v2828
      %v2830 = vrot.slane %v2829, 4
      %v2832 = vshll.u32 %v2754, 16
      %v2834 = vrot.slane %v2832, 5
      %v2835 = vsel %vm899, %v2830, %v2834
      %v2836 = vshrl.u32 %v2754, 16
      %v2838 = vrot.slane %v2836, 4
      %v2839 = vor.u32 %v2838, %v2834
      %v2840 = vrot.slane %v2839, 4
      %v2842 = vshll.u32 %v2755, 16
      %v2844 = vrot.slane %v2842, 5
      %v2845 = vsel %vm899, %v2840, %v2844
      %v2847 = vshrl.u32 %v2756, 16
      %v2849 = vrot.slane %v2847, 4
      %v2850 = vshll.u32 %v2756, 16
      %v2852 = vrot.slane %v2850, 5
      %v2853 = vor.u32 %v2849, %v2852
      %v2854 = vrot.slane %v2853, 4
      %v2856 = vshll.u32 %v2757, 16
      %v2858 = vrot.slane %v2856, 5
      %v2859 = vsel %vm899, %v2854, %v2858
      %v2860 = vshrl.u32 %v2757, 16
      %v2862 = vrot.slane %v2860, 4
      %v2863 = vor.u32 %v2862, %v2858
      %v2864 = vrot.slane %v2863, 4
      %v2866 = vshll.u32 %v2758, 16
      %v2868 = vrot.slane %v2866, 5
      %v2869 = vsel %vm899, %v2864, %v2868
      %v2871 = vshrl.u32 %v2759, 16
      %v2873 = vrot.slane %v2871, 4
      %v2874 = vshll.u32 %v2759, 16
      %v2876 = vrot.slane %v2874, 5
      %v2877 = vor.u32 %v2873, %v2876
      %v2878 = vrot.slane %v2877, 4
      %v2880 = vshll.u32 %v2760, 16
      %v2882 = vrot.slane %v2880, 5
      %v2883 = vsel %vm899, %v2878, %v2882
      %v2884 = vshrl.u32 %v2760, 16
      %v2886 = vrot.slane %v2884, 4
      %v2887 = vor.u32 %v2886, %v2882
      %v2888 = vrot.slane %v2887, 4
      %v2890 = vshll.u32 %v2761, 16
      %v2892 = vrot.slane %v2890, 5
      %v2893 = vsel %vm899, %v2888, %v2892
      %v2895 = vshrl.u32 %v2762, 16
      %v2897 = vrot.slane %v2895, 4
      %v2898 = vshll.u32 %v2762, 16
      %v2900 = vrot.slane %v2898, 5
      %v2901 = vor.u32 %v2897, %v2900
      %v2902 = vrot.slane %v2901, 4
      %v2904 = vshll.u32 %v2763, 16
      %v2906 = vrot.slane %v2904, 5
      %v2907 = vsel %vm899, %v2902, %v2906
      %v2908 = vshrl.u32 %v2763, 16
      %v2910 = vrot.slane %v2908, 4
      %v2911 = vor.u32 %v2910, %v2906
      %v2912 = vrot.slane %v2911, 4
      %v2914 = vshll.u32 %v2764, 16
      %v2916 = vrot.slane %v2914, 5
      %v2917 = vsel %vm899, %v2912, %v2916
      %v2919 = vshrl.u32 %v2765, 16
      %v2921 = vrot.slane %v2919, 4
      %v2922 = vshll.u32 %v2765, 16
      %v2924 = vrot.slane %v2922, 5
      %v2925 = vor.u32 %v2921, %v2924
      %v2926 = vrot.slane %v2925, 4
      %v2928 = vshll.u32 %v2766, 16
      %v2930 = vrot.slane %v2928, 5
      %v2931 = vsel %vm899, %v2926, %v2930
      %v2932 = vshrl.u32 %v2766, 16
      %v2934 = vrot.slane %v2932, 4
      %v2935 = vor.u32 %v2934, %v2930
      %v2936 = vrot.slane %v2935, 4
      %v2938 = vshll.u32 %v2767, 16
      %v2940 = vrot.slane %v2938, 5
      %v2941 = vsel %vm899, %v2936, %v2940
      %v2943 = vshrl.u32 %v2768, 16
      %v2945 = vrot.slane %v2943, 4
      %v2946 = vshll.u32 %v2768, 16
      %v2948 = vrot.slane %v2946, 5
      %v2949 = vor.u32 %v2945, %v2948
      %v2950 = vrot.slane %v2949, 4
      %v2952 = vshll.u32 %v2769, 16
      %v2954 = vrot.slane %v2952, 5
      %v2955 = vsel %vm899, %v2950, %v2954
      %v2956 = vshrl.u32 %v2769, 16
      %v2958 = vrot.slane %v2956, 4
      %v2959 = vor.u32 %v2958, %v2954
      %v2960 = vrot.slane %v2959, 4
      %v2962 = vshll.u32 %v2770, 16
      %v2964 = vrot.slane %v2962, 5
      %v2965 = vsel %vm899, %v2960, %v2964
      %v2967 = vshrl.u32 %v2771, 16
      %v2969 = vrot.slane %v2967, 4
      %v2970 = vshll.u32 %v2771, 16
      %v2972 = vrot.slane %v2970, 5
      %v2973 = vor.u32 %v2969, %v2972
      %v2974 = vrot.slane %v2973, 4
      %v2976 = vshll.u32 %v2772, 16
      %v2978 = vrot.slane %v2976, 5
      %v2979 = vsel %vm899, %v2974, %v2978
      %v2980 = vshrl.u32 %v2772, 16
      %v2982 = vrot.slane %v2980, 4
      %v2983 = vor.u32 %v2982, %v2978
      %v2984 = vrot.slane %v2983, 4
      %v2986 = vshll.u32 %v2773, 16
      %v2988 = vrot.slane %v2986, 5
      %v2989 = vsel %vm899, %v2984, %v2988
      %v2991 = vshrl.u32 %v2774, 16
      %v2993 = vrot.slane %v2991, 4
      %v2994 = vshll.u32 %v2774, 16
      %v2996 = vrot.slane %v2994, 5
      %v2997 = vor.u32 %v2993, %v2996
      %v2998 = vrot.slane %v2997, 4
      %v3000 = vshll.u32 %v2775, 16
      %v3002 = vrot.slane %v3000, 5
      %v3003 = vsel %vm899, %v2998, %v3002
      %v3004 = vshrl.u32 %v2775, 16
      %v3006 = vrot.slane %v3004, 4
      %v3007 = vor.u32 %v3006, %v3002
      %v3008 = vrot.slane %v3007, 4
      %v3010 = vshll.u32 %v2776, 16
      %v3012 = vrot.slane %v3010, 5
      %v3013 = vsel %vm899, %v3008, %v3012
      %v3015 = vshrl.u32 %v2777, 16
      %v3017 = vrot.slane %v3015, 4
      %v3018 = vshll.u32 %v2777, 16
      %v3020 = vrot.slane %v3018, 5
      %v3021 = vor.u32 %v3017, %v3020
      %v3022 = vrot.slane %v3021, 4
      %v3024 = vshll.u32 %v2778, 16
      %v3026 = vrot.slane %v3024, 5
      %v3027 = vsel %vm899, %v3022, %v3026
      %v3028 = vshrl.u32 %v2778, 16
      %v3030 = vrot.slane %v3028, 4
      %v3031 = vor.u32 %v3030, %v3026
      %v3032 = vrot.slane %v3031, 4
      %v3034 = vshll.u32 %v2779, 16
      %v3036 = vrot.slane %v3034, 5
      %v3037 = vsel %vm899, %v3032, %v3036
      %v3039 = vshrl.u32 %v2780, 16
      %v3041 = vrot.slane %v3039, 4
      %v3042 = vshll.u32 %v2780, 16
      %v3044 = vrot.slane %v3042, 5
      %v3045 = vor.u32 %v3041, %v3044
      %v3046 = vrot.slane %v3045, 4
      %v3048 = vshll.u32 %v2781, 16
      %v3050 = vrot.slane %v3048, 5
      %v3051 = vsel %vm899, %v3046, %v3050
      %v3052 = vshrl.u32 %v2781, 16
      %v3054 = vrot.slane %v3052, 4
      %v3055 = vor.u32 %v3054, %v3050
      %v3056 = vrot.slane %v3055, 4
      %v3058 = vshll.u32 %v2782, 16
      %v3060 = vrot.slane %v3058, 5
      %v3061 = vsel %vm899, %v3056, %v3060
      %v3063 = vshrl.u32 %v2783, 16
      %v3065 = vrot.slane %v3063, 4
      %v3066 = vshll.u32 %v2783, 16
      %v3068 = vrot.slane %v3066, 5
      %v3069 = vor.u32 %v3065, %v3068
      %v3070 = vrot.slane %v3069, 4
      %v3072 = vshll.u32 %v2784, 16
      %v3074 = vrot.slane %v3072, 5
      %v3075 = vsel %vm899, %v3070, %v3074
      %v3076 = vshrl.u32 %v2784, 16
      %v3078 = vrot.slane %v3076, 4
      %v3079 = vor.u32 %v3078, %v3074
      %v3080 = vrot.slane %v3079, 4
      %v3082 = vshll.u32 %v2785, 16
      %v3084 = vrot.slane %v3082, 5
      %v3085 = vsel %vm899, %v3080, %v3084
      %v3087 = vshrl.u32 %v2786, 16
      %v3089 = vrot.slane %v3087, 4
      %v3090 = vshll.u32 %v2786, 16
      %v3092 = vrot.slane %v3090, 5
      %v3093 = vor.u32 %v3089, %v3092
      %v3094 = vrot.slane %v3093, 4
      %v3096 = vshll.u32 %v2787, 16
      %v3098 = vrot.slane %v3096, 5
      %v3099 = vsel %vm899, %v3094, %v3098
      %v3100 = vshrl.u32 %v2787, 16
      %v3102 = vrot.slane %v3100, 4
      %v3103 = vor.u32 %v3102, %v3098
      %v3104 = vrot.slane %v3103, 4
      %v3106 = vshll.u32 %v2788, 16
      %v3108 = vrot.slane %v3106, 5
      %v3109 = vsel %vm899, %v3104, %v3108
      %v3111 = vshrl.u32 %v2789, 16
      %v3113 = vrot.slane %v3111, 4
      %v3114 = vshll.u32 %v2789, 16
      %v3116 = vrot.slane %v3114, 5
      %v3117 = vor.u32 %v3113, %v3116
      %v3118 = vrot.slane %v3117, 4
      %v3120 = vshll.u32 %v2790, 16
      %v3122 = vrot.slane %v3120, 5
      %v3123 = vsel %vm899, %v3118, %v3122
      %v3124 = vshrl.u32 %v2790, 16
      %v3126 = vrot.slane %v3124, 4
      %v3127 = vor.u32 %v3126, %v3122
      %v3128 = vrot.slane %v3127, 4
      %v3130 = vshll.u32 %v2791, 16
      %v3132 = vrot.slane %v3130, 5
      %v3133 = vsel %vm899, %v3128, %v3132
      %v3135 = vshrl.u32 %v2792, 16
      %v3137 = vrot.slane %v3135, 4
      %v3138 = vshll.u32 %v2792, 16
      %v3140 = vrot.slane %v3138, 5
      %v3141 = vor.u32 %v3137, %v3140
      %v3142 = vrot.slane %v3141, 4
      %v3144 = vshll.u32 %v2793, 16
      %v3146 = vrot.slane %v3144, 5
      %v3147 = vsel %vm899, %v3142, %v3146
      %v3148 = vshrl.u32 %v2793, 16
      %v3150 = vrot.slane %v3148, 4
      %v3151 = vor.u32 %v3150, %v3146
      %v3152 = vrot.slane %v3151, 4
      %v3154 = vshll.u32 %v2794, 16
      %v3156 = vrot.slane %v3154, 5
      %v3157 = vsel %vm899, %v3152, %v3156
      %v3159 = vshrl.u32 %v2795, 16
      %v3161 = vrot.slane %v3159, 4
      %v3162 = vshll.u32 %v2795, 16
      %v3164 = vrot.slane %v3162, 5
      %v3165 = vor.u32 %v3161, %v3164
      %v3166 = vrot.slane %v3165, 4
      %v3168 = vshll.u32 %v2796, 16
      %v3170 = vrot.slane %v3168, 5
      %v3171 = vsel %vm899, %v3166, %v3170
      %v3172 = vshrl.u32 %v2796, 16
      %v3174 = vrot.slane %v3172, 4
      %v3175 = vor.u32 %v3174, %v3170
      %v3176 = vrot.slane %v3175, 4
      %v3178 = vshll.u32 %v2797, 16
      %v3180 = vrot.slane %v3178, 5
      %v3181 = vsel %vm899, %v3176, %v3180
      %s3182 = scalar_lea.vmem %s1, 256
      %v3183 = vld [vmem:[%s3182] sm:$0xf]
      %v3184 = vld [vmem:[%s3182 + $0x4] sm:$0xf]
      %v3185 = vld [vmem:[%s3182 + $0x8] sm:$0xf]
      %v3186 = vld [vmem:[%s3182 + $0xc] sm:$0xf]
      %v3187 = vld [vmem:[%s3182 + $0x10] sm:$0xf]
      %v3188 = vld [vmem:[%s3182 + $0x14] sm:$0xf]
      %v3189 = vld [vmem:[%s3182 + $0x18] sm:$0xf]
      %v3190 = vld [vmem:[%s3182 + $0x1c] sm:$0xf]
      %v3191 = vld [vmem:[%s3182 + $0x20] sm:$0xf]
      %v3192 = vld [vmem:[%s3182 + $0x24] sm:$0xf]
      %v3193 = vld [vmem:[%s3182 + $0x28] sm:$0xf]
      %v3194 = vld [vmem:[%s3182 + $0x2c] sm:$0xf]
      %v3195 = vld [vmem:[%s3182 + $0x30] sm:$0xf]
      %v3196 = vld [vmem:[%s3182 + $0x34] sm:$0xf]
      %v3197 = vld [vmem:[%s3182 + $0x38] sm:$0xf]
      %v3198 = vld [vmem:[%s3182 + $0x3c] sm:$0xf]
      %v3199 = vunpack.c.l.b16 %v2811
      %v3200 = vunpack.c.l.b16 %v2821
      %v3201 = vunpack.c.l.b16 %v2835
      %v3202 = vunpack.c.l.b16 %v2845
      %v3203 = vunpack.c.l.b16 %v2859
      %v3204 = vunpack.c.l.b16 %v2869
      %v3205 = vunpack.c.l.b16 %v2883
      %v3206 = vunpack.c.l.b16 %v2893
      %v3207 = vunpack.c.l.b16 %v2907
      %v3208 = vunpack.c.l.b16 %v2917
      %v3209 = vunpack.c.l.b16 %v2931
      %v3210 = vunpack.c.l.b16 %v2941
      %v3211 = vunpack.c.l.b16 %v2955
      %v3212 = vunpack.c.l.b16 %v2965
      %v3213 = vunpack.c.l.b16 %v2979
      %v3214 = vunpack.c.l.b16 %v2989
      %v3215 = vunpack.c.l.b16 %v3003
      %v3216 = vunpack.c.l.b16 %v3013
      %v3217 = vunpack.c.l.b16 %v3027
      %v3218 = vunpack.c.l.b16 %v3037
      %v3219 = vunpack.c.l.b16 %v3051
      %v3220 = vunpack.c.l.b16 %v3061
      %v3221 = vunpack.c.l.b16 %v3075
      %v3222 = vunpack.c.l.b16 %v3085
      %v3223 = vunpack.c.l.b16 %v3099
      %v3224 = vunpack.c.l.b16 %v3109
      %v3225 = vunpack.c.l.b16 %v3123
      %v3226 = vunpack.c.l.b16 %v3133
      %v3227 = vunpack.c.l.b16 %v3147
      %v3228 = vunpack.c.l.b16 %v3157
      %v3229 = vunpack.c.l.b16 %v3171
      %v3230 = vunpack.c.l.b16 %v3181
      %v3231 = vpack.c.b16 %v3200, %v3199
      %v3232 = vpack.c.b16 %v3202, %v3201
      %v3233 = vpack.c.b16 %v3204, %v3203
      %v3234 = vpack.c.b16 %v3206, %v3205
      %v3235 = vpack.c.b16 %v3208, %v3207
      %v3236 = vpack.c.b16 %v3210, %v3209
      %v3237 = vpack.c.b16 %v3212, %v3211
      %v3238 = vpack.c.b16 %v3214, %v3213
      %v3239 = vpack.c.b16 %v3216, %v3215
      %v3240 = vpack.c.b16 %v3218, %v3217
      %v3241 = vpack.c.b16 %v3220, %v3219
      %v3242 = vpack.c.b16 %v3222, %v3221
      %v3243 = vpack.c.b16 %v3224, %v3223
      %v3244 = vpack.c.b16 %v3226, %v3225
      %v3245 = vpack.c.b16 %v3228, %v3227
      %v3246 = vpack.c.b16 %v3230, %v3229
      %v3279 = vunpack.c.l.b16 %v3183
      %v3280 = vunpack.c.l.b16 %v3184
      %v3281 = vunpack.c.l.b16 %v3185
      %v3282 = vunpack.c.l.b16 %v3186
      %v3283 = vunpack.c.l.b16 %v3187
      %v3284 = vunpack.c.l.b16 %v3188
      %v3285 = vunpack.c.l.b16 %v3189
      %v3286 = vunpack.c.l.b16 %v3190
      %v3287 = vunpack.c.l.b16 %v3191
      %v3288 = vunpack.c.l.b16 %v3192
      %v3289 = vunpack.c.l.b16 %v3193
      %v3290 = vunpack.c.l.b16 %v3194
      %v3291 = vunpack.c.l.b16 %v3195
      %v3292 = vunpack.c.l.b16 %v3196
      %v3293 = vunpack.c.l.b16 %v3197
      %v3294 = vunpack.c.l.b16 %v3198
      %v3295 = vpack.c.b16 %v3280, %v3279
      %v3296 = vpack.c.b16 %v3282, %v3281
      %v3297 = vpack.c.b16 %v3284, %v3283
      %v3298 = vpack.c.b16 %v3286, %v3285
      %v3299 = vpack.c.b16 %v3288, %v3287
      %v3300 = vpack.c.b16 %v3290, %v3289
      %v3301 = vpack.c.b16 %v3292, %v3291
      %v3302 = vpack.c.b16 %v3294, %v3293
      %3311 = vmatprep.subr.bf16.mxu0 0
      %3312 = vmatpush1.bf16.msra.mxu0 %v3302
      %3313 = vmatprep.subr.bf16.mxu0 0
      %3314 = vmatpush1.bf16.msra.mxu0 %v3301
      %3315 = vmatprep.subr.bf16.mxu0 0
      %3316 = vmatpush1.bf16.msra.mxu0 %v3300
      %3317 = vmatprep.subr.bf16.mxu0 0
      %3318 = vmatpush1.bf16.msra.mxu0 %v3299
      %3319 = vmatprep.subr.bf16.mxu0 0
      %3320 = vmatpush1.bf16.msra.mxu0 %v3298
      %3321 = vmatprep.subr.bf16.mxu0 0
      %3322 = vmatpush1.bf16.msra.mxu0 %v3297
      %3323 = vmatprep.subr.bf16.mxu0 0
      %3324 = vmatpush1.bf16.msra.mxu0 %v3296
      %3325 = vmatprep.subr.bf16.mxu0 0
      %3326 = vmatpush1.bf16.msra.mxu0 %v3295
      %3327 = vmatprep.subr.bf16.mxu0 0
      %3328 = vmatpush2.bf16.msra.mxu0 0
      %3329 = vmatprep.subr.bf16.mxu0 0
      %3330 = vmatpush2.bf16.msra.mxu0 0
      %3331 = vmatprep.subr.bf16.mxu0 0
      %3332 = vmatpush2.bf16.msra.mxu0 0
      %3333 = vmatprep.subr.bf16.mxu0 0
      %3334 = vmatpush2.bf16.msra.mxu0 0
      %3335 = vmatprep.subr.bf16.mxu0 0
      %3336 = vmatpush2.bf16.msra.mxu0 0
      %3337 = vmatprep.subr.bf16.mxu0 0
      %3338 = vmatpush2.bf16.msra.mxu0 0
      %3339 = vmatprep.subr.bf16.mxu0 0
      %3340 = vmatpush2.bf16.msra.mxu0 0
      %3341 = vmatprep.subr.bf16.mxu0 0
      %3342 = vmatpush2.bf16.msra.mxu0 0
      %3343 = vmatprep.mubr.bf16.mxu0 0
      %3344 = vmatmul.mubr.bf16.gmra.mxu0 %v3231
      %v3345 = vpop.f32.mrf.mxu0
      %v3346 = vadd.f32 0.0, %v3345
      %v3347 = vpop.f32.mrf.mxu0
      %v3348 = vpop.f32.mrf.mxu0
      %v3349 = vadd.f32 0.0, %v3348
      %v3350 = vpop.f32.mrf.mxu0
      %3351 = vmatprep.mubr.bf16.mxu0 0
      %3352 = vmatmul.mubr.bf16.gmra.mxu0 %v3232
      %v3353 = vpop.f32.mrf.mxu0
      %v3354 = vadd.f32 0.0, %v3353
      %v3355 = vpop.f32.mrf.mxu0
      %v3356 = vpop.f32.mrf.mxu0
      %v3357 = vadd.f32 0.0, %v3356
      %v3358 = vpop.f32.mrf.mxu0
      %3359 = vmatprep.mubr.bf16.mxu0 0
      %3360 = vmatmul.mubr.bf16.gmra.mxu0 %v3233
      %v3361 = vpop.f32.mrf.mxu0
      %v3362 = vadd.f32 0.0, %v3361
      %v3363 = vpop.f32.mrf.mxu0
      %v3364 = vpop.f32.mrf.mxu0
      %v3365 = vadd.f32 0.0, %v3364
      %v3366 = vpop.f32.mrf.mxu0
      %3367 = vmatprep.mubr.bf16.mxu0 0
      %3368 = vmatmul.mubr.bf16.gmra.mxu0 %v3234
      %v3369 = vpop.f32.mrf.mxu0
      %v3370 = vadd.f32 0.0, %v3369
      %v3371 = vpop.f32.mrf.mxu0
      %v3372 = vpop.f32.mrf.mxu0
      %v3373 = vadd.f32 0.0, %v3372
      %v3374 = vpop.f32.mrf.mxu0
      %3375 = vmatprep.mubr.bf16.mxu0 0
      %3376 = vmatmul.mubr.bf16.gmra.mxu0 %v3235
      %v3377 = vpop.f32.mrf.mxu0
      %v3378 = vadd.f32 0.0, %v3377
      %v3379 = vpop.f32.mrf.mxu0
      %v3380 = vpop.f32.mrf.mxu0
      %v3381 = vadd.f32 0.0, %v3380
      %v3382 = vpop.f32.mrf.mxu0
      %3383 = vmatprep.mubr.bf16.mxu0 0
      %3384 = vmatmul.mubr.bf16.gmra.mxu0 %v3236
      %v3385 = vpop.f32.mrf.mxu0
      %v3386 = vadd.f32 0.0, %v3385
      %v3387 = vpop.f32.mrf.mxu0
      %v3388 = vpop.f32.mrf.mxu0
      %v3389 = vadd.f32 0.0, %v3388
      %v3390 = vpop.f32.mrf.mxu0
      %3391 = vmatprep.mubr.bf16.mxu0 0
      %3392 = vmatmul.mubr.bf16.gmra.mxu0 %v3237
      %v3393 = vpop.f32.mrf.mxu0
      %v3394 = vadd.f32 0.0, %v3393
      %v3395 = vpop.f32.mrf.mxu0
      %v3396 = vpop.f32.mrf.mxu0
      %v3397 = vadd.f32 0.0, %v3396
      %v3398 = vpop.f32.mrf.mxu0
      %3399 = vmatprep.mubr.bf16.mxu0 0
      %3400 = vmatmul.mubr.bf16.gmra.mxu0 %v3238
      %v3401 = vpop.f32.mrf.mxu0
      %v3402 = vadd.f32 0.0, %v3401
      %v3403 = vpop.f32.mrf.mxu0
      %v3404 = vpop.f32.mrf.mxu0
      %v3405 = vadd.f32 0.0, %v3404
      %v3406 = vpop.f32.mrf.mxu0
      %3407 = vmatprep.mubr.bf16.mxu0 0
      %3408 = vmatmul.mubr.bf16.gmra.mxu0 %v3239
      %v3409 = vpop.f32.mrf.mxu0
      %v3410 = vadd.f32 0.0, %v3409
      %v3411 = vpop.f32.mrf.mxu0
      %v3412 = vpop.f32.mrf.mxu0
      %v3413 = vadd.f32 0.0, %v3412
      %v3414 = vpop.f32.mrf.mxu0
      %3415 = vmatprep.mubr.bf16.mxu0 0
      %3416 = vmatmul.mubr.bf16.gmra.mxu0 %v3240
      %v3417 = vpop.f32.mrf.mxu0
      %v3418 = vadd.f32 0.0, %v3417
      %v3419 = vpop.f32.mrf.mxu0
      %v3420 = vpop.f32.mrf.mxu0
      %v3421 = vadd.f32 0.0, %v3420
      %v3422 = vpop.f32.mrf.mxu0
      %3423 = vmatprep.mubr.bf16.mxu0 0
      %3424 = vmatmul.mubr.bf16.gmra.mxu0 %v3241
      %v3425 = vpop.f32.mrf.mxu0
      %v3426 = vadd.f32 0.0, %v3425
      %v3427 = vpop.f32.mrf.mxu0
      %v3428 = vpop.f32.mrf.mxu0
      %v3429 = vadd.f32 0.0, %v3428
      %v3430 = vpop.f32.mrf.mxu0
      %3431 = vmatprep.mubr.bf16.mxu0 0
      %3432 = vmatmul.mubr.bf16.gmra.mxu0 %v3242
      %v3433 = vpop.f32.mrf.mxu0
      %v3434 = vadd.f32 0.0, %v3433
      %v3435 = vpop.f32.mrf.mxu0
      %v3436 = vpop.f32.mrf.mxu0
      %v3437 = vadd.f32 0.0, %v3436
      %v3438 = vpop.f32.mrf.mxu0
      %3439 = vmatprep.mubr.bf16.mxu0 0
      %3440 = vmatmul.mubr.bf16.gmra.mxu0 %v3243
      %v3441 = vpop.f32.mrf.mxu0
      %v3442 = vadd.f32 0.0, %v3441
      %v3443 = vpop.f32.mrf.mxu0
      %v3444 = vpop.f32.mrf.mxu0
      %v3445 = vadd.f32 0.0, %v3444
      %v3446 = vpop.f32.mrf.mxu0
      %3447 = vmatprep.mubr.bf16.mxu0 0
      %3448 = vmatmul.mubr.bf16.gmra.mxu0 %v3244
      %v3449 = vpop.f32.mrf.mxu0
      %v3450 = vadd.f32 0.0, %v3449
      %v3451 = vpop.f32.mrf.mxu0
      %v3452 = vpop.f32.mrf.mxu0
      %v3453 = vadd.f32 0.0, %v3452
      %v3454 = vpop.f32.mrf.mxu0
      %3455 = vmatprep.mubr.bf16.mxu0 0
      %3456 = vmatmul.mubr.bf16.gmra.mxu0 %v3245
      %v3457 = vpop.f32.mrf.mxu0
      %v3458 = vadd.f32 0.0, %v3457
      %v3459 = vpop.f32.mrf.mxu0
      %v3460 = vpop.f32.mrf.mxu0
      %v3461 = vadd.f32 0.0, %v3460
      %v3462 = vpop.f32.mrf.mxu0
      %3463 = vmatprep.mubr.bf16.mxu0 0
      %3464 = vmatmul.mubr.bf16.gmra.mxu0 %v3246
      %v3465 = vpop.f32.mrf.mxu0
      %v3466 = vadd.f32 0.0, %v3465
      %v3467 = vpop.f32.mrf.mxu0
      %v3468 = vpop.f32.mrf.mxu0
      %v3469 = vadd.f32 0.0, %v3468
      %v3470 = vpop.f32.mrf.mxu0
      %3471 = vdwg.mxu0
      %v3472 = vadd.f32 %v2718, %v3346
      %v3473 = vadd.f32 %v2719, %v3349
      %v3474 = vadd.f32 %v2720, %v3354
      %v3475 = vadd.f32 %v2721, %v3357
      %v3476 = vadd.f32 %v2722, %v3362
      %v3477 = vadd.f32 %v2723, %v3365
      %v3478 = vadd.f32 %v2724, %v3370
      %v3479 = vadd.f32 %v2725, %v3373
      %v3480 = vadd.f32 %v2726, %v3378
      %v3481 = vadd.f32 %v2727, %v3381
      %v3482 = vadd.f32 %v2728, %v3386
      %v3483 = vadd.f32 %v2729, %v3389
      %v3484 = vadd.f32 %v2730, %v3394
      %v3485 = vadd.f32 %v2731, %v3397
      %v3486 = vadd.f32 %v2732, %v3402
      %v3487 = vadd.f32 %v2733, %v3405
      %v3488 = vadd.f32 %v2734, %v3410
      %v3489 = vadd.f32 %v2735, %v3413
      %v3490 = vadd.f32 %v2736, %v3418
      %v3491 = vadd.f32 %v2737, %v3421
      %v3492 = vadd.f32 %v2738, %v3426
      %v3493 = vadd.f32 %v2739, %v3429
      %v3494 = vadd.f32 %v2740, %v3434
      %v3495 = vadd.f32 %v2741, %v3437
      %v3496 = vadd.f32 %v2742, %v3442
      %v3497 = vadd.f32 %v2743, %v3445
      %v3498 = vadd.f32 %v2744, %v3450
      %v3499 = vadd.f32 %v2745, %v3453
      %v3500 = vadd.f32 %v2746, %v3458
      %v3501 = vadd.f32 %v2747, %v3461
      %v3502 = vadd.f32 %v2748, %v3466
      %v3503 = vadd.f32 %v2749, %v3469
      %v3504 = vld [vmem:[%s715] sm:$0xe]
      %v3505 = vld [vmem:[%s715 + $0xc] sm:$0xe]
      %v3506 = vld [vmem:[%s715 + $0x18] sm:$0xe]
      %v3507 = vld [vmem:[%s715 + $0x24] sm:$0xe]
      %v3508 = vld [vmem:[%s715 + $0x30] sm:$0xe]
      %v3509 = vld [vmem:[%s715 + $0x3c] sm:$0xe]
      %v3510 = vld [vmem:[%s715 + $0x48] sm:$0xe]
      %v3511 = vld [vmem:[%s715 + $0x54] sm:$0xe]
      %v3512 = vld [vmem:[%s715 + $0x60] sm:$0xe]
      %v3513 = vld [vmem:[%s715 + $0x6c] sm:$0xe]
      %v3514 = vld [vmem:[%s715 + $0x78] sm:$0xe]
      %v3515 = vld [vmem:[%s715 + $0x84] sm:$0xe]
      %v3516 = vld [vmem:[%s715 + $0x90] sm:$0xe]
      %v3517 = vld [vmem:[%s715 + $0x9c] sm:$0xe]
      %v3518 = vld [vmem:[%s715 + $0xa8] sm:$0xe]
      %v3519 = vld [vmem:[%s715 + $0xb4] sm:$0xe]
      %v3568 = vrot.slane %v3504, 5
      %v3569 = vrot.slane %v3568, 4
      %v3570 = vrot.slane %v2751, 5
      %v3571 = vsel %vm1929, %v3569, %v3570
      %v3572 = vrot.slane %v3570, 4
      %v3573 = vrot.slane %v2752, 5
      %v3574 = vsel %vm1929, %v3572, %v3573
      %v3575 = vrot.slane %v3505, 5
      %v3576 = vrot.slane %v3575, 4
      %v3577 = vrot.slane %v2754, 5
      %v3578 = vsel %vm1929, %v3576, %v3577
      %v3579 = vrot.slane %v3577, 4
      %v3580 = vrot.slane %v2755, 5
      %v3581 = vsel %vm1929, %v3579, %v3580
      %v3582 = vrot.slane %v3506, 5
      %v3583 = vrot.slane %v3582, 4
      %v3584 = vrot.slane %v2757, 5
      %v3585 = vsel %vm1929, %v3583, %v3584
      %v3586 = vrot.slane %v3584, 4
      %v3587 = vrot.slane %v2758, 5
      %v3588 = vsel %vm1929, %v3586, %v3587
      %v3589 = vrot.slane %v3507, 5
      %v3590 = vrot.slane %v3589, 4
      %v3591 = vrot.slane %v2760, 5
      %v3592 = vsel %vm1929, %v3590, %v3591
      %v3593 = vrot.slane %v3591, 4
      %v3594 = vrot.slane %v2761, 5
      %v3595 = vsel %vm1929, %v3593, %v3594
      %v3596 = vrot.slane %v3508, 5
      %v3597 = vrot.slane %v3596, 4
      %v3598 = vrot.slane %v2763, 5
      %v3599 = vsel %vm1929, %v3597, %v3598
      %v3600 = vrot.slane %v3598, 4
      %v3601 = vrot.slane %v2764, 5
      %v3602 = vsel %vm1929, %v3600, %v3601
      %v3603 = vrot.slane %v3509, 5
      %v3604 = vrot.slane %v3603, 4
      %v3605 = vrot.slane %v2766, 5
      %v3606 = vsel %vm1929, %v3604, %v3605
      %v3607 = vrot.slane %v3605, 4
      %v3608 = vrot.slane %v2767, 5
      %v3609 = vsel %vm1929, %v3607, %v3608
      %v3610 = vrot.slane %v3510, 5
      %v3611 = vrot.slane %v3610, 4
      %v3612 = vrot.slane %v2769, 5
      %v3613 = vsel %vm1929, %v3611, %v3612
      %v3614 = vrot.slane %v3612, 4
      %v3615 = vrot.slane %v2770, 5
      %v3616 = vsel %vm1929, %v3614, %v3615
      %v3617 = vrot.slane %v3511, 5
      %v3618 = vrot.slane %v3617, 4
      %v3619 = vrot.slane %v2772, 5
      %v3620 = vsel %vm1929, %v3618, %v3619
      %v3621 = vrot.slane %v3619, 4
      %v3622 = vrot.slane %v2773, 5
      %v3623 = vsel %vm1929, %v3621, %v3622
      %v3624 = vrot.slane %v3512, 5
      %v3625 = vrot.slane %v3624, 4
      %v3626 = vrot.slane %v2775, 5
      %v3627 = vsel %vm1929, %v3625, %v3626
      %v3628 = vrot.slane %v3626, 4
      %v3629 = vrot.slane %v2776, 5
      %v3630 = vsel %vm1929, %v3628, %v3629
      %v3631 = vrot.slane %v3513, 5
      %v3632 = vrot.slane %v3631, 4
      %v3633 = vrot.slane %v2778, 5
      %v3634 = vsel %vm1929, %v3632, %v3633
      %v3635 = vrot.slane %v3633, 4
      %v3636 = vrot.slane %v2779, 5
      %v3637 = vsel %vm1929, %v3635, %v3636
      %v3638 = vrot.slane %v3514, 5
      %v3639 = vrot.slane %v3638, 4
      %v3640 = vrot.slane %v2781, 5
      %v3641 = vsel %vm1929, %v3639, %v3640
      %v3642 = vrot.slane %v3640, 4
      %v3643 = vrot.slane %v2782, 5
      %v3644 = vsel %vm1929, %v3642, %v3643
      %v3645 = vrot.slane %v3515, 5
      %v3646 = vrot.slane %v3645, 4
      %v3647 = vrot.slane %v2784, 5
      %v3648 = vsel %vm1929, %v3646, %v3647
      %v3649 = vrot.slane %v3647, 4
      %v3650 = vrot.slane %v2785, 5
      %v3651 = vsel %vm1929, %v3649, %v3650
      %v3652 = vrot.slane %v3516, 5
      %v3653 = vrot.slane %v3652, 4
      %v3654 = vrot.slane %v2787, 5
      %v3655 = vsel %vm1929, %v3653, %v3654
      %v3656 = vrot.slane %v3654, 4
      %v3657 = vrot.slane %v2788, 5
      %v3658 = vsel %vm1929, %v3656, %v3657
      %v3659 = vrot.slane %v3517, 5
      %v3660 = vrot.slane %v3659, 4
      %v3661 = vrot.slane %v2790, 5
      %v3662 = vsel %vm1929, %v3660, %v3661
      %v3663 = vrot.slane %v3661, 4
      %v3664 = vrot.slane %v2791, 5
      %v3665 = vsel %vm1929, %v3663, %v3664
      %v3666 = vrot.slane %v3518, 5
      %v3667 = vrot.slane %v3666, 4
      %v3668 = vrot.slane %v2793, 5
      %v3669 = vsel %vm1929, %v3667, %v3668
      %v3670 = vrot.slane %v3668, 4
      %v3671 = vrot.slane %v2794, 5
      %v3672 = vsel %vm1929, %v3670, %v3671
      %v3673 = vrot.slane %v3519, 5
      %v3674 = vrot.slane %v3673, 4
      %v3675 = vrot.slane %v2796, 5
      %v3676 = vsel %vm1929, %v3674, %v3675
      %v3677 = vrot.slane %v3675, 4
      %v3678 = vrot.slane %v2797, 5
      %v3679 = vsel %vm1929, %v3677, %v3678
      %s3680 = scalar_lea.vmem %s1, 320
      %v3681 = vld [vmem:[%s3680] sm:$0xf]
      %v3682 = vld [vmem:[%s3680 + $0x4] sm:$0xf]
      %v3683 = vld [vmem:[%s3680 + $0x8] sm:$0xf]
      %v3684 = vld [vmem:[%s3680 + $0xc] sm:$0xf]
      %v3685 = vld [vmem:[%s3680 + $0x10] sm:$0xf]
      %v3686 = vld [vmem:[%s3680 + $0x14] sm:$0xf]
      %v3687 = vld [vmem:[%s3680 + $0x18] sm:$0xf]
      %v3688 = vld [vmem:[%s3680 + $0x1c] sm:$0xf]
      %v3689 = vld [vmem:[%s3680 + $0x20] sm:$0xf]
      %v3690 = vld [vmem:[%s3680 + $0x24] sm:$0xf]
      %v3691 = vld [vmem:[%s3680 + $0x28] sm:$0xf]
      %v3692 = vld [vmem:[%s3680 + $0x2c] sm:$0xf]
      %v3693 = vld [vmem:[%s3680 + $0x30] sm:$0xf]
      %v3694 = vld [vmem:[%s3680 + $0x34] sm:$0xf]
      %v3695 = vld [vmem:[%s3680 + $0x38] sm:$0xf]
      %v3696 = vld [vmem:[%s3680 + $0x3c] sm:$0xf]
      %v3697 = vunpack.c.l.b16 %v3571
      %v3698 = vunpack.c.l.b16 %v3574
      %v3699 = vunpack.c.l.b16 %v3578
      %v3700 = vunpack.c.l.b16 %v3581
      %v3701 = vunpack.c.l.b16 %v3585
      %v3702 = vunpack.c.l.b16 %v3588
      %v3703 = vunpack.c.l.b16 %v3592
      %v3704 = vunpack.c.l.b16 %v3595
      %v3705 = vunpack.c.l.b16 %v3599
      %v3706 = vunpack.c.l.b16 %v3602
      %v3707 = vunpack.c.l.b16 %v3606
      %v3708 = vunpack.c.l.b16 %v3609
      %v3709 = vunpack.c.l.b16 %v3613
      %v3710 = vunpack.c.l.b16 %v3616
      %v3711 = vunpack.c.l.b16 %v3620
      %v3712 = vunpack.c.l.b16 %v3623
      %v3713 = vunpack.c.l.b16 %v3627
      %v3714 = vunpack.c.l.b16 %v3630
      %v3715 = vunpack.c.l.b16 %v3634
      %v3716 = vunpack.c.l.b16 %v3637
      %v3717 = vunpack.c.l.b16 %v3641
      %v3718 = vunpack.c.l.b16 %v3644
      %v3719 = vunpack.c.l.b16 %v3648
      %v3720 = vunpack.c.l.b16 %v3651
      %v3721 = vunpack.c.l.b16 %v3655
      %v3722 = vunpack.c.l.b16 %v3658
      %v3723 = vunpack.c.l.b16 %v3662
      %v3724 = vunpack.c.l.b16 %v3665
      %v3725 = vunpack.c.l.b16 %v3669
      %v3726 = vunpack.c.l.b16 %v3672
      %v3727 = vunpack.c.l.b16 %v3676
      %v3728 = vunpack.c.l.b16 %v3679
      %v3729 = vpack.c.b16 %v3698, %v3697
      %v3730 = vpack.c.b16 %v3700, %v3699
      %v3731 = vpack.c.b16 %v3702, %v3701
      %v3732 = vpack.c.b16 %v3704, %v3703
      %v3733 = vpack.c.b16 %v3706, %v3705
      %v3734 = vpack.c.b16 %v3708, %v3707
      %v3735 = vpack.c.b16 %v3710, %v3709
      %v3736 = vpack.c.b16 %v3712, %v3711
      %v3737 = vpack.c.b16 %v3714, %v3713
      %v3738 = vpack.c.b16 %v3716, %v3715
      %v3739 = vpack.c.b16 %v3718, %v3717
      %v3740 = vpack.c.b16 %v3720, %v3719
      %v3741 = vpack.c.b16 %v3722, %v3721
      %v3742 = vpack.c.b16 %v3724, %v3723
      %v3743 = vpack.c.b16 %v3726, %v3725
      %v3744 = vpack.c.b16 %v3728, %v3727
      %v3777 = vunpack.c.l.b16 %v3681
      %v3778 = vunpack.c.l.b16 %v3682
      %v3779 = vunpack.c.l.b16 %v3683
      %v3780 = vunpack.c.l.b16 %v3684
      %v3781 = vunpack.c.l.b16 %v3685
      %v3782 = vunpack.c.l.b16 %v3686
      %v3783 = vunpack.c.l.b16 %v3687
      %v3784 = vunpack.c.l.b16 %v3688
      %v3785 = vunpack.c.l.b16 %v3689
      %v3786 = vunpack.c.l.b16 %v3690
      %v3787 = vunpack.c.l.b16 %v3691
      %v3788 = vunpack.c.l.b16 %v3692
      %v3789 = vunpack.c.l.b16 %v3693
      %v3790 = vunpack.c.l.b16 %v3694
      %v3791 = vunpack.c.l.b16 %v3695
      %v3792 = vunpack.c.l.b16 %v3696
      %v3793 = vpack.c.b16 %v3778, %v3777
      %v3794 = vpack.c.b16 %v3780, %v3779
      %v3795 = vpack.c.b16 %v3782, %v3781
      %v3796 = vpack.c.b16 %v3784, %v3783
      %v3797 = vpack.c.b16 %v3786, %v3785
      %v3798 = vpack.c.b16 %v3788, %v3787
      %v3799 = vpack.c.b16 %v3790, %v3789
      %v3800 = vpack.c.b16 %v3792, %v3791
      %3809 = vmatprep.subr.bf16.mxu0 0
      %3810 = vmatpush1.bf16.msra.mxu0 %v3800
      %3811 = vmatprep.subr.bf16.mxu0 0
      %3812 = vmatpush1.bf16.msra.mxu0 %v3799
      %3813 = vmatprep.subr.bf16.mxu0 0
      %3814 = vmatpush1.bf16.msra.mxu0 %v3798
      %3815 = vmatprep.subr.bf16.mxu0 0
      %3816 = vmatpush1.bf16.msra.mxu0 %v3797
      %3817 = vmatprep.subr.bf16.mxu0 0
      %3818 = vmatpush1.bf16.msra.mxu0 %v3796
      %3819 = vmatprep.subr.bf16.mxu0 0
      %3820 = vmatpush1.bf16.msra.mxu0 %v3795
      %3821 = vmatprep.subr.bf16.mxu0 0
      %3822 = vmatpush1.bf16.msra.mxu0 %v3794
      %3823 = vmatprep.subr.bf16.mxu0 0
      %3824 = vmatpush1.bf16.msra.mxu0 %v3793
      %3825 = vmatprep.subr.bf16.mxu0 0
      %3826 = vmatpush2.bf16.msra.mxu0 0
      %3827 = vmatprep.subr.bf16.mxu0 0
      %3828 = vmatpush2.bf16.msra.mxu0 0
      %3829 = vmatprep.subr.bf16.mxu0 0
      %3830 = vmatpush2.bf16.msra.mxu0 0
      %3831 = vmatprep.subr.bf16.mxu0 0
      %3832 = vmatpush2.bf16.msra.mxu0 0
      %3833 = vmatprep.subr.bf16.mxu0 0
      %3834 = vmatpush2.bf16.msra.mxu0 0
      %3835 = vmatprep.subr.bf16.mxu0 0
      %3836 = vmatpush2.bf16.msra.mxu0 0
      %3837 = vmatprep.subr.bf16.mxu0 0
      %3838 = vmatpush2.bf16.msra.mxu0 0
      %3839 = vmatprep.subr.bf16.mxu0 0
      %3840 = vmatpush2.bf16.msra.mxu0 0
      %3841 = vmatprep.mubr.bf16.mxu0 0
      %3842 = vmatmul.mubr.bf16.gmra.mxu0 %v3729
      %v3843 = vpop.f32.mrf.mxu0
      %v3844 = vadd.f32 0.0, %v3843
      %v3845 = vpop.f32.mrf.mxu0
      %v3846 = vpop.f32.mrf.mxu0
      %v3847 = vadd.f32 0.0, %v3846
      %v3848 = vpop.f32.mrf.mxu0
      %3849 = vmatprep.mubr.bf16.mxu0 0
      %3850 = vmatmul.mubr.bf16.gmra.mxu0 %v3730
      %v3851 = vpop.f32.mrf.mxu0
      %v3852 = vadd.f32 0.0, %v3851
      %v3853 = vpop.f32.mrf.mxu0
      %v3854 = vpop.f32.mrf.mxu0
      %v3855 = vadd.f32 0.0, %v3854
      %v3856 = vpop.f32.mrf.mxu0
      %3857 = vmatprep.mubr.bf16.mxu0 0
      %3858 = vmatmul.mubr.bf16.gmra.mxu0 %v3731
      %v3859 = vpop.f32.mrf.mxu0
      %v3860 = vadd.f32 0.0, %v3859
      %v3861 = vpop.f32.mrf.mxu0
      %v3862 = vpop.f32.mrf.mxu0
      %v3863 = vadd.f32 0.0, %v3862
      %v3864 = vpop.f32.mrf.mxu0
      %3865 = vmatprep.mubr.bf16.mxu0 0
      %3866 = vmatmul.mubr.bf16.gmra.mxu0 %v3732
      %v3867 = vpop.f32.mrf.mxu0
      %v3868 = vadd.f32 0.0, %v3867
      %v3869 = vpop.f32.mrf.mxu0
      %v3870 = vpop.f32.mrf.mxu0
      %v3871 = vadd.f32 0.0, %v3870
      %v3872 = vpop.f32.mrf.mxu0
      %3873 = vmatprep.mubr.bf16.mxu0 0
      %3874 = vmatmul.mubr.bf16.gmra.mxu0 %v3733
      %v3875 = vpop.f32.mrf.mxu0
      %v3876 = vadd.f32 0.0, %v3875
      %v3877 = vpop.f32.mrf.mxu0
      %v3878 = vpop.f32.mrf.mxu0
      %v3879 = vadd.f32 0.0, %v3878
      %v3880 = vpop.f32.mrf.mxu0
      %3881 = vmatprep.mubr.bf16.mxu0 0
      %3882 = vmatmul.mubr.bf16.gmra.mxu0 %v3734
      %v3883 = vpop.f32.mrf.mxu0
      %v3884 = vadd.f32 0.0, %v3883
      %v3885 = vpop.f32.mrf.mxu0
      %v3886 = vpop.f32.mrf.mxu0
      %v3887 = vadd.f32 0.0, %v3886
      %v3888 = vpop.f32.mrf.mxu0
      %3889 = vmatprep.mubr.bf16.mxu0 0
      %3890 = vmatmul.mubr.bf16.gmra.mxu0 %v3735
      %v3891 = vpop.f32.mrf.mxu0
      %v3892 = vadd.f32 0.0, %v3891
      %v3893 = vpop.f32.mrf.mxu0
      %v3894 = vpop.f32.mrf.mxu0
      %v3895 = vadd.f32 0.0, %v3894
      %v3896 = vpop.f32.mrf.mxu0
      %3897 = vmatprep.mubr.bf16.mxu0 0
      %3898 = vmatmul.mubr.bf16.gmra.mxu0 %v3736
      %v3899 = vpop.f32.mrf.mxu0
      %v3900 = vadd.f32 0.0, %v3899
      %v3901 = vpop.f32.mrf.mxu0
      %v3902 = vpop.f32.mrf.mxu0
      %v3903 = vadd.f32 0.0, %v3902
      %v3904 = vpop.f32.mrf.mxu0
      %3905 = vmatprep.mubr.bf16.mxu0 0
      %3906 = vmatmul.mubr.bf16.gmra.mxu0 %v3737
      %v3907 = vpop.f32.mrf.mxu0
      %v3908 = vadd.f32 0.0, %v3907
      %v3909 = vpop.f32.mrf.mxu0
      %v3910 = vpop.f32.mrf.mxu0
      %v3911 = vadd.f32 0.0, %v3910
      %v3912 = vpop.f32.mrf.mxu0
      %3913 = vmatprep.mubr.bf16.mxu0 0
      %3914 = vmatmul.mubr.bf16.gmra.mxu0 %v3738
      %v3915 = vpop.f32.mrf.mxu0
      %v3916 = vadd.f32 0.0, %v3915
      %v3917 = vpop.f32.mrf.mxu0
      %v3918 = vpop.f32.mrf.mxu0
      %v3919 = vadd.f32 0.0, %v3918
      %v3920 = vpop.f32.mrf.mxu0
      %3921 = vmatprep.mubr.bf16.mxu0 0
      %3922 = vmatmul.mubr.bf16.gmra.mxu0 %v3739
      %v3923 = vpop.f32.mrf.mxu0
      %v3924 = vadd.f32 0.0, %v3923
      %v3925 = vpop.f32.mrf.mxu0
      %v3926 = vpop.f32.mrf.mxu0
      %v3927 = vadd.f32 0.0, %v3926
      %v3928 = vpop.f32.mrf.mxu0
      %3929 = vmatprep.mubr.bf16.mxu0 0
      %3930 = vmatmul.mubr.bf16.gmra.mxu0 %v3740
      %v3931 = vpop.f32.mrf.mxu0
      %v3932 = vadd.f32 0.0, %v3931
      %v3933 = vpop.f32.mrf.mxu0
      %v3934 = vpop.f32.mrf.mxu0
      %v3935 = vadd.f32 0.0, %v3934
      %v3936 = vpop.f32.mrf.mxu0
      %3937 = vmatprep.mubr.bf16.mxu0 0
      %3938 = vmatmul.mubr.bf16.gmra.mxu0 %v3741
      %v3939 = vpop.f32.mrf.mxu0
      %v3940 = vadd.f32 0.0, %v3939
      %v3941 = vpop.f32.mrf.mxu0
      %v3942 = vpop.f32.mrf.mxu0
      %v3943 = vadd.f32 0.0, %v3942
      %v3944 = vpop.f32.mrf.mxu0
      %3945 = vmatprep.mubr.bf16.mxu0 0
      %3946 = vmatmul.mubr.bf16.gmra.mxu0 %v3742
      %v3947 = vpop.f32.mrf.mxu0
      %v3948 = vadd.f32 0.0, %v3947
      %v3949 = vpop.f32.mrf.mxu0
      %v3950 = vpop.f32.mrf.mxu0
      %v3951 = vadd.f32 0.0, %v3950
      %v3952 = vpop.f32.mrf.mxu0
      %3953 = vmatprep.mubr.bf16.mxu0 0
      %3954 = vmatmul.mubr.bf16.gmra.mxu0 %v3743
      %v3955 = vpop.f32.mrf.mxu0
      %v3956 = vadd.f32 0.0, %v3955
      %v3957 = vpop.f32.mrf.mxu0
      %v3958 = vpop.f32.mrf.mxu0
      %v3959 = vadd.f32 0.0, %v3958
      %v3960 = vpop.f32.mrf.mxu0
      %3961 = vmatprep.mubr.bf16.mxu0 0
      %3962 = vmatmul.mubr.bf16.gmra.mxu0 %v3744
      %v3963 = vpop.f32.mrf.mxu0
      %v3964 = vadd.f32 0.0, %v3963
      %v3965 = vpop.f32.mrf.mxu0
      %v3966 = vpop.f32.mrf.mxu0
      %v3967 = vadd.f32 0.0, %v3966
      %v3968 = vpop.f32.mrf.mxu0
      %3969 = vdwg.mxu0
      %v3970 = vadd.f32 %v3472, %v3844
      %v3971 = vadd.f32 %v3473, %v3847
      %v3972 = vadd.f32 %v3474, %v3852
      %v3973 = vadd.f32 %v3475, %v3855
      %v3974 = vadd.f32 %v3476, %v3860
      %v3975 = vadd.f32 %v3477, %v3863
      %v3976 = vadd.f32 %v3478, %v3868
      %v3977 = vadd.f32 %v3479, %v3871
      %v3978 = vadd.f32 %v3480, %v3876
      %v3979 = vadd.f32 %v3481, %v3879
      %v3980 = vadd.f32 %v3482, %v3884
      %v3981 = vadd.f32 %v3483, %v3887
      %v3982 = vadd.f32 %v3484, %v3892
      %v3983 = vadd.f32 %v3485, %v3895
      %v3984 = vadd.f32 %v3486, %v3900
      %v3985 = vadd.f32 %v3487, %v3903
      %v3986 = vadd.f32 %v3488, %v3908
      %v3987 = vadd.f32 %v3489, %v3911
      %v3988 = vadd.f32 %v3490, %v3916
      %v3989 = vadd.f32 %v3491, %v3919
      %v3990 = vadd.f32 %v3492, %v3924
      %v3991 = vadd.f32 %v3493, %v3927
      %v3992 = vadd.f32 %v3494, %v3932
      %v3993 = vadd.f32 %v3495, %v3935
      %v3994 = vadd.f32 %v3496, %v3940
      %v3995 = vadd.f32 %v3497, %v3943
      %v3996 = vadd.f32 %v3498, %v3948
      %v3997 = vadd.f32 %v3499, %v3951
      %v3998 = vadd.f32 %v3500, %v3956
      %v3999 = vadd.f32 %v3501, %v3959
      %v4000 = vadd.f32 %v3502, %v3964
      %v4001 = vadd.f32 %v3503, %v3967
      %s4002 = scalar_lea.vmem [#allocation2], 24
      %v4003 = vld [vmem:[%s4002] sm:$0xf]
      %v4004 = vld [vmem:[%s4002 + $0x4] sm:$0xf]
      %v4005 = vld [vmem:[%s4002 + $0xc] sm:$0xf]
      %v4006 = vld [vmem:[%s4002 + $0x10] sm:$0xf]
      %v4007 = vld [vmem:[%s4002 + $0x18] sm:$0xf]
      %v4008 = vld [vmem:[%s4002 + $0x1c] sm:$0xf]
      %v4009 = vld [vmem:[%s4002 + $0x24] sm:$0xf]
      %v4010 = vld [vmem:[%s4002 + $0x28] sm:$0xf]
      %v4011 = vld [vmem:[%s4002 + $0x30] sm:$0xf]
      %v4012 = vld [vmem:[%s4002 + $0x34] sm:$0xf]
      %v4013 = vld [vmem:[%s4002 + $0x3c] sm:$0xf]
      %v4014 = vld [vmem:[%s4002 + $0x40] sm:$0xf]
      %v4015 = vld [vmem:[%s4002 + $0x48] sm:$0xf]
      %v4016 = vld [vmem:[%s4002 + $0x4c] sm:$0xf]
      %v4017 = vld [vmem:[%s4002 + $0x54] sm:$0xf]
      %v4018 = vld [vmem:[%s4002 + $0x58] sm:$0xf]
      %v4019 = vld [vmem:[%s4002 + $0x60] sm:$0xf]
      %v4020 = vld [vmem:[%s4002 + $0x64] sm:$0xf]
      %v4021 = vld [vmem:[%s4002 + $0x6c] sm:$0xf]
      %v4022 = vld [vmem:[%s4002 + $0x70] sm:$0xf]
      %v4023 = vld [vmem:[%s4002 + $0x78] sm:$0xf]
      %v4024 = vld [vmem:[%s4002 + $0x7c] sm:$0xf]
      %v4025 = vld [vmem:[%s4002 + $0x84] sm:$0xf]
      %v4026 = vld [vmem:[%s4002 + $0x88] sm:$0xf]
      %v4027 = vld [vmem:[%s4002 + $0x90] sm:$0xf]
      %v4028 = vld [vmem:[%s4002 + $0x94] sm:$0xf]
      %v4029 = vld [vmem:[%s4002 + $0x9c] sm:$0xf]
      %v4030 = vld [vmem:[%s4002 + $0xa0] sm:$0xf]
      %v4031 = vld [vmem:[%s4002 + $0xa8] sm:$0xf]
      %v4032 = vld [vmem:[%s4002 + $0xac] sm:$0xf]
      %v4033 = vld [vmem:[%s4002 + $0xb4] sm:$0xf]
      %v4034 = vld [vmem:[%s4002 + $0xb8] sm:$0xf]
      %s4035 = scalar_lea.vmem %s1, 384
      %v4036 = vld [vmem:[%s4035] sm:$0xf]
      %v4037 = vld [vmem:[%s4035 + $0x4] sm:$0xf]
      %v4038 = vld [vmem:[%s4035 + $0x8] sm:$0xf]
      %v4039 = vld [vmem:[%s4035 + $0xc] sm:$0xf]
      %v4040 = vld [vmem:[%s4035 + $0x10] sm:$0xf]
      %v4041 = vld [vmem:[%s4035 + $0x14] sm:$0xf]
      %v4042 = vld [vmem:[%s4035 + $0x18] sm:$0xf]
      %v4043 = vld [vmem:[%s4035 + $0x1c] sm:$0xf]
      %v4044 = vld [vmem:[%s4035 + $0x20] sm:$0xf]
      %v4045 = vld [vmem:[%s4035 + $0x24] sm:$0xf]
      %v4046 = vld [vmem:[%s4035 + $0x28] sm:$0xf]
      %v4047 = vld [vmem:[%s4035 + $0x2c] sm:$0xf]
      %v4048 = vld [vmem:[%s4035 + $0x30] sm:$0xf]
      %v4049 = vld [vmem:[%s4035 + $0x34] sm:$0xf]
      %v4050 = vld [vmem:[%s4035 + $0x38] sm:$0xf]
      %v4051 = vld [vmem:[%s4035 + $0x3c] sm:$0xf]
      %v4084 = vunpack.c.l.b16 %v4003
      %v4085 = vunpack.c.l.b16 %v4004
      %v4086 = vunpack.c.l.b16 %v4005
      %v4087 = vunpack.c.l.b16 %v4006
      %v4088 = vunpack.c.l.b16 %v4007
      %v4089 = vunpack.c.l.b16 %v4008
      %v4090 = vunpack.c.l.b16 %v4009
      %v4091 = vunpack.c.l.b16 %v4010
      %v4092 = vunpack.c.l.b16 %v4011
      %v4093 = vunpack.c.l.b16 %v4012
      %v4094 = vunpack.c.l.b16 %v4013
      %v4095 = vunpack.c.l.b16 %v4014
      %v4096 = vunpack.c.l.b16 %v4015
      %v4097 = vunpack.c.l.b16 %v4016
      %v4098 = vunpack.c.l.b16 %v4017
      %v4099 = vunpack.c.l.b16 %v4018
      %v4100 = vunpack.c.l.b16 %v4019
      %v4101 = vunpack.c.l.b16 %v4020
      %v4102 = vunpack.c.l.b16 %v4021
      %v4103 = vunpack.c.l.b16 %v4022
      %v4104 = vunpack.c.l.b16 %v4023
      %v4105 = vunpack.c.l.b16 %v4024
      %v4106 = vunpack.c.l.b16 %v4025
      %v4107 = vunpack.c.l.b16 %v4026
      %v4108 = vunpack.c.l.b16 %v4027
      %v4109 = vunpack.c.l.b16 %v4028
      %v4110 = vunpack.c.l.b16 %v4029
      %v4111 = vunpack.c.l.b16 %v4030
      %v4112 = vunpack.c.l.b16 %v4031
      %v4113 = vunpack.c.l.b16 %v4032
      %v4114 = vunpack.c.l.b16 %v4033
      %v4115 = vunpack.c.l.b16 %v4034
      %v4116 = vpack.c.b16 %v4085, %v4084
      %v4117 = vpack.c.b16 %v4087, %v4086
      %v4118 = vpack.c.b16 %v4089, %v4088
      %v4119 = vpack.c.b16 %v4091, %v4090
      %v4120 = vpack.c.b16 %v4093, %v4092
      %v4121 = vpack.c.b16 %v4095, %v4094
      %v4122 = vpack.c.b16 %v4097, %v4096
      %v4123 = vpack.c.b16 %v4099, %v4098
      %v4124 = vpack.c.b16 %v4101, %v4100
      %v4125 = vpack.c.b16 %v4103, %v4102
      %v4126 = vpack.c.b16 %v4105, %v4104
      %v4127 = vpack.c.b16 %v4107, %v4106
      %v4128 = vpack.c.b16 %v4109, %v4108
      %v4129 = vpack.c.b16 %v4111, %v4110
      %v4130 = vpack.c.b16 %v4113, %v4112
      %v4131 = vpack.c.b16 %v4115, %v4114
      %v4164 = vunpack.c.l.b16 %v4036
      %v4165 = vunpack.c.l.b16 %v4037
      %v4166 = vunpack.c.l.b16 %v4038
      %v4167 = vunpack.c.l.b16 %v4039
      %v4168 = vunpack.c.l.b16 %v4040
      %v4169 = vunpack.c.l.b16 %v4041
      %v4170 = vunpack.c.l.b16 %v4042
      %v4171 = vunpack.c.l.b16 %v4043
      %v4172 = vunpack.c.l.b16 %v4044
      %v4173 = vunpack.c.l.b16 %v4045
      %v4174 = vunpack.c.l.b16 %v4046
      %v4175 = vunpack.c.l.b16 %v4047
      %v4176 = vunpack.c.l.b16 %v4048
      %v4177 = vunpack.c.l.b16 %v4049
      %v4178 = vunpack.c.l.b16 %v4050
      %v4179 = vunpack.c.l.b16 %v4051
      %v4180 = vpack.c.b16 %v4165, %v4164
      %v4181 = vpack.c.b16 %v4167, %v4166
      %v4182 = vpack.c.b16 %v4169, %v4168
      %v4183 = vpack.c.b16 %v4171, %v4170
      %v4184 = vpack.c.b16 %v4173, %v4172
      %v4185 = vpack.c.b16 %v4175, %v4174
      %v4186 = vpack.c.b16 %v4177, %v4176
      %v4187 = vpack.c.b16 %v4179, %v4178
      %4196 = vmatprep.subr.bf16.mxu0 0
      %4197 = vmatpush1.bf16.msra.mxu0 %v4187
      %4198 = vmatprep.subr.bf16.mxu0 0
      %4199 = vmatpush1.bf16.msra.mxu0 %v4186
      %4200 = vmatprep.subr.bf16.mxu0 0
      %4201 = vmatpush1.bf16.msra.mxu0 %v4185
      %4202 = vmatprep.subr.bf16.mxu0 0
      %4203 = vmatpush1.bf16.msra.mxu0 %v4184
      %4204 = vmatprep.subr.bf16.mxu0 0
      %4205 = vmatpush1.bf16.msra.mxu0 %v4183
      %4206 = vmatprep.subr.bf16.mxu0 0
      %4207 = vmatpush1.bf16.msra.mxu0 %v4182
      %4208 = vmatprep.subr.bf16.mxu0 0
      %4209 = vmatpush1.bf16.msra.mxu0 %v4181
      %4210 = vmatprep.subr.bf16.mxu0 0
      %4211 = vmatpush1.bf16.msra.mxu0 %v4180
      %4212 = vmatprep.subr.bf16.mxu0 0
      %4213 = vmatpush2.bf16.msra.mxu0 0
      %4214 = vmatprep.subr.bf16.mxu0 0
      %4215 = vmatpush2.bf16.msra.mxu0 0
      %4216 = vmatprep.subr.bf16.mxu0 0
      %4217 = vmatpush2.bf16.msra.mxu0 0
      %4218 = vmatprep.subr.bf16.mxu0 0
      %4219 = vmatpush2.bf16.msra.mxu0 0
      %4220 = vmatprep.subr.bf16.mxu0 0
      %4221 = vmatpush2.bf16.msra.mxu0 0
      %4222 = vmatprep.subr.bf16.mxu0 0
      %4223 = vmatpush2.bf16.msra.mxu0 0
      %4224 = vmatprep.subr.bf16.mxu0 0
      %4225 = vmatpush2.bf16.msra.mxu0 0
      %4226 = vmatprep.subr.bf16.mxu0 0
      %4227 = vmatpush2.bf16.msra.mxu0 0
      %4228 = vmatprep.mubr.bf16.mxu0 0
      %4229 = vmatmul.mubr.bf16.gmra.mxu0 %v4116
      %v4230 = vpop.f32.mrf.mxu0
      %v4231 = vadd.f32 0.0, %v4230
      %v4232 = vpop.f32.mrf.mxu0
      %v4233 = vpop.f32.mrf.mxu0
      %v4234 = vadd.f32 0.0, %v4233
      %v4235 = vpop.f32.mrf.mxu0
      %4236 = vmatprep.mubr.bf16.mxu0 0
      %4237 = vmatmul.mubr.bf16.gmra.mxu0 %v4117
      %v4238 = vpop.f32.mrf.mxu0
      %v4239 = vadd.f32 0.0, %v4238
      %v4240 = vpop.f32.mrf.mxu0
      %v4241 = vpop.f32.mrf.mxu0
      %v4242 = vadd.f32 0.0, %v4241
      %v4243 = vpop.f32.mrf.mxu0
      %4244 = vmatprep.mubr.bf16.mxu0 0
      %4245 = vmatmul.mubr.bf16.gmra.mxu0 %v4118
      %v4246 = vpop.f32.mrf.mxu0
      %v4247 = vadd.f32 0.0, %v4246
      %v4248 = vpop.f32.mrf.mxu0
      %v4249 = vpop.f32.mrf.mxu0
      %v4250 = vadd.f32 0.0, %v4249
      %v4251 = vpop.f32.mrf.mxu0
      %4252 = vmatprep.mubr.bf16.mxu0 0
      %4253 = vmatmul.mubr.bf16.gmra.mxu0 %v4119
      %v4254 = vpop.f32.mrf.mxu0
      %v4255 = vadd.f32 0.0, %v4254
      %v4256 = vpop.f32.mrf.mxu0
      %v4257 = vpop.f32.mrf.mxu0
      %v4258 = vadd.f32 0.0, %v4257
      %v4259 = vpop.f32.mrf.mxu0
      %4260 = vmatprep.mubr.bf16.mxu0 0
      %4261 = vmatmul.mubr.bf16.gmra.mxu0 %v4120
      %v4262 = vpop.f32.mrf.mxu0
      %v4263 = vadd.f32 0.0, %v4262
      %v4264 = vpop.f32.mrf.mxu0
      %v4265 = vpop.f32.mrf.mxu0
      %v4266 = vadd.f32 0.0, %v4265
      %v4267 = vpop.f32.mrf.mxu0
      %4268 = vmatprep.mubr.bf16.mxu0 0
      %4269 = vmatmul.mubr.bf16.gmra.mxu0 %v4121
      %v4270 = vpop.f32.mrf.mxu0
      %v4271 = vadd.f32 0.0, %v4270
      %v4272 = vpop.f32.mrf.mxu0
      %v4273 = vpop.f32.mrf.mxu0
      %v4274 = vadd.f32 0.0, %v4273
      %v4275 = vpop.f32.mrf.mxu0
      %4276 = vmatprep.mubr.bf16.mxu0 0
      %4277 = vmatmul.mubr.bf16.gmra.mxu0 %v4122
      %v4278 = vpop.f32.mrf.mxu0
      %v4279 = vadd.f32 0.0, %v4278
      %v4280 = vpop.f32.mrf.mxu0
      %v4281 = vpop.f32.mrf.mxu0
      %v4282 = vadd.f32 0.0, %v4281
      %v4283 = vpop.f32.mrf.mxu0
      %4284 = vmatprep.mubr.bf16.mxu0 0
      %4285 = vmatmul.mubr.bf16.gmra.mxu0 %v4123
      %v4286 = vpop.f32.mrf.mxu0
      %v4287 = vadd.f32 0.0, %v4286
      %v4288 = vpop.f32.mrf.mxu0
      %v4289 = vpop.f32.mrf.mxu0
      %v4290 = vadd.f32 0.0, %v4289
      %v4291 = vpop.f32.mrf.mxu0
      %4292 = vmatprep.mubr.bf16.mxu0 0
      %4293 = vmatmul.mubr.bf16.gmra.mxu0 %v4124
      %v4294 = vpop.f32.mrf.mxu0
      %v4295 = vadd.f32 0.0, %v4294
      %v4296 = vpop.f32.mrf.mxu0
      %v4297 = vpop.f32.mrf.mxu0
      %v4298 = vadd.f32 0.0, %v4297
      %v4299 = vpop.f32.mrf.mxu0
      %4300 = vmatprep.mubr.bf16.mxu0 0
      %4301 = vmatmul.mubr.bf16.gmra.mxu0 %v4125
      %v4302 = vpop.f32.mrf.mxu0
      %v4303 = vadd.f32 0.0, %v4302
      %v4304 = vpop.f32.mrf.mxu0
      %v4305 = vpop.f32.mrf.mxu0
      %v4306 = vadd.f32 0.0, %v4305
      %v4307 = vpop.f32.mrf.mxu0
      %4308 = vmatprep.mubr.bf16.mxu0 0
      %4309 = vmatmul.mubr.bf16.gmra.mxu0 %v4126
      %v4310 = vpop.f32.mrf.mxu0
      %v4311 = vadd.f32 0.0, %v4310
      %v4312 = vpop.f32.mrf.mxu0
      %v4313 = vpop.f32.mrf.mxu0
      %v4314 = vadd.f32 0.0, %v4313
      %v4315 = vpop.f32.mrf.mxu0
      %4316 = vmatprep.mubr.bf16.mxu0 0
      %4317 = vmatmul.mubr.bf16.gmra.mxu0 %v4127
      %v4318 = vpop.f32.mrf.mxu0
      %v4319 = vadd.f32 0.0, %v4318
      %v4320 = vpop.f32.mrf.mxu0
      %v4321 = vpop.f32.mrf.mxu0
      %v4322 = vadd.f32 0.0, %v4321
      %v4323 = vpop.f32.mrf.mxu0
      %4324 = vmatprep.mubr.bf16.mxu0 0
      %4325 = vmatmul.mubr.bf16.gmra.mxu0 %v4128
      %v4326 = vpop.f32.mrf.mxu0
      %v4327 = vadd.f32 0.0, %v4326
      %v4328 = vpop.f32.mrf.mxu0
      %v4329 = vpop.f32.mrf.mxu0
      %v4330 = vadd.f32 0.0, %v4329
      %v4331 = vpop.f32.mrf.mxu0
      %4332 = vmatprep.mubr.bf16.mxu0 0
      %4333 = vmatmul.mubr.bf16.gmra.mxu0 %v4129
      %v4334 = vpop.f32.mrf.mxu0
      %v4335 = vadd.f32 0.0, %v4334
      %v4336 = vpop.f32.mrf.mxu0
      %v4337 = vpop.f32.mrf.mxu0
      %v4338 = vadd.f32 0.0, %v4337
      %v4339 = vpop.f32.mrf.mxu0
      %4340 = vmatprep.mubr.bf16.mxu0 0
      %4341 = vmatmul.mubr.bf16.gmra.mxu0 %v4130
      %v4342 = vpop.f32.mrf.mxu0
      %v4343 = vadd.f32 0.0, %v4342
      %v4344 = vpop.f32.mrf.mxu0
      %v4345 = vpop.f32.mrf.mxu0
      %v4346 = vadd.f32 0.0, %v4345
      %v4347 = vpop.f32.mrf.mxu0
      %4348 = vmatprep.mubr.bf16.mxu0 0
      %4349 = vmatmul.mubr.bf16.gmra.mxu0 %v4131
      %v4350 = vpop.f32.mrf.mxu0
      %v4351 = vadd.f32 0.0, %v4350
      %v4352 = vpop.f32.mrf.mxu0
      %v4353 = vpop.f32.mrf.mxu0
      %v4354 = vadd.f32 0.0, %v4353
      %v4355 = vpop.f32.mrf.mxu0
      %4356 = vdwg.mxu0
      %v4357 = vadd.f32 %v3970, %v4231
      %v4358 = vadd.f32 %v3971, %v4234
      %v4359 = vadd.f32 %v3972, %v4239
      %v4360 = vadd.f32 %v3973, %v4242
      %v4361 = vadd.f32 %v3974, %v4247
      %v4362 = vadd.f32 %v3975, %v4250
      %v4363 = vadd.f32 %v3976, %v4255
      %v4364 = vadd.f32 %v3977, %v4258
      %v4365 = vadd.f32 %v3978, %v4263
      %v4366 = vadd.f32 %v3979, %v4266
      %v4367 = vadd.f32 %v3980, %v4271
      %v4368 = vadd.f32 %v3981, %v4274
      %v4369 = vadd.f32 %v3982, %v4279
      %v4370 = vadd.f32 %v3983, %v4282
      %v4371 = vadd.f32 %v3984, %v4287
      %v4372 = vadd.f32 %v3985, %v4290
      %v4373 = vadd.f32 %v3986, %v4295
      %v4374 = vadd.f32 %v3987, %v4298
      %v4375 = vadd.f32 %v3988, %v4303
      %v4376 = vadd.f32 %v3989, %v4306
      %v4377 = vadd.f32 %v3990, %v4311
      %v4378 = vadd.f32 %v3991, %v4314
      %v4379 = vadd.f32 %v3992, %v4319
      %v4380 = vadd.f32 %v3993, %v4322
      %v4381 = vadd.f32 %v3994, %v4327
      %v4382 = vadd.f32 %v3995, %v4330
      %v4383 = vadd.f32 %v3996, %v4335
      %v4384 = vadd.f32 %v3997, %v4338
      %v4385 = vadd.f32 %v3998, %v4343
      %v4386 = vadd.f32 %v3999, %v4346
      %v4387 = vadd.f32 %v4000, %v4351
      %v4388 = vadd.f32 %v4001, %v4354
      %v4389 = vld [vmem:[%s4002] sm:$0xf]
      %v4390 = vld [vmem:[%s4002 + $0x4] sm:$0xf]
      %v4391 = vld [vmem:[%s4002 + $0x8] sm:$0x1]
      %v4392 = vld [vmem:[%s4002 + $0xc] sm:$0xf]
      %v4393 = vld [vmem:[%s4002 + $0x10] sm:$0xf]
      %v4394 = vld [vmem:[%s4002 + $0x14] sm:$0x1]
      %v4395 = vld [vmem:[%s4002 + $0x18] sm:$0xf]
      %v4396 = vld [vmem:[%s4002 + $0x1c] sm:$0xf]
      %v4397 = vld [vmem:[%s4002 + $0x20] sm:$0x1]
      %v4398 = vld [vmem:[%s4002 + $0x24] sm:$0xf]
      %v4399 = vld [vmem:[%s4002 + $0x28] sm:$0xf]
      %v4400 = vld [vmem:[%s4002 + $0x2c] sm:$0x1]
      %v4401 = vld [vmem:[%s4002 + $0x30] sm:$0xf]
      %v4402 = vld [vmem:[%s4002 + $0x34] sm:$0xf]
      %v4403 = vld [vmem:[%s4002 + $0x38] sm:$0x1]
      %v4404 = vld [vmem:[%s4002 + $0x3c] sm:$0xf]
      %v4405 = vld [vmem:[%s4002 + $0x40] sm:$0xf]
      %v4406 = vld [vmem:[%s4002 + $0x44] sm:$0x1]
      %v4407 = vld [vmem:[%s4002 + $0x48] sm:$0xf]
      %v4408 = vld [vmem:[%s4002 + $0x4c] sm:$0xf]
      %v4409 = vld [vmem:[%s4002 + $0x50] sm:$0x1]
      %v4410 = vld [vmem:[%s4002 + $0x54] sm:$0xf]
      %v4411 = vld [vmem:[%s4002 + $0x58] sm:$0xf]
      %v4412 = vld [vmem:[%s4002 + $0x5c] sm:$0x1]
      %v4413 = vld [vmem:[%s4002 + $0x60] sm:$0xf]
      %v4414 = vld [vmem:[%s4002 + $0x64] sm:$0xf]
      %v4415 = vld [vmem:[%s4002 + $0x68] sm:$0x1]
      %v4416 = vld [vmem:[%s4002 + $0x6c] sm:$0xf]
      %v4417 = vld [vmem:[%s4002 + $0x70] sm:$0xf]
      %v4418 = vld [vmem:[%s4002 + $0x74] sm:$0x1]
      %v4419 = vld [vmem:[%s4002 + $0x78] sm:$0xf]
      %v4420 = vld [vmem:[%s4002 + $0x7c] sm:$0xf]
      %v4421 = vld [vmem:[%s4002 + $0x80] sm:$0x1]
      %v4422 = vld [vmem:[%s4002 + $0x84] sm:$0xf]
      %v4423 = vld [vmem:[%s4002 + $0x88] sm:$0xf]
      %v4424 = vld [vmem:[%s4002 + $0x8c] sm:$0x1]
      %v4425 = vld [vmem:[%s4002 + $0x90] sm:$0xf]
      %v4426 = vld [vmem:[%s4002 + $0x94] sm:$0xf]
      %v4427 = vld [vmem:[%s4002 + $0x98] sm:$0x1]
      %v4428 = vld [vmem:[%s4002 + $0x9c] sm:$0xf]
      %v4429 = vld [vmem:[%s4002 + $0xa0] sm:$0xf]
      %v4430 = vld [vmem:[%s4002 + $0xa4] sm:$0x1]
      %v4431 = vld [vmem:[%s4002 + $0xa8] sm:$0xf]
      %v4432 = vld [vmem:[%s4002 + $0xac] sm:$0xf]
      %v4433 = vld [vmem:[%s4002 + $0xb0] sm:$0x1]
      %v4434 = vld [vmem:[%s4002 + $0xb4] sm:$0xf]
      %v4435 = vld [vmem:[%s4002 + $0xb8] sm:$0xf]
      %v4436 = vld [vmem:[%s4002 + $0xbc] sm:$0x1]
      %v4438 = vshrl.u32 %v4389, 16
      %v4440 = vrot.slane %v4438, 4
      %v4441 = vshll.u32 %v4389, 16
      %v4443 = vrot.slane %v4441, 5
      %v4444 = vor.u32 %v4440, %v4443
      %v4445 = vrot.slane %v4444, 4
      %v4447 = vshll.u32 %v4390, 16
      %v4449 = vrot.slane %v4447, 5
      %v4450 = vsel %vm899, %v4445, %v4449
      %v4451 = vshrl.u32 %v4390, 16
      %v4453 = vrot.slane %v4451, 4
      %v4454 = vor.u32 %v4453, %v4449
      %v4455 = vrot.slane %v4454, 4
      %v4457 = vshll.u32 %v4391, 16
      %v4459 = vrot.slane %v4457, 5
      %v4460 = vsel %vm899, %v4455, %v4459
      %v4462 = vshrl.u32 %v4392, 16
      %v4464 = vrot.slane %v4462, 4
      %v4465 = vshll.u32 %v4392, 16
      %v4467 = vrot.slane %v4465, 5
      %v4468 = vor.u32 %v4464, %v4467
      %v4469 = vrot.slane %v4468, 4
      %v4471 = vshll.u32 %v4393, 16
      %v4473 = vrot.slane %v4471, 5
      %v4474 = vsel %vm899, %v4469, %v4473
      %v4475 = vshrl.u32 %v4393, 16
      %v4477 = vrot.slane %v4475, 4
      %v4478 = vor.u32 %v4477, %v4473
      %v4479 = vrot.slane %v4478, 4
      %v4481 = vshll.u32 %v4394, 16
      %v4483 = vrot.slane %v4481, 5
      %v4484 = vsel %vm899, %v4479, %v4483
      %v4486 = vshrl.u32 %v4395, 16
      %v4488 = vrot.slane %v4486, 4
      %v4489 = vshll.u32 %v4395, 16
      %v4491 = vrot.slane %v4489, 5
      %v4492 = vor.u32 %v4488, %v4491
      %v4493 = vrot.slane %v4492, 4
      %v4495 = vshll.u32 %v4396, 16
      %v4497 = vrot.slane %v4495, 5
      %v4498 = vsel %vm899, %v4493, %v4497
      %v4499 = vshrl.u32 %v4396, 16
      %v4501 = vrot.slane %v4499, 4
      %v4502 = vor.u32 %v4501, %v4497
      %v4503 = vrot.slane %v4502, 4
      %v4505 = vshll.u32 %v4397, 16
      %v4507 = vrot.slane %v4505, 5
      %v4508 = vsel %vm899, %v4503, %v4507
      %v4510 = vshrl.u32 %v4398, 16
      %v4512 = vrot.slane %v4510, 4
      %v4513 = vshll.u32 %v4398, 16
      %v4515 = vrot.slane %v4513, 5
      %v4516 = vor.u32 %v4512, %v4515
      %v4517 = vrot.slane %v4516, 4
      %v4519 = vshll.u32 %v4399, 16
      %v4521 = vrot.slane %v4519, 5
      %v4522 = vsel %vm899, %v4517, %v4521
      %v4523 = vshrl.u32 %v4399, 16
      %v4525 = vrot.slane %v4523, 4
      %v4526 = vor.u32 %v4525, %v4521
      %v4527 = vrot.slane %v4526, 4
      %v4529 = vshll.u32 %v4400, 16
      %v4531 = vrot.slane %v4529, 5
      %v4532 = vsel %vm899, %v4527, %v4531
      %v4534 = vshrl.u32 %v4401, 16
      %v4536 = vrot.slane %v4534, 4
      %v4537 = vshll.u32 %v4401, 16
      %v4539 = vrot.slane %v4537, 5
      %v4540 = vor.u32 %v4536, %v4539
      %v4541 = vrot.slane %v4540, 4
      %v4543 = vshll.u32 %v4402, 16
      %v4545 = vrot.slane %v4543, 5
      %v4546 = vsel %vm899, %v4541, %v4545
      %v4547 = vshrl.u32 %v4402, 16
      %v4549 = vrot.slane %v4547, 4
      %v4550 = vor.u32 %v4549, %v4545
      %v4551 = vrot.slane %v4550, 4
      %v4553 = vshll.u32 %v4403, 16
      %v4555 = vrot.slane %v4553, 5
      %v4556 = vsel %vm899, %v4551, %v4555
      %v4558 = vshrl.u32 %v4404, 16
      %v4560 = vrot.slane %v4558, 4
      %v4561 = vshll.u32 %v4404, 16
      %v4563 = vrot.slane %v4561, 5
      %v4564 = vor.u32 %v4560, %v4563
      %v4565 = vrot.slane %v4564, 4
      %v4567 = vshll.u32 %v4405, 16
      %v4569 = vrot.slane %v4567, 5
      %v4570 = vsel %vm899, %v4565, %v4569
      %v4571 = vshrl.u32 %v4405, 16
      %v4573 = vrot.slane %v4571, 4
      %v4574 = vor.u32 %v4573, %v4569
      %v4575 = vrot.slane %v4574, 4
      %v4577 = vshll.u32 %v4406, 16
      %v4579 = vrot.slane %v4577, 5
      %v4580 = vsel %vm899, %v4575, %v4579
      %v4582 = vshrl.u32 %v4407, 16
      %v4584 = vrot.slane %v4582, 4
      %v4585 = vshll.u32 %v4407, 16
      %v4587 = vrot.slane %v4585, 5
      %v4588 = vor.u32 %v4584, %v4587
      %v4589 = vrot.slane %v4588, 4
      %v4591 = vshll.u32 %v4408, 16
      %v4593 = vrot.slane %v4591, 5
      %v4594 = vsel %vm899, %v4589, %v4593
      %v4595 = vshrl.u32 %v4408, 16
      %v4597 = vrot.slane %v4595, 4
      %v4598 = vor.u32 %v4597, %v4593
      %v4599 = vrot.slane %v4598, 4
      %v4601 = vshll.u32 %v4409, 16
      %v4603 = vrot.slane %v4601, 5
      %v4604 = vsel %vm899, %v4599, %v4603
      %v4606 = vshrl.u32 %v4410, 16
      %v4608 = vrot.slane %v4606, 4
      %v4609 = vshll.u32 %v4410, 16
      %v4611 = vrot.slane %v4609, 5
      %v4612 = vor.u32 %v4608, %v4611
      %v4613 = vrot.slane %v4612, 4
      %v4615 = vshll.u32 %v4411, 16
      %v4617 = vrot.slane %v4615, 5
      %v4618 = vsel %vm899, %v4613, %v4617
      %v4619 = vshrl.u32 %v4411, 16
      %v4621 = vrot.slane %v4619, 4
      %v4622 = vor.u32 %v4621, %v4617
      %v4623 = vrot.slane %v4622, 4
      %v4625 = vshll.u32 %v4412, 16
      %v4627 = vrot.slane %v4625, 5
      %v4628 = vsel %vm899, %v4623, %v4627
      %v4630 = vshrl.u32 %v4413, 16
      %v4632 = vrot.slane %v4630, 4
      %v4633 = vshll.u32 %v4413, 16
      %v4635 = vrot.slane %v4633, 5
      %v4636 = vor.u32 %v4632, %v4635
      %v4637 = vrot.slane %v4636, 4
      %v4639 = vshll.u32 %v4414, 16
      %v4641 = vrot.slane %v4639, 5
      %v4642 = vsel %vm899, %v4637, %v4641
      %v4643 = vshrl.u32 %v4414, 16
      %v4645 = vrot.slane %v4643, 4
      %v4646 = vor.u32 %v4645, %v4641
      %v4647 = vrot.slane %v4646, 4
      %v4649 = vshll.u32 %v4415, 16
      %v4651 = vrot.slane %v4649, 5
      %v4652 = vsel %vm899, %v4647, %v4651
      %v4654 = vshrl.u32 %v4416, 16
      %v4656 = vrot.slane %v4654, 4
      %v4657 = vshll.u32 %v4416, 16
      %v4659 = vrot.slane %v4657, 5
      %v4660 = vor.u32 %v4656, %v4659
      %v4661 = vrot.slane %v4660, 4
      %v4663 = vshll.u32 %v4417, 16
      %v4665 = vrot.slane %v4663, 5
      %v4666 = vsel %vm899, %v4661, %v4665
      %v4667 = vshrl.u32 %v4417, 16
      %v4669 = vrot.slane %v4667, 4
      %v4670 = vor.u32 %v4669, %v4665
      %v4671 = vrot.slane %v4670, 4
      %v4673 = vshll.u32 %v4418, 16
      %v4675 = vrot.slane %v4673, 5
      %v4676 = vsel %vm899, %v4671, %v4675
      %v4678 = vshrl.u32 %v4419, 16
      %v4680 = vrot.slane %v4678, 4
      %v4681 = vshll.u32 %v4419, 16
      %v4683 = vrot.slane %v4681, 5
      %v4684 = vor.u32 %v4680, %v4683
      %v4685 = vrot.slane %v4684, 4
      %v4687 = vshll.u32 %v4420, 16
      %v4689 = vrot.slane %v4687, 5
      %v4690 = vsel %vm899, %v4685, %v4689
      %v4691 = vshrl.u32 %v4420, 16
      %v4693 = vrot.slane %v4691, 4
      %v4694 = vor.u32 %v4693, %v4689
      %v4695 = vrot.slane %v4694, 4
      %v4697 = vshll.u32 %v4421, 16
      %v4699 = vrot.slane %v4697, 5
      %v4700 = vsel %vm899, %v4695, %v4699
      %v4702 = vshrl.u32 %v4422, 16
      %v4704 = vrot.slane %v4702, 4
      %v4705 = vshll.u32 %v4422, 16
      %v4707 = vrot.slane %v4705, 5
      %v4708 = vor.u32 %v4704, %v4707
      %v4709 = vrot.slane %v4708, 4
      %v4711 = vshll.u32 %v4423, 16
      %v4713 = vrot.slane %v4711, 5
      %v4714 = vsel %vm899, %v4709, %v4713
      %v4715 = vshrl.u32 %v4423, 16
      %v4717 = vrot.slane %v4715, 4
      %v4718 = vor.u32 %v4717, %v4713
      %v4719 = vrot.slane %v4718, 4
      %v4721 = vshll.u32 %v4424, 16
      %v4723 = vrot.slane %v4721, 5
      %v4724 = vsel %vm899, %v4719, %v4723
      %v4726 = vshrl.u32 %v4425, 16
      %v4728 = vrot.slane %v4726, 4
      %v4729 = vshll.u32 %v4425, 16
      %v4731 = vrot.slane %v4729, 5
      %v4732 = vor.u32 %v4728, %v4731
      %v4733 = vrot.slane %v4732, 4
      %v4735 = vshll.u32 %v4426, 16
      %v4737 = vrot.slane %v4735, 5
      %v4738 = vsel %vm899, %v4733, %v4737
      %v4739 = vshrl.u32 %v4426, 16
      %v4741 = vrot.slane %v4739, 4
      %v4742 = vor.u32 %v4741, %v4737
      %v4743 = vrot.slane %v4742, 4
      %v4745 = vshll.u32 %v4427, 16
      %v4747 = vrot.slane %v4745, 5
      %v4748 = vsel %vm899, %v4743, %v4747
      %v4750 = vshrl.u32 %v4428, 16
      %v4752 = vrot.slane %v4750, 4
      %v4753 = vshll.u32 %v4428, 16
      %v4755 = vrot.slane %v4753, 5
      %v4756 = vor.u32 %v4752, %v4755
      %v4757 = vrot.slane %v4756, 4
      %v4759 = vshll.u32 %v4429, 16
      %v4761 = vrot.slane %v4759, 5
      %v4762 = vsel %vm899, %v4757, %v4761
      %v4763 = vshrl.u32 %v4429, 16
      %v4765 = vrot.slane %v4763, 4
      %v4766 = vor.u32 %v4765, %v4761
      %v4767 = vrot.slane %v4766, 4
      %v4769 = vshll.u32 %v4430, 16
      %v4771 = vrot.slane %v4769, 5
      %v4772 = vsel %vm899, %v4767, %v4771
      %v4774 = vshrl.u32 %v4431, 16
      %v4776 = vrot.slane %v4774, 4
      %v4777 = vshll.u32 %v4431, 16
      %v4779 = vrot.slane %v4777, 5
      %v4780 = vor.u32 %v4776, %v4779
      %v4781 = vrot.slane %v4780, 4
      %v4783 = vshll.u32 %v4432, 16
      %v4785 = vrot.slane %v4783, 5
      %v4786 = vsel %vm899, %v4781, %v4785
      %v4787 = vshrl.u32 %v4432, 16
      %v4789 = vrot.slane %v4787, 4
      %v4790 = vor.u32 %v4789, %v4785
      %v4791 = vrot.slane %v4790, 4
      %v4793 = vshll.u32 %v4433, 16
      %v4795 = vrot.slane %v4793, 5
      %v4796 = vsel %vm899, %v4791, %v4795
      %v4798 = vshrl.u32 %v4434, 16
      %v4800 = vrot.slane %v4798, 4
      %v4801 = vshll.u32 %v4434, 16
      %v4803 = vrot.slane %v4801, 5
      %v4804 = vor.u32 %v4800, %v4803
      %v4805 = vrot.slane %v4804, 4
      %v4807 = vshll.u32 %v4435, 16
      %v4809 = vrot.slane %v4807, 5
      %v4810 = vsel %vm899, %v4805, %v4809
      %v4811 = vshrl.u32 %v4435, 16
      %v4813 = vrot.slane %v4811, 4
      %v4814 = vor.u32 %v4813, %v4809
      %v4815 = vrot.slane %v4814, 4
      %v4817 = vshll.u32 %v4436, 16
      %v4819 = vrot.slane %v4817, 5
      %v4820 = vsel %vm899, %v4815, %v4819
      %s4821 = scalar_lea.vmem %s1, 448
      %v4822 = vld [vmem:[%s4821] sm:$0xf]
      %v4823 = vld [vmem:[%s4821 + $0x4] sm:$0xf]
      %v4824 = vld [vmem:[%s4821 + $0x8] sm:$0xf]
      %v4825 = vld [vmem:[%s4821 + $0xc] sm:$0xf]
      %v4826 = vld [vmem:[%s4821 + $0x10] sm:$0xf]
      %v4827 = vld [vmem:[%s4821 + $0x14] sm:$0xf]
      %v4828 = vld [vmem:[%s4821 + $0x18] sm:$0xf]
      %v4829 = vld [vmem:[%s4821 + $0x1c] sm:$0xf]
      %v4830 = vld [vmem:[%s4821 + $0x20] sm:$0xf]
      %v4831 = vld [vmem:[%s4821 + $0x24] sm:$0xf]
      %v4832 = vld [vmem:[%s4821 + $0x28] sm:$0xf]
      %v4833 = vld [vmem:[%s4821 + $0x2c] sm:$0xf]
      %v4834 = vld [vmem:[%s4821 + $0x30] sm:$0xf]
      %v4835 = vld [vmem:[%s4821 + $0x34] sm:$0xf]
      %v4836 = vld [vmem:[%s4821 + $0x38] sm:$0xf]
      %v4837 = vld [vmem:[%s4821 + $0x3c] sm:$0xf]
      %v4838 = vunpack.c.l.b16 %v4450
      %v4839 = vunpack.c.l.b16 %v4460
      %v4840 = vunpack.c.l.b16 %v4474
      %v4841 = vunpack.c.l.b16 %v4484
      %v4842 = vunpack.c.l.b16 %v4498
      %v4843 = vunpack.c.l.b16 %v4508
      %v4844 = vunpack.c.l.b16 %v4522
      %v4845 = vunpack.c.l.b16 %v4532
      %v4846 = vunpack.c.l.b16 %v4546
      %v4847 = vunpack.c.l.b16 %v4556
      %v4848 = vunpack.c.l.b16 %v4570
      %v4849 = vunpack.c.l.b16 %v4580
      %v4850 = vunpack.c.l.b16 %v4594
      %v4851 = vunpack.c.l.b16 %v4604
      %v4852 = vunpack.c.l.b16 %v4618
      %v4853 = vunpack.c.l.b16 %v4628
      %v4854 = vunpack.c.l.b16 %v4642
      %v4855 = vunpack.c.l.b16 %v4652
      %v4856 = vunpack.c.l.b16 %v4666
      %v4857 = vunpack.c.l.b16 %v4676
      %v4858 = vunpack.c.l.b16 %v4690
      %v4859 = vunpack.c.l.b16 %v4700
      %v4860 = vunpack.c.l.b16 %v4714
      %v4861 = vunpack.c.l.b16 %v4724
      %v4862 = vunpack.c.l.b16 %v4738
      %v4863 = vunpack.c.l.b16 %v4748
      %v4864 = vunpack.c.l.b16 %v4762
      %v4865 = vunpack.c.l.b16 %v4772
      %v4866 = vunpack.c.l.b16 %v4786
      %v4867 = vunpack.c.l.b16 %v4796
      %v4868 = vunpack.c.l.b16 %v4810
      %v4869 = vunpack.c.l.b16 %v4820
      %v4870 = vpack.c.b16 %v4839, %v4838
      %v4871 = vpack.c.b16 %v4841, %v4840
      %v4872 = vpack.c.b16 %v4843, %v4842
      %v4873 = vpack.c.b16 %v4845, %v4844
      %v4874 = vpack.c.b16 %v4847, %v4846
      %v4875 = vpack.c.b16 %v4849, %v4848
      %v4876 = vpack.c.b16 %v4851, %v4850
      %v4877 = vpack.c.b16 %v4853, %v4852
      %v4878 = vpack.c.b16 %v4855, %v4854
      %v4879 = vpack.c.b16 %v4857, %v4856
      %v4880 = vpack.c.b16 %v4859, %v4858
      %v4881 = vpack.c.b16 %v4861, %v4860
      %v4882 = vpack.c.b16 %v4863, %v4862
      %v4883 = vpack.c.b16 %v4865, %v4864
      %v4884 = vpack.c.b16 %v4867, %v4866
      %v4885 = vpack.c.b16 %v4869, %v4868
      %v4918 = vunpack.c.l.b16 %v4822
      %v4919 = vunpack.c.l.b16 %v4823
      %v4920 = vunpack.c.l.b16 %v4824
      %v4921 = vunpack.c.l.b16 %v4825
      %v4922 = vunpack.c.l.b16 %v4826
      %v4923 = vunpack.c.l.b16 %v4827
      %v4924 = vunpack.c.l.b16 %v4828
      %v4925 = vunpack.c.l.b16 %v4829
      %v4926 = vunpack.c.l.b16 %v4830
      %v4927 = vunpack.c.l.b16 %v4831
      %v4928 = vunpack.c.l.b16 %v4832
      %v4929 = vunpack.c.l.b16 %v4833
      %v4930 = vunpack.c.l.b16 %v4834
      %v4931 = vunpack.c.l.b16 %v4835
      %v4932 = vunpack.c.l.b16 %v4836
      %v4933 = vunpack.c.l.b16 %v4837
      %v4934 = vpack.c.b16 %v4919, %v4918
      %v4935 = vpack.c.b16 %v4921, %v4920
      %v4936 = vpack.c.b16 %v4923, %v4922
      %v4937 = vpack.c.b16 %v4925, %v4924
      %v4938 = vpack.c.b16 %v4927, %v4926
      %v4939 = vpack.c.b16 %v4929, %v4928
      %v4940 = vpack.c.b16 %v4931, %v4930
      %v4941 = vpack.c.b16 %v4933, %v4932
      %4950 = vmatprep.subr.bf16.mxu0 0
      %4951 = vmatpush1.bf16.msra.mxu0 %v4941
      %4952 = vmatprep.subr.bf16.mxu0 0
      %4953 = vmatpush1.bf16.msra.mxu0 %v4940
      %4954 = vmatprep.subr.bf16.mxu0 0
      %4955 = vmatpush1.bf16.msra.mxu0 %v4939
      %4956 = vmatprep.subr.bf16.mxu0 0
      %4957 = vmatpush1.bf16.msra.mxu0 %v4938
      %4958 = vmatprep.subr.bf16.mxu0 0
      %4959 = vmatpush1.bf16.msra.mxu0 %v4937
      %4960 = vmatprep.subr.bf16.mxu0 0
      %4961 = vmatpush1.bf16.msra.mxu0 %v4936
      %4962 = vmatprep.subr.bf16.mxu0 0
      %4963 = vmatpush1.bf16.msra.mxu0 %v4935
      %4964 = vmatprep.subr.bf16.mxu0 0
      %4965 = vmatpush1.bf16.msra.mxu0 %v4934
      %4966 = vmatprep.subr.bf16.mxu0 0
      %4967 = vmatpush2.bf16.msra.mxu0 0
      %4968 = vmatprep.subr.bf16.mxu0 0
      %4969 = vmatpush2.bf16.msra.mxu0 0
      %4970 = vmatprep.subr.bf16.mxu0 0
      %4971 = vmatpush2.bf16.msra.mxu0 0
      %4972 = vmatprep.subr.bf16.mxu0 0
      %4973 = vmatpush2.bf16.msra.mxu0 0
      %4974 = vmatprep.subr.bf16.mxu0 0
      %4975 = vmatpush2.bf16.msra.mxu0 0
      %4976 = vmatprep.subr.bf16.mxu0 0
      %4977 = vmatpush2.bf16.msra.mxu0 0
      %4978 = vmatprep.subr.bf16.mxu0 0
      %4979 = vmatpush2.bf16.msra.mxu0 0
      %4980 = vmatprep.subr.bf16.mxu0 0
      %4981 = vmatpush2.bf16.msra.mxu0 0
      %4982 = vmatprep.mubr.bf16.mxu0 0
      %4983 = vmatmul.mubr.bf16.gmra.mxu0 %v4870
      %v4984 = vpop.f32.mrf.mxu0
      %v4985 = vadd.f32 0.0, %v4984
      %v4986 = vpop.f32.mrf.mxu0
      %v4987 = vpop.f32.mrf.mxu0
      %v4988 = vadd.f32 0.0, %v4987
      %v4989 = vpop.f32.mrf.mxu0
      %4990 = vmatprep.mubr.bf16.mxu0 0
      %4991 = vmatmul.mubr.bf16.gmra.mxu0 %v4871
      %v4992 = vpop.f32.mrf.mxu0
      %v4993 = vadd.f32 0.0, %v4992
      %v4994 = vpop.f32.mrf.mxu0
      %v4995 = vpop.f32.mrf.mxu0
      %v4996 = vadd.f32 0.0, %v4995
      %v4997 = vpop.f32.mrf.mxu0
      %4998 = vmatprep.mubr.bf16.mxu0 0
      %4999 = vmatmul.mubr.bf16.gmra.mxu0 %v4872
      %v5000 = vpop.f32.mrf.mxu0
      %v5001 = vadd.f32 0.0, %v5000
      %v5002 = vpop.f32.mrf.mxu0
      %v5003 = vpop.f32.mrf.mxu0
      %v5004 = vadd.f32 0.0, %v5003
      %v5005 = vpop.f32.mrf.mxu0
      %5006 = vmatprep.mubr.bf16.mxu0 0
      %5007 = vmatmul.mubr.bf16.gmra.mxu0 %v4873
      %v5008 = vpop.f32.mrf.mxu0
      %v5009 = vadd.f32 0.0, %v5008
      %v5010 = vpop.f32.mrf.mxu0
      %v5011 = vpop.f32.mrf.mxu0
      %v5012 = vadd.f32 0.0, %v5011
      %v5013 = vpop.f32.mrf.mxu0
      %5014 = vmatprep.mubr.bf16.mxu0 0
      %5015 = vmatmul.mubr.bf16.gmra.mxu0 %v4874
      %v5016 = vpop.f32.mrf.mxu0
      %v5017 = vadd.f32 0.0, %v5016
      %v5018 = vpop.f32.mrf.mxu0
      %v5019 = vpop.f32.mrf.mxu0
      %v5020 = vadd.f32 0.0, %v5019
      %v5021 = vpop.f32.mrf.mxu0
      %5022 = vmatprep.mubr.bf16.mxu0 0
      %5023 = vmatmul.mubr.bf16.gmra.mxu0 %v4875
      %v5024 = vpop.f32.mrf.mxu0
      %v5025 = vadd.f32 0.0, %v5024
      %v5026 = vpop.f32.mrf.mxu0
      %v5027 = vpop.f32.mrf.mxu0
      %v5028 = vadd.f32 0.0, %v5027
      %v5029 = vpop.f32.mrf.mxu0
      %5030 = vmatprep.mubr.bf16.mxu0 0
      %5031 = vmatmul.mubr.bf16.gmra.mxu0 %v4876
      %v5032 = vpop.f32.mrf.mxu0
      %v5033 = vadd.f32 0.0, %v5032
      %v5034 = vpop.f32.mrf.mxu0
      %v5035 = vpop.f32.mrf.mxu0
      %v5036 = vadd.f32 0.0, %v5035
      %v5037 = vpop.f32.mrf.mxu0
      %5038 = vmatprep.mubr.bf16.mxu0 0
      %5039 = vmatmul.mubr.bf16.gmra.mxu0 %v4877
      %v5040 = vpop.f32.mrf.mxu0
      %v5041 = vadd.f32 0.0, %v5040
      %v5042 = vpop.f32.mrf.mxu0
      %v5043 = vpop.f32.mrf.mxu0
      %v5044 = vadd.f32 0.0, %v5043
      %v5045 = vpop.f32.mrf.mxu0
      %5046 = vmatprep.mubr.bf16.mxu0 0
      %5047 = vmatmul.mubr.bf16.gmra.mxu0 %v4878
      %v5048 = vpop.f32.mrf.mxu0
      %v5049 = vadd.f32 0.0, %v5048
      %v5050 = vpop.f32.mrf.mxu0
      %v5051 = vpop.f32.mrf.mxu0
      %v5052 = vadd.f32 0.0, %v5051
      %v5053 = vpop.f32.mrf.mxu0
      %5054 = vmatprep.mubr.bf16.mxu0 0
      %5055 = vmatmul.mubr.bf16.gmra.mxu0 %v4879
      %v5056 = vpop.f32.mrf.mxu0
      %v5057 = vadd.f32 0.0, %v5056
      %v5058 = vpop.f32.mrf.mxu0
      %v5059 = vpop.f32.mrf.mxu0
      %v5060 = vadd.f32 0.0, %v5059
      %v5061 = vpop.f32.mrf.mxu0
      %5062 = vmatprep.mubr.bf16.mxu0 0
      %5063 = vmatmul.mubr.bf16.gmra.mxu0 %v4880
      %v5064 = vpop.f32.mrf.mxu0
      %v5065 = vadd.f32 0.0, %v5064
      %v5066 = vpop.f32.mrf.mxu0
      %v5067 = vpop.f32.mrf.mxu0
      %v5068 = vadd.f32 0.0, %v5067
      %v5069 = vpop.f32.mrf.mxu0
      %5070 = vmatprep.mubr.bf16.mxu0 0
      %5071 = vmatmul.mubr.bf16.gmra.mxu0 %v4881
      %v5072 = vpop.f32.mrf.mxu0
      %v5073 = vadd.f32 0.0, %v5072
      %v5074 = vpop.f32.mrf.mxu0
      %v5075 = vpop.f32.mrf.mxu0
      %v5076 = vadd.f32 0.0, %v5075
      %v5077 = vpop.f32.mrf.mxu0
      %5078 = vmatprep.mubr.bf16.mxu0 0
      %5079 = vmatmul.mubr.bf16.gmra.mxu0 %v4882
      %v5080 = vpop.f32.mrf.mxu0
      %v5081 = vadd.f32 0.0, %v5080
      %v5082 = vpop.f32.mrf.mxu0
      %v5083 = vpop.f32.mrf.mxu0
      %v5084 = vadd.f32 0.0, %v5083
      %v5085 = vpop.f32.mrf.mxu0
      %5086 = vmatprep.mubr.bf16.mxu0 0
      %5087 = vmatmul.mubr.bf16.gmra.mxu0 %v4883
      %v5088 = vpop.f32.mrf.mxu0
      %v5089 = vadd.f32 0.0, %v5088
      %v5090 = vpop.f32.mrf.mxu0
      %v5091 = vpop.f32.mrf.mxu0
      %v5092 = vadd.f32 0.0, %v5091
      %v5093 = vpop.f32.mrf.mxu0
      %5094 = vmatprep.mubr.bf16.mxu0 0
      %5095 = vmatmul.mubr.bf16.gmra.mxu0 %v4884
      %v5096 = vpop.f32.mrf.mxu0
      %v5097 = vadd.f32 0.0, %v5096
      %v5098 = vpop.f32.mrf.mxu0
      %v5099 = vpop.f32.mrf.mxu0
      %v5100 = vadd.f32 0.0, %v5099
      %v5101 = vpop.f32.mrf.mxu0
      %5102 = vmatprep.mubr.bf16.mxu0 0
      %5103 = vmatmul.mubr.bf16.gmra.mxu0 %v4885
      %v5104 = vpop.f32.mrf.mxu0
      %v5105 = vadd.f32 0.0, %v5104
      %v5106 = vpop.f32.mrf.mxu0
      %v5107 = vpop.f32.mrf.mxu0
      %v5108 = vadd.f32 0.0, %v5107
      %v5109 = vpop.f32.mrf.mxu0
      %5110 = vdwg.mxu0
      %v5111 = vadd.f32 %v4357, %v4985
      %v5112 = vadd.f32 %v4358, %v4988
      %v5113 = vadd.f32 %v4359, %v4993
      %v5114 = vadd.f32 %v4360, %v4996
      %v5115 = vadd.f32 %v4361, %v5001
      %v5116 = vadd.f32 %v4362, %v5004
      %v5117 = vadd.f32 %v4363, %v5009
      %v5118 = vadd.f32 %v4364, %v5012
      %v5119 = vadd.f32 %v4365, %v5017
      %v5120 = vadd.f32 %v4366, %v5020
      %v5121 = vadd.f32 %v4367, %v5025
      %v5122 = vadd.f32 %v4368, %v5028
      %v5123 = vadd.f32 %v4369, %v5033
      %v5124 = vadd.f32 %v4370, %v5036
      %v5125 = vadd.f32 %v4371, %v5041
      %v5126 = vadd.f32 %v4372, %v5044
      %v5127 = vadd.f32 %v4373, %v5049
      %v5128 = vadd.f32 %v4374, %v5052
      %v5129 = vadd.f32 %v4375, %v5057
      %v5130 = vadd.f32 %v4376, %v5060
      %v5131 = vadd.f32 %v4377, %v5065
      %v5132 = vadd.f32 %v4378, %v5068
      %v5133 = vadd.f32 %v4379, %v5073
      %v5134 = vadd.f32 %v4380, %v5076
      %v5135 = vadd.f32 %v4381, %v5081
      %v5136 = vadd.f32 %v4382, %v5084
      %v5137 = vadd.f32 %v4383, %v5089
      %v5138 = vadd.f32 %v4384, %v5092
      %v5139 = vadd.f32 %v4385, %v5097
      %v5140 = vadd.f32 %v4386, %v5100
      %v5141 = vadd.f32 %v4387, %v5105
      %v5142 = vadd.f32 %v4388, %v5108
      %v5143 = vld [vmem:[%s4002] sm:$0xe]
      %v5144 = vld [vmem:[%s4002 + $0xc] sm:$0xe]
      %v5145 = vld [vmem:[%s4002 + $0x18] sm:$0xe]
      %v5146 = vld [vmem:[%s4002 + $0x24] sm:$0xe]
      %v5147 = vld [vmem:[%s4002 + $0x30] sm:$0xe]
      %v5148 = vld [vmem:[%s4002 + $0x3c] sm:$0xe]
      %v5149 = vld [vmem:[%s4002 + $0x48] sm:$0xe]
      %v5150 = vld [vmem:[%s4002 + $0x54] sm:$0xe]
      %v5151 = vld [vmem:[%s4002 + $0x60] sm:$0xe]
      %v5152 = vld [vmem:[%s4002 + $0x6c] sm:$0xe]
      %v5153 = vld [vmem:[%s4002 + $0x78] sm:$0xe]
      %v5154 = vld [vmem:[%s4002 + $0x84] sm:$0xe]
      %v5155 = vld [vmem:[%s4002 + $0x90] sm:$0xe]
      %v5156 = vld [vmem:[%s4002 + $0x9c] sm:$0xe]
      %v5157 = vld [vmem:[%s4002 + $0xa8] sm:$0xe]
      %v5158 = vld [vmem:[%s4002 + $0xb4] sm:$0xe]
      %v5207 = vrot.slane %v5143, 5
      %v5208 = vrot.slane %v5207, 4
      %v5209 = vrot.slane %v4390, 5
      %v5210 = vsel %vm1929, %v5208, %v5209
      %v5211 = vrot.slane %v5209, 4
      %v5212 = vrot.slane %v4391, 5
      %v5213 = vsel %vm1929, %v5211, %v5212
      %v5214 = vrot.slane %v5144, 5
      %v5215 = vrot.slane %v5214, 4
      %v5216 = vrot.slane %v4393, 5
      %v5217 = vsel %vm1929, %v5215, %v5216
      %v5218 = vrot.slane %v5216, 4
      %v5219 = vrot.slane %v4394, 5
      %v5220 = vsel %vm1929, %v5218, %v5219
      %v5221 = vrot.slane %v5145, 5
      %v5222 = vrot.slane %v5221, 4
      %v5223 = vrot.slane %v4396, 5
      %v5224 = vsel %vm1929, %v5222, %v5223
      %v5225 = vrot.slane %v5223, 4
      %v5226 = vrot.slane %v4397, 5
      %v5227 = vsel %vm1929, %v5225, %v5226
      %v5228 = vrot.slane %v5146, 5
      %v5229 = vrot.slane %v5228, 4
      %v5230 = vrot.slane %v4399, 5
      %v5231 = vsel %vm1929, %v5229, %v5230
      %v5232 = vrot.slane %v5230, 4
      %v5233 = vrot.slane %v4400, 5
      %v5234 = vsel %vm1929, %v5232, %v5233
      %v5235 = vrot.slane %v5147, 5
      %v5236 = vrot.slane %v5235, 4
      %v5237 = vrot.slane %v4402, 5
      %v5238 = vsel %vm1929, %v5236, %v5237
      %v5239 = vrot.slane %v5237, 4
      %v5240 = vrot.slane %v4403, 5
      %v5241 = vsel %vm1929, %v5239, %v5240
      %v5242 = vrot.slane %v5148, 5
      %v5243 = vrot.slane %v5242, 4
      %v5244 = vrot.slane %v4405, 5
      %v5245 = vsel %vm1929, %v5243, %v5244
      %v5246 = vrot.slane %v5244, 4
      %v5247 = vrot.slane %v4406, 5
      %v5248 = vsel %vm1929, %v5246, %v5247
      %v5249 = vrot.slane %v5149, 5
      %v5250 = vrot.slane %v5249, 4
      %v5251 = vrot.slane %v4408, 5
      %v5252 = vsel %vm1929, %v5250, %v5251
      %v5253 = vrot.slane %v5251, 4
      %v5254 = vrot.slane %v4409, 5
      %v5255 = vsel %vm1929, %v5253, %v5254
      %v5256 = vrot.slane %v5150, 5
      %v5257 = vrot.slane %v5256, 4
      %v5258 = vrot.slane %v4411, 5
      %v5259 = vsel %vm1929, %v5257, %v5258
      %v5260 = vrot.slane %v5258, 4
      %v5261 = vrot.slane %v4412, 5
      %v5262 = vsel %vm1929, %v5260, %v5261
      %v5263 = vrot.slane %v5151, 5
      %v5264 = vrot.slane %v5263, 4
      %v5265 = vrot.slane %v4414, 5
      %v5266 = vsel %vm1929, %v5264, %v5265
      %v5267 = vrot.slane %v5265, 4
      %v5268 = vrot.slane %v4415, 5
      %v5269 = vsel %vm1929, %v5267, %v5268
      %v5270 = vrot.slane %v5152, 5
      %v5271 = vrot.slane %v5270, 4
      %v5272 = vrot.slane %v4417, 5
      %v5273 = vsel %vm1929, %v5271, %v5272
      %v5274 = vrot.slane %v5272, 4
      %v5275 = vrot.slane %v4418, 5
      %v5276 = vsel %vm1929, %v5274, %v5275
      %v5277 = vrot.slane %v5153, 5
      %v5278 = vrot.slane %v5277, 4
      %v5279 = vrot.slane %v4420, 5
      %v5280 = vsel %vm1929, %v5278, %v5279
      %v5281 = vrot.slane %v5279, 4
      %v5282 = vrot.slane %v4421, 5
      %v5283 = vsel %vm1929, %v5281, %v5282
      %v5284 = vrot.slane %v5154, 5
      %v5285 = vrot.slane %v5284, 4
      %v5286 = vrot.slane %v4423, 5
      %v5287 = vsel %vm1929, %v5285, %v5286
      %v5288 = vrot.slane %v5286, 4
      %v5289 = vrot.slane %v4424, 5
      %v5290 = vsel %vm1929, %v5288, %v5289
      %v5291 = vrot.slane %v5155, 5
      %v5292 = vrot.slane %v5291, 4
      %v5293 = vrot.slane %v4426, 5
      %v5294 = vsel %vm1929, %v5292, %v5293
      %v5295 = vrot.slane %v5293, 4
      %v5296 = vrot.slane %v4427, 5
      %v5297 = vsel %vm1929, %v5295, %v5296
      %v5298 = vrot.slane %v5156, 5
      %v5299 = vrot.slane %v5298, 4
      %v5300 = vrot.slane %v4429, 5
      %v5301 = vsel %vm1929, %v5299, %v5300
      %v5302 = vrot.slane %v5300, 4
      %v5303 = vrot.slane %v4430, 5
      %v5304 = vsel %vm1929, %v5302, %v5303
      %v5305 = vrot.slane %v5157, 5
      %v5306 = vrot.slane %v5305, 4
      %v5307 = vrot.slane %v4432, 5
      %v5308 = vsel %vm1929, %v5306, %v5307
      %v5309 = vrot.slane %v5307, 4
      %v5310 = vrot.slane %v4433, 5
      %v5311 = vsel %vm1929, %v5309, %v5310
      %v5312 = vrot.slane %v5158, 5
      %v5313 = vrot.slane %v5312, 4
      %v5314 = vrot.slane %v4435, 5
      %v5315 = vsel %vm1929, %v5313, %v5314
      %v5316 = vrot.slane %v5314, 4
      %v5317 = vrot.slane %v4436, 5
      %v5318 = vsel %vm1929, %v5316, %v5317
      %s5319 = scalar_lea.vmem %s1, 512
      %v5320 = vld [vmem:[%s5319] sm:$0xf]
      %v5321 = vld [vmem:[%s5319 + $0x4] sm:$0xf]
      %v5322 = vld [vmem:[%s5319 + $0x8] sm:$0xf]
      %v5323 = vld [vmem:[%s5319 + $0xc] sm:$0xf]
      %v5324 = vld [vmem:[%s5319 + $0x10] sm:$0xf]
      %v5325 = vld [vmem:[%s5319 + $0x14] sm:$0xf]
      %v5326 = vld [vmem:[%s5319 + $0x18] sm:$0xf]
      %v5327 = vld [vmem:[%s5319 + $0x1c] sm:$0xf]
      %v5328 = vld [vmem:[%s5319 + $0x20] sm:$0xf]
      %v5329 = vld [vmem:[%s5319 + $0x24] sm:$0xf]
      %v5330 = vld [vmem:[%s5319 + $0x28] sm:$0xf]
      %v5331 = vld [vmem:[%s5319 + $0x2c] sm:$0xf]
      %v5332 = vld [vmem:[%s5319 + $0x30] sm:$0xf]
      %v5333 = vld [vmem:[%s5319 + $0x34] sm:$0xf]
      %v5334 = vld [vmem:[%s5319 + $0x38] sm:$0xf]
      %v5335 = vld [vmem:[%s5319 + $0x3c] sm:$0xf]
      %v5336 = vunpack.c.l.b16 %v5210
      %v5337 = vunpack.c.l.b16 %v5213
      %v5338 = vunpack.c.l.b16 %v5217
      %v5339 = vunpack.c.l.b16 %v5220
      %v5340 = vunpack.c.l.b16 %v5224
      %v5341 = vunpack.c.l.b16 %v5227
      %v5342 = vunpack.c.l.b16 %v5231
      %v5343 = vunpack.c.l.b16 %v5234
      %v5344 = vunpack.c.l.b16 %v5238
      %v5345 = vunpack.c.l.b16 %v5241
      %v5346 = vunpack.c.l.b16 %v5245
      %v5347 = vunpack.c.l.b16 %v5248
      %v5348 = vunpack.c.l.b16 %v5252
      %v5349 = vunpack.c.l.b16 %v5255
      %v5350 = vunpack.c.l.b16 %v5259
      %v5351 = vunpack.c.l.b16 %v5262
      %v5352 = vunpack.c.l.b16 %v5266
      %v5353 = vunpack.c.l.b16 %v5269
      %v5354 = vunpack.c.l.b16 %v5273
      %v5355 = vunpack.c.l.b16 %v5276
      %v5356 = vunpack.c.l.b16 %v5280
      %v5357 = vunpack.c.l.b16 %v5283
      %v5358 = vunpack.c.l.b16 %v5287
      %v5359 = vunpack.c.l.b16 %v5290
      %v5360 = vunpack.c.l.b16 %v5294
      %v5361 = vunpack.c.l.b16 %v5297
      %v5362 = vunpack.c.l.b16 %v5301
      %v5363 = vunpack.c.l.b16 %v5304
      %v5364 = vunpack.c.l.b16 %v5308
      %v5365 = vunpack.c.l.b16 %v5311
      %v5366 = vunpack.c.l.b16 %v5315
      %v5367 = vunpack.c.l.b16 %v5318
      %v5368 = vpack.c.b16 %v5337, %v5336
      %v5369 = vpack.c.b16 %v5339, %v5338
      %v5370 = vpack.c.b16 %v5341, %v5340
      %v5371 = vpack.c.b16 %v5343, %v5342
      %v5372 = vpack.c.b16 %v5345, %v5344
      %v5373 = vpack.c.b16 %v5347, %v5346
      %v5374 = vpack.c.b16 %v5349, %v5348
      %v5375 = vpack.c.b16 %v5351, %v5350
      %v5376 = vpack.c.b16 %v5353, %v5352
      %v5377 = vpack.c.b16 %v5355, %v5354
      %v5378 = vpack.c.b16 %v5357, %v5356
      %v5379 = vpack.c.b16 %v5359, %v5358
      %v5380 = vpack.c.b16 %v5361, %v5360
      %v5381 = vpack.c.b16 %v5363, %v5362
      %v5382 = vpack.c.b16 %v5365, %v5364
      %v5383 = vpack.c.b16 %v5367, %v5366
      %v5416 = vunpack.c.l.b16 %v5320
      %v5417 = vunpack.c.l.b16 %v5321
      %v5418 = vunpack.c.l.b16 %v5322
      %v5419 = vunpack.c.l.b16 %v5323
      %v5420 = vunpack.c.l.b16 %v5324
      %v5421 = vunpack.c.l.b16 %v5325
      %v5422 = vunpack.c.l.b16 %v5326
      %v5423 = vunpack.c.l.b16 %v5327
      %v5424 = vunpack.c.l.b16 %v5328
      %v5425 = vunpack.c.l.b16 %v5329
      %v5426 = vunpack.c.l.b16 %v5330
      %v5427 = vunpack.c.l.b16 %v5331
      %v5428 = vunpack.c.l.b16 %v5332
      %v5429 = vunpack.c.l.b16 %v5333
      %v5430 = vunpack.c.l.b16 %v5334
      %v5431 = vunpack.c.l.b16 %v5335
      %v5432 = vpack.c.b16 %v5417, %v5416
      %v5433 = vpack.c.b16 %v5419, %v5418
      %v5434 = vpack.c.b16 %v5421, %v5420
      %v5435 = vpack.c.b16 %v5423, %v5422
      %v5436 = vpack.c.b16 %v5425, %v5424
      %v5437 = vpack.c.b16 %v5427, %v5426
      %v5438 = vpack.c.b16 %v5429, %v5428
      %v5439 = vpack.c.b16 %v5431, %v5430
      %5448 = vmatprep.subr.bf16.mxu0 0
      %5449 = vmatpush1.bf16.msra.mxu0 %v5439
      %5450 = vmatprep.subr.bf16.mxu0 0
      %5451 = vmatpush1.bf16.msra.mxu0 %v5438
      %5452 = vmatprep.subr.bf16.mxu0 0
      %5453 = vmatpush1.bf16.msra.mxu0 %v5437
      %5454 = vmatprep.subr.bf16.mxu0 0
      %5455 = vmatpush1.bf16.msra.mxu0 %v5436
      %5456 = vmatprep.subr.bf16.mxu0 0
      %5457 = vmatpush1.bf16.msra.mxu0 %v5435
      %5458 = vmatprep.subr.bf16.mxu0 0
      %5459 = vmatpush1.bf16.msra.mxu0 %v5434
      %5460 = vmatprep.subr.bf16.mxu0 0
      %5461 = vmatpush1.bf16.msra.mxu0 %v5433
      %5462 = vmatprep.subr.bf16.mxu0 0
      %5463 = vmatpush1.bf16.msra.mxu0 %v5432
      %5464 = vmatprep.subr.bf16.mxu0 0
      %5465 = vmatpush2.bf16.msra.mxu0 0
      %5466 = vmatprep.subr.bf16.mxu0 0
      %5467 = vmatpush2.bf16.msra.mxu0 0
      %5468 = vmatprep.subr.bf16.mxu0 0
      %5469 = vmatpush2.bf16.msra.mxu0 0
      %5470 = vmatprep.subr.bf16.mxu0 0
      %5471 = vmatpush2.bf16.msra.mxu0 0
      %5472 = vmatprep.subr.bf16.mxu0 0
      %5473 = vmatpush2.bf16.msra.mxu0 0
      %5474 = vmatprep.subr.bf16.mxu0 0
      %5475 = vmatpush2.bf16.msra.mxu0 0
      %5476 = vmatprep.subr.bf16.mxu0 0
      %5477 = vmatpush2.bf16.msra.mxu0 0
      %5478 = vmatprep.subr.bf16.mxu0 0
      %5479 = vmatpush2.bf16.msra.mxu0 0
      %5480 = vmatprep.mubr.bf16.mxu0 0
      %5481 = vmatmul.mubr.bf16.gmra.mxu0 %v5368
      %v5482 = vpop.f32.mrf.mxu0
      %v5483 = vadd.f32 0.0, %v5482
      %v5484 = vpop.f32.mrf.mxu0
      %v5485 = vpop.f32.mrf.mxu0
      %v5486 = vadd.f32 0.0, %v5485
      %v5487 = vpop.f32.mrf.mxu0
      %5488 = vmatprep.mubr.bf16.mxu0 0
      %5489 = vmatmul.mubr.bf16.gmra.mxu0 %v5369
      %v5490 = vpop.f32.mrf.mxu0
      %v5491 = vadd.f32 0.0, %v5490
      %v5492 = vpop.f32.mrf.mxu0
      %v5493 = vpop.f32.mrf.mxu0
      %v5494 = vadd.f32 0.0, %v5493
      %v5495 = vpop.f32.mrf.mxu0
      %5496 = vmatprep.mubr.bf16.mxu0 0
      %5497 = vmatmul.mubr.bf16.gmra.mxu0 %v5370
      %v5498 = vpop.f32.mrf.mxu0
      %v5499 = vadd.f32 0.0, %v5498
      %v5500 = vpop.f32.mrf.mxu0
      %v5501 = vpop.f32.mrf.mxu0
      %v5502 = vadd.f32 0.0, %v5501
      %v5503 = vpop.f32.mrf.mxu0
      %5504 = vmatprep.mubr.bf16.mxu0 0
      %5505 = vmatmul.mubr.bf16.gmra.mxu0 %v5371
      %v5506 = vpop.f32.mrf.mxu0
      %v5507 = vadd.f32 0.0, %v5506
      %v5508 = vpop.f32.mrf.mxu0
      %v5509 = vpop.f32.mrf.mxu0
      %v5510 = vadd.f32 0.0, %v5509
      %v5511 = vpop.f32.mrf.mxu0
      %5512 = vmatprep.mubr.bf16.mxu0 0
      %5513 = vmatmul.mubr.bf16.gmra.mxu0 %v5372
      %v5514 = vpop.f32.mrf.mxu0
      %v5515 = vadd.f32 0.0, %v5514
      %v5516 = vpop.f32.mrf.mxu0
      %v5517 = vpop.f32.mrf.mxu0
      %v5518 = vadd.f32 0.0, %v5517
      %v5519 = vpop.f32.mrf.mxu0
      %5520 = vmatprep.mubr.bf16.mxu0 0
      %5521 = vmatmul.mubr.bf16.gmra.mxu0 %v5373
      %v5522 = vpop.f32.mrf.mxu0
      %v5523 = vadd.f32 0.0, %v5522
      %v5524 = vpop.f32.mrf.mxu0
      %v5525 = vpop.f32.mrf.mxu0
      %v5526 = vadd.f32 0.0, %v5525
      %v5527 = vpop.f32.mrf.mxu0
      %5528 = vmatprep.mubr.bf16.mxu0 0
      %5529 = vmatmul.mubr.bf16.gmra.mxu0 %v5374
      %v5530 = vpop.f32.mrf.mxu0
      %v5531 = vadd.f32 0.0, %v5530
      %v5532 = vpop.f32.mrf.mxu0
      %v5533 = vpop.f32.mrf.mxu0
      %v5534 = vadd.f32 0.0, %v5533
      %v5535 = vpop.f32.mrf.mxu0
      %5536 = vmatprep.mubr.bf16.mxu0 0
      %5537 = vmatmul.mubr.bf16.gmra.mxu0 %v5375
      %v5538 = vpop.f32.mrf.mxu0
      %v5539 = vadd.f32 0.0, %v5538
      %v5540 = vpop.f32.mrf.mxu0
      %v5541 = vpop.f32.mrf.mxu0
      %v5542 = vadd.f32 0.0, %v5541
      %v5543 = vpop.f32.mrf.mxu0
      %5544 = vmatprep.mubr.bf16.mxu0 0
      %5545 = vmatmul.mubr.bf16.gmra.mxu0 %v5376
      %v5546 = vpop.f32.mrf.mxu0
      %v5547 = vadd.f32 0.0, %v5546
      %v5548 = vpop.f32.mrf.mxu0
      %v5549 = vpop.f32.mrf.mxu0
      %v5550 = vadd.f32 0.0, %v5549
      %v5551 = vpop.f32.mrf.mxu0
      %5552 = vmatprep.mubr.bf16.mxu0 0
      %5553 = vmatmul.mubr.bf16.gmra.mxu0 %v5377
      %v5554 = vpop.f32.mrf.mxu0
      %v5555 = vadd.f32 0.0, %v5554
      %v5556 = vpop.f32.mrf.mxu0
      %v5557 = vpop.f32.mrf.mxu0
      %v5558 = vadd.f32 0.0, %v5557
      %v5559 = vpop.f32.mrf.mxu0
      %5560 = vmatprep.mubr.bf16.mxu0 0
      %5561 = vmatmul.mubr.bf16.gmra.mxu0 %v5378
      %v5562 = vpop.f32.mrf.mxu0
      %v5563 = vadd.f32 0.0, %v5562
      %v5564 = vpop.f32.mrf.mxu0
      %v5565 = vpop.f32.mrf.mxu0
      %v5566 = vadd.f32 0.0, %v5565
      %v5567 = vpop.f32.mrf.mxu0
      %5568 = vmatprep.mubr.bf16.mxu0 0
      %5569 = vmatmul.mubr.bf16.gmra.mxu0 %v5379
      %v5570 = vpop.f32.mrf.mxu0
      %v5571 = vadd.f32 0.0, %v5570
      %v5572 = vpop.f32.mrf.mxu0
      %v5573 = vpop.f32.mrf.mxu0
      %v5574 = vadd.f32 0.0, %v5573
      %v5575 = vpop.f32.mrf.mxu0
      %5576 = vmatprep.mubr.bf16.mxu0 0
      %5577 = vmatmul.mubr.bf16.gmra.mxu0 %v5380
      %v5578 = vpop.f32.mrf.mxu0
      %v5579 = vadd.f32 0.0, %v5578
      %v5580 = vpop.f32.mrf.mxu0
      %v5581 = vpop.f32.mrf.mxu0
      %v5582 = vadd.f32 0.0, %v5581
      %v5583 = vpop.f32.mrf.mxu0
      %5584 = vmatprep.mubr.bf16.mxu0 0
      %5585 = vmatmul.mubr.bf16.gmra.mxu0 %v5381
      %v5586 = vpop.f32.mrf.mxu0
      %v5587 = vadd.f32 0.0, %v5586
      %v5588 = vpop.f32.mrf.mxu0
      %v5589 = vpop.f32.mrf.mxu0
      %v5590 = vadd.f32 0.0, %v5589
      %v5591 = vpop.f32.mrf.mxu0
      %5592 = vmatprep.mubr.bf16.mxu0 0
      %5593 = vmatmul.mubr.bf16.gmra.mxu0 %v5382
      %v5594 = vpop.f32.mrf.mxu0
      %v5595 = vadd.f32 0.0, %v5594
      %v5596 = vpop.f32.mrf.mxu0
      %v5597 = vpop.f32.mrf.mxu0
      %v5598 = vadd.f32 0.0, %v5597
      %v5599 = vpop.f32.mrf.mxu0
      %5600 = vmatprep.mubr.bf16.mxu0 0
      %5601 = vmatmul.mubr.bf16.gmra.mxu0 %v5383
      %v5602 = vpop.f32.mrf.mxu0
      %v5603 = vadd.f32 0.0, %v5602
      %v5604 = vpop.f32.mrf.mxu0
      %v5605 = vpop.f32.mrf.mxu0
      %v5606 = vadd.f32 0.0, %v5605
      %v5607 = vpop.f32.mrf.mxu0
      %5608 = vdwg.mxu0
      %v5609 = vadd.f32 %v5111, %v5483
      %v5610 = vadd.f32 %v5112, %v5486
      %v5611 = vadd.f32 %v5113, %v5491
      %v5612 = vadd.f32 %v5114, %v5494
      %v5613 = vadd.f32 %v5115, %v5499
      %v5614 = vadd.f32 %v5116, %v5502
      %v5615 = vadd.f32 %v5117, %v5507
      %v5616 = vadd.f32 %v5118, %v5510
      %v5617 = vadd.f32 %v5119, %v5515
      %v5618 = vadd.f32 %v5120, %v5518
      %v5619 = vadd.f32 %v5121, %v5523
      %v5620 = vadd.f32 %v5122, %v5526
      %v5621 = vadd.f32 %v5123, %v5531
      %v5622 = vadd.f32 %v5124, %v5534
      %v5623 = vadd.f32 %v5125, %v5539
      %v5624 = vadd.f32 %v5126, %v5542
      %v5625 = vadd.f32 %v5127, %v5547
      %v5626 = vadd.f32 %v5128, %v5550
      %v5627 = vadd.f32 %v5129, %v5555
      %v5628 = vadd.f32 %v5130, %v5558
      %v5629 = vadd.f32 %v5131, %v5563
      %v5630 = vadd.f32 %v5132, %v5566
      %v5631 = vadd.f32 %v5133, %v5571
      %v5632 = vadd.f32 %v5134, %v5574
      %v5633 = vadd.f32 %v5135, %v5579
      %v5634 = vadd.f32 %v5136, %v5582
      %v5635 = vadd.f32 %v5137, %v5587
      %v5636 = vadd.f32 %v5138, %v5590
      %v5637 = vadd.f32 %v5139, %v5595
      %v5638 = vadd.f32 %v5140, %v5598
      %v5639 = vadd.f32 %v5141, %v5603
      %v5640 = vadd.f32 %v5142, %v5606
      %v5641 = vld [vmem:[%s2] sm:$0x1]
      %v5643 = vlaneseq
      %v5644 = vshrl.u32 %v5643, 7
      %v5645 = vsub.s32 0, %v5644
      %v5646 = vrot.slane %v5641, %v5645
      %v5648 = vadd.f32 %v5609, %v5646
      %v5649 = vadd.f32 %v5610, %v5646
      %v5650 = vadd.f32 %v5611, %v5646
      %v5651 = vadd.f32 %v5612, %v5646
      %v5652 = vadd.f32 %v5613, %v5646
      %v5653 = vadd.f32 %v5614, %v5646
      %v5654 = vadd.f32 %v5615, %v5646
      %v5655 = vadd.f32 %v5616, %v5646
      %v5656 = vadd.f32 %v5617, %v5646
      %v5657 = vadd.f32 %v5618, %v5646
      %v5658 = vadd.f32 %v5619, %v5646
      %v5659 = vadd.f32 %v5620, %v5646
      %v5660 = vadd.f32 %v5621, %v5646
      %v5661 = vadd.f32 %v5622, %v5646
      %v5662 = vadd.f32 %v5623, %v5646
      %v5663 = vadd.f32 %v5624, %v5646
      %v5664 = vadd.f32 %v5625, %v5646
      %v5665 = vadd.f32 %v5626, %v5646
      %v5666 = vadd.f32 %v5627, %v5646
      %v5667 = vadd.f32 %v5628, %v5646
      %v5668 = vadd.f32 %v5629, %v5646
      %v5669 = vadd.f32 %v5630, %v5646
      %v5670 = vadd.f32 %v5631, %v5646
      %v5671 = vadd.f32 %v5632, %v5646
      %v5672 = vadd.f32 %v5633, %v5646
      %v5673 = vadd.f32 %v5634, %v5646
      %v5674 = vadd.f32 %v5635, %v5646
      %v5675 = vadd.f32 %v5636, %v5646
      %v5676 = vadd.f32 %v5637, %v5646
      %v5677 = vadd.f32 %v5638, %v5646
      %v5678 = vadd.f32 %v5639, %v5646
      %v5679 = vadd.f32 %v5640, %v5646
      %v5680 = vadd.f32 %v5648, %v5649
      %v5681 = vadd.f32 %v5680, %v5650
      %v5682 = vadd.f32 %v5681, %v5651
      %v5683 = vadd.f32 %v5682, %v5652
      %v5684 = vadd.f32 %v5683, %v5653
      %v5685 = vadd.f32 %v5684, %v5654
      %v5686 = vadd.f32 %v5685, %v5655
      %v5687 = vadd.f32 %v5686, %v5656
      %v5688 = vadd.f32 %v5687, %v5657
      %v5689 = vadd.f32 %v5688, %v5658
      %v5690 = vadd.f32 %v5689, %v5659
      %v5691 = vadd.f32 %v5690, %v5660
      %v5692 = vadd.f32 %v5691, %v5661
      %v5693 = vadd.f32 %v5692, %v5662
      %v5694 = vadd.f32 %v5693, %v5663
      %v5695 = vadd.f32 %v5694, %v5664
      %v5696 = vadd.f32 %v5695, %v5665
      %v5697 = vadd.f32 %v5696, %v5666
      %v5698 = vadd.f32 %v5697, %v5667
      %v5699 = vadd.f32 %v5698, %v5668
      %v5700 = vadd.f32 %v5699, %v5669
      %v5701 = vadd.f32 %v5700, %v5670
      %v5702 = vadd.f32 %v5701, %v5671
      %v5703 = vadd.f32 %v5702, %v5672
      %v5704 = vadd.f32 %v5703, %v5673
      %v5705 = vadd.f32 %v5704, %v5674
      %v5706 = vadd.f32 %v5705, %v5675
      %v5707 = vadd.f32 %v5706, %v5676
      %v5708 = vadd.f32 %v5707, %v5677
      %v5709 = vadd.f32 %v5708, %v5678
      %v5710 = vadd.f32 %v5709, %v5679
      %v5711 = vrot.slane %v5710, 4
      %v5712 = vadd.f32 %v5710, %v5711
      %v5713 = vrot.slane %v5712, 2
      %v5714 = vadd.f32 %v5712, %v5713
      %v5715 = vrot.slane %v5714, 1
      %v5716 = vadd.f32 %v5714, %v5715
      %5717 = vst [vmem:[%s208] sm:$0x1] %v5716
      %v5718 = vmul.f32 %v5648, %v5648
      %v5719 = vmul.f32 %v5649, %v5649
      %v5720 = vmul.f32 %v5650, %v5650
      %v5721 = vmul.f32 %v5651, %v5651
      %v5722 = vmul.f32 %v5652, %v5652
      %v5723 = vmul.f32 %v5653, %v5653
      %v5724 = vmul.f32 %v5654, %v5654
      %v5725 = vmul.f32 %v5655, %v5655
      %v5726 = vmul.f32 %v5656, %v5656
      %v5727 = vmul.f32 %v5657, %v5657
      %v5728 = vmul.f32 %v5658, %v5658
      %v5729 = vmul.f32 %v5659, %v5659
      %v5730 = vmul.f32 %v5660, %v5660
      %v5731 = vmul.f32 %v5661, %v5661
      %v5732 = vmul.f32 %v5662, %v5662
      %v5733 = vmul.f32 %v5663, %v5663
      %v5734 = vmul.f32 %v5664, %v5664
      %v5735 = vmul.f32 %v5665, %v5665
      %v5736 = vmul.f32 %v5666, %v5666
      %v5737 = vmul.f32 %v5667, %v5667
      %v5738 = vmul.f32 %v5668, %v5668
      %v5739 = vmul.f32 %v5669, %v5669
      %v5740 = vmul.f32 %v5670, %v5670
      %v5741 = vmul.f32 %v5671, %v5671
      %v5742 = vmul.f32 %v5672, %v5672
      %v5743 = vmul.f32 %v5673, %v5673
      %v5744 = vmul.f32 %v5674, %v5674
      %v5745 = vmul.f32 %v5675, %v5675
      %v5746 = vmul.f32 %v5676, %v5676
      %v5747 = vmul.f32 %v5677, %v5677
      %v5748 = vmul.f32 %v5678, %v5678
      %v5749 = vmul.f32 %v5679, %v5679
      %v5750 = vadd.f32 %v5718, %v5719
      %v5751 = vadd.f32 %v5750, %v5720
      %v5752 = vadd.f32 %v5751, %v5721
      %v5753 = vadd.f32 %v5752, %v5722
      %v5754 = vadd.f32 %v5753, %v5723
      %v5755 = vadd.f32 %v5754, %v5724
      %v5756 = vadd.f32 %v5755, %v5725
      %v5757 = vadd.f32 %v5756, %v5726
      %v5758 = vadd.f32 %v5757, %v5727
      %v5759 = vadd.f32 %v5758, %v5728
      %v5760 = vadd.f32 %v5759, %v5729
      %v5761 = vadd.f32 %v5760, %v5730
      %v5762 = vadd.f32 %v5761, %v5731
      %v5763 = vadd.f32 %v5762, %v5732
      %v5764 = vadd.f32 %v5763, %v5733
      %v5765 = vadd.f32 %v5764, %v5734
      %v5766 = vadd.f32 %v5765, %v5735
      %v5767 = vadd.f32 %v5766, %v5736
      %v5768 = vadd.f32 %v5767, %v5737
      %v5769 = vadd.f32 %v5768, %v5738
      %v5770 = vadd.f32 %v5769, %v5739
      %v5771 = vadd.f32 %v5770, %v5740
      %v5772 = vadd.f32 %v5771, %v5741
      %v5773 = vadd.f32 %v5772, %v5742
      %v5774 = vadd.f32 %v5773, %v5743
      %v5775 = vadd.f32 %v5774, %v5744
      %v5776 = vadd.f32 %v5775, %v5745
      %v5777 = vadd.f32 %v5776, %v5746
      %v5778 = vadd.f32 %v5777, %v5747
      %v5779 = vadd.f32 %v5778, %v5748
      %v5780 = vadd.f32 %v5779, %v5749
      %v5781 = vrot.slane %v5780, 4
      %v5782 = vadd.f32 %v5780, %v5781
      %v5783 = vrot.slane %v5782, 2
      %v5784 = vadd.f32 %v5782, %v5783
      %v5785 = vrot.slane %v5784, 1
      %v5786 = vadd.f32 %v5784, %v5785
      %5787 = vst [vmem:[%s208 + $0x1] sm:$0x1] %v5786
      %v5788 = vpack.c.bf16 %v5649, %v5648
      %v5789 = vpack.c.bf16 %v5651, %v5650
      %v5790 = vpack.c.bf16 %v5653, %v5652
      %v5791 = vpack.c.bf16 %v5655, %v5654
      %v5792 = vpack.c.bf16 %v5657, %v5656
      %v5793 = vpack.c.bf16 %v5659, %v5658
      %v5794 = vpack.c.bf16 %v5661, %v5660
      %v5795 = vpack.c.bf16 %v5663, %v5662
      %v5796 = vpack.c.bf16 %v5665, %v5664
      %v5797 = vpack.c.bf16 %v5667, %v5666
      %v5798 = vpack.c.bf16 %v5669, %v5668
      %v5799 = vpack.c.bf16 %v5671, %v5670
      %v5800 = vpack.c.bf16 %v5673, %v5672
      %v5801 = vpack.c.bf16 %v5675, %v5674
      %v5802 = vpack.c.bf16 %v5677, %v5676
      %v5803 = vpack.c.bf16 %v5679, %v5678
      %v5820 = vunpack.c.l.b16 %v5788
      %v5821 = vunpack.c.h.b16 %v5788
      %v5822 = vunpack.c.l.b16 %v5789
      %v5823 = vunpack.c.h.b16 %v5789
      %v5824 = vunpack.c.l.b16 %v5790
      %v5825 = vunpack.c.h.b16 %v5790
      %v5826 = vunpack.c.l.b16 %v5791
      %v5827 = vunpack.c.h.b16 %v5791
      %v5828 = vunpack.c.l.b16 %v5792
      %v5829 = vunpack.c.h.b16 %v5792
      %v5830 = vunpack.c.l.b16 %v5793
      %v5831 = vunpack.c.h.b16 %v5793
      %v5832 = vunpack.c.l.b16 %v5794
      %v5833 = vunpack.c.h.b16 %v5794
      %v5834 = vunpack.c.l.b16 %v5795
      %v5835 = vunpack.c.h.b16 %v5795
      %v5836 = vunpack.c.l.b16 %v5796
      %v5837 = vunpack.c.h.b16 %v5796
      %v5838 = vunpack.c.l.b16 %v5797
      %v5839 = vunpack.c.h.b16 %v5797
      %v5840 = vunpack.c.l.b16 %v5798
      %v5841 = vunpack.c.h.b16 %v5798
      %v5842 = vunpack.c.l.b16 %v5799
      %v5843 = vunpack.c.h.b16 %v5799
      %v5844 = vunpack.c.l.b16 %v5800
      %v5845 = vunpack.c.h.b16 %v5800
      %v5846 = vunpack.c.l.b16 %v5801
      %v5847 = vunpack.c.h.b16 %v5801
      %v5848 = vunpack.c.l.b16 %v5802
      %v5849 = vunpack.c.h.b16 %v5802
      %v5850 = vunpack.c.l.b16 %v5803
      %v5851 = vunpack.c.h.b16 %v5803
      %v5852 = vpack.c.b16 %v5820, %v5820
      %v5853 = vpack.c.b16 %v5821, %v5821
      %v5854 = vpack.c.b16 %v5822, %v5822
      %v5855 = vpack.c.b16 %v5823, %v5823
      %v5856 = vpack.c.b16 %v5824, %v5824
      %v5857 = vpack.c.b16 %v5825, %v5825
      %v5858 = vpack.c.b16 %v5826, %v5826
      %v5859 = vpack.c.b16 %v5827, %v5827
      %v5860 = vpack.c.b16 %v5828, %v5828
      %v5861 = vpack.c.b16 %v5829, %v5829
      %v5862 = vpack.c.b16 %v5830, %v5830
      %v5863 = vpack.c.b16 %v5831, %v5831
      %v5864 = vpack.c.b16 %v5832, %v5832
      %v5865 = vpack.c.b16 %v5833, %v5833
      %v5866 = vpack.c.b16 %v5834, %v5834
      %v5867 = vpack.c.b16 %v5835, %v5835
      %v5868 = vpack.c.b16 %v5836, %v5836
      %v5869 = vpack.c.b16 %v5837, %v5837
      %v5870 = vpack.c.b16 %v5838, %v5838
      %v5871 = vpack.c.b16 %v5839, %v5839
      %v5872 = vpack.c.b16 %v5840, %v5840
      %v5873 = vpack.c.b16 %v5841, %v5841
      %v5874 = vpack.c.b16 %v5842, %v5842
      %v5875 = vpack.c.b16 %v5843, %v5843
      %v5876 = vpack.c.b16 %v5844, %v5844
      %v5877 = vpack.c.b16 %v5845, %v5845
      %v5878 = vpack.c.b16 %v5846, %v5846
      %v5879 = vpack.c.b16 %v5847, %v5847
      %v5880 = vpack.c.b16 %v5848, %v5848
      %v5881 = vpack.c.b16 %v5849, %v5849
      %v5882 = vpack.c.b16 %v5850, %v5850
      %v5883 = vpack.c.b16 %v5851, %v5851
      %5916 = vst [vmem:[%s204] sm:$0xf] %v5852
      %5917 = vst [vmem:[%s204 + $0x4] sm:$0xf] %v5853
      %5918 = vst [vmem:[%s204 + $0x8] sm:$0xf] %v5854
      %5919 = vst [vmem:[%s204 + $0xc] sm:$0xf] %v5855
      %5920 = vst [vmem:[%s204 + $0x10] sm:$0xf] %v5856
      %5921 = vst [vmem:[%s204 + $0x14] sm:$0xf] %v5857
      %5922 = vst [vmem:[%s204 + $0x18] sm:$0xf] %v5858
      %5923 = vst [vmem:[%s204 + $0x1c] sm:$0xf] %v5859
      %5924 = vst [vmem:[%s204 + $0x20] sm:$0xf] %v5860
      %5925 = vst [vmem:[%s204 + $0x24] sm:$0xf] %v5861
      %5926 = vst [vmem:[%s204 + $0x28] sm:$0xf] %v5862
      %5927 = vst [vmem:[%s204 + $0x2c] sm:$0xf] %v5863
      %5928 = vst [vmem:[%s204 + $0x30] sm:$0xf] %v5864
      %5929 = vst [vmem:[%s204 + $0x34] sm:$0xf] %v5865
      %5930 = vst [vmem:[%s204 + $0x38] sm:$0xf] %v5866
      %5931 = vst [vmem:[%s204 + $0x3c] sm:$0xf] %v5867
      %5932 = vst [vmem:[%s204 + $0x40] sm:$0xf] %v5868
      %5933 = vst [vmem:[%s204 + $0x44] sm:$0xf] %v5869
      %5934 = vst [vmem:[%s204 + $0x48] sm:$0xf] %v5870
      %5935 = vst [vmem:[%s204 + $0x4c] sm:$0xf] %v5871
      %5936 = vst [vmem:[%s204 + $0x50] sm:$0xf] %v5872
      %5937 = vst [vmem:[%s204 + $0x54] sm:$0xf] %v5873
      %5938 = vst [vmem:[%s204 + $0x58] sm:$0xf] %v5874
      %5939 = vst [vmem:[%s204 + $0x5c] sm:$0xf] %v5875
      %5940 = vst [vmem:[%s204 + $0x60] sm:$0xf] %v5876
      %5941 = vst [vmem:[%s204 + $0x64] sm:$0xf] %v5877
      %5942 = vst [vmem:[%s204 + $0x68] sm:$0xf] %v5878
      %5943 = vst [vmem:[%s204 + $0x6c] sm:$0xf] %v5879
      %5944 = vst [vmem:[%s204 + $0x70] sm:$0xf] %v5880
      %5945 = vst [vmem:[%s204 + $0x74] sm:$0xf] %v5881
      %5946 = vst [vmem:[%s204 + $0x78] sm:$0xf] %v5882
      %5947 = vst [vmem:[%s204 + $0x7c] sm:$0xf] %v5883
      %p5948 = scmp.lt.s32.totalorder %s16, 1
      %s5949 = scalar_select %p5948, %s16, 1
      %s5950 = smul.addr %s5949, 32
      %s5951 = smul.addr %s5950, 4
      %s5952 = scalar_lea.vmem %s3, %s5951
      %p5953 = scmp.lt.s32.totalorder %s16, 1
      %s5954 = scalar_select %p5953, %s16, 1
      %s5955 = smul.addr %s5954, 2
      %s5956 = scalar_lea.vmem %s4, %s5955
      // Predicated region
      $region33: #{bottleneck_forward.3} parent=31 // pred_check
        %p5957 = pneg %p102
      $region34: #{bottleneck_forward.3} parent=31 // pred_check_branch
        %5959 = sbr.rel (%p5957) target = $region36
      $region35: #{bottleneck_forward.3} parent=31 // pred_region
        _
      $region36: #{bottleneck_forward.3} parent=31 // pred_fallthru
        _
      // Predicated region
      $region37: #{bottleneck_forward.3} parent=31 // pred_check
        %p5960 = pneg %p128
      $region38: #{bottleneck_forward.3} parent=31 // pred_check_branch
        %5962 = sbr.rel (%p5960) target = $region40
      $region39: #{bottleneck_forward.3} parent=31 // pred_region
        _
      $region40: #{bottleneck_forward.3} parent=31 // pred_fallthru
        _
    $region32: #{bottleneck_forward.3} parent=5 // pred_fallthru
      _
    %p5963 = scmp.le.s32.totalorder 2, %s11
    // Predicated region
    $region41: #{bottleneck_forward.3} parent=5 // pred_check
      %p5964 = pneg %p5963
    $region42: #{bottleneck_forward.3} parent=5 // pred_check_branch
      %5966 = sbr.rel (%p5964) target = $region44
    $region43: #{bottleneck_forward.3} parent=5 // pred_region
      %s5967 = ssub.s32 %s11, 2
      // Predicated region
      $region45: #{bottleneck_forward.3} parent=43 // pred_check
        %p5968 = pneg %p108
      $region46: #{bottleneck_forward.3} parent=43 // pred_check_branch
        %5970 = sbr.rel (%p5968) target = $region48
      $region47: #{bottleneck_forward.3} parent=43 // pred_region
        %p5971 = scmp.lt.s32.totalorder %s17, 1
        %s5972 = scalar_select %p5971, %s17, 1
        %s5973 = smul.addr %s5972, 32
        %s5974 = smul.addr %s5973, 4
        %s5975 = scalar_lea.vmem %s3, %s5974
      $region48: #{bottleneck_forward.3} parent=43 // pred_fallthru
        _
      // Predicated region
      $region49: #{bottleneck_forward.3} parent=43 // pred_check
        %p5976 = pneg %p134
      $region50: #{bottleneck_forward.3} parent=43 // pred_check_branch
        %5978 = sbr.rel (%p5976) target = $region52
      $region51: #{bottleneck_forward.3} parent=43 // pred_region
        %p5979 = scmp.lt.s32.totalorder %s17, 1
        %s5980 = scalar_select %p5979, %s17, 1
        %s5981 = smul.addr %s5980, 2
        %s5982 = scalar_lea.vmem %s4, %s5981
      $region52: #{bottleneck_forward.3} parent=43 // pred_fallthru
        _
    $region44: #{bottleneck_forward.3} parent=5 // pred_fallthru
      _
  $region6: #{bottleneck_forward.3} parent=0 // loop_footer
    %s15 = sadd.s32 1, %s11
  $region7: #{bottleneck_forward.3} parent=0 // loop_footer_branch
    %10 = sbr.rel target = $region3
  $region8: #{bottleneck_forward.3} parent=0 // loop_exit
    _

// kernel: bottleneck_forward.4
$region0: #{bottleneck_forward.4}
  #allocation0 [shape = 'u32[]', space=smem, size = 0x4, offset = 0x4, fixed_abs, tag = 'smem constant byte address 0x4 - core index']
  #allocation1 [shape = 'u32[144,128]{1,0:T(1,128)}', space=vmem, size = 0x12000, scoped, tag = 'internal scratch']
  #allocation2 [shape = 'bf16[18,18,128]{2,1,0:T(8,128)(2,1)}', space=vmem, size = 0x1b000, scoped, tag = 'scratch operand']
  #allocation3 [shape = 'f32[1]{0:T(128)S(6)}', space=smem, size = 0x200, scoped, tag = 'scoped memory for bottleneck_forward.4']
  %s0 = inlined_call_operand.vmem [shape: bf16[2,16,16,128], index: 0, kind: input, shape index: {}]
  %s1 = inlined_call_operand.vmem [shape: bf16[9,128,128], index: 1, kind: input, shape index: {}]
  %s2 = inlined_call_operand.vmem [shape: f32[1,128], index: 2, kind: input, shape index: {}]
  %s3 = inlined_call_operand.vmem [shape: f32[1,128], index: 3, kind: input, shape index: {}]
  %s4 = inlined_call_operand.vmem [shape: f32[1,128], index: 4, kind: input, shape index: {}]
  %s5 = inlined_call_operand.<no memory space> [shape: f32[1], index: 5, kind: input, shape index: {}]
  %s6 = inlined_call_operand.vmem [shape: bf16[2,16,16,128], index: 6, kind: output, shape index: {0}]
  %s7 = inlined_call_operand.vmem [shape: f32[2,2,128], index: 7, kind: output, shape index: {1}]
  %8 = xla_tuple %s6, %s7
  %s9 = sld [smem:[#allocation0]]
  $region65: #{bottleneck_forward.4} parent=0
    _
  %s11 = ssub.s32 1, %s9
  %s12 = scalar_select 0, %s11, %s9
  %13 = sst [smem:[#allocation3]] %s5
  loop: start=0, step=1, limit=4
  $region2: #{bottleneck_forward.4} parent=0 // loop_pre_header
    _
  $region3: #{bottleneck_forward.4} parent=0 // loop_header
    %s15 = sphi 0, %s19
    %p16 = scmp.ge.s32.totalorder %s15, 4
    %s25 = sphi 0, %s27
    %s28 = sphi 0, %s25
    %s29 = sphi 0, %s28
    %s45 = sphi 0, %s29
    %s49 = sphi 0, %s49
    %s51 = sphi 0, %s49
    %s52 = sphi 0, %s51
    %s66 = sphi 0, %s52
    %s70 = sphi 0, %s70
    %s72 = sphi 0, %s70
    %s73 = sphi 0, %s72
    %s87 = sphi 0, %s73
    %s91 = sphi 0, %s91
    %s93 = sphi 0, %s91
    %s94 = sphi 0, %s93
    %s108 = sphi 0, %s94
    %s112 = sphi 0, %s112
    %s114 = sphi 0, %s112
    %s115 = sphi 0, %s114
    %s129 = sphi 0, %s115
    %s133 = sphi 0, %s133
    %s135 = sphi 0, %s133
    %s136 = sphi 0, %s135
    %s150 = sphi 0, %s136
    %s156 = sphi 0, %s158
    %s159 = sphi 0, %s156
    %s160 = sphi 0, %s159
    %s176 = sphi 0, %s160
    %s182 = sphi 0, %s184
    %s185 = sphi 0, %s182
    %s186 = sphi 0, %s185
    %s202 = sphi 0, %s186
  $region4: #{bottleneck_forward.4} parent=0 // loop_header_branch
    %18 = sbr.rel (%p16) target = $region8
  $region5: #{bottleneck_forward.4} parent=0 // loop_body
    %s20 = ssub.s32 %s15, 1
    %s21 = ssub.s32 %s15, 2
    %s22 = sadd.s32 %s15, 1
    %s23 = ssub.s32 %s15, %s22
    %p24 = scmp.eq.s32.totalorder %s23, 0
    %s26 = sadd.s32 %s25, 1
    %s27 = scalar_select %p24, %s25, %s26
    %p30 = pneg %p24
    %p31 = scmp.eq.s32.totalorder %s15, 1
    %p32 = por %p30, %p31
    %p33 = scmp.ne.s32.totalorder %s25, %s28
    %p34 = scmp.eq.s32.totalorder %s15, 0
    %p35 = por %p33, %p34
    %p36 = scmp.ne.s32.totalorder %s25, %s28
    %p37 = scmp.eq.s32.totalorder %s20, 1
    %p38 = por %p36, %p37
    %p39 = scmp.ne.s32.totalorder %s28, %s29
    %p40 = scmp.eq.s32.totalorder %s20, 0
    %p41 = por %p39, %p40
    %p42 = scmp.ne.s32.totalorder %s28, %s29
    %p43 = scmp.eq.s32.totalorder %s21, 1
    %p44 = por %p42, %p43
    %p46 = scmp.ne.s32.totalorder %s29, %s45
    %p47 = scmp.eq.s32.totalorder %s21, 0
    %p48 = por %p46, %p47
    %s50 = sadd.s32 %s49, 1
    %p53 = scmp.eq.s32.totalorder %s15, 1
    %p54 = scmp.ne.s32.totalorder %s49, %s51
    %p55 = scmp.eq.s32.totalorder %s15, 0
    %p56 = por %p54, %p55
    %p57 = scmp.ne.s32.totalorder %s49, %s51
    %p58 = scmp.eq.s32.totalorder %s20, 1
    %p59 = por %p57, %p58
    %p60 = scmp.ne.s32.totalorder %s51, %s52
    %p61 = scmp.eq.s32.totalorder %s20, 0
    %p62 = por %p60, %p61
    %p63 = scmp.ne.s32.totalorder %s51, %s52
    %p64 = scmp.eq.s32.totalorder %s21, 1
    %p65 = por %p63, %p64
    %p67 = scmp.ne.s32.totalorder %s52, %s66
    %p68 = scmp.eq.s32.totalorder %s21, 0
    %p69 = por %p67, %p68
    %s71 = sadd.s32 %s70, 1
    %p74 = scmp.eq.s32.totalorder %s15, 1
    %p75 = scmp.ne.s32.totalorder %s70, %s72
    %p76 = scmp.eq.s32.totalorder %s15, 0
    %p77 = por %p75, %p76
    %p78 = scmp.ne.s32.totalorder %s70, %s72
    %p79 = scmp.eq.s32.totalorder %s20, 1
    %p80 = por %p78, %p79
    %p81 = scmp.ne.s32.totalorder %s72, %s73
    %p82 = scmp.eq.s32.totalorder %s20, 0
    %p83 = por %p81, %p82
    %p84 = scmp.ne.s32.totalorder %s72, %s73
    %p85 = scmp.eq.s32.totalorder %s21, 1
    %p86 = por %p84, %p85
    %p88 = scmp.ne.s32.totalorder %s73, %s87
    %p89 = scmp.eq.s32.totalorder %s21, 0
    %p90 = por %p88, %p89
    %s92 = sadd.s32 %s91, 1
    %p95 = scmp.eq.s32.totalorder %s15, 1
    %p96 = scmp.ne.s32.totalorder %s91, %s93
    %p97 = scmp.eq.s32.totalorder %s15, 0
    %p98 = por %p96, %p97
    %p99 = scmp.ne.s32.totalorder %s91, %s93
    %p100 = scmp.eq.s32.totalorder %s20, 1
    %p101 = por %p99, %p100
    %p102 = scmp.ne.s32.totalorder %s93, %s94
    %p103 = scmp.eq.s32.totalorder %s20, 0
    %p104 = por %p102, %p103
    %p105 = scmp.ne.s32.totalorder %s93, %s94
    %p106 = scmp.eq.s32.totalorder %s21, 1
    %p107 = por %p105, %p106
    %p109 = scmp.ne.s32.totalorder %s94, %s108
    %p110 = scmp.eq.s32.totalorder %s21, 0
    %p111 = por %p109, %p110
    %s113 = sadd.s32 %s112, 1
    %p116 = scmp.eq.s32.totalorder %s15, 1
    %p117 = scmp.ne.s32.totalorder %s112, %s114
    %p118 = scmp.eq.s32.totalorder %s15, 0
    %p119 = por %p117, %p118
    %p120 = scmp.ne.s32.totalorder %s112, %s114
    %p121 = scmp.eq.s32.totalorder %s20, 1
    %p122 = por %p120, %p121
    %p123 = scmp.ne.s32.totalorder %s114, %s115
    %p124 = scmp.eq.s32.totalorder %s20, 0
    %p125 = por %p123, %p124
    %p126 = scmp.ne.s32.totalorder %s114, %s115
    %p127 = scmp.eq.s32.totalorder %s21, 1
    %p128 = por %p126, %p127
    %p130 = scmp.ne.s32.totalorder %s115, %s129
    %p131 = scmp.eq.s32.totalorder %s21, 0
    %p132 = por %p130, %p131
    %s134 = sadd.s32 %s133, 1
    %p137 = scmp.eq.s32.totalorder %s15, 1
    %p138 = scmp.ne.s32.totalorder %s133, %s135
    %p139 = scmp.eq.s32.totalorder %s15, 0
    %p140 = por %p138, %p139
    %p141 = scmp.ne.s32.totalorder %s133, %s135
    %p142 = scmp.eq.s32.totalorder %s20, 1
    %p143 = por %p141, %p142
    %p144 = scmp.ne.s32.totalorder %s135, %s136
    %p145 = scmp.eq.s32.totalorder %s20, 0
    %p146 = por %p144, %p145
    %p147 = scmp.ne.s32.totalorder %s135, %s136
    %p148 = scmp.eq.s32.totalorder %s21, 1
    %p149 = por %p147, %p148
    %p151 = scmp.ne.s32.totalorder %s136, %s150
    %p152 = scmp.eq.s32.totalorder %s21, 0
    %p153 = por %p151, %p152
    %s154 = ssub.s32 %s15, %s22
    %p155 = scmp.eq.s32.totalorder %s154, 0
    %s157 = sadd.s32 %s156, 1
    %s158 = scalar_select %p155, %s156, %s157
    %p161 = pneg %p155
    %p162 = scmp.eq.s32.totalorder %s15, 1
    %p163 = por %p161, %p162
    %p164 = scmp.ne.s32.totalorder %s156, %s159
    %p165 = scmp.eq.s32.totalorder %s15, 0
    %p166 = por %p164, %p165
    %p167 = scmp.ne.s32.totalorder %s156, %s159
    %p168 = scmp.eq.s32.totalorder %s20, 1
    %p169 = por %p167, %p168
    %p170 = scmp.ne.s32.totalorder %s159, %s160
    %p171 = scmp.eq.s32.totalorder %s20, 0
    %p172 = por %p170, %p171
    %p173 = scmp.ne.s32.totalorder %s159, %s160
    %p174 = scmp.eq.s32.totalorder %s21, 1
    %p175 = por %p173, %p174
    %p177 = scmp.ne.s32.totalorder %s160, %s176
    %p178 = scmp.eq.s32.totalorder %s21, 0
    %p179 = por %p177, %p178
    %s180 = ssub.s32 %s15, %s22
    %p181 = scmp.eq.s32.totalorder %s180, 0
    %s183 = sadd.s32 %s182, 1
    %s184 = scalar_select %p181, %s182, %s183
    %p187 = pneg %p181
    %p188 = scmp.eq.s32.totalorder %s15, 1
    %p189 = por %p187, %p188
    %p190 = scmp.ne.s32.totalorder %s182, %s185
    %p191 = scmp.eq.s32.totalorder %s15, 0
    %p192 = por %p190, %p191
    %p193 = scmp.ne.s32.totalorder %s182, %s185
    %p194 = scmp.eq.s32.totalorder %s20, 1
    %p195 = por %p193, %p194
    %p196 = scmp.ne.s32.totalorder %s185, %s186
    %p197 = scmp.eq.s32.totalorder %s20, 0
    %p198 = por %p196, %p197
    %p199 = scmp.ne.s32.totalorder %s185, %s186
    %p200 = scmp.eq.s32.totalorder %s21, 1
    %p201 = por %p199, %p200
    %p203 = scmp.ne.s32.totalorder %s186, %s202
    %p204 = scmp.eq.s32.totalorder %s21, 0
    %p205 = por %p203, %p204
    %p206 = scmp.le.s32.totalorder 1, %s15
    %p207 = scmp.lt.s32.totalorder %s15, 3
    %p208 = pnand %p206, %p207
    %p209 = pneg %p208
    // Predicated region
    $region9: #{bottleneck_forward.4} parent=5 // pred_check
      _
    $region10: #{bottleneck_forward.4} parent=5 // pred_check_branch
      %211 = sbr.rel (%p208) target = $region12
    $region11: #{bottleneck_forward.4} parent=5 // pred_region
      %s212 = ssub.s32 %s15, 1
      // Predicated region
      $region13: #{bottleneck_forward.4} parent=11 // pred_check
        %p213 = pneg %p62
      $region14: #{bottleneck_forward.4} parent=11 // pred_check_branch
        %215 = sbr.rel (%p213) target = $region16
      $region15: #{bottleneck_forward.4} parent=11 // pred_region
        _
      $region16: #{bottleneck_forward.4} parent=11 // pred_fallthru
        _
      // Predicated region
      $region17: #{bottleneck_forward.4} parent=11 // pred_check
        %p216 = pneg %p83
      $region18: #{bottleneck_forward.4} parent=11 // pred_check_branch
        %218 = sbr.rel (%p216) target = $region20
      $region19: #{bottleneck_forward.4} parent=11 // pred_region
        _
      $region20: #{bottleneck_forward.4} parent=11 // pred_fallthru
        _
      // Predicated region
      $region21: #{bottleneck_forward.4} parent=11 // pred_check
        %p219 = pneg %p104
      $region22: #{bottleneck_forward.4} parent=11 // pred_check_branch
        %221 = sbr.rel (%p219) target = $region24
      $region23: #{bottleneck_forward.4} parent=11 // pred_region
        _
      $region24: #{bottleneck_forward.4} parent=11 // pred_fallthru
        _
      // Predicated region
      $region25: #{bottleneck_forward.4} parent=11 // pred_check
        %p222 = pneg %p125
      $region26: #{bottleneck_forward.4} parent=11 // pred_check_branch
        %224 = sbr.rel (%p222) target = $region28
      $region27: #{bottleneck_forward.4} parent=11 // pred_region
        _
      $region28: #{bottleneck_forward.4} parent=11 // pred_fallthru
        _
      // Predicated region
      $region29: #{bottleneck_forward.4} parent=11 // pred_check
        %p225 = pneg %p146
      $region30: #{bottleneck_forward.4} parent=11 // pred_check_branch
        %227 = sbr.rel (%p225) target = $region32
      $region31: #{bottleneck_forward.4} parent=11 // pred_region
        _
      $region32: #{bottleneck_forward.4} parent=11 // pred_fallthru
        _
    $region12: #{bottleneck_forward.4} parent=5 // pred_fallthru
      _
    %p228 = scmp.lt.s32.totalorder %s15, 2
    // Predicated region
    $region33: #{bottleneck_forward.4} parent=5 // pred_check
      %p229 = pneg %p228
    $region34: #{bottleneck_forward.4} parent=5 // pred_check_branch
      %231 = sbr.rel (%p229) target = $region36
    $region35: #{bottleneck_forward.4} parent=5 // pred_region
      // Predicated region
      $region37: #{bottleneck_forward.4} parent=35 // pred_check
        %p232 = pneg %p35
      $region38: #{bottleneck_forward.4} parent=35 // pred_check_branch
        %234 = sbr.rel (%p232) target = $region40
      $region39: #{bottleneck_forward.4} parent=35 // pred_region
        %p235 = scmp.lt.s32.totalorder %s15, 1
        %s236 = scalar_select %p235, %s15, 1
        %s237 = smul.addr %s236, 32
        %s238 = smul.addr %s237, 4
        %s239 = scalar_lea.vmem %s0, %s238
      $region40: #{bottleneck_forward.4} parent=35 // pred_fallthru
        _
    $region36: #{bottleneck_forward.4} parent=5 // pred_fallthru
      _
    %p240 = scmp.le.s32.totalorder 1, %s15
    %p241 = scmp.lt.s32.totalorder %s15, 3
    %p242 = pnand %p240, %p241
    %p243 = pneg %p242
    // Predicated region
    $region41: #{bottleneck_forward.4} parent=5 // pred_check
      _
    $region42: #{bottleneck_forward.4} parent=5 // pred_check_branch
      %245 = sbr.rel (%p242) target = $region44
    $region43: #{bottleneck_forward.4} parent=5 // pred_region
      %s246 = ssub.s32 %s15, 1
      %p247 = scmp.lt.s32.totalorder %s20, 1
      %s248 = scalar_select %p247, %s20, 1
      %s249 = smul.addr %s248, 32
      %s250 = smul.addr %s249, 4
      %s251 = scalar_lea.vmem %s0, %s250
      %p252 = pneg %p41
      %p253 = pneg %p38
      %p254 = pneg %p62
      %p255 = pneg %p59
      %p256 = pneg %p83
      %p257 = pneg %p80
      %p258 = pneg %p104
      %p259 = pneg %p101
      %p260 = pneg %p125
      %p261 = pneg %p122
      %p262 = pneg %p146
      %p263 = pneg %p143
      %p264 = pneg %p172
      %p265 = pneg %p169
      %p266 = scmp.lt.s32.totalorder %s20, 1
      %s267 = scalar_select %p266, %s20, 1
      %s268 = smul.addr %s267, 32
      %s269 = smul.addr %s268, 4
      %s270 = scalar_lea.vmem %s6, %s269
      %p271 = pneg %p198
      %p272 = pneg %p195
      %p273 = scmp.lt.s32.totalorder %s20, 1
      %s274 = scalar_select %p273, %s20, 1
      %s275 = smul.addr %s274, 2
      %s276 = scalar_lea.vmem %s7, %s275
      %p277 = scmp.lt.s32.totalorder %s20, 1
      %s278 = scalar_select %p277, %s20, 1
      %s279 = smul.addr %s278, 32
      %s280 = smul.addr %s279, 4
      %s281 = scalar_lea.vmem %s0, %s280
      %p282 = scmp.lt.s32.totalorder %s20, 1
      %s283 = scalar_select %p282, %s20, 1
      %s284 = smul.addr %s283, 32
      %s285 = smul.addr %s284, 4
      %s286 = scalar_lea.vmem %s6, %s285
      %p287 = scmp.lt.s32.totalorder %s20, 1
      %s288 = scalar_select %p287, %s20, 1
      %s289 = smul.addr %s288, 2
      %s290 = scalar_lea.vmem %s7, %s289
      %v292 = vld [vmem:[%s3] sm:$0x1]
      %v293 = vld [vmem:[%s4] sm:$0x1]
      %s294 = sld [smem:[#allocation3]]
      %v295 = vld [vmem:[%s281] sm:$0xf]
      %v296 = vld [vmem:[%s281 + $0x4] sm:$0xf]
      %v297 = vld [vmem:[%s281 + $0x8] sm:$0xf]
      %v298 = vld [vmem:[%s281 + $0xc] sm:$0xf]
      %v299 = vld [vmem:[%s281 + $0x10] sm:$0xf]
      %v300 = vld [vmem:[%s281 + $0x14] sm:$0xf]
      %v301 = vld [vmem:[%s281 + $0x18] sm:$0xf]
      %v302 = vld [vmem:[%s281 + $0x1c] sm:$0xf]
      %v303 = vld [vmem:[%s281 + $0x20] sm:$0xf]
      %v304 = vld [vmem:[%s281 + $0x24] sm:$0xf]
      %v305 = vld [vmem:[%s281 + $0x28] sm:$0xf]
      %v306 = vld [vmem:[%s281 + $0x2c] sm:$0xf]
      %v307 = vld [vmem:[%s281 + $0x30] sm:$0xf]
      %v308 = vld [vmem:[%s281 + $0x34] sm:$0xf]
      %v309 = vld [vmem:[%s281 + $0x38] sm:$0xf]
      %v310 = vld [vmem:[%s281 + $0x3c] sm:$0xf]
      %v311 = vld [vmem:[%s281 + $0x40] sm:$0xf]
      %v312 = vld [vmem:[%s281 + $0x44] sm:$0xf]
      %v313 = vld [vmem:[%s281 + $0x48] sm:$0xf]
      %v314 = vld [vmem:[%s281 + $0x4c] sm:$0xf]
      %v315 = vld [vmem:[%s281 + $0x50] sm:$0xf]
      %v316 = vld [vmem:[%s281 + $0x54] sm:$0xf]
      %v317 = vld [vmem:[%s281 + $0x58] sm:$0xf]
      %v318 = vld [vmem:[%s281 + $0x5c] sm:$0xf]
      %v319 = vld [vmem:[%s281 + $0x60] sm:$0xf]
      %v320 = vld [vmem:[%s281 + $0x64] sm:$0xf]
      %v321 = vld [vmem:[%s281 + $0x68] sm:$0xf]
      %v322 = vld [vmem:[%s281 + $0x6c] sm:$0xf]
      %v323 = vld [vmem:[%s281 + $0x70] sm:$0xf]
      %v324 = vld [vmem:[%s281 + $0x74] sm:$0xf]
      %v325 = vld [vmem:[%s281 + $0x78] sm:$0xf]
      %v326 = vld [vmem:[%s281 + $0x7c] sm:$0xf]
      %v327 = vunpack.c.l.bf16 %v295
      %v328 = vunpack.c.l.bf16 %v296
      %v329 = vunpack.c.l.bf16 %v297
      %v330 = vunpack.c.l.bf16 %v298
      %v331 = vunpack.c.l.bf16 %v299
      %v332 = vunpack.c.l.bf16 %v300
      %v333 = vunpack.c.l.bf16 %v301
      %v334 = vunpack.c.l.bf16 %v302
      %v335 = vunpack.c.l.bf16 %v303
      %v336 = vunpack.c.l.bf16 %v304
      %v337 = vunpack.c.l.bf16 %v305
      %v338 = vunpack.c.l.bf16 %v306
      %v339 = vunpack.c.l.bf16 %v307
      %v340 = vunpack.c.l.bf16 %v308
      %v341 = vunpack.c.l.bf16 %v309
      %v342 = vunpack.c.l.bf16 %v310
      %v343 = vunpack.c.l.bf16 %v311
      %v344 = vunpack.c.l.bf16 %v312
      %v345 = vunpack.c.l.bf16 %v313
      %v346 = vunpack.c.l.bf16 %v314
      %v347 = vunpack.c.l.bf16 %v315
      %v348 = vunpack.c.l.bf16 %v316
      %v349 = vunpack.c.l.bf16 %v317
      %v350 = vunpack.c.l.bf16 %v318
      %v351 = vunpack.c.l.bf16 %v319
      %v352 = vunpack.c.l.bf16 %v320
      %v353 = vunpack.c.l.bf16 %v321
      %v354 = vunpack.c.l.bf16 %v322
      %v355 = vunpack.c.l.bf16 %v323
      %v356 = vunpack.c.l.bf16 %v324
      %v357 = vunpack.c.l.bf16 %v325
      %v358 = vunpack.c.l.bf16 %v326
      %v360 = vlaneseq
      %v361 = vshrl.u32 %v360, 7
      %v362 = vsub.s32 0, %v361
      %v363 = vrot.slane %v292, %v362
      %v365 = vmul.f32 %v327, %v363
      %v366 = vmul.f32 %v328, %v363
      %v367 = vmul.f32 %v329, %v363
      %v368 = vmul.f32 %v330, %v363
      %v369 = vmul.f32 %v331, %v363
      %v370 = vmul.f32 %v332, %v363
      %v371 = vmul.f32 %v333, %v363
      %v372 = vmul.f32 %v334, %v363
      %v373 = vmul.f32 %v335, %v363
      %v374 = vmul.f32 %v336, %v363
      %v375 = vmul.f32 %v337, %v363
      %v376 = vmul.f32 %v338, %v363
      %v377 = vmul.f32 %v339, %v363
      %v378 = vmul.f32 %v340, %v363
      %v379 = vmul.f32 %v341, %v363
      %v380 = vmul.f32 %v342, %v363
      %v381 = vmul.f32 %v343, %v363
      %v382 = vmul.f32 %v344, %v363
      %v383 = vmul.f32 %v345, %v363
      %v384 = vmul.f32 %v346, %v363
      %v385 = vmul.f32 %v347, %v363
      %v386 = vmul.f32 %v348, %v363
      %v387 = vmul.f32 %v349, %v363
      %v388 = vmul.f32 %v350, %v363
      %v389 = vmul.f32 %v351, %v363
      %v390 = vmul.f32 %v352, %v363
      %v391 = vmul.f32 %v353, %v363
      %v392 = vmul.f32 %v354, %v363
      %v393 = vmul.f32 %v355, %v363
      %v394 = vmul.f32 %v356, %v363
      %v395 = vmul.f32 %v357, %v363
      %v396 = vmul.f32 %v358, %v363
      %v398 = vlaneseq
      %v399 = vshrl.u32 %v398, 7
      %v400 = vsub.s32 0, %v399
      %v401 = vrot.slane %v293, %v400
      %v403 = vadd.f32 %v365, %v401
      %v404 = vadd.f32 %v366, %v401
      %v405 = vadd.f32 %v367, %v401
      %v406 = vadd.f32 %v368, %v401
      %v407 = vadd.f32 %v369, %v401
      %v408 = vadd.f32 %v370, %v401
      %v409 = vadd.f32 %v371, %v401
      %v410 = vadd.f32 %v372, %v401
      %v411 = vadd.f32 %v373, %v401
      %v412 = vadd.f32 %v374, %v401
      %v413 = vadd.f32 %v375, %v401
      %v414 = vadd.f32 %v376, %v401
      %v415 = vadd.f32 %v377, %v401
      %v416 = vadd.f32 %v378, %v401
      %v417 = vadd.f32 %v379, %v401
      %v418 = vadd.f32 %v380, %v401
      %v419 = vadd.f32 %v381, %v401
      %v420 = vadd.f32 %v382, %v401
      %v421 = vadd.f32 %v383, %v401
      %v422 = vadd.f32 %v384, %v401
      %v423 = vadd.f32 %v385, %v401
      %v424 = vadd.f32 %v386, %v401
      %v425 = vadd.f32 %v387, %v401
      %v426 = vadd.f32 %v388, %v401
      %v427 = vadd.f32 %v389, %v401
      %v428 = vadd.f32 %v390, %v401
      %v429 = vadd.f32 %v391, %v401
      %v430 = vadd.f32 %v392, %v401
      %v431 = vadd.f32 %v393, %v401
      %v432 = vadd.f32 %v394, %v401
      %v433 = vadd.f32 %v395, %v401
      %v434 = vadd.f32 %v396, %v401
      %vm435 = vcmp.gt.f32.partialorder %v403, 0.0
      %vm436 = vcmp.gt.f32.partialorder %v404, 0.0
      %vm437 = vcmp.gt.f32.partialorder %v405, 0.0
      %vm438 = vcmp.gt.f32.partialorder %v406, 0.0
      %vm439 = vcmp.gt.f32.partialorder %v407, 0.0
      %vm440 = vcmp.gt.f32.partialorder %v408, 0.0
      %vm441 = vcmp.gt.f32.partialorder %v409, 0.0
      %vm442 = vcmp.gt.f32.partialorder %v410, 0.0
      %vm443 = vcmp.gt.f32.partialorder %v411, 0.0
      %vm444 = vcmp.gt.f32.partialorder %v412, 0.0
      %vm445 = vcmp.gt.f32.partialorder %v413, 0.0
      %vm446 = vcmp.gt.f32.partialorder %v414, 0.0
      %vm447 = vcmp.gt.f32.partialorder %v415, 0.0
      %vm448 = vcmp.gt.f32.partialorder %v416, 0.0
      %vm449 = vcmp.gt.f32.partialorder %v417, 0.0
      %vm450 = vcmp.gt.f32.partialorder %v418, 0.0
      %vm451 = vcmp.gt.f32.partialorder %v419, 0.0
      %vm452 = vcmp.gt.f32.partialorder %v420, 0.0
      %vm453 = vcmp.gt.f32.partialorder %v421, 0.0
      %vm454 = vcmp.gt.f32.partialorder %v422, 0.0
      %vm455 = vcmp.gt.f32.partialorder %v423, 0.0
      %vm456 = vcmp.gt.f32.partialorder %v424, 0.0
      %vm457 = vcmp.gt.f32.partialorder %v425, 0.0
      %vm458 = vcmp.gt.f32.partialorder %v426, 0.0
      %vm459 = vcmp.gt.f32.partialorder %v427, 0.0
      %vm460 = vcmp.gt.f32.partialorder %v428, 0.0
      %vm461 = vcmp.gt.f32.partialorder %v429, 0.0
      %vm462 = vcmp.gt.f32.partialorder %v430, 0.0
      %vm463 = vcmp.gt.f32.partialorder %v431, 0.0
      %vm464 = vcmp.gt.f32.partialorder %v432, 0.0
      %vm465 = vcmp.gt.f32.partialorder %v433, 0.0
      %vm466 = vcmp.gt.f32.partialorder %v434, 0.0
      %v467 = vstv %s294
      %v468 = vmul.f32 %v467, %v403
      %v469 = vmul.f32 %v467, %v404
      %v470 = vmul.f32 %v467, %v405
      %v471 = vmul.f32 %v467, %v406
      %v472 = vmul.f32 %v467, %v407
      %v473 = vmul.f32 %v467, %v408
      %v474 = vmul.f32 %v467, %v409
      %v475 = vmul.f32 %v467, %v410
      %v476 = vmul.f32 %v467, %v411
      %v477 = vmul.f32 %v467, %v412
      %v478 = vmul.f32 %v467, %v413
      %v479 = vmul.f32 %v467, %v414
      %v480 = vmul.f32 %v467, %v415
      %v481 = vmul.f32 %v467, %v416
      %v482 = vmul.f32 %v467, %v417
      %v483 = vmul.f32 %v467, %v418
      %v484 = vmul.f32 %v467, %v419
      %v485 = vmul.f32 %v467, %v420
      %v486 = vmul.f32 %v467, %v421
      %v487 = vmul.f32 %v467, %v422
      %v488 = vmul.f32 %v467, %v423
      %v489 = vmul.f32 %v467, %v424
      %v490 = vmul.f32 %v467, %v425
      %v491 = vmul.f32 %v467, %v426
      %v492 = vmul.f32 %v467, %v427
      %v493 = vmul.f32 %v467, %v428
      %v494 = vmul.f32 %v467, %v429
      %v495 = vmul.f32 %v467, %v430
      %v496 = vmul.f32 %v467, %v431
      %v497 = vmul.f32 %v467, %v432
      %v498 = vmul.f32 %v467, %v433
      %v499 = vmul.f32 %v467, %v434
      %v500 = vsel %vm435, %v403, %v468
      %v501 = vsel %vm436, %v404, %v469
      %v502 = vsel %vm437, %v405, %v470
      %v503 = vsel %vm438, %v406, %v471
      %v504 = vsel %vm439, %v407, %v472
      %v505 = vsel %vm440, %v408, %v473
      %v506 = vsel %vm441, %v409, %v474
      %v507 = vsel %vm442, %v410, %v475
      %v508 = vsel %vm443, %v411, %v476
      %v509 = vsel %vm444, %v412, %v477
      %v510 = vsel %vm445, %v413, %v478
      %v511 = vsel %vm446, %v414, %v479
      %v512 = vsel %vm447, %v415, %v480
      %v513 = vsel %vm448, %v416, %v481
      %v514 = vsel %vm449, %v417, %v482
      %v515 = vsel %vm450, %v418, %v483
      %v516 = vsel %vm451, %v419, %v484
      %v517 = vsel %vm452, %v420, %v485
      %v518 = vsel %vm453, %v421, %v486
      %v519 = vsel %vm454, %v422, %v487
      %v520 = vsel %vm455, %v423, %v488
      %v521 = vsel %vm456, %v424, %v489
      %v522 = vsel %vm457, %v425, %v490
      %v523 = vsel %vm458, %v426, %v491
      %v524 = vsel %vm459, %v427, %v492
      %v525 = vsel %vm460, %v428, %v493
      %v526 = vsel %vm461, %v429, %v494
      %v527 = vsel %vm462, %v430, %v495
      %v528 = vsel %vm463, %v431, %v496
      %v529 = vsel %vm464, %v432, %v497
      %v530 = vsel %vm465, %v433, %v498
      %v531 = vsel %vm466, %v434, %v499
      %532 = vst [vmem:[#allocation2] sm:$0xf] 0
      %533 = vst [vmem:[#allocation2 + $0x4] sm:$0xf] 0
      %534 = vst [vmem:[#allocation2 + $0x8] sm:$0x1] 0
      %535 = vst [vmem:[#allocation2 + $0xc] sm:$0xf] 0
      %536 = vst [vmem:[#allocation2 + $0x10] sm:$0xf] 0
      %537 = vst [vmem:[#allocation2 + $0x14] sm:$0x1] 0
      %538 = vst [vmem:[#allocation2 + $0x18] sm:$0xf] 0
      %539 = vst [vmem:[#allocation2 + $0x1c] sm:$0xf] 0
      %540 = vst [vmem:[#allocation2 + $0x20] sm:$0x1] 0
      %541 = vst [vmem:[#allocation2 + $0x24] sm:$0xf] 0
      %542 = vst [vmem:[#allocation2 + $0x28] sm:$0xf] 0
      %543 = vst [vmem:[#allocation2 + $0x2c] sm:$0x1] 0
      %544 = vst [vmem:[#allocation2 + $0x30] sm:$0xf] 0
      %545 = vst [vmem:[#allocation2 + $0x34] sm:$0xf] 0
      %546 = vst [vmem:[#allocation2 + $0x38] sm:$0x1] 0
      %547 = vst [vmem:[#allocation2 + $0x3c] sm:$0xf] 0
      %548 = vst [vmem:[#allocation2 + $0x40] sm:$0xf] 0
      %549 = vst [vmem:[#allocation2 + $0x44] sm:$0x1] 0
      %550 = vst [vmem:[#allocation2 + $0x48] sm:$0xf] 0
      %551 = vst [vmem:[#allocation2 + $0x4c] sm:$0xf] 0
      %552 = vst [vmem:[#allocation2 + $0x50] sm:$0x1] 0
      %553 = vst [vmem:[#allocation2 + $0x54] sm:$0xf] 0
      %554 = vst [vmem:[#allocation2 + $0x58] sm:$0xf] 0
      %555 = vst [vmem:[#allocation2 + $0x5c] sm:$0x1] 0
      %556 = vst [vmem:[#allocation2 + $0x60] sm:$0xf] 0
      %557 = vst [vmem:[#allocation2 + $0x64] sm:$0xf] 0
      %558 = vst [vmem:[#allocation2 + $0x68] sm:$0x1] 0
      %559 = vst [vmem:[#allocation2 + $0x6c] sm:$0xf] 0
      %560 = vst [vmem:[#allocation2 + $0x70] sm:$0xf] 0
      %561 = vst [vmem:[#allocation2 + $0x74] sm:$0x1] 0
      %562 = vst [vmem:[#allocation2 + $0x78] sm:$0xf] 0
      %563 = vst [vmem:[#allocation2 + $0x7c] sm:$0xf] 0
      %564 = vst [vmem:[#allocation2 + $0x80] sm:$0x1] 0
      %565 = vst [vmem:[#allocation2 + $0x84] sm:$0xf] 0
      %566 = vst [vmem:[#allocation2 + $0x88] sm:$0xf] 0
      %567 = vst [vmem:[#allocation2 + $0x8c] sm:$0x1] 0
      %568 = vst [vmem:[#allocation2 + $0x90] sm:$0xf] 0
      %569 = vst [vmem:[#allocation2 + $0x94] sm:$0xf] 0
      %570 = vst [vmem:[#allocation2 + $0x98] sm:$0x1] 0
      %571 = vst [vmem:[#allocation2 + $0x9c] sm:$0xf] 0
      %572 = vst [vmem:[#allocation2 + $0xa0] sm:$0xf] 0
      %573 = vst [vmem:[#allocation2 + $0xa4] sm:$0x1] 0
      %574 = vst [vmem:[#allocation2 + $0xa8] sm:$0xf] 0
      %575 = vst [vmem:[#allocation2 + $0xac] sm:$0xf] 0
      %576 = vst [vmem:[#allocation2 + $0xb0] sm:$0x1] 0
      %577 = vst [vmem:[#allocation2 + $0xb4] sm:$0xf] 0
      %578 = vst [vmem:[#allocation2 + $0xb8] sm:$0xf] 0
      %579 = vst [vmem:[#allocation2 + $0xbc] sm:$0x1] 0
      %580 = vst [vmem:[#allocation2 + $0xc0] sm:$0xf] 0
      %581 = vst [vmem:[#allocation2 + $0xc4] sm:$0xf] 0
      %582 = vst [vmem:[#allocation2 + $0xc8] sm:$0x1] 0
      %583 = vst [vmem:[#allocation2 + $0xcc] sm:$0xf] 0
      %584 = vst [vmem:[#allocation2 + $0xd0] sm:$0xf] 0
      %585 = vst [vmem:[#allocation2 + $0xd4] sm:$0x1] 0
      %v586 = vpack.c.bf16 %v501, %v500
      %v587 = vpack.c.bf16 %v503, %v502
      %v588 = vpack.c.bf16 %v505, %v504
      %v589 = vpack.c.bf16 %v507, %v506
      %v590 = vpack.c.bf16 %v509, %v508
      %v591 = vpack.c.bf16 %v511, %v510
      %v592 = vpack.c.bf16 %v513, %v512
      %v593 = vpack.c.bf16 %v515, %v514
      %v594 = vpack.c.bf16 %v517, %v516
      %v595 = vpack.c.bf16 %v519, %v518
      %v596 = vpack.c.bf16 %v521, %v520
      %v597 = vpack.c.bf16 %v523, %v522
      %v598 = vpack.c.bf16 %v525, %v524
      %v599 = vpack.c.bf16 %v527, %v526
      %v600 = vpack.c.bf16 %v529, %v528
      %v601 = vpack.c.bf16 %v531, %v530
      %v618 = vunpack.c.l.b16 %v586
      %v619 = vunpack.c.h.b16 %v586
      %v620 = vunpack.c.l.b16 %v587
      %v621 = vunpack.c.h.b16 %v587
      %v622 = vunpack.c.l.b16 %v588
      %v623 = vunpack.c.h.b16 %v588
      %v624 = vunpack.c.l.b16 %v589
      %v625 = vunpack.c.h.b16 %v589
      %v626 = vunpack.c.l.b16 %v590
      %v627 = vunpack.c.h.b16 %v590
      %v628 = vunpack.c.l.b16 %v591
      %v629 = vunpack.c.h.b16 %v591
      %v630 = vunpack.c.l.b16 %v592
      %v631 = vunpack.c.h.b16 %v592
      %v632 = vunpack.c.l.b16 %v593
      %v633 = vunpack.c.h.b16 %v593
      %v634 = vunpack.c.l.b16 %v594
      %v635 = vunpack.c.h.b16 %v594
      %v636 = vunpack.c.l.b16 %v595
      %v637 = vunpack.c.h.b16 %v595
      %v638 = vunpack.c.l.b16 %v596
      %v639 = vunpack.c.h.b16 %v596
      %v640 = vunpack.c.l.b16 %v597
      %v641 = vunpack.c.h.b16 %v597
      %v642 = vunpack.c.l.b16 %v598
      %v643 = vunpack.c.h.b16 %v598
      %v644 = vunpack.c.l.b16 %v599
      %v645 = vunpack.c.h.b16 %v599
      %v646 = vunpack.c.l.b16 %v600
      %v647 = vunpack.c.h.b16 %v600
      %v648 = vunpack.c.l.b16 %v601
      %v649 = vunpack.c.h.b16 %v601
      %v650 = vpack.c.b16 %v618, %v618
      %v651 = vpack.c.b16 %v619, %v619
      %v652 = vpack.c.b16 %v620, %v620
      %v653 = vpack.c.b16 %v621, %v621
      %v654 = vpack.c.b16 %v622, %v622
      %v655 = vpack.c.b16 %v623, %v623
      %v656 = vpack.c.b16 %v624, %v624
      %v657 = vpack.c.b16 %v625, %v625
      %v658 = vpack.c.b16 %v626, %v626
      %v659 = vpack.c.b16 %v627, %v627
      %v660 = vpack.c.b16 %v628, %v628
      %v661 = vpack.c.b16 %v629, %v629
      %v662 = vpack.c.b16 %v630, %v630
      %v663 = vpack.c.b16 %v631, %v631
      %v664 = vpack.c.b16 %v632, %v632
      %v665 = vpack.c.b16 %v633, %v633
      %v666 = vpack.c.b16 %v634, %v634
      %v667 = vpack.c.b16 %v635, %v635
      %v668 = vpack.c.b16 %v636, %v636
      %v669 = vpack.c.b16 %v637, %v637
      %v670 = vpack.c.b16 %v638, %v638
      %v671 = vpack.c.b16 %v639, %v639
      %v672 = vpack.c.b16 %v640, %v640
      %v673 = vpack.c.b16 %v641, %v641
      %v674 = vpack.c.b16 %v642, %v642
      %v675 = vpack.c.b16 %v643, %v643
      %v676 = vpack.c.b16 %v644, %v644
      %v677 = vpack.c.b16 %v645, %v645
      %v678 = vpack.c.b16 %v646, %v646
      %v679 = vpack.c.b16 %v647, %v647
      %v680 = vpack.c.b16 %v648, %v648
      %v681 = vpack.c.b16 %v649, %v649
      %vm682 = vsmask.f32 256
      %vm683 = vsmask.f32 4368
      %vm684 = vmor %vm682, %vm683
      %v686 = vshrl.u32 %v650, 16
      %v688 = vrot.slane %v686, 7
      %v689 = vshll.u32 %v650, 16
      %v691 = vor.u32 %v688, %v689
      %v692 = vrot.slane %v688, 4
      %v694 = vshrl.u32 %v651, 16
      %v696 = vrot.slane %v694, 7
      %v697 = vshll.u32 %v651, 16
      %v699 = vor.u32 %v696, %v697
      %v700 = vsel %vm684, %v692, %v699
      %v701 = vrot.slane %v696, 4
      %v703 = vshrl.u32 %v652, 16
      %v705 = vrot.slane %v703, 7
      %v706 = vshll.u32 %v652, 16
      %v708 = vor.u32 %v705, %v706
      %v709 = vrot.slane %v705, 4
      %v711 = vshrl.u32 %v653, 16
      %v713 = vrot.slane %v711, 7
      %v714 = vshll.u32 %v653, 16
      %v716 = vor.u32 %v713, %v714
      %v717 = vsel %vm684, %v709, %v716
      %v718 = vrot.slane %v713, 4
      %v720 = vshrl.u32 %v654, 16
      %v722 = vrot.slane %v720, 7
      %v723 = vshll.u32 %v654, 16
      %v725 = vor.u32 %v722, %v723
      %v726 = vrot.slane %v722, 4
      %v728 = vshrl.u32 %v655, 16
      %v730 = vrot.slane %v728, 7
      %v731 = vshll.u32 %v655, 16
      %v733 = vor.u32 %v730, %v731
      %v734 = vsel %vm684, %v726, %v733
      %v735 = vrot.slane %v730, 4
      %v737 = vshrl.u32 %v656, 16
      %v739 = vrot.slane %v737, 7
      %v740 = vshll.u32 %v656, 16
      %v742 = vor.u32 %v739, %v740
      %v743 = vrot.slane %v739, 4
      %v745 = vshrl.u32 %v657, 16
      %v747 = vrot.slane %v745, 7
      %v748 = vshll.u32 %v657, 16
      %v750 = vor.u32 %v747, %v748
      %v751 = vsel %vm684, %v743, %v750
      %v752 = vrot.slane %v747, 4
      %v754 = vshrl.u32 %v658, 16
      %v756 = vrot.slane %v754, 7
      %v757 = vshll.u32 %v658, 16
      %v759 = vor.u32 %v756, %v757
      %v760 = vrot.slane %v756, 4
      %v762 = vshrl.u32 %v659, 16
      %v764 = vrot.slane %v762, 7
      %v765 = vshll.u32 %v659, 16
      %v767 = vor.u32 %v764, %v765
      %v768 = vsel %vm684, %v760, %v767
      %v769 = vrot.slane %v764, 4
      %v771 = vshrl.u32 %v660, 16
      %v773 = vrot.slane %v771, 7
      %v774 = vshll.u32 %v660, 16
      %v776 = vor.u32 %v773, %v774
      %v777 = vrot.slane %v773, 4
      %v779 = vshrl.u32 %v661, 16
      %v781 = vrot.slane %v779, 7
      %v782 = vshll.u32 %v661, 16
      %v784 = vor.u32 %v781, %v782
      %v785 = vsel %vm684, %v777, %v784
      %v786 = vrot.slane %v781, 4
      %v788 = vshrl.u32 %v662, 16
      %v790 = vrot.slane %v788, 7
      %v791 = vshll.u32 %v662, 16
      %v793 = vor.u32 %v790, %v791
      %v794 = vrot.slane %v790, 4
      %v796 = vshrl.u32 %v663, 16
      %v798 = vrot.slane %v796, 7
      %v799 = vshll.u32 %v663, 16
      %v801 = vor.u32 %v798, %v799
      %v802 = vsel %vm684, %v794, %v801
      %v803 = vrot.slane %v798, 4
      %v805 = vshrl.u32 %v664, 16
      %v807 = vrot.slane %v805, 7
      %v808 = vshll.u32 %v664, 16
      %v810 = vor.u32 %v807, %v808
      %v811 = vrot.slane %v807, 4
      %v813 = vshrl.u32 %v665, 16
      %v815 = vrot.slane %v813, 7
      %v816 = vshll.u32 %v665, 16
      %v818 = vor.u32 %v815, %v816
      %v819 = vsel %vm684, %v811, %v818
      %v820 = vrot.slane %v815, 4
      %v822 = vshrl.u32 %v666, 16
      %v824 = vrot.slane %v822, 7
      %v825 = vshll.u32 %v666, 16
      %v827 = vor.u32 %v824, %v825
      %v828 = vrot.slane %v824, 4
      %v830 = vshrl.u32 %v667, 16
      %v832 = vrot.slane %v830, 7
      %v833 = vshll.u32 %v667, 16
      %v835 = vor.u32 %v832, %v833
      %v836 = vsel %vm684, %v828, %v835
      %v837 = vrot.slane %v832, 4
      %v839 = vshrl.u32 %v668, 16
      %v841 = vrot.slane %v839, 7
      %v842 = vshll.u32 %v668, 16
      %v844 = vor.u32 %v841, %v842
      %v845 = vrot.slane %v841, 4
      %v847 = vshrl.u32 %v669, 16
      %v849 = vrot.slane %v847, 7
      %v850 = vshll.u32 %v669, 16
      %v852 = vor.u32 %v849, %v850
      %v853 = vsel %vm684, %v845, %v852
      %v854 = vrot.slane %v849, 4
      %v856 = vshrl.u32 %v670, 16
      %v858 = vrot.slane %v856, 7
      %v859 = vshll.u32 %v670, 16
      %v861 = vor.u32 %v858, %v859
      %v862 = vrot.slane %v858, 4
      %v864 = vshrl.u32 %v671, 16
      %v866 = vrot.slane %v864, 7
      %v867 = vshll.u32 %v671, 16
      %v869 = vor.u32 %v866, %v867
      %v870 = vsel %vm684, %v862, %v869
      %v871 = vrot.slane %v866, 4
      %v873 = vshrl.u32 %v672, 16
      %v875 = vrot.slane %v873, 7
      %v876 = vshll.u32 %v672, 16
      %v878 = vor.u32 %v875, %v876
      %v879 = vrot.slane %v875, 4
      %v881 = vshrl.u32 %v673, 16
      %v883 = vrot.slane %v881, 7
      %v884 = vshll.u32 %v673, 16
      %v886 = vor.u32 %v883, %v884
      %v887 = vsel %vm684, %v879, %v886
      %v888 = vrot.slane %v883, 4
      %v890 = vshrl.u32 %v674, 16
      %v892 = vrot.slane %v890, 7
      %v893 = vshll.u32 %v674, 16
      %v895 = vor.u32 %v892, %v893
      %v896 = vrot.slane %v892, 4
      %v898 = vshrl.u32 %v675, 16
      %v900 = vrot.slane %v898, 7
      %v901 = vshll.u32 %v675, 16
      %v903 = vor.u32 %v900, %v901
      %v904 = vsel %vm684, %v896, %v903
      %v905 = vrot.slane %v900, 4
      %v907 = vshrl.u32 %v676, 16
      %v909 = vrot.slane %v907, 7
      %v910 = vshll.u32 %v676, 16
      %v912 = vor.u32 %v909, %v910
      %v913 = vrot.slane %v909, 4
      %v915 = vshrl.u32 %v677, 16
      %v917 = vrot.slane %v915, 7
      %v918 = vshll.u32 %v677, 16
      %v920 = vor.u32 %v917, %v918
      %v921 = vsel %vm684, %v913, %v920
      %v922 = vrot.slane %v917, 4
      %v924 = vshrl.u32 %v678, 16
      %v926 = vrot.slane %v924, 7
      %v927 = vshll.u32 %v678, 16
      %v929 = vor.u32 %v926, %v927
      %v930 = vrot.slane %v926, 4
      %v932 = vshrl.u32 %v679, 16
      %v934 = vrot.slane %v932, 7
      %v935 = vshll.u32 %v679, 16
      %v937 = vor.u32 %v934, %v935
      %v938 = vsel %vm684, %v930, %v937
      %v939 = vrot.slane %v934, 4
      %v941 = vshrl.u32 %v680, 16
      %v943 = vrot.slane %v941, 7
      %v944 = vshll.u32 %v680, 16
      %v946 = vor.u32 %v943, %v944
      %v947 = vrot.slane %v943, 4
      %v949 = vshrl.u32 %v681, 16
      %v951 = vrot.slane %v949, 7
      %v952 = vshll.u32 %v681, 16
      %v954 = vor.u32 %v951, %v952
      %v955 = vsel %vm684, %v947, %v954
      %v956 = vrot.slane %v951, 4
      %s1005 = scalar_lea.vmem [#allocation2], 12
      %vm1006 = vcmask 1043456
      %vm1007 = vsmask.f32 7938
      %vm1008 = vmand %vm1006, %vm1007
      %v1009 = vld [vmem:[%s1005] sm:$0xf]
      %v1010 = vsel %vm1008, %v691, %v1009
      %1011 = vst [vmem:[%s1005] sm:$0xf] %v1010
      %1012 = vst [vmem:[%s1005 + $0x4] sm:$0xf] %v700
      %vm1013 = vcmask 1040384
      %vm1014 = vmand %vm1013, %vm682
      %v1015 = vld [vmem:[%s1005 + $0x8] sm:$0x1]
      %v1016 = vsel %vm1014, %v701, %v1015
      %1017 = vst [vmem:[%s1005 + $0x8] sm:$0x1] %v1016
      %v1018 = vld [vmem:[%s1005 + $0xc] sm:$0xf]
      %v1019 = vsel %vm1008, %v708, %v1018
      %1020 = vst [vmem:[%s1005 + $0xc] sm:$0xf] %v1019
      %1021 = vst [vmem:[%s1005 + $0x10] sm:$0xf] %v717
      %v1022 = vld [vmem:[%s1005 + $0x14] sm:$0x1]
      %v1023 = vsel %vm1014, %v718, %v1022
      %1024 = vst [vmem:[%s1005 + $0x14] sm:$0x1] %v1023
      %v1025 = vld [vmem:[%s1005 + $0x18] sm:$0xf]
      %v1026 = vsel %vm1008, %v725, %v1025
      %1027 = vst [vmem:[%s1005 + $0x18] sm:$0xf] %v1026
      %1028 = vst [vmem:[%s1005 + $0x1c] sm:$0xf] %v734
      %v1029 = vld [vmem:[%s1005 + $0x20] sm:$0x1]
      %v1030 = vsel %vm1014, %v735, %v1029
      %1031 = vst [vmem:[%s1005 + $0x20] sm:$0x1] %v1030
      %v1032 = vld [vmem:[%s1005 + $0x24] sm:$0xf]
      %v1033 = vsel %vm1008, %v742, %v1032
      %1034 = vst [vmem:[%s1005 + $0x24] sm:$0xf] %v1033
      %1035 = vst [vmem:[%s1005 + $0x28] sm:$0xf] %v751
      %v1036 = vld [vmem:[%s1005 + $0x2c] sm:$0x1]
      %v1037 = vsel %vm1014, %v752, %v1036
      %1038 = vst [vmem:[%s1005 + $0x2c] sm:$0x1] %v1037
      %v1039 = vld [vmem:[%s1005 + $0x30] sm:$0xf]
      %v1040 = vsel %vm1008, %v759, %v1039
      %1041 = vst [vmem:[%s1005 + $0x30] sm:$0xf] %v1040
      %1042 = vst [vmem:[%s1005 + $0x34] sm:$0xf] %v768
      %v1043 = vld [vmem:[%s1005 + $0x38] sm:$0x1]
      %v1044 = vsel %vm1014, %v769, %v1043
      %1045 = vst [vmem:[%s1005 + $0x38] sm:$0x1] %v1044
      %v1046 = vld [vmem:[%s1005 + $0x3c] sm:$0xf]
      %v1047 = vsel %vm1008, %v776, %v1046
      %1048 = vst [vmem:[%s1005 + $0x3c] sm:$0xf] %v1047
      %1049 = vst [vmem:[%s1005 + $0x40] sm:$0xf] %v785
      %v1050 = vld [vmem:[%s1005 + $0x44] sm:$0x1]
      %v1051 = vsel %vm1014, %v786, %v1050
      %1052 = vst [vmem:[%s1005 + $0x44] sm:$0x1] %v1051
      %v1053 = vld [vmem:[%s1005 + $0x48] sm:$0xf]
      %v1054 = vsel %vm1008, %v793, %v1053
      %1055 = vst [vmem:[%s1005 + $0x48] sm:$0xf] %v1054
      %1056 = vst [vmem:[%s1005 + $0x4c] sm:$0xf] %v802
      %v1057 = vld [vmem:[%s1005 + $0x50] sm:$0x1]
      %v1058 = vsel %vm1014, %v803, %v1057
      %1059 = vst [vmem:[%s1005 + $0x50] sm:$0x1] %v1058
      %v1060 = vld [vmem:[%s1005 + $0x54] sm:$0xf]
      %v1061 = vsel %vm1008, %v810, %v1060
      %1062 = vst [vmem:[%s1005 + $0x54] sm:$0xf] %v1061
      %1063 = vst [vmem:[%s1005 + $0x58] sm:$0xf] %v819
      %v1064 = vld [vmem:[%s1005 + $0x5c] sm:$0x1]
      %v1065 = vsel %vm1014, %v820, %v1064
      %1066 = vst [vmem:[%s1005 + $0x5c] sm:$0x1] %v1065
      %v1067 = vld [vmem:[%s1005 + $0x60] sm:$0xf]
      %v1068 = vsel %vm1008, %v827, %v1067
      %1069 = vst [vmem:[%s1005 + $0x60] sm:$0xf] %v1068
      %1070 = vst [vmem:[%s1005 + $0x64] sm:$0xf] %v836
      %v1071 = vld [vmem:[%s1005 + $0x68] sm:$0x1]
      %v1072 = vsel %vm1014, %v837, %v1071
      %1073 = vst [vmem:[%s1005 + $0x68] sm:$0x1] %v1072
      %v1074 = vld [vmem:[%s1005 + $0x6c] sm:$0xf]
      %v1075 = vsel %vm1008, %v844, %v1074
      %1076 = vst [vmem:[%s1005 + $0x6c] sm:$0xf] %v1075
      %1077 = vst [vmem:[%s1005 + $0x70] sm:$0xf] %v853
      %v1078 = vld [vmem:[%s1005 + $0x74] sm:$0x1]
      %v1079 = vsel %vm1014, %v854, %v1078
      %1080 = vst [vmem:[%s1005 + $0x74] sm:$0x1] %v1079
      %v1081 = vld [vmem:[%s1005 + $0x78] sm:$0xf]
      %v1082 = vsel %vm1008, %v861, %v1081
      %1083 = vst [vmem:[%s1005 + $0x78] sm:$0xf] %v1082
      %1084 = vst [vmem:[%s1005 + $0x7c] sm:$0xf] %v870
      %v1085 = vld [vmem:[%s1005 + $0x80] sm:$0x1]
      %v1086 = vsel %vm1014, %v871, %v1085
      %1087 = vst [vmem:[%s1005 + $0x80] sm:$0x1] %v1086
      %v1088 = vld [vmem:[%s1005 + $0x84] sm:$0xf]
      %v1089 = vsel %vm1008, %v878, %v1088
      %1090 = vst [vmem:[%s1005 + $0x84] sm:$0xf] %v1089
      %1091 = vst [vmem:[%s1005 + $0x88] sm:$0xf] %v887
      %v1092 = vld [vmem:[%s1005 + $0x8c] sm:$0x1]
      %v1093 = vsel %vm1014, %v888, %v1092
      %1094 = vst [vmem:[%s1005 + $0x8c] sm:$0x1] %v1093
      %v1095 = vld [vmem:[%s1005 + $0x90] sm:$0xf]
      %v1096 = vsel %vm1008, %v895, %v1095
      %1097 = vst [vmem:[%s1005 + $0x90] sm:$0xf] %v1096
      %1098 = vst [vmem:[%s1005 + $0x94] sm:$0xf] %v904
      %v1099 = vld [vmem:[%s1005 + $0x98] sm:$0x1]
      %v1100 = vsel %vm1014, %v905, %v1099
      %1101 = vst [vmem:[%s1005 + $0x98] sm:$0x1] %v1100
      %v1102 = vld [vmem:[%s1005 + $0x9c] sm:$0xf]
      %v1103 = vsel %vm1008, %v912, %v1102
      %1104 = vst [vmem:[%s1005 + $0x9c] sm:$0xf] %v1103
      %1105 = vst [vmem:[%s1005 + $0xa0] sm:$0xf] %v921
      %v1106 = vld [vmem:[%s1005 + $0xa4] sm:$0x1]
      %v1107 = vsel %vm1014, %v922, %v1106
      %1108 = vst [vmem:[%s1005 + $0xa4] sm:$0x1] %v1107
      %v1109 = vld [vmem:[%s1005 + $0xa8] sm:$0xf]
      %v1110 = vsel %vm1008, %v929, %v1109
      %1111 = vst [vmem:[%s1005 + $0xa8] sm:$0xf] %v1110
      %1112 = vst [vmem:[%s1005 + $0xac] sm:$0xf] %v938
      %v1113 = vld [vmem:[%s1005 + $0xb0] sm:$0x1]
      %v1114 = vsel %vm1014, %v939, %v1113
      %1115 = vst [vmem:[%s1005 + $0xb0] sm:$0x1] %v1114
      %v1116 = vld [vmem:[%s1005 + $0xb4] sm:$0xf]
      %v1117 = vsel %vm1008, %v946, %v1116
      %1118 = vst [vmem:[%s1005 + $0xb4] sm:$0xf] %v1117
      %1119 = vst [vmem:[%s1005 + $0xb8] sm:$0xf] %v955
      %v1120 = vld [vmem:[%s1005 + $0xbc] sm:$0x1]
      %v1121 = vsel %vm1014, %v956, %v1120
      %1122 = vst [vmem:[%s1005 + $0xbc] sm:$0x1] %v1121
      %v1123 = vld [vmem:[#allocation2] sm:$0xf]
      %v1124 = vld [vmem:[#allocation2 + $0x4] sm:$0xf]
      %v1125 = vld [vmem:[#allocation2 + $0xc] sm:$0xf]
      %v1126 = vld [vmem:[#allocation2 + $0x10] sm:$0xf]
      %v1127 = vld [vmem:[#allocation2 + $0x18] sm:$0xf]
      %v1128 = vld [vmem:[#allocation2 + $0x1c] sm:$0xf]
      %v1129 = vld [vmem:[#allocation2 + $0x24] sm:$0xf]
      %v1130 = vld [vmem:[#allocation2 + $0x28] sm:$0xf]
      %v1131 = vld [vmem:[#allocation2 + $0x30] sm:$0xf]
      %v1132 = vld [vmem:[#allocation2 + $0x34] sm:$0xf]
      %v1133 = vld [vmem:[#allocation2 + $0x3c] sm:$0xf]
      %v1134 = vld [vmem:[#allocation2 + $0x40] sm:$0xf]
      %v1135 = vld [vmem:[#allocation2 + $0x48] sm:$0xf]
      %v1136 = vld [vmem:[#allocation2 + $0x4c] sm:$0xf]
      %v1137 = vld [vmem:[#allocation2 + $0x54] sm:$0xf]
      %v1138 = vld [vmem:[#allocation2 + $0x58] sm:$0xf]
      %v1139 = vld [vmem:[#allocation2 + $0x60] sm:$0xf]
      %v1140 = vld [vmem:[#allocation2 + $0x64] sm:$0xf]
      %v1141 = vld [vmem:[#allocation2 + $0x6c] sm:$0xf]
      %v1142 = vld [vmem:[#allocation2 + $0x70] sm:$0xf]
      %v1143 = vld [vmem:[#allocation2 + $0x78] sm:$0xf]
      %v1144 = vld [vmem:[#allocation2 + $0x7c] sm:$0xf]
      %v1145 = vld [vmem:[#allocation2 + $0x84] sm:$0xf]
      %v1146 = vld [vmem:[#allocation2 + $0x88] sm:$0xf]
      %v1147 = vld [vmem:[#allocation2 + $0x90] sm:$0xf]
      %v1148 = vld [vmem:[#allocation2 + $0x94] sm:$0xf]
      %v1149 = vld [vmem:[#allocation2 + $0x9c] sm:$0xf]
      %v1150 = vld [vmem:[#allocation2 + $0xa0] sm:$0xf]
      %v1151 = vld [vmem:[#allocation2 + $0xa8] sm:$0xf]
      %v1152 = vld [vmem:[#allocation2 + $0xac] sm:$0xf]
      %v1153 = vld [vmem:[#allocation2 + $0xb4] sm:$0xf]
      %v1154 = vld [vmem:[#allocation2 + $0xb8] sm:$0xf]
      %v1155 = vld [vmem:[%s1] sm:$0xf]
      %v1156 = vld [vmem:[%s1 + $0x4] sm:$0xf]
      %v1157 = vld [vmem:[%s1 + $0x8] sm:$0xf]
      %v1158 = vld [vmem:[%s1 + $0xc] sm:$0xf]
      %v1159 = vld [vmem:[%s1 + $0x10] sm:$0xf]
      %v1160 = vld [vmem:[%s1 + $0x14] sm:$0xf]
      %v1161 = vld [vmem:[%s1 + $0x18] sm:$0xf]
      %v1162 = vld [vmem:[%s1 + $0x1c] sm:$0xf]
      %v1163 = vld [vmem:[%s1 + $0x20] sm:$0xf]
      %v1164 = vld [vmem:[%s1 + $0x24] sm:$0xf]
      %v1165 = vld [vmem:[%s1 + $0x28] sm:$0xf]
      %v1166 = vld [vmem:[%s1 + $0x2c] sm:$0xf]
      %v1167 = vld [vmem:[%s1 + $0x30] sm:$0xf]
      %v1168 = vld [vmem:[%s1 + $0x34] sm:$0xf]
      %v1169 = vld [vmem:[%s1 + $0x38] sm:$0xf]
      %v1170 = vld [vmem:[%s1 + $0x3c] sm:$0xf]
      %v1171 = vld [vmem:[#allocation2 + $0x8] sm:$0x1]
      %v1172 = vld [vmem:[#allocation2 + $0x14] sm:$0x1]
      %v1173 = vld [vmem:[#allocation2 + $0x20] sm:$0x1]
      %v1174 = vld [vmem:[#allocation2 + $0x2c] sm:$0x1]
      %v1175 = vld [vmem:[#allocation2 + $0x38] sm:$0x1]
      %v1176 = vld [vmem:[#allocation2 + $0x44] sm:$0x1]
      %v1177 = vld [vmem:[#allocation2 + $0x50] sm:$0x1]
      %v1178 = vld [vmem:[#allocation2 + $0x5c] sm:$0x1]
      %v1179 = vld [vmem:[#allocation2 + $0x68] sm:$0x1]
      %v1180 = vld [vmem:[#allocation2 + $0x74] sm:$0x1]
      %v1181 = vld [vmem:[#allocation2 + $0x80] sm:$0x1]
      %v1182 = vld [vmem:[#allocation2 + $0x8c] sm:$0x1]
      %v1183 = vld [vmem:[#allocation2 + $0x98] sm:$0x1]
      %v1184 = vld [vmem:[#allocation2 + $0xa4] sm:$0x1]
      %v1185 = vld [vmem:[#allocation2 + $0xb0] sm:$0x1]
      %v1186 = vld [vmem:[#allocation2 + $0xbc] sm:$0x1]
      %vm1187 = vsmask.f32 3328
      %vm1188 = vsmask.f32 7440
      %vm1189 = vmor %vm1187, %vm1188
      %v1191 = vshrl.u32 %v1123, 16
      %v1193 = vrot.slane %v1191, 4
      %v1194 = vshll.u32 %v1123, 16
      %v1196 = vrot.slane %v1194, 5
      %v1197 = vor.u32 %v1193, %v1196
      %v1198 = vrot.slane %v1197, 4
      %v1200 = vshll.u32 %v1124, 16
      %v1202 = vrot.slane %v1200, 5
      %v1203 = vsel %vm1189, %v1198, %v1202
      %v1204 = vshrl.u32 %v1124, 16
      %v1206 = vrot.slane %v1204, 4
      %v1207 = vor.u32 %v1206, %v1202
      %v1208 = vrot.slane %v1207, 4
      %v1210 = vshll.u32 %v1171, 16
      %v1212 = vrot.slane %v1210, 5
      %v1213 = vsel %vm1189, %v1208, %v1212
      %v1215 = vshrl.u32 %v1125, 16
      %v1217 = vrot.slane %v1215, 4
      %v1218 = vshll.u32 %v1125, 16
      %v1220 = vrot.slane %v1218, 5
      %v1221 = vor.u32 %v1217, %v1220
      %v1222 = vrot.slane %v1221, 4
      %v1224 = vshll.u32 %v1126, 16
      %v1226 = vrot.slane %v1224, 5
      %v1227 = vsel %vm1189, %v1222, %v1226
      %v1228 = vshrl.u32 %v1126, 16
      %v1230 = vrot.slane %v1228, 4
      %v1231 = vor.u32 %v1230, %v1226
      %v1232 = vrot.slane %v1231, 4
      %v1234 = vshll.u32 %v1172, 16
      %v1236 = vrot.slane %v1234, 5
      %v1237 = vsel %vm1189, %v1232, %v1236
      %v1239 = vshrl.u32 %v1127, 16
      %v1241 = vrot.slane %v1239, 4
      %v1242 = vshll.u32 %v1127, 16
      %v1244 = vrot.slane %v1242, 5
      %v1245 = vor.u32 %v1241, %v1244
      %v1246 = vrot.slane %v1245, 4
      %v1248 = vshll.u32 %v1128, 16
      %v1250 = vrot.slane %v1248, 5
      %v1251 = vsel %vm1189, %v1246, %v1250
      %v1252 = vshrl.u32 %v1128, 16
      %v1254 = vrot.slane %v1252, 4
      %v1255 = vor.u32 %v1254, %v1250
      %v1256 = vrot.slane %v1255, 4
      %v1258 = vshll.u32 %v1173, 16
      %v1260 = vrot.slane %v1258, 5
      %v1261 = vsel %vm1189, %v1256, %v1260
      %v1263 = vshrl.u32 %v1129, 16
      %v1265 = vrot.slane %v1263, 4
      %v1266 = vshll.u32 %v1129, 16
      %v1268 = vrot.slane %v1266, 5
      %v1269 = vor.u32 %v1265, %v1268
      %v1270 = vrot.slane %v1269, 4
      %v1272 = vshll.u32 %v1130, 16
      %v1274 = vrot.slane %v1272, 5
      %v1275 = vsel %vm1189, %v1270, %v1274
      %v1276 = vshrl.u32 %v1130, 16
      %v1278 = vrot.slane %v1276, 4
      %v1279 = vor.u32 %v1278, %v1274
      %v1280 = vrot.slane %v1279, 4
      %v1282 = vshll.u32 %v1174, 16
      %v1284 = vrot.slane %v1282, 5
      %v1285 = vsel %vm1189, %v1280, %v1284
      %v1287 = vshrl.u32 %v1131, 16
      %v1289 = vrot.slane %v1287, 4
      %v1290 = vshll.u32 %v1131, 16
      %v1292 = vrot.slane %v1290, 5
      %v1293 = vor.u32 %v1289, %v1292
      %v1294 = vrot.slane %v1293, 4
      %v1296 = vshll.u32 %v1132, 16
      %v1298 = vrot.slane %v1296, 5
      %v1299 = vsel %vm1189, %v1294, %v1298
      %v1300 = vshrl.u32 %v1132, 16
      %v1302 = vrot.slane %v1300, 4
      %v1303 = vor.u32 %v1302, %v1298
      %v1304 = vrot.slane %v1303, 4
      %v1306 = vshll.u32 %v1175, 16
      %v1308 = vrot.slane %v1306, 5
      %v1309 = vsel %vm1189, %v1304, %v1308
      %v1311 = vshrl.u32 %v1133, 16
      %v1313 = vrot.slane %v1311, 4
      %v1314 = vshll.u32 %v1133, 16
      %v1316 = vrot.slane %v1314, 5
      %v1317 = vor.u32 %v1313, %v1316
      %v1318 = vrot.slane %v1317, 4
      %v1320 = vshll.u32 %v1134, 16
      %v1322 = vrot.slane %v1320, 5
      %v1323 = vsel %vm1189, %v1318, %v1322
      %v1324 = vshrl.u32 %v1134, 16
      %v1326 = vrot.slane %v1324, 4
      %v1327 = vor.u32 %v1326, %v1322
      %v1328 = vrot.slane %v1327, 4
      %v1330 = vshll.u32 %v1176, 16
      %v1332 = vrot.slane %v1330, 5
      %v1333 = vsel %vm1189, %v1328, %v1332
      %v1335 = vshrl.u32 %v1135, 16
      %v1337 = vrot.slane %v1335, 4
      %v1338 = vshll.u32 %v1135, 16
      %v1340 = vrot.slane %v1338, 5
      %v1341 = vor.u32 %v1337, %v1340
      %v1342 = vrot.slane %v1341, 4
      %v1344 = vshll.u32 %v1136, 16
      %v1346 = vrot.slane %v1344, 5
      %v1347 = vsel %vm1189, %v1342, %v1346
      %v1348 = vshrl.u32 %v1136, 16
      %v1350 = vrot.slane %v1348, 4
      %v1351 = vor.u32 %v1350, %v1346
      %v1352 = vrot.slane %v1351, 4
      %v1354 = vshll.u32 %v1177, 16
      %v1356 = vrot.slane %v1354, 5
      %v1357 = vsel %vm1189, %v1352, %v1356
      %v1359 = vshrl.u32 %v1137, 16
      %v1361 = vrot.slane %v1359, 4
      %v1362 = vshll.u32 %v1137, 16
      %v1364 = vrot.slane %v1362, 5
      %v1365 = vor.u32 %v1361, %v1364
      %v1366 = vrot.slane %v1365, 4
      %v1368 = vshll.u32 %v1138, 16
      %v1370 = vrot.slane %v1368, 5
      %v1371 = vsel %vm1189, %v1366, %v1370
      %v1372 = vshrl.u32 %v1138, 16
      %v1374 = vrot.slane %v1372, 4
      %v1375 = vor.u32 %v1374, %v1370
      %v1376 = vrot.slane %v1375, 4
      %v1378 = vshll.u32 %v1178, 16
      %v1380 = vrot.slane %v1378, 5
      %v1381 = vsel %vm1189, %v1376, %v1380
      %v1383 = vshrl.u32 %v1139, 16
      %v1385 = vrot.slane %v1383, 4
      %v1386 = vshll.u32 %v1139, 16
      %v1388 = vrot.slane %v1386, 5
      %v1389 = vor.u32 %v1385, %v1388
      %v1390 = vrot.slane %v1389, 4
      %v1392 = vshll.u32 %v1140, 16
      %v1394 = vrot.slane %v1392, 5
      %v1395 = vsel %vm1189, %v1390, %v1394
      %v1396 = vshrl.u32 %v1140, 16
      %v1398 = vrot.slane %v1396, 4
      %v1399 = vor.u32 %v1398, %v1394
      %v1400 = vrot.slane %v1399, 4
      %v1402 = vshll.u32 %v1179, 16
      %v1404 = vrot.slane %v1402, 5
      %v1405 = vsel %vm1189, %v1400, %v1404
      %v1407 = vshrl.u32 %v1141, 16
      %v1409 = vrot.slane %v1407, 4
      %v1410 = vshll.u32 %v1141, 16
      %v1412 = vrot.slane %v1410, 5
      %v1413 = vor.u32 %v1409, %v1412
      %v1414 = vrot.slane %v1413, 4
      %v1416 = vshll.u32 %v1142, 16
      %v1418 = vrot.slane %v1416, 5
      %v1419 = vsel %vm1189, %v1414, %v1418
      %v1420 = vshrl.u32 %v1142, 16
      %v1422 = vrot.slane %v1420, 4
      %v1423 = vor.u32 %v1422, %v1418
      %v1424 = vrot.slane %v1423, 4
      %v1426 = vshll.u32 %v1180, 16
      %v1428 = vrot.slane %v1426, 5
      %v1429 = vsel %vm1189, %v1424, %v1428
      %v1431 = vshrl.u32 %v1143, 16
      %v1433 = vrot.slane %v1431, 4
      %v1434 = vshll.u32 %v1143, 16
      %v1436 = vrot.slane %v1434, 5
      %v1437 = vor.u32 %v1433, %v1436
      %v1438 = vrot.slane %v1437, 4
      %v1440 = vshll.u32 %v1144, 16
      %v1442 = vrot.slane %v1440, 5
      %v1443 = vsel %vm1189, %v1438, %v1442
      %v1444 = vshrl.u32 %v1144, 16
      %v1446 = vrot.slane %v1444, 4
      %v1447 = vor.u32 %v1446, %v1442
      %v1448 = vrot.slane %v1447, 4
      %v1450 = vshll.u32 %v1181, 16
      %v1452 = vrot.slane %v1450, 5
      %v1453 = vsel %vm1189, %v1448, %v1452
      %v1455 = vshrl.u32 %v1145, 16
      %v1457 = vrot.slane %v1455, 4
      %v1458 = vshll.u32 %v1145, 16
      %v1460 = vrot.slane %v1458, 5
      %v1461 = vor.u32 %v1457, %v1460
      %v1462 = vrot.slane %v1461, 4
      %v1464 = vshll.u32 %v1146, 16
      %v1466 = vrot.slane %v1464, 5
      %v1467 = vsel %vm1189, %v1462, %v1466
      %v1468 = vshrl.u32 %v1146, 16
      %v1470 = vrot.slane %v1468, 4
      %v1471 = vor.u32 %v1470, %v1466
      %v1472 = vrot.slane %v1471, 4
      %v1474 = vshll.u32 %v1182, 16
      %v1476 = vrot.slane %v1474, 5
      %v1477 = vsel %vm1189, %v1472, %v1476
      %v1479 = vshrl.u32 %v1147, 16
      %v1481 = vrot.slane %v1479, 4
      %v1482 = vshll.u32 %v1147, 16
      %v1484 = vrot.slane %v1482, 5
      %v1485 = vor.u32 %v1481, %v1484
      %v1486 = vrot.slane %v1485, 4
      %v1488 = vshll.u32 %v1148, 16
      %v1490 = vrot.slane %v1488, 5
      %v1491 = vsel %vm1189, %v1486, %v1490
      %v1492 = vshrl.u32 %v1148, 16
      %v1494 = vrot.slane %v1492, 4
      %v1495 = vor.u32 %v1494, %v1490
      %v1496 = vrot.slane %v1495, 4
      %v1498 = vshll.u32 %v1183, 16
      %v1500 = vrot.slane %v1498, 5
      %v1501 = vsel %vm1189, %v1496, %v1500
      %v1503 = vshrl.u32 %v1149, 16
      %v1505 = vrot.slane %v1503, 4
      %v1506 = vshll.u32 %v1149, 16
      %v1508 = vrot.slane %v1506, 5
      %v1509 = vor.u32 %v1505, %v1508
      %v1510 = vrot.slane %v1509, 4
      %v1512 = vshll.u32 %v1150, 16
      %v1514 = vrot.slane %v1512, 5
      %v1515 = vsel %vm1189, %v1510, %v1514
      %v1516 = vshrl.u32 %v1150, 16
      %v1518 = vrot.slane %v1516, 4
      %v1519 = vor.u32 %v1518, %v1514
      %v1520 = vrot.slane %v1519, 4
      %v1522 = vshll.u32 %v1184, 16
      %v1524 = vrot.slane %v1522, 5
      %v1525 = vsel %vm1189, %v1520, %v1524
      %v1527 = vshrl.u32 %v1151, 16
      %v1529 = vrot.slane %v1527, 4
      %v1530 = vshll.u32 %v1151, 16
      %v1532 = vrot.slane %v1530, 5
      %v1533 = vor.u32 %v1529, %v1532
      %v1534 = vrot.slane %v1533, 4
      %v1536 = vshll.u32 %v1152, 16
      %v1538 = vrot.slane %v1536, 5
      %v1539 = vsel %vm1189, %v1534, %v1538
      %v1540 = vshrl.u32 %v1152, 16
      %v1542 = vrot.slane %v1540, 4
      %v1543 = vor.u32 %v1542, %v1538
      %v1544 = vrot.slane %v1543, 4
      %v1546 = vshll.u32 %v1185, 16
      %v1548 = vrot.slane %v1546, 5
      %v1549 = vsel %vm1189, %v1544, %v1548
      %v1551 = vshrl.u32 %v1153, 16
      %v1553 = vrot.slane %v1551, 4
      %v1554 = vshll.u32 %v1153, 16
      %v1556 = vrot.slane %v1554, 5
      %v1557 = vor.u32 %v1553, %v1556
      %v1558 = vrot.slane %v1557, 4
      %v1560 = vshll.u32 %v1154, 16
      %v1562 = vrot.slane %v1560, 5
      %v1563 = vsel %vm1189, %v1558, %v1562
      %v1564 = vshrl.u32 %v1154, 16
      %v1566 = vrot.slane %v1564, 4
      %v1567 = vor.u32 %v1566, %v1562
      %v1568 = vrot.slane %v1567, 4
      %v1570 = vshll.u32 %v1186, 16
      %v1572 = vrot.slane %v1570, 5
      %v1573 = vsel %vm1189, %v1568, %v1572
      %s1574 = scalar_lea.vmem %s1, 64
      %v1575 = vld [vmem:[%s1574] sm:$0xf]
      %v1576 = vld [vmem:[%s1574 + $0x4] sm:$0xf]
      %v1577 = vld [vmem:[%s1574 + $0x8] sm:$0xf]
      %v1578 = vld [vmem:[%s1574 + $0xc] sm:$0xf]
      %v1579 = vld [vmem:[%s1574 + $0x10] sm:$0xf]
      %v1580 = vld [vmem:[%s1574 + $0x14] sm:$0xf]
      %v1581 = vld [vmem:[%s1574 + $0x18] sm:$0xf]
      %v1582 = vld [vmem:[%s1574 + $0x1c] sm:$0xf]
      %v1583 = vld [vmem:[%s1574 + $0x20] sm:$0xf]
      %v1584 = vld [vmem:[%s1574 + $0x24] sm:$0xf]
      %v1585 = vld [vmem:[%s1574 + $0x28] sm:$0xf]
      %v1586 = vld [vmem:[%s1574 + $0x2c] sm:$0xf]
      %v1587 = vld [vmem:[%s1574 + $0x30] sm:$0xf]
      %v1588 = vld [vmem:[%s1574 + $0x34] sm:$0xf]
      %v1589 = vld [vmem:[%s1574 + $0x38] sm:$0xf]
      %v1590 = vld [vmem:[%s1574 + $0x3c] sm:$0xf]
      %v1591 = vunpack.c.l.b16 %v1203
      %v1592 = vunpack.c.l.b16 %v1213
      %v1593 = vunpack.c.l.b16 %v1227
      %v1594 = vunpack.c.l.b16 %v1237
      %v1595 = vunpack.c.l.b16 %v1251
      %v1596 = vunpack.c.l.b16 %v1261
      %v1597 = vunpack.c.l.b16 %v1275
      %v1598 = vunpack.c.l.b16 %v1285
      %v1599 = vunpack.c.l.b16 %v1299
      %v1600 = vunpack.c.l.b16 %v1309
      %v1601 = vunpack.c.l.b16 %v1323
      %v1602 = vunpack.c.l.b16 %v1333
      %v1603 = vunpack.c.l.b16 %v1347
      %v1604 = vunpack.c.l.b16 %v1357
      %v1605 = vunpack.c.l.b16 %v1371
      %v1606 = vunpack.c.l.b16 %v1381
      %v1607 = vunpack.c.l.b16 %v1395
      %v1608 = vunpack.c.l.b16 %v1405
      %v1609 = vunpack.c.l.b16 %v1419
      %v1610 = vunpack.c.l.b16 %v1429
      %v1611 = vunpack.c.l.b16 %v1443
      %v1612 = vunpack.c.l.b16 %v1453
      %v1613 = vunpack.c.l.b16 %v1467
      %v1614 = vunpack.c.l.b16 %v1477
      %v1615 = vunpack.c.l.b16 %v1491
      %v1616 = vunpack.c.l.b16 %v1501
      %v1617 = vunpack.c.l.b16 %v1515
      %v1618 = vunpack.c.l.b16 %v1525
      %v1619 = vunpack.c.l.b16 %v1539
      %v1620 = vunpack.c.l.b16 %v1549
      %v1621 = vunpack.c.l.b16 %v1563
      %v1622 = vunpack.c.l.b16 %v1573
      %v1623 = vpack.c.b16 %v1592, %v1591
      %v1624 = vpack.c.b16 %v1594, %v1593
      %v1625 = vpack.c.b16 %v1596, %v1595
      %v1626 = vpack.c.b16 %v1598, %v1597
      %v1627 = vpack.c.b16 %v1600, %v1599
      %v1628 = vpack.c.b16 %v1602, %v1601
      %v1629 = vpack.c.b16 %v1604, %v1603
      %v1630 = vpack.c.b16 %v1606, %v1605
      %v1631 = vpack.c.b16 %v1608, %v1607
      %v1632 = vpack.c.b16 %v1610, %v1609
      %v1633 = vpack.c.b16 %v1612, %v1611
      %v1634 = vpack.c.b16 %v1614, %v1613
      %v1635 = vpack.c.b16 %v1616, %v1615
      %v1636 = vpack.c.b16 %v1618, %v1617
      %v1637 = vpack.c.b16 %v1620, %v1619
      %v1638 = vpack.c.b16 %v1622, %v1621
      %v1671 = vunpack.c.l.b16 %v1575
      %v1672 = vunpack.c.l.b16 %v1576
      %v1673 = vunpack.c.l.b16 %v1577
      %v1674 = vunpack.c.l.b16 %v1578
      %v1675 = vunpack.c.l.b16 %v1579
      %v1676 = vunpack.c.l.b16 %v1580
      %v1677 = vunpack.c.l.b16 %v1581
      %v1678 = vunpack.c.l.b16 %v1582
      %v1679 = vunpack.c.l.b16 %v1583
      %v1680 = vunpack.c.l.b16 %v1584
      %v1681 = vunpack.c.l.b16 %v1585
      %v1682 = vunpack.c.l.b16 %v1586
      %v1683 = vunpack.c.l.b16 %v1587
      %v1684 = vunpack.c.l.b16 %v1588
      %v1685 = vunpack.c.l.b16 %v1589
      %v1686 = vunpack.c.l.b16 %v1590
      %v1687 = vpack.c.b16 %v1672, %v1671
      %v1688 = vpack.c.b16 %v1674, %v1673
      %v1689 = vpack.c.b16 %v1676, %v1675
      %v1690 = vpack.c.b16 %v1678, %v1677
      %v1691 = vpack.c.b16 %v1680, %v1679
      %v1692 = vpack.c.b16 %v1682, %v1681
      %v1693 = vpack.c.b16 %v1684, %v1683
      %v1694 = vpack.c.b16 %v1686, %v1685
      %1703 = vmatprep.subr.bf16.mxu0 0
      %1704 = vmatpush1.bf16.msra.mxu0 %v1694
      %1705 = vmatprep.subr.bf16.mxu0 0
      %1706 = vmatpush1.bf16.msra.mxu0 %v1693
      %1707 = vmatprep.subr.bf16.mxu0 0
      %1708 = vmatpush1.bf16.msra.mxu0 %v1692
      %1709 = vmatprep.subr.bf16.mxu0 0
      %1710 = vmatpush1.bf16.msra.mxu0 %v1691
      %1711 = vmatprep.subr.bf16.mxu0 0
      %1712 = vmatpush1.bf16.msra.mxu0 %v1690
      %1713 = vmatprep.subr.bf16.mxu0 0
      %1714 = vmatpush1.bf16.msra.mxu0 %v1689
      %1715 = vmatprep.subr.bf16.mxu0 0
      %1716 = vmatpush1.bf16.msra.mxu0 %v1688
      %1717 = vmatprep.subr.bf16.mxu0 0
      %1718 = vmatpush1.bf16.msra.mxu0 %v1687
      %1719 = vmatprep.subr.bf16.mxu0 0
      %1720 = vmatpush2.bf16.msra.mxu0 0
      %1721 = vmatprep.subr.bf16.mxu0 0
      %1722 = vmatpush2.bf16.msra.mxu0 0
      %1723 = vmatprep.subr.bf16.mxu0 0
      %1724 = vmatpush2.bf16.msra.mxu0 0
      %1725 = vmatprep.subr.bf16.mxu0 0
      %1726 = vmatpush2.bf16.msra.mxu0 0
      %1727 = vmatprep.subr.bf16.mxu0 0
      %1728 = vmatpush2.bf16.msra.mxu0 0
      %1729 = vmatprep.subr.bf16.mxu0 0
      %1730 = vmatpush2.bf16.msra.mxu0 0
      %1731 = vmatprep.subr.bf16.mxu0 0
      %1732 = vmatpush2.bf16.msra.mxu0 0
      %1733 = vmatprep.subr.bf16.mxu0 0
      %1734 = vmatpush2.bf16.msra.mxu0 0
      %1735 = vmatprep.mubr.bf16.mxu0 0
      %1736 = vmatmul.mubr.bf16.gmra.mxu0 %v1623
      %v1737 = vpop.f32.mrf.mxu0
      %v1738 = vadd.f32 0.0, %v1737
      %v1739 = vpop.f32.mrf.mxu0
      %v1740 = vpop.f32.mrf.mxu0
      %v1741 = vadd.f32 0.0, %v1740
      %v1742 = vpop.f32.mrf.mxu0
      %1743 = vmatprep.mubr.bf16.mxu0 0
      %1744 = vmatmul.mubr.bf16.gmra.mxu0 %v1624
      %v1745 = vpop.f32.mrf.mxu0
      %v1746 = vadd.f32 0.0, %v1745
      %v1747 = vpop.f32.mrf.mxu0
      %v1748 = vpop.f32.mrf.mxu0
      %v1749 = vadd.f32 0.0, %v1748
      %v1750 = vpop.f32.mrf.mxu0
      %1751 = vmatprep.mubr.bf16.mxu0 0
      %1752 = vmatmul.mubr.bf16.gmra.mxu0 %v1625
      %v1753 = vpop.f32.mrf.mxu0
      %v1754 = vadd.f32 0.0, %v1753
      %v1755 = vpop.f32.mrf.mxu0
      %v1756 = vpop.f32.mrf.mxu0
      %v1757 = vadd.f32 0.0, %v1756
      %v1758 = vpop.f32.mrf.mxu0
      %1759 = vmatprep.mubr.bf16.mxu0 0
      %1760 = vmatmul.mubr.bf16.gmra.mxu0 %v1626
      %v1761 = vpop.f32.mrf.mxu0
      %v1762 = vadd.f32 0.0, %v1761
      %v1763 = vpop.f32.mrf.mxu0
      %v1764 = vpop.f32.mrf.mxu0
      %v1765 = vadd.f32 0.0, %v1764
      %v1766 = vpop.f32.mrf.mxu0
      %1767 = vmatprep.mubr.bf16.mxu0 0
      %1768 = vmatmul.mubr.bf16.gmra.mxu0 %v1627
      %v1769 = vpop.f32.mrf.mxu0
      %v1770 = vadd.f32 0.0, %v1769
      %v1771 = vpop.f32.mrf.mxu0
      %v1772 = vpop.f32.mrf.mxu0
      %v1773 = vadd.f32 0.0, %v1772
      %v1774 = vpop.f32.mrf.mxu0
      %1775 = vmatprep.mubr.bf16.mxu0 0
      %1776 = vmatmul.mubr.bf16.gmra.mxu0 %v1628
      %v1777 = vpop.f32.mrf.mxu0
      %v1778 = vadd.f32 0.0, %v1777
      %v1779 = vpop.f32.mrf.mxu0
      %v1780 = vpop.f32.mrf.mxu0
      %v1781 = vadd.f32 0.0, %v1780
      %v1782 = vpop.f32.mrf.mxu0
      %1783 = vmatprep.mubr.bf16.mxu0 0
      %1784 = vmatmul.mubr.bf16.gmra.mxu0 %v1629
      %v1785 = vpop.f32.mrf.mxu0
      %v1786 = vadd.f32 0.0, %v1785
      %v1787 = vpop.f32.mrf.mxu0
      %v1788 = vpop.f32.mrf.mxu0
      %v1789 = vadd.f32 0.0, %v1788
      %v1790 = vpop.f32.mrf.mxu0
      %1791 = vmatprep.mubr.bf16.mxu0 0
      %1792 = vmatmul.mubr.bf16.gmra.mxu0 %v1630
      %v1793 = vpop.f32.mrf.mxu0
      %v1794 = vadd.f32 0.0, %v1793
      %v1795 = vpop.f32.mrf.mxu0
      %v1796 = vpop.f32.mrf.mxu0
      %v1797 = vadd.f32 0.0, %v1796
      %v1798 = vpop.f32.mrf.mxu0
      %1799 = vmatprep.mubr.bf16.mxu0 0
      %1800 = vmatmul.mubr.bf16.gmra.mxu0 %v1631
      %v1801 = vpop.f32.mrf.mxu0
      %v1802 = vadd.f32 0.0, %v1801
      %v1803 = vpop.f32.mrf.mxu0
      %v1804 = vpop.f32.mrf.mxu0
      %v1805 = vadd.f32 0.0, %v1804
      %v1806 = vpop.f32.mrf.mxu0
      %1807 = vmatprep.mubr.bf16.mxu0 0
      %1808 = vmatmul.mubr.bf16.gmra.mxu0 %v1632
      %v1809 = vpop.f32.mrf.mxu0
      %v1810 = vadd.f32 0.0, %v1809
      %v1811 = vpop.f32.mrf.mxu0
      %v1812 = vpop.f32.mrf.mxu0
      %v1813 = vadd.f32 0.0, %v1812
      %v1814 = vpop.f32.mrf.mxu0
      %1815 = vmatprep.mubr.bf16.mxu0 0
      %1816 = vmatmul.mubr.bf16.gmra.mxu0 %v1633
      %v1817 = vpop.f32.mrf.mxu0
      %v1818 = vadd.f32 0.0, %v1817
      %v1819 = vpop.f32.mrf.mxu0
      %v1820 = vpop.f32.mrf.mxu0
      %v1821 = vadd.f32 0.0, %v1820
      %v1822 = vpop.f32.mrf.mxu0
      %1823 = vmatprep.mubr.bf16.mxu0 0
      %1824 = vmatmul.mubr.bf16.gmra.mxu0 %v1634
      %v1825 = vpop.f32.mrf.mxu0
      %v1826 = vadd.f32 0.0, %v1825
      %v1827 = vpop.f32.mrf.mxu0
      %v1828 = vpop.f32.mrf.mxu0
      %v1829 = vadd.f32 0.0, %v1828
      %v1830 = vpop.f32.mrf.mxu0
      %1831 = vmatprep.mubr.bf16.mxu0 0
      %1832 = vmatmul.mubr.bf16.gmra.mxu0 %v1635
      %v1833 = vpop.f32.mrf.mxu0
      %v1834 = vadd.f32 0.0, %v1833
      %v1835 = vpop.f32.mrf.mxu0
      %v1836 = vpop.f32.mrf.mxu0
      %v1837 = vadd.f32 0.0, %v1836
      %v1838 = vpop.f32.mrf.mxu0
      %1839 = vmatprep.mubr.bf16.mxu0 0
      %1840 = vmatmul.mubr.bf16.gmra.mxu0 %v1636
      %v1841 = vpop.f32.mrf.mxu0
      %v1842 = vadd.f32 0.0, %v1841
      %v1843 = vpop.f32.mrf.mxu0
      %v1844 = vpop.f32.mrf.mxu0
      %v1845 = vadd.f32 0.0, %v1844
      %v1846 = vpop.f32.mrf.mxu0
      %1847 = vmatprep.mubr.bf16.mxu0 0
      %1848 = vmatmul.mubr.bf16.gmra.mxu0 %v1637
      %v1849 = vpop.f32.mrf.mxu0
      %v1850 = vadd.f32 0.0, %v1849
      %v1851 = vpop.f32.mrf.mxu0
      %v1852 = vpop.f32.mrf.mxu0
      %v1853 = vadd.f32 0.0, %v1852
      %v1854 = vpop.f32.mrf.mxu0
      %1855 = vmatprep.mubr.bf16.mxu0 0
      %1856 = vmatmul.mubr.bf16.gmra.mxu0 %v1638
      %v1857 = vpop.f32.mrf.mxu0
      %v1858 = vadd.f32 0.0, %v1857
      %v1859 = vpop.f32.mrf.mxu0
      %v1860 = vpop.f32.mrf.mxu0
      %v1861 = vadd.f32 0.0, %v1860
      %v1862 = vpop.f32.mrf.mxu0
      %1863 = vdwg.mxu0
      %v1896 = vunpack.c.l.b16 %v1123
      %v1897 = vunpack.c.l.b16 %v1124
      %v1898 = vunpack.c.l.b16 %v1125
      %v1899 = vunpack.c.l.b16 %v1126
      %v1900 = vunpack.c.l.b16 %v1127
      %v1901 = vunpack.c.l.b16 %v1128
      %v1902 = vunpack.c.l.b16 %v1129
      %v1903 = vunpack.c.l.b16 %v1130
      %v1904 = vunpack.c.l.b16 %v1131
      %v1905 = vunpack.c.l.b16 %v1132
      %v1906 = vunpack.c.l.b16 %v1133
      %v1907 = vunpack.c.l.b16 %v1134
      %v1908 = vunpack.c.l.b16 %v1135
      %v1909 = vunpack.c.l.b16 %v1136
      %v1910 = vunpack.c.l.b16 %v1137
      %v1911 = vunpack.c.l.b16 %v1138
      %v1912 = vunpack.c.l.b16 %v1139
      %v1913 = vunpack.c.l.b16 %v1140
      %v1914 = vunpack.c.l.b16 %v1141
      %v1915 = vunpack.c.l.b16 %v1142
      %v1916 = vunpack.c.l.b16 %v1143
      %v1917 = vunpack.c.l.b16 %v1144
      %v1918 = vunpack.c.l.b16 %v1145
      %v1919 = vunpack.c.l.b16 %v1146
      %v1920 = vunpack.c.l.b16 %v1147
      %v1921 = vunpack.c.l.b16 %v1148
      %v1922 = vunpack.c.l.b16 %v1149
      %v1923 = vunpack.c.l.b16 %v1150
      %v1924 = vunpack.c.l.b16 %v1151
      %v1925 = vunpack.c.l.b16 %v1152
      %v1926 = vunpack.c.l.b16 %v1153
      %v1927 = vunpack.c.l.b16 %v1154
      %v1928 = vpack.c.b16 %v1897, %v1896
      %v1929 = vpack.c.b16 %v1899, %v1898
      %v1930 = vpack.c.b16 %v1901, %v1900
      %v1931 = vpack.c.b16 %v1903, %v1902
      %v1932 = vpack.c.b16 %v1905, %v1904
      %v1933 = vpack.c.b16 %v1907, %v1906
      %v1934 = vpack.c.b16 %v1909, %v1908
      %v1935 = vpack.c.b16 %v1911, %v1910
      %v1936 = vpack.c.b16 %v1913, %v1912
      %v1937 = vpack.c.b16 %v1915, %v1914
      %v1938 = vpack.c.b16 %v1917, %v1916
      %v1939 = vpack.c.b16 %v1919, %v1918
      %v1940 = vpack.c.b16 %v1921, %v1920
      %v1941 = vpack.c.b16 %v1923, %v1922
      %v1942 = vpack.c.b16 %v1925, %v1924
      %v1943 = vpack.c.b16 %v1927, %v1926
      %v1976 = vunpack.c.l.b16 %v1155
      %v1977 = vunpack.c.l.b16 %v1156
      %v1978 = vunpack.c.l.b16 %v1157
      %v1979 = vunpack.c.l.b16 %v1158
      %v1980 = vunpack.c.l.b16 %v1159
      %v1981 = vunpack.c.l.b16 %v1160
      %v1982 = vunpack.c.l.b16 %v1161
      %v1983 = vunpack.c.l.b16 %v1162
      %v1984 = vunpack.c.l.b16 %v1163
      %v1985 = vunpack.c.l.b16 %v1164
      %v1986 = vunpack.c.l.b16 %v1165
      %v1987 = vunpack.c.l.b16 %v1166
      %v1988 = vunpack.c.l.b16 %v1167
      %v1989 = vunpack.c.l.b16 %v1168
      %v1990 = vunpack.c.l.b16 %v1169
      %v1991 = vunpack.c.l.b16 %v1170
      %v1992 = vpack.c.b16 %v1977, %v1976
      %v1993 = vpack.c.b16 %v1979, %v1978
      %v1994 = vpack.c.b16 %v1981, %v1980
      %v1995 = vpack.c.b16 %v1983, %v1982
      %v1996 = vpack.c.b16 %v1985, %v1984
      %v1997 = vpack.c.b16 %v1987, %v1986
      %v1998 = vpack.c.b16 %v1989, %v1988
      %v1999 = vpack.c.b16 %v1991, %v1990
      %2008 = vmatprep.subr.bf16.mxu0 0
      %2009 = vmatpush1.bf16.msra.mxu0 %v1999
      %2010 = vmatprep.subr.bf16.mxu0 0
      %2011 = vmatpush1.bf16.msra.mxu0 %v1998
      %2012 = vmatprep.subr.bf16.mxu0 0
      %2013 = vmatpush1.bf16.msra.mxu0 %v1997
      %2014 = vmatprep.subr.bf16.mxu0 0
      %2015 = vmatpush1.bf16.msra.mxu0 %v1996
      %2016 = vmatprep.subr.bf16.mxu0 0
      %2017 = vmatpush1.bf16.msra.mxu0 %v1995
      %2018 = vmatprep.subr.bf16.mxu0 0
      %2019 = vmatpush1.bf16.msra.mxu0 %v1994
      %2020 = vmatprep.subr.bf16.mxu0 0
      %2021 = vmatpush1.bf16.msra.mxu0 %v1993
      %2022 = vmatprep.subr.bf16.mxu0 0
      %2023 = vmatpush1.bf16.msra.mxu0 %v1992
      %2024 = vmatprep.subr.bf16.mxu0 0
      %2025 = vmatpush2.bf16.msra.mxu0 0
      %2026 = vmatprep.subr.bf16.mxu0 0
      %2027 = vmatpush2.bf16.msra.mxu0 0
      %2028 = vmatprep.subr.bf16.mxu0 0
      %2029 = vmatpush2.bf16.msra.mxu0 0
      %2030 = vmatprep.subr.bf16.mxu0 0
      %2031 = vmatpush2.bf16.msra.mxu0 0
      %2032 = vmatprep.subr.bf16.mxu0 0
      %2033 = vmatpush2.bf16.msra.mxu0 0
      %2034 = vmatprep.subr.bf16.mxu0 0
      %2035 = vmatpush2.bf16.msra.mxu0 0
      %2036 = vmatprep.subr.bf16.mxu0 0
      %2037 = vmatpush2.bf16.msra.mxu0 0
      %2038 = vmatprep.subr.bf16.mxu0 0
      %2039 = vmatpush2.bf16.msra.mxu0 0
      %2040 = vmatprep.mubr.bf16.mxu0 0
      %2041 = vmatmul.mubr.bf16.gmra.mxu0 %v1928
      %v2042 = vpop.f32.mrf.mxu0
      %v2043 = vadd.f32 %v1738, %v2042
      %v2044 = vpop.f32.mrf.mxu0
      %v2045 = vpop.f32.mrf.mxu0
      %v2046 = vadd.f32 %v1741, %v2045
      %v2047 = vpop.f32.mrf.mxu0
      %2048 = vmatprep.mubr.bf16.mxu0 0
      %2049 = vmatmul.mubr.bf16.gmra.mxu0 %v1929
      %v2050 = vpop.f32.mrf.mxu0
      %v2051 = vadd.f32 %v1746, %v2050
      %v2052 = vpop.f32.mrf.mxu0
      %v2053 = vpop.f32.mrf.mxu0
      %v2054 = vadd.f32 %v1749, %v2053
      %v2055 = vpop.f32.mrf.mxu0
      %2056 = vmatprep.mubr.bf16.mxu0 0
      %2057 = vmatmul.mubr.bf16.gmra.mxu0 %v1930
      %v2058 = vpop.f32.mrf.mxu0
      %v2059 = vadd.f32 %v1754, %v2058
      %v2060 = vpop.f32.mrf.mxu0
      %v2061 = vpop.f32.mrf.mxu0
      %v2062 = vadd.f32 %v1757, %v2061
      %v2063 = vpop.f32.mrf.mxu0
      %2064 = vmatprep.mubr.bf16.mxu0 0
      %2065 = vmatmul.mubr.bf16.gmra.mxu0 %v1931
      %v2066 = vpop.f32.mrf.mxu0
      %v2067 = vadd.f32 %v1762, %v2066
      %v2068 = vpop.f32.mrf.mxu0
      %v2069 = vpop.f32.mrf.mxu0
      %v2070 = vadd.f32 %v1765, %v2069
      %v2071 = vpop.f32.mrf.mxu0
      %2072 = vmatprep.mubr.bf16.mxu0 0
      %2073 = vmatmul.mubr.bf16.gmra.mxu0 %v1932
      %v2074 = vpop.f32.mrf.mxu0
      %v2075 = vadd.f32 %v1770, %v2074
      %v2076 = vpop.f32.mrf.mxu0
      %v2077 = vpop.f32.mrf.mxu0
      %v2078 = vadd.f32 %v1773, %v2077
      %v2079 = vpop.f32.mrf.mxu0
      %2080 = vmatprep.mubr.bf16.mxu0 0
      %2081 = vmatmul.mubr.bf16.gmra.mxu0 %v1933
      %v2082 = vpop.f32.mrf.mxu0
      %v2083 = vadd.f32 %v1778, %v2082
      %v2084 = vpop.f32.mrf.mxu0
      %v2085 = vpop.f32.mrf.mxu0
      %v2086 = vadd.f32 %v1781, %v2085
      %v2087 = vpop.f32.mrf.mxu0
      %2088 = vmatprep.mubr.bf16.mxu0 0
      %2089 = vmatmul.mubr.bf16.gmra.mxu0 %v1934
      %v2090 = vpop.f32.mrf.mxu0
      %v2091 = vadd.f32 %v1786, %v2090
      %v2092 = vpop.f32.mrf.mxu0
      %v2093 = vpop.f32.mrf.mxu0
      %v2094 = vadd.f32 %v1789, %v2093
      %v2095 = vpop.f32.mrf.mxu0
      %2096 = vmatprep.mubr.bf16.mxu0 0
      %2097 = vmatmul.mubr.bf16.gmra.mxu0 %v1935
      %v2098 = vpop.f32.mrf.mxu0
      %v2099 = vadd.f32 %v1794, %v2098
      %v2100 = vpop.f32.mrf.mxu0
      %v2101 = vpop.f32.mrf.mxu0
      %v2102 = vadd.f32 %v1797, %v2101
      %v2103 = vpop.f32.mrf.mxu0
      %2104 = vmatprep.mubr.bf16.mxu0 0
      %2105 = vmatmul.mubr.bf16.gmra.mxu0 %v1936
      %v2106 = vpop.f32.mrf.mxu0
      %v2107 = vadd.f32 %v1802, %v2106
      %v2108 = vpop.f32.mrf.mxu0
      %v2109 = vpop.f32.mrf.mxu0
      %v2110 = vadd.f32 %v1805, %v2109
      %v2111 = vpop.f32.mrf.mxu0
      %2112 = vmatprep.mubr.bf16.mxu0 0
      %2113 = vmatmul.mubr.bf16.gmra.mxu0 %v1937
      %v2114 = vpop.f32.mrf.mxu0
      %v2115 = vadd.f32 %v1810, %v2114
      %v2116 = vpop.f32.mrf.mxu0
      %v2117 = vpop.f32.mrf.mxu0
      %v2118 = vadd.f32 %v1813, %v2117
      %v2119 = vpop.f32.mrf.mxu0
      %2120 = vmatprep.mubr.bf16.mxu0 0
      %2121 = vmatmul.mubr.bf16.gmra.mxu0 %v1938
      %v2122 = vpop.f32.mrf.mxu0
      %v2123 = vadd.f32 %v1818, %v2122
      %v2124 = vpop.f32.mrf.mxu0
      %v2125 = vpop.f32.mrf.mxu0
      %v2126 = vadd.f32 %v1821, %v2125
      %v2127 = vpop.f32.mrf.mxu0
      %2128 = vmatprep.mubr.bf16.mxu0 0
      %2129 = vmatmul.mubr.bf16.gmra.mxu0 %v1939
      %v2130 = vpop.f32.mrf.mxu0
      %v2131 = vadd.f32 %v1826, %v2130
      %v2132 = vpop.f32.mrf.mxu0
      %v2133 = vpop.f32.mrf.mxu0
      %v2134 = vadd.f32 %v1829, %v2133
      %v2135 = vpop.f32.mrf.mxu0
      %2136 = vmatprep.mubr.bf16.mxu0 0
      %2137 = vmatmul.mubr.bf16.gmra.mxu0 %v1940
      %v2138 = vpop.f32.mrf.mxu0
      %v2139 = vadd.f32 %v1834, %v2138
      %v2140 = vpop.f32.mrf.mxu0
      %v2141 = vpop.f32.mrf.mxu0
      %v2142 = vadd.f32 %v1837, %v2141
      %v2143 = vpop.f32.mrf.mxu0
      %2144 = vmatprep.mubr.bf16.mxu0 0
      %2145 = vmatmul.mubr.bf16.gmra.mxu0 %v1941
      %v2146 = vpop.f32.mrf.mxu0
      %v2147 = vadd.f32 %v1842, %v2146
      %v2148 = vpop.f32.mrf.mxu0
      %v2149 = vpop.f32.mrf.mxu0
      %v2150 = vadd.f32 %v1845, %v2149
      %v2151 = vpop.f32.mrf.mxu0
      %2152 = vmatprep.mubr.bf16.mxu0 0
      %2153 = vmatmul.mubr.bf16.gmra.mxu0 %v1942
      %v2154 = vpop.f32.mrf.mxu0
      %v2155 = vadd.f32 %v1850, %v2154
      %v2156 = vpop.f32.mrf.mxu0
      %v2157 = vpop.f32.mrf.mxu0
      %v2158 = vadd.f32 %v1853, %v2157
      %v2159 = vpop.f32.mrf.mxu0
      %2160 = vmatprep.mubr.bf16.mxu0 0
      %2161 = vmatmul.mubr.bf16.gmra.mxu0 %v1943
      %v2162 = vpop.f32.mrf.mxu0
      %v2163 = vadd.f32 %v1858, %v2162
      %v2164 = vpop.f32.mrf.mxu0
      %v2165 = vpop.f32.mrf.mxu0
      %v2166 = vadd.f32 %v1861, %v2165
      %v2167 = vpop.f32.mrf.mxu0
      %2168 = vdwg.mxu0
      %v2169 = vld [vmem:[#allocation2] sm:$0xe]
      %v2170 = vld [vmem:[#allocation2 + $0xc] sm:$0xe]
      %v2171 = vld [vmem:[#allocation2 + $0x18] sm:$0xe]
      %v2172 = vld [vmem:[#allocation2 + $0x24] sm:$0xe]
      %v2173 = vld [vmem:[#allocation2 + $0x30] sm:$0xe]
      %v2174 = vld [vmem:[#allocation2 + $0x3c] sm:$0xe]
      %v2175 = vld [vmem:[#allocation2 + $0x48] sm:$0xe]
      %v2176 = vld [vmem:[#allocation2 + $0x54] sm:$0xe]
      %v2177 = vld [vmem:[#allocation2 + $0x60] sm:$0xe]
      %v2178 = vld [vmem:[#allocation2 + $0x6c] sm:$0xe]
      %v2179 = vld [vmem:[#allocation2 + $0x78] sm:$0xe]
      %v2180 = vld [vmem:[#allocation2 + $0x84] sm:$0xe]
      %v2181 = vld [vmem:[#allocation2 + $0x90] sm:$0xe]
      %v2182 = vld [vmem:[#allocation2 + $0x9c] sm:$0xe]
      %v2183 = vld [vmem:[#allocation2 + $0xa8] sm:$0xe]
      %v2184 = vld [vmem:[#allocation2 + $0xb4] sm:$0xe]
      %vm2217 = vcmask 1042432
      %vm2218 = vcmask 1046532
      %vm2219 = vmor %vm2217, %vm2218
      %v2220 = vrot.slane %v2169, 5
      %v2221 = vrot.slane %v2220, 4
      %v2222 = vrot.slane %v1124, 5
      %v2223 = vsel %vm2219, %v2221, %v2222
      %v2224 = vrot.slane %v2222, 4
      %v2225 = vrot.slane %v1171, 5
      %v2226 = vsel %vm2219, %v2224, %v2225
      %v2227 = vrot.slane %v2170, 5
      %v2228 = vrot.slane %v2227, 4
      %v2229 = vrot.slane %v1126, 5
      %v2230 = vsel %vm2219, %v2228, %v2229
      %v2231 = vrot.slane %v2229, 4
      %v2232 = vrot.slane %v1172, 5
      %v2233 = vsel %vm2219, %v2231, %v2232
      %v2234 = vrot.slane %v2171, 5
      %v2235 = vrot.slane %v2234, 4
      %v2236 = vrot.slane %v1128, 5
      %v2237 = vsel %vm2219, %v2235, %v2236
      %v2238 = vrot.slane %v2236, 4
      %v2239 = vrot.slane %v1173, 5
      %v2240 = vsel %vm2219, %v2238, %v2239
      %v2241 = vrot.slane %v2172, 5
      %v2242 = vrot.slane %v2241, 4
      %v2243 = vrot.slane %v1130, 5
      %v2244 = vsel %vm2219, %v2242, %v2243
      %v2245 = vrot.slane %v2243, 4
      %v2246 = vrot.slane %v1174, 5
      %v2247 = vsel %vm2219, %v2245, %v2246
      %v2248 = vrot.slane %v2173, 5
      %v2249 = vrot.slane %v2248, 4
      %v2250 = vrot.slane %v1132, 5
      %v2251 = vsel %vm2219, %v2249, %v2250
      %v2252 = vrot.slane %v2250, 4
      %v2253 = vrot.slane %v1175, 5
      %v2254 = vsel %vm2219, %v2252, %v2253
      %v2255 = vrot.slane %v2174, 5
      %v2256 = vrot.slane %v2255, 4
      %v2257 = vrot.slane %v1134, 5
      %v2258 = vsel %vm2219, %v2256, %v2257
      %v2259 = vrot.slane %v2257, 4
      %v2260 = vrot.slane %v1176, 5
      %v2261 = vsel %vm2219, %v2259, %v2260
      %v2262 = vrot.slane %v2175, 5
      %v2263 = vrot.slane %v2262, 4
      %v2264 = vrot.slane %v1136, 5
      %v2265 = vsel %vm2219, %v2263, %v2264
      %v2266 = vrot.slane %v2264, 4
      %v2267 = vrot.slane %v1177, 5
      %v2268 = vsel %vm2219, %v2266, %v2267
      %v2269 = vrot.slane %v2176, 5
      %v2270 = vrot.slane %v2269, 4
      %v2271 = vrot.slane %v1138, 5
      %v2272 = vsel %vm2219, %v2270, %v2271
      %v2273 = vrot.slane %v2271, 4
      %v2274 = vrot.slane %v1178, 5
      %v2275 = vsel %vm2219, %v2273, %v2274
      %v2276 = vrot.slane %v2177, 5
      %v2277 = vrot.slane %v2276, 4
      %v2278 = vrot.slane %v1140, 5
      %v2279 = vsel %vm2219, %v2277, %v2278
      %v2280 = vrot.slane %v2278, 4
      %v2281 = vrot.slane %v1179, 5
      %v2282 = vsel %vm2219, %v2280, %v2281
      %v2283 = vrot.slane %v2178, 5
      %v2284 = vrot.slane %v2283, 4
      %v2285 = vrot.slane %v1142, 5
      %v2286 = vsel %vm2219, %v2284, %v2285
      %v2287 = vrot.slane %v2285, 4
      %v2288 = vrot.slane %v1180, 5
      %v2289 = vsel %vm2219, %v2287, %v2288
      %v2290 = vrot.slane %v2179, 5
      %v2291 = vrot.slane %v2290, 4
      %v2292 = vrot.slane %v1144, 5
      %v2293 = vsel %vm2219, %v2291, %v2292
      %v2294 = vrot.slane %v2292, 4
      %v2295 = vrot.slane %v1181, 5
      %v2296 = vsel %vm2219, %v2294, %v2295
      %v2297 = vrot.slane %v2180, 5
      %v2298 = vrot.slane %v2297, 4
      %v2299 = vrot.slane %v1146, 5
      %v2300 = vsel %vm2219, %v2298, %v2299
      %v2301 = vrot.slane %v2299, 4
      %v2302 = vrot.slane %v1182, 5
      %v2303 = vsel %vm2219, %v2301, %v2302
      %v2304 = vrot.slane %v2181, 5
      %v2305 = vrot.slane %v2304, 4
      %v2306 = vrot.slane %v1148, 5
      %v2307 = vsel %vm2219, %v2305, %v2306
      %v2308 = vrot.slane %v2306, 4
      %v2309 = vrot.slane %v1183, 5
      %v2310 = vsel %vm2219, %v2308, %v2309
      %v2311 = vrot.slane %v2182, 5
      %v2312 = vrot.slane %v2311, 4
      %v2313 = vrot.slane %v1150, 5
      %v2314 = vsel %vm2219, %v2312, %v2313
      %v2315 = vrot.slane %v2313, 4
      %v2316 = vrot.slane %v1184, 5
      %v2317 = vsel %vm2219, %v2315, %v2316
      %v2318 = vrot.slane %v2183, 5
      %v2319 = vrot.slane %v2318, 4
      %v2320 = vrot.slane %v1152, 5
      %v2321 = vsel %vm2219, %v2319, %v2320
      %v2322 = vrot.slane %v2320, 4
      %v2323 = vrot.slane %v1185, 5
      %v2324 = vsel %vm2219, %v2322, %v2323
      %v2325 = vrot.slane %v2184, 5
      %v2326 = vrot.slane %v2325, 4
      %v2327 = vrot.slane %v1154, 5
      %v2328 = vsel %vm2219, %v2326, %v2327
      %v2329 = vrot.slane %v2327, 4
      %v2330 = vrot.slane %v1186, 5
      %v2331 = vsel %vm2219, %v2329, %v2330
      %s2332 = scalar_lea.vmem %s1, 128
      %v2333 = vld [vmem:[%s2332] sm:$0xf]
      %v2334 = vld [vmem:[%s2332 + $0x4] sm:$0xf]
      %v2335 = vld [vmem:[%s2332 + $0x8] sm:$0xf]
      %v2336 = vld [vmem:[%s2332 + $0xc] sm:$0xf]
      %v2337 = vld [vmem:[%s2332 + $0x10] sm:$0xf]
      %v2338 = vld [vmem:[%s2332 + $0x14] sm:$0xf]
      %v2339 = vld [vmem:[%s2332 + $0x18] sm:$0xf]
      %v2340 = vld [vmem:[%s2332 + $0x1c] sm:$0xf]
      %v2341 = vld [vmem:[%s2332 + $0x20] sm:$0xf]
      %v2342 = vld [vmem:[%s2332 + $0x24] sm:$0xf]
      %v2343 = vld [vmem:[%s2332 + $0x28] sm:$0xf]
      %v2344 = vld [vmem:[%s2332 + $0x2c] sm:$0xf]
      %v2345 = vld [vmem:[%s2332 + $0x30] sm:$0xf]
      %v2346 = vld [vmem:[%s2332 + $0x34] sm:$0xf]
      %v2347 = vld [vmem:[%s2332 + $0x38] sm:$0xf]
      %v2348 = vld [vmem:[%s2332 + $0x3c] sm:$0xf]
      %v2349 = vunpack.c.l.b16 %v2223
      %v2350 = vunpack.c.l.b16 %v2226
      %v2351 = vunpack.c.l.b16 %v2230
      %v2352 = vunpack.c.l.b16 %v2233
      %v2353 = vunpack.c.l.b16 %v2237
      %v2354 = vunpack.c.l.b16 %v2240
      %v2355 = vunpack.c.l.b16 %v2244
      %v2356 = vunpack.c.l.b16 %v2247
      %v2357 = vunpack.c.l.b16 %v2251
      %v2358 = vunpack.c.l.b16 %v2254
      %v2359 = vunpack.c.l.b16 %v2258
      %v2360 = vunpack.c.l.b16 %v2261
      %v2361 = vunpack.c.l.b16 %v2265
      %v2362 = vunpack.c.l.b16 %v2268
      %v2363 = vunpack.c.l.b16 %v2272
      %v2364 = vunpack.c.l.b16 %v2275
      %v2365 = vunpack.c.l.b16 %v2279
      %v2366 = vunpack.c.l.b16 %v2282
      %v2367 = vunpack.c.l.b16 %v2286
      %v2368 = vunpack.c.l.b16 %v2289
      %v2369 = vunpack.c.l.b16 %v2293
      %v2370 = vunpack.c.l.b16 %v2296
      %v2371 = vunpack.c.l.b16 %v2300
      %v2372 = vunpack.c.l.b16 %v2303
      %v2373 = vunpack.c.l.b16 %v2307
      %v2374 = vunpack.c.l.b16 %v2310
      %v2375 = vunpack.c.l.b16 %v2314
      %v2376 = vunpack.c.l.b16 %v2317
      %v2377 = vunpack.c.l.b16 %v2321
      %v2378 = vunpack.c.l.b16 %v2324
      %v2379 = vunpack.c.l.b16 %v2328
      %v2380 = vunpack.c.l.b16 %v2331
      %v2381 = vpack.c.b16 %v2350, %v2349
      %v2382 = vpack.c.b16 %v2352, %v2351
      %v2383 = vpack.c.b16 %v2354, %v2353
      %v2384 = vpack.c.b16 %v2356, %v2355
      %v2385 = vpack.c.b16 %v2358, %v2357
      %v2386 = vpack.c.b16 %v2360, %v2359
      %v2387 = vpack.c.b16 %v2362, %v2361
      %v2388 = vpack.c.b16 %v2364, %v2363
      %v2389 = vpack.c.b16 %v2366, %v2365
      %v2390 = vpack.c.b16 %v2368, %v2367
      %v2391 = vpack.c.b16 %v2370, %v2369
      %v2392 = vpack.c.b16 %v2372, %v2371
      %v2393 = vpack.c.b16 %v2374, %v2373
      %v2394 = vpack.c.b16 %v2376, %v2375
      %v2395 = vpack.c.b16 %v2378, %v2377
      %v2396 = vpack.c.b16 %v2380, %v2379
      %v2429 = vunpack.c.l.b16 %v2333
      %v2430 = vunpack.c.l.b16 %v2334
      %v2431 = vunpack.c.l.b16 %v2335
      %v2432 = vunpack.c.l.b16 %v2336
      %v2433 = vunpack.c.l.b16 %v2337
      %v2434 = vunpack.c.l.b16 %v2338
      %v2435 = vunpack.c.l.b16 %v2339
      %v2436 = vunpack.c.l.b16 %v2340
      %v2437 = vunpack.c.l.b16 %v2341
      %v2438 = vunpack.c.l.b16 %v2342
      %v2439 = vunpack.c.l.b16 %v2343
      %v2440 = vunpack.c.l.b16 %v2344
      %v2441 = vunpack.c.l.b16 %v2345
      %v2442 = vunpack.c.l.b16 %v2346
      %v2443 = vunpack.c.l.b16 %v2347
      %v2444 = vunpack.c.l.b16 %v2348
      %v2445 = vpack.c.b16 %v2430, %v2429
      %v2446 = vpack.c.b16 %v2432, %v2431
      %v2447 = vpack.c.b16 %v2434, %v2433
      %v2448 = vpack.c.b16 %v2436, %v2435
      %v2449 = vpack.c.b16 %v2438, %v2437
      %v2450 = vpack.c.b16 %v2440, %v2439
      %v2451 = vpack.c.b16 %v2442, %v2441
      %v2452 = vpack.c.b16 %v2444, %v2443
      %2461 = vmatprep.subr.bf16.mxu0 0
      %2462 = vmatpush1.bf16.msra.mxu0 %v2452
      %2463 = vmatprep.subr.bf16.mxu0 0
      %2464 = vmatpush1.bf16.msra.mxu0 %v2451
      %2465 = vmatprep.subr.bf16.mxu0 0
      %2466 = vmatpush1.bf16.msra.mxu0 %v2450
      %2467 = vmatprep.subr.bf16.mxu0 0
      %2468 = vmatpush1.bf16.msra.mxu0 %v2449
      %2469 = vmatprep.subr.bf16.mxu0 0
      %2470 = vmatpush1.bf16.msra.mxu0 %v2448
      %2471 = vmatprep.subr.bf16.mxu0 0
      %2472 = vmatpush1.bf16.msra.mxu0 %v2447
      %2473 = vmatprep.subr.bf16.mxu0 0
      %2474 = vmatpush1.bf16.msra.mxu0 %v2446
      %2475 = vmatprep.subr.bf16.mxu0 0
      %2476 = vmatpush1.bf16.msra.mxu0 %v2445
      %2477 = vmatprep.subr.bf16.mxu0 0
      %2478 = vmatpush2.bf16.msra.mxu0 0
      %2479 = vmatprep.subr.bf16.mxu0 0
      %2480 = vmatpush2.bf16.msra.mxu0 0
      %2481 = vmatprep.subr.bf16.mxu0 0
      %2482 = vmatpush2.bf16.msra.mxu0 0
      %2483 = vmatprep.subr.bf16.mxu0 0
      %2484 = vmatpush2.bf16.msra.mxu0 0
      %2485 = vmatprep.subr.bf16.mxu0 0
      %2486 = vmatpush2.bf16.msra.mxu0 0
      %2487 = vmatprep.subr.bf16.mxu0 0
      %2488 = vmatpush2.bf16.msra.mxu0 0
      %2489 = vmatprep.subr.bf16.mxu0 0
      %2490 = vmatpush2.bf16.msra.mxu0 0
      %2491 = vmatprep.subr.bf16.mxu0 0
      %2492 = vmatpush2.bf16.msra.mxu0 0
      %2493 = vmatprep.mubr.bf16.mxu0 0
      %2494 = vmatmul.mubr.bf16.gmra.mxu0 %v2381
      %v2495 = vpop.f32.mrf.mxu0
      %v2496 = vadd.f32 0.0, %v2495
      %v2497 = vpop.f32.mrf.mxu0
      %v2498 = vpop.f32.mrf.mxu0
      %v2499 = vadd.f32 0.0, %v2498
      %v2500 = vpop.f32.mrf.mxu0
      %2501 = vmatprep.mubr.bf16.mxu0 0
      %2502 = vmatmul.mubr.bf16.gmra.mxu0 %v2382
      %v2503 = vpop.f32.mrf.mxu0
      %v2504 = vadd.f32 0.0, %v2503
      %v2505 = vpop.f32.mrf.mxu0
      %v2506 = vpop.f32.mrf.mxu0
      %v2507 = vadd.f32 0.0, %v2506
      %v2508 = vpop.f32.mrf.mxu0
      %2509 = vmatprep.mubr.bf16.mxu0 0
      %2510 = vmatmul.mubr.bf16.gmra.mxu0 %v2383
      %v2511 = vpop.f32.mrf.mxu0
      %v2512 = vadd.f32 0.0, %v2511
      %v2513 = vpop.f32.mrf.mxu0
      %v2514 = vpop.f32.mrf.mxu0
      %v2515 = vadd.f32 0.0, %v2514
      %v2516 = vpop.f32.mrf.mxu0
      %2517 = vmatprep.mubr.bf16.mxu0 0
      %2518 = vmatmul.mubr.bf16.gmra.mxu0 %v2384
      %v2519 = vpop.f32.mrf.mxu0
      %v2520 = vadd.f32 0.0, %v2519
      %v2521 = vpop.f32.mrf.mxu0
      %v2522 = vpop.f32.mrf.mxu0
      %v2523 = vadd.f32 0.0, %v2522
      %v2524 = vpop.f32.mrf.mxu0
      %2525 = vmatprep.mubr.bf16.mxu0 0
      %2526 = vmatmul.mubr.bf16.gmra.mxu0 %v2385
      %v2527 = vpop.f32.mrf.mxu0
      %v2528 = vadd.f32 0.0, %v2527
      %v2529 = vpop.f32.mrf.mxu0
      %v2530 = vpop.f32.mrf.mxu0
      %v2531 = vadd.f32 0.0, %v2530
      %v2532 = vpop.f32.mrf.mxu0
      %2533 = vmatprep.mubr.bf16.mxu0 0
      %2534 = vmatmul.mubr.bf16.gmra.mxu0 %v2386
      %v2535 = vpop.f32.mrf.mxu0
      %v2536 = vadd.f32 0.0, %v2535
      %v2537 = vpop.f32.mrf.mxu0
      %v2538 = vpop.f32.mrf.mxu0
      %v2539 = vadd.f32 0.0, %v2538
      %v2540 = vpop.f32.mrf.mxu0
      %2541 = vmatprep.mubr.bf16.mxu0 0
      %2542 = vmatmul.mubr.bf16.gmra.mxu0 %v2387
      %v2543 = vpop.f32.mrf.mxu0
      %v2544 = vadd.f32 0.0, %v2543
      %v2545 = vpop.f32.mrf.mxu0
      %v2546 = vpop.f32.mrf.mxu0
      %v2547 = vadd.f32 0.0, %v2546
      %v2548 = vpop.f32.mrf.mxu0
      %2549 = vmatprep.mubr.bf16.mxu0 0
      %2550 = vmatmul.mubr.bf16.gmra.mxu0 %v2388
      %v2551 = vpop.f32.mrf.mxu0
      %v2552 = vadd.f32 0.0, %v2551
      %v2553 = vpop.f32.mrf.mxu0
      %v2554 = vpop.f32.mrf.mxu0
      %v2555 = vadd.f32 0.0, %v2554
      %v2556 = vpop.f32.mrf.mxu0
      %2557 = vmatprep.mubr.bf16.mxu0 0
      %2558 = vmatmul.mubr.bf16.gmra.mxu0 %v2389
      %v2559 = vpop.f32.mrf.mxu0
      %v2560 = vadd.f32 0.0, %v2559
      %v2561 = vpop.f32.mrf.mxu0
      %v2562 = vpop.f32.mrf.mxu0
      %v2563 = vadd.f32 0.0, %v2562
      %v2564 = vpop.f32.mrf.mxu0
      %2565 = vmatprep.mubr.bf16.mxu0 0
      %2566 = vmatmul.mubr.bf16.gmra.mxu0 %v2390
      %v2567 = vpop.f32.mrf.mxu0
      %v2568 = vadd.f32 0.0, %v2567
      %v2569 = vpop.f32.mrf.mxu0
      %v2570 = vpop.f32.mrf.mxu0
      %v2571 = vadd.f32 0.0, %v2570
      %v2572 = vpop.f32.mrf.mxu0
      %2573 = vmatprep.mubr.bf16.mxu0 0
      %2574 = vmatmul.mubr.bf16.gmra.mxu0 %v2391
      %v2575 = vpop.f32.mrf.mxu0
      %v2576 = vadd.f32 0.0, %v2575
      %v2577 = vpop.f32.mrf.mxu0
      %v2578 = vpop.f32.mrf.mxu0
      %v2579 = vadd.f32 0.0, %v2578
      %v2580 = vpop.f32.mrf.mxu0
      %2581 = vmatprep.mubr.bf16.mxu0 0
      %2582 = vmatmul.mubr.bf16.gmra.mxu0 %v2392
      %v2583 = vpop.f32.mrf.mxu0
      %v2584 = vadd.f32 0.0, %v2583
      %v2585 = vpop.f32.mrf.mxu0
      %v2586 = vpop.f32.mrf.mxu0
      %v2587 = vadd.f32 0.0, %v2586
      %v2588 = vpop.f32.mrf.mxu0
      %2589 = vmatprep.mubr.bf16.mxu0 0
      %2590 = vmatmul.mubr.bf16.gmra.mxu0 %v2393
      %v2591 = vpop.f32.mrf.mxu0
      %v2592 = vadd.f32 0.0, %v2591
      %v2593 = vpop.f32.mrf.mxu0
      %v2594 = vpop.f32.mrf.mxu0
      %v2595 = vadd.f32 0.0, %v2594
      %v2596 = vpop.f32.mrf.mxu0
      %2597 = vmatprep.mubr.bf16.mxu0 0
      %2598 = vmatmul.mubr.bf16.gmra.mxu0 %v2394
      %v2599 = vpop.f32.mrf.mxu0
      %v2600 = vadd.f32 0.0, %v2599
      %v2601 = vpop.f32.mrf.mxu0
      %v2602 = vpop.f32.mrf.mxu0
      %v2603 = vadd.f32 0.0, %v2602
      %v2604 = vpop.f32.mrf.mxu0
      %2605 = vmatprep.mubr.bf16.mxu0 0
      %2606 = vmatmul.mubr.bf16.gmra.mxu0 %v2395
      %v2607 = vpop.f32.mrf.mxu0
      %v2608 = vadd.f32 0.0, %v2607
      %v2609 = vpop.f32.mrf.mxu0
      %v2610 = vpop.f32.mrf.mxu0
      %v2611 = vadd.f32 0.0, %v2610
      %v2612 = vpop.f32.mrf.mxu0
      %2613 = vmatprep.mubr.bf16.mxu0 0
      %2614 = vmatmul.mubr.bf16.gmra.mxu0 %v2396
      %v2615 = vpop.f32.mrf.mxu0
      %v2616 = vadd.f32 0.0, %v2615
      %v2617 = vpop.f32.mrf.mxu0
      %v2618 = vpop.f32.mrf.mxu0
      %v2619 = vadd.f32 0.0, %v2618
      %v2620 = vpop.f32.mrf.mxu0
      %2621 = vdwg.mxu0
      %v2622 = vadd.f32 %v2043, %v2496
      %v2623 = vadd.f32 %v2046, %v2499
      %v2624 = vadd.f32 %v2051, %v2504
      %v2625 = vadd.f32 %v2054, %v2507
      %v2626 = vadd.f32 %v2059, %v2512
      %v2627 = vadd.f32 %v2062, %v2515
      %v2628 = vadd.f32 %v2067, %v2520
      %v2629 = vadd.f32 %v2070, %v2523
      %v2630 = vadd.f32 %v2075, %v2528
      %v2631 = vadd.f32 %v2078, %v2531
      %v2632 = vadd.f32 %v2083, %v2536
      %v2633 = vadd.f32 %v2086, %v2539
      %v2634 = vadd.f32 %v2091, %v2544
      %v2635 = vadd.f32 %v2094, %v2547
      %v2636 = vadd.f32 %v2099, %v2552
      %v2637 = vadd.f32 %v2102, %v2555
      %v2638 = vadd.f32 %v2107, %v2560
      %v2639 = vadd.f32 %v2110, %v2563
      %v2640 = vadd.f32 %v2115, %v2568
      %v2641 = vadd.f32 %v2118, %v2571
      %v2642 = vadd.f32 %v2123, %v2576
      %v2643 = vadd.f32 %v2126, %v2579
      %v2644 = vadd.f32 %v2131, %v2584
      %v2645 = vadd.f32 %v2134, %v2587
      %v2646 = vadd.f32 %v2139, %v2592
      %v2647 = vadd.f32 %v2142, %v2595
      %v2648 = vadd.f32 %v2147, %v2600
      %v2649 = vadd.f32 %v2150, %v2603
      %v2650 = vadd.f32 %v2155, %v2608
      %v2651 = vadd.f32 %v2158, %v2611
      %v2652 = vadd.f32 %v2163, %v2616
      %v2653 = vadd.f32 %v2166, %v2619
      %v2654 = vld [vmem:[%s1005] sm:$0xf]
      %v2655 = vld [vmem:[%s1005 + $0x4] sm:$0xf]
      %v2656 = vld [vmem:[%s1005 + $0xc] sm:$0xf]
      %v2657 = vld [vmem:[%s1005 + $0x10] sm:$0xf]
      %v2658 = vld [vmem:[%s1005 + $0x18] sm:$0xf]
      %v2659 = vld [vmem:[%s1005 + $0x1c] sm:$0xf]
      %v2660 = vld [vmem:[%s1005 + $0x24] sm:$0xf]
      %v2661 = vld [vmem:[%s1005 + $0x28] sm:$0xf]
      %v2662 = vld [vmem:[%s1005 + $0x30] sm:$0xf]
      %v2663 = vld [vmem:[%s1005 + $0x34] sm:$0xf]
      %v2664 = vld [vmem:[%s1005 + $0x3c] sm:$0xf]
      %v2665 = vld [vmem:[%s1005 + $0x40] sm:$0xf]
      %v2666 = vld [vmem:[%s1005 + $0x48] sm:$0xf]
      %v2667 = vld [vmem:[%s1005 + $0x4c] sm:$0xf]
      %v2668 = vld [vmem:[%s1005 + $0x54] sm:$0xf]
      %v2669 = vld [vmem:[%s1005 + $0x58] sm:$0xf]
      %v2670 = vld [vmem:[%s1005 + $0x60] sm:$0xf]
      %v2671 = vld [vmem:[%s1005 + $0x64] sm:$0xf]
      %v2672 = vld [vmem:[%s1005 + $0x6c] sm:$0xf]
      %v2673 = vld [vmem:[%s1005 + $0x70] sm:$0xf]
      %v2674 = vld [vmem:[%s1005 + $0x78] sm:$0xf]
      %v2675 = vld [vmem:[%s1005 + $0x7c] sm:$0xf]
      %v2676 = vld [vmem:[%s1005 + $0x84] sm:$0xf]
      %v2677 = vld [vmem:[%s1005 + $0x88] sm:$0xf]
      %v2678 = vld [vmem:[%s1005 + $0x90] sm:$0xf]
      %v2679 = vld [vmem:[%s1005 + $0x94] sm:$0xf]
      %v2680 = vld [vmem:[%s1005 + $0x9c] sm:$0xf]
      %v2681 = vld [vmem:[%s1005 + $0xa0] sm:$0xf]
      %v2682 = vld [vmem:[%s1005 + $0xa8] sm:$0xf]
      %v2683 = vld [vmem:[%s1005 + $0xac] sm:$0xf]
      %v2684 = vld [vmem:[%s1005 + $0xb4] sm:$0xf]
      %v2685 = vld [vmem:[%s1005 + $0xb8] sm:$0xf]
      %s2686 = scalar_lea.vmem %s1, 192
      %v2687 = vld [vmem:[%s2686] sm:$0xf]
      %v2688 = vld [vmem:[%s2686 + $0x4] sm:$0xf]
      %v2689 = vld [vmem:[%s2686 + $0x8] sm:$0xf]
      %v2690 = vld [vmem:[%s2686 + $0xc] sm:$0xf]
      %v2691 = vld [vmem:[%s2686 + $0x10] sm:$0xf]
      %v2692 = vld [vmem:[%s2686 + $0x14] sm:$0xf]
      %v2693 = vld [vmem:[%s2686 + $0x18] sm:$0xf]
      %v2694 = vld [vmem:[%s2686 + $0x1c] sm:$0xf]
      %v2695 = vld [vmem:[%s2686 + $0x20] sm:$0xf]
      %v2696 = vld [vmem:[%s2686 + $0x24] sm:$0xf]
      %v2697 = vld [vmem:[%s2686 + $0x28] sm:$0xf]
      %v2698 = vld [vmem:[%s2686 + $0x2c] sm:$0xf]
      %v2699 = vld [vmem:[%s2686 + $0x30] sm:$0xf]
      %v2700 = vld [vmem:[%s2686 + $0x34] sm:$0xf]
      %v2701 = vld [vmem:[%s2686 + $0x38] sm:$0xf]
      %v2702 = vld [vmem:[%s2686 + $0x3c] sm:$0xf]
      %v2735 = vunpack.c.l.b16 %v2654
      %v2736 = vunpack.c.l.b16 %v2655
      %v2737 = vunpack.c.l.b16 %v2656
      %v2738 = vunpack.c.l.b16 %v2657
      %v2739 = vunpack.c.l.b16 %v2658
      %v2740 = vunpack.c.l.b16 %v2659
      %v2741 = vunpack.c.l.b16 %v2660
      %v2742 = vunpack.c.l.b16 %v2661
      %v2743 = vunpack.c.l.b16 %v2662
      %v2744 = vunpack.c.l.b16 %v2663
      %v2745 = vunpack.c.l.b16 %v2664
      %v2746 = vunpack.c.l.b16 %v2665
      %v2747 = vunpack.c.l.b16 %v2666
      %v2748 = vunpack.c.l.b16 %v2667
      %v2749 = vunpack.c.l.b16 %v2668
      %v2750 = vunpack.c.l.b16 %v2669
      %v2751 = vunpack.c.l.b16 %v2670
      %v2752 = vunpack.c.l.b16 %v2671
      %v2753 = vunpack.c.l.b16 %v2672
      %v2754 = vunpack.c.l.b16 %v2673
      %v2755 = vunpack.c.l.b16 %v2674
      %v2756 = vunpack.c.l.b16 %v2675
      %v2757 = vunpack.c.l.b16 %v2676
      %v2758 = vunpack.c.l.b16 %v2677
      %v2759 = vunpack.c.l.b16 %v2678
      %v2760 = vunpack.c.l.b16 %v2679
      %v2761 = vunpack.c.l.b16 %v2680
      %v2762 = vunpack.c.l.b16 %v2681
      %v2763 = vunpack.c.l.b16 %v2682
      %v2764 = vunpack.c.l.b16 %v2683
      %v2765 = vunpack.c.l.b16 %v2684
      %v2766 = vunpack.c.l.b16 %v2685
      %v2767 = vpack.c.b16 %v2736, %v2735
      %v2768 = vpack.c.b16 %v2738, %v2737
      %v2769 = vpack.c.b16 %v2740, %v2739
      %v2770 = vpack.c.b16 %v2742, %v2741
      %v2771 = vpack.c.b16 %v2744, %v2743
      %v2772 = vpack.c.b16 %v2746, %v2745
      %v2773 = vpack.c.b16 %v2748, %v2747
      %v2774 = vpack.c.b16 %v2750, %v2749
      %v2775 = vpack.c.b16 %v2752, %v2751
      %v2776 = vpack.c.b16 %v2754, %v2753
      %v2777 = vpack.c.b16 %v2756, %v2755
      %v2778 = vpack.c.b16 %v2758, %v2757
      %v2779 = vpack.c.b16 %v2760, %v2759
      %v2780 = vpack.c.b16 %v2762, %v2761
      %v2781 = vpack.c.b16 %v2764, %v2763
      %v2782 = vpack.c.b16 %v2766, %v2765
      %v2815 = vunpack.c.l.b16 %v2687
      %v2816 = vunpack.c.l.b16 %v2688
      %v2817 = vunpack.c.l.b16 %v2689
      %v2818 = vunpack.c.l.b16 %v2690
      %v2819 = vunpack.c.l.b16 %v2691
      %v2820 = vunpack.c.l.b16 %v2692
      %v2821 = vunpack.c.l.b16 %v2693
      %v2822 = vunpack.c.l.b16 %v2694
      %v2823 = vunpack.c.l.b16 %v2695
      %v2824 = vunpack.c.l.b16 %v2696
      %v2825 = vunpack.c.l.b16 %v2697
      %v2826 = vunpack.c.l.b16 %v2698
      %v2827 = vunpack.c.l.b16 %v2699
      %v2828 = vunpack.c.l.b16 %v2700
      %v2829 = vunpack.c.l.b16 %v2701
      %v2830 = vunpack.c.l.b16 %v2702
      %v2831 = vpack.c.b16 %v2816, %v2815
      %v2832 = vpack.c.b16 %v2818, %v2817
      %v2833 = vpack.c.b16 %v2820, %v2819
      %v2834 = vpack.c.b16 %v2822, %v2821
      %v2835 = vpack.c.b16 %v2824, %v2823
      %v2836 = vpack.c.b16 %v2826, %v2825
      %v2837 = vpack.c.b16 %v2828, %v2827
      %v2838 = vpack.c.b16 %v2830, %v2829
      %2847 = vmatprep.subr.bf16.mxu0 0
      %2848 = vmatpush1.bf16.msra.mxu0 %v2838
      %2849 = vmatprep.subr.bf16.mxu0 0
      %2850 = vmatpush1.bf16.msra.mxu0 %v2837
      %2851 = vmatprep.subr.bf16.mxu0 0
      %2852 = vmatpush1.bf16.msra.mxu0 %v2836
      %2853 = vmatprep.subr.bf16.mxu0 0
      %2854 = vmatpush1.bf16.msra.mxu0 %v2835
      %2855 = vmatprep.subr.bf16.mxu0 0
      %2856 = vmatpush1.bf16.msra.mxu0 %v2834
      %2857 = vmatprep.subr.bf16.mxu0 0
      %2858 = vmatpush1.bf16.msra.mxu0 %v2833
      %2859 = vmatprep.subr.bf16.mxu0 0
      %2860 = vmatpush1.bf16.msra.mxu0 %v2832
      %2861 = vmatprep.subr.bf16.mxu0 0
      %2862 = vmatpush1.bf16.msra.mxu0 %v2831
      %2863 = vmatprep.subr.bf16.mxu0 0
      %2864 = vmatpush2.bf16.msra.mxu0 0
      %2865 = vmatprep.subr.bf16.mxu0 0
      %2866 = vmatpush2.bf16.msra.mxu0 0
      %2867 = vmatprep.subr.bf16.mxu0 0
      %2868 = vmatpush2.bf16.msra.mxu0 0
      %2869 = vmatprep.subr.bf16.mxu0 0
      %2870 = vmatpush2.bf16.msra.mxu0 0
      %2871 = vmatprep.subr.bf16.mxu0 0
      %2872 = vmatpush2.bf16.msra.mxu0 0
      %2873 = vmatprep.subr.bf16.mxu0 0
      %2874 = vmatpush2.bf16.msra.mxu0 0
      %2875 = vmatprep.subr.bf16.mxu0 0
      %2876 = vmatpush2.bf16.msra.mxu0 0
      %2877 = vmatprep.subr.bf16.mxu0 0
      %2878 = vmatpush2.bf16.msra.mxu0 0
      %2879 = vmatprep.mubr.bf16.mxu0 0
      %2880 = vmatmul.mubr.bf16.gmra.mxu0 %v2767
      %v2881 = vpop.f32.mrf.mxu0
      %v2882 = vadd.f32 0.0, %v2881
      %v2883 = vpop.f32.mrf.mxu0
      %v2884 = vpop.f32.mrf.mxu0
      %v2885 = vadd.f32 0.0, %v2884
      %v2886 = vpop.f32.mrf.mxu0
      %2887 = vmatprep.mubr.bf16.mxu0 0
      %2888 = vmatmul.mubr.bf16.gmra.mxu0 %v2768
      %v2889 = vpop.f32.mrf.mxu0
      %v2890 = vadd.f32 0.0, %v2889
      %v2891 = vpop.f32.mrf.mxu0
      %v2892 = vpop.f32.mrf.mxu0
      %v2893 = vadd.f32 0.0, %v2892
      %v2894 = vpop.f32.mrf.mxu0
      %2895 = vmatprep.mubr.bf16.mxu0 0
      %2896 = vmatmul.mubr.bf16.gmra.mxu0 %v2769
      %v2897 = vpop.f32.mrf.mxu0
      %v2898 = vadd.f32 0.0, %v2897
      %v2899 = vpop.f32.mrf.mxu0
      %v2900 = vpop.f32.mrf.mxu0
      %v2901 = vadd.f32 0.0, %v2900
      %v2902 = vpop.f32.mrf.mxu0
      %2903 = vmatprep.mubr.bf16.mxu0 0
      %2904 = vmatmul.mubr.bf16.gmra.mxu0 %v2770
      %v2905 = vpop.f32.mrf.mxu0
      %v2906 = vadd.f32 0.0, %v2905
      %v2907 = vpop.f32.mrf.mxu0
      %v2908 = vpop.f32.mrf.mxu0
      %v2909 = vadd.f32 0.0, %v2908
      %v2910 = vpop.f32.mrf.mxu0
      %2911 = vmatprep.mubr.bf16.mxu0 0
      %2912 = vmatmul.mubr.bf16.gmra.mxu0 %v2771
      %v2913 = vpop.f32.mrf.mxu0
      %v2914 = vadd.f32 0.0, %v2913
      %v2915 = vpop.f32.mrf.mxu0
      %v2916 = vpop.f32.mrf.mxu0
      %v2917 = vadd.f32 0.0, %v2916
      %v2918 = vpop.f32.mrf.mxu0
      %2919 = vmatprep.mubr.bf16.mxu0 0
      %2920 = vmatmul.mubr.bf16.gmra.mxu0 %v2772
      %v2921 = vpop.f32.mrf.mxu0
      %v2922 = vadd.f32 0.0, %v2921
      %v2923 = vpop.f32.mrf.mxu0
      %v2924 = vpop.f32.mrf.mxu0
      %v2925 = vadd.f32 0.0, %v2924
      %v2926 = vpop.f32.mrf.mxu0
      %2927 = vmatprep.mubr.bf16.mxu0 0
      %2928 = vmatmul.mubr.bf16.gmra.mxu0 %v2773
      %v2929 = vpop.f32.mrf.mxu0
      %v2930 = vadd.f32 0.0, %v2929
      %v2931 = vpop.f32.mrf.mxu0
      %v2932 = vpop.f32.mrf.mxu0
      %v2933 = vadd.f32 0.0, %v2932
      %v2934 = vpop.f32.mrf.mxu0
      %2935 = vmatprep.mubr.bf16.mxu0 0
      %2936 = vmatmul.mubr.bf16.gmra.mxu0 %v2774
      %v2937 = vpop.f32.mrf.mxu0
      %v2938 = vadd.f32 0.0, %v2937
      %v2939 = vpop.f32.mrf.mxu0
      %v2940 = vpop.f32.mrf.mxu0
      %v2941 = vadd.f32 0.0, %v2940
      %v2942 = vpop.f32.mrf.mxu0
      %2943 = vmatprep.mubr.bf16.mxu0 0
      %2944 = vmatmul.mubr.bf16.gmra.mxu0 %v2775
      %v2945 = vpop.f32.mrf.mxu0
      %v2946 = vadd.f32 0.0, %v2945
      %v2947 = vpop.f32.mrf.mxu0
      %v2948 = vpop.f32.mrf.mxu0
      %v2949 = vadd.f32 0.0, %v2948
      %v2950 = vpop.f32.mrf.mxu0
      %2951 = vmatprep.mubr.bf16.mxu0 0
      %2952 = vmatmul.mubr.bf16.gmra.mxu0 %v2776
      %v2953 = vpop.f32.mrf.mxu0
      %v2954 = vadd.f32 0.0, %v2953
      %v2955 = vpop.f32.mrf.mxu0
      %v2956 = vpop.f32.mrf.mxu0
      %v2957 = vadd.f32 0.0, %v2956
      %v2958 = vpop.f32.mrf.mxu0
      %2959 = vmatprep.mubr.bf16.mxu0 0
      %2960 = vmatmul.mubr.bf16.gmra.mxu0 %v2777
      %v2961 = vpop.f32.mrf.mxu0
      %v2962 = vadd.f32 0.0, %v2961
      %v2963 = vpop.f32.mrf.mxu0
      %v2964 = vpop.f32.mrf.mxu0
      %v2965 = vadd.f32 0.0, %v2964
      %v2966 = vpop.f32.mrf.mxu0
      %2967 = vmatprep.mubr.bf16.mxu0 0
      %2968 = vmatmul.mubr.bf16.gmra.mxu0 %v2778
      %v2969 = vpop.f32.mrf.mxu0
      %v2970 = vadd.f32 0.0, %v2969
      %v2971 = vpop.f32.mrf.mxu0
      %v2972 = vpop.f32.mrf.mxu0
      %v2973 = vadd.f32 0.0, %v2972
      %v2974 = vpop.f32.mrf.mxu0
      %2975 = vmatprep.mubr.bf16.mxu0 0
      %2976 = vmatmul.mubr.bf16.gmra.mxu0 %v2779
      %v2977 = vpop.f32.mrf.mxu0
      %v2978 = vadd.f32 0.0, %v2977
      %v2979 = vpop.f32.mrf.mxu0
      %v2980 = vpop.f32.mrf.mxu0
      %v2981 = vadd.f32 0.0, %v2980
      %v2982 = vpop.f32.mrf.mxu0
      %2983 = vmatprep.mubr.bf16.mxu0 0
      %2984 = vmatmul.mubr.bf16.gmra.mxu0 %v2780
      %v2985 = vpop.f32.mrf.mxu0
      %v2986 = vadd.f32 0.0, %v2985
      %v2987 = vpop.f32.mrf.mxu0
      %v2988 = vpop.f32.mrf.mxu0
      %v2989 = vadd.f32 0.0, %v2988
      %v2990 = vpop.f32.mrf.mxu0
      %2991 = vmatprep.mubr.bf16.mxu0 0
      %2992 = vmatmul.mubr.bf16.gmra.mxu0 %v2781
      %v2993 = vpop.f32.mrf.mxu0
      %v2994 = vadd.f32 0.0, %v2993
      %v2995 = vpop.f32.mrf.mxu0
      %v2996 = vpop.f32.mrf.mxu0
      %v2997 = vadd.f32 0.0, %v2996
      %v2998 = vpop.f32.mrf.mxu0
      %2999 = vmatprep.mubr.bf16.mxu0 0
      %3000 = vmatmul.mubr.bf16.gmra.mxu0 %v2782
      %v3001 = vpop.f32.mrf.mxu0
      %v3002 = vadd.f32 0.0, %v3001
      %v3003 = vpop.f32.mrf.mxu0
      %v3004 = vpop.f32.mrf.mxu0
      %v3005 = vadd.f32 0.0, %v3004
      %v3006 = vpop.f32.mrf.mxu0
      %3007 = vdwg.mxu0
      %v3008 = vadd.f32 %v2622, %v2882
      %v3009 = vadd.f32 %v2623, %v2885
      %v3010 = vadd.f32 %v2624, %v2890
      %v3011 = vadd.f32 %v2625, %v2893
      %v3012 = vadd.f32 %v2626, %v2898
      %v3013 = vadd.f32 %v2627, %v2901
      %v3014 = vadd.f32 %v2628, %v2906
      %v3015 = vadd.f32 %v2629, %v2909
      %v3016 = vadd.f32 %v2630, %v2914
      %v3017 = vadd.f32 %v2631, %v2917
      %v3018 = vadd.f32 %v2632, %v2922
      %v3019 = vadd.f32 %v2633, %v2925
      %v3020 = vadd.f32 %v2634, %v2930
      %v3021 = vadd.f32 %v2635, %v2933
      %v3022 = vadd.f32 %v2636, %v2938
      %v3023 = vadd.f32 %v2637, %v2941
      %v3024 = vadd.f32 %v2638, %v2946
      %v3025 = vadd.f32 %v2639, %v2949
      %v3026 = vadd.f32 %v2640, %v2954
      %v3027 = vadd.f32 %v2641, %v2957
      %v3028 = vadd.f32 %v2642, %v2962
      %v3029 = vadd.f32 %v2643, %v2965
      %v3030 = vadd.f32 %v2644, %v2970
      %v3031 = vadd.f32 %v2645, %v2973
      %v3032 = vadd.f32 %v2646, %v2978
      %v3033 = vadd.f32 %v2647, %v2981
      %v3034 = vadd.f32 %v2648, %v2986
      %v3035 = vadd.f32 %v2649, %v2989
      %v3036 = vadd.f32 %v2650, %v2994
      %v3037 = vadd.f32 %v2651, %v2997
      %v3038 = vadd.f32 %v2652, %v3002
      %v3039 = vadd.f32 %v2653, %v3005
      %v3040 = vld [vmem:[%s1005] sm:$0xf]
      %v3041 = vld [vmem:[%s1005 + $0x4] sm:$0xf]
      %v3042 = vld [vmem:[%s1005 + $0x8] sm:$0x1]
      %v3043 = vld [vmem:[%s1005 + $0xc] sm:$0xf]
      %v3044 = vld [vmem:[%s1005 + $0x10] sm:$0xf]
      %v3045 = vld [vmem:[%s1005 + $0x14] sm:$0x1]
      %v3046 = vld [vmem:[%s1005 + $0x18] sm:$0xf]
      %v3047 = vld [vmem:[%s1005 + $0x1c] sm:$0xf]
      %v3048 = vld [vmem:[%s1005 + $0x20] sm:$0x1]
      %v3049 = vld [vmem:[%s1005 + $0x24] sm:$0xf]
      %v3050 = vld [vmem:[%s1005 + $0x28] sm:$0xf]
      %v3051 = vld [vmem:[%s1005 + $0x2c] sm:$0x1]
      %v3052 = vld [vmem:[%s1005 + $0x30] sm:$0xf]
      %v3053 = vld [vmem:[%s1005 + $0x34] sm:$0xf]
      %v3054 = vld [vmem:[%s1005 + $0x38] sm:$0x1]
      %v3055 = vld [vmem:[%s1005 + $0x3c] sm:$0xf]
      %v3056 = vld [vmem:[%s1005 + $0x40] sm:$0xf]
      %v3057 = vld [vmem:[%s1005 + $0x44] sm:$0x1]
      %v3058 = vld [vmem:[%s1005 + $0x48] sm:$0xf]
      %v3059 = vld [vmem:[%s1005 + $0x4c] sm:$0xf]
      %v3060 = vld [vmem:[%s1005 + $0x50] sm:$0x1]
      %v3061 = vld [vmem:[%s1005 + $0x54] sm:$0xf]
      %v3062 = vld [vmem:[%s1005 + $0x58] sm:$0xf]
      %v3063 = vld [vmem:[%s1005 + $0x5c] sm:$0x1]
      %v3064 = vld [vmem:[%s1005 + $0x60] sm:$0xf]
      %v3065 = vld [vmem:[%s1005 + $0x64] sm:$0xf]
      %v3066 = vld [vmem:[%s1005 + $0x68] sm:$0x1]
      %v3067 = vld [vmem:[%s1005 + $0x6c] sm:$0xf]
      %v3068 = vld [vmem:[%s1005 + $0x70] sm:$0xf]
      %v3069 = vld [vmem:[%s1005 + $0x74] sm:$0x1]
      %v3070 = vld [vmem:[%s1005 + $0x78] sm:$0xf]
      %v3071 = vld [vmem:[%s1005 + $0x7c] sm:$0xf]
      %v3072 = vld [vmem:[%s1005 + $0x80] sm:$0x1]
      %v3073 = vld [vmem:[%s1005 + $0x84] sm:$0xf]
      %v3074 = vld [vmem:[%s1005 + $0x88] sm:$0xf]
      %v3075 = vld [vmem:[%s1005 + $0x8c] sm:$0x1]
      %v3076 = vld [vmem:[%s1005 + $0x90] sm:$0xf]
      %v3077 = vld [vmem:[%s1005 + $0x94] sm:$0xf]
      %v3078 = vld [vmem:[%s1005 + $0x98] sm:$0x1]
      %v3079 = vld [vmem:[%s1005 + $0x9c] sm:$0xf]
      %v3080 = vld [vmem:[%s1005 + $0xa0] sm:$0xf]
      %v3081 = vld [vmem:[%s1005 + $0xa4] sm:$0x1]
      %v3082 = vld [vmem:[%s1005 + $0xa8] sm:$0xf]
      %v3083 = vld [vmem:[%s1005 + $0xac] sm:$0xf]
      %v3084 = vld [vmem:[%s1005 + $0xb0] sm:$0x1]
      %v3085 = vld [vmem:[%s1005 + $0xb4] sm:$0xf]
      %v3086 = vld [vmem:[%s1005 + $0xb8] sm:$0xf]
      %v3087 = vld [vmem:[%s1005 + $0xbc] sm:$0x1]
      %v3089 = vshrl.u32 %v3040, 16
      %v3091 = vrot.slane %v3089, 4
      %v3092 = vshll.u32 %v3040, 16
      %v3094 = vrot.slane %v3092, 5
      %v3095 = vor.u32 %v3091, %v3094
      %v3096 = vrot.slane %v3095, 4
      %v3098 = vshll.u32 %v3041, 16
      %v3100 = vrot.slane %v3098, 5
      %v3101 = vsel %vm1189, %v3096, %v3100
      %v3102 = vshrl.u32 %v3041, 16
      %v3104 = vrot.slane %v3102, 4
      %v3105 = vor.u32 %v3104, %v3100
      %v3106 = vrot.slane %v3105, 4
      %v3108 = vshll.u32 %v3042, 16
      %v3110 = vrot.slane %v3108, 5
      %v3111 = vsel %vm1189, %v3106, %v3110
      %v3113 = vshrl.u32 %v3043, 16
      %v3115 = vrot.slane %v3113, 4
      %v3116 = vshll.u32 %v3043, 16
      %v3118 = vrot.slane %v3116, 5
      %v3119 = vor.u32 %v3115, %v3118
      %v3120 = vrot.slane %v3119, 4
      %v3122 = vshll.u32 %v3044, 16
      %v3124 = vrot.slane %v3122, 5
      %v3125 = vsel %vm1189, %v3120, %v3124
      %v3126 = vshrl.u32 %v3044, 16
      %v3128 = vrot.slane %v3126, 4
      %v3129 = vor.u32 %v3128, %v3124
      %v3130 = vrot.slane %v3129, 4
      %v3132 = vshll.u32 %v3045, 16
      %v3134 = vrot.slane %v3132, 5
      %v3135 = vsel %vm1189, %v3130, %v3134
      %v3137 = vshrl.u32 %v3046, 16
      %v3139 = vrot.slane %v3137, 4
      %v3140 = vshll.u32 %v3046, 16
      %v3142 = vrot.slane %v3140, 5
      %v3143 = vor.u32 %v3139, %v3142
      %v3144 = vrot.slane %v3143, 4
      %v3146 = vshll.u32 %v3047, 16
      %v3148 = vrot.slane %v3146, 5
      %v3149 = vsel %vm1189, %v3144, %v3148
      %v3150 = vshrl.u32 %v3047, 16
      %v3152 = vrot.slane %v3150, 4
      %v3153 = vor.u32 %v3152, %v3148
      %v3154 = vrot.slane %v3153, 4
      %v3156 = vshll.u32 %v3048, 16
      %v3158 = vrot.slane %v3156, 5
      %v3159 = vsel %vm1189, %v3154, %v3158
      %v3161 = vshrl.u32 %v3049, 16
      %v3163 = vrot.slane %v3161, 4
      %v3164 = vshll.u32 %v3049, 16
      %v3166 = vrot.slane %v3164, 5
      %v3167 = vor.u32 %v3163, %v3166
      %v3168 = vrot.slane %v3167, 4
      %v3170 = vshll.u32 %v3050, 16
      %v3172 = vrot.slane %v3170, 5
      %v3173 = vsel %vm1189, %v3168, %v3172
      %v3174 = vshrl.u32 %v3050, 16
      %v3176 = vrot.slane %v3174, 4
      %v3177 = vor.u32 %v3176, %v3172
      %v3178 = vrot.slane %v3177, 4
      %v3180 = vshll.u32 %v3051, 16
      %v3182 = vrot.slane %v3180, 5
      %v3183 = vsel %vm1189, %v3178, %v3182
      %v3185 = vshrl.u32 %v3052, 16
      %v3187 = vrot.slane %v3185, 4
      %v3188 = vshll.u32 %v3052, 16
      %v3190 = vrot.slane %v3188, 5
      %v3191 = vor.u32 %v3187, %v3190
      %v3192 = vrot.slane %v3191, 4
      %v3194 = vshll.u32 %v3053, 16
      %v3196 = vrot.slane %v3194, 5
      %v3197 = vsel %vm1189, %v3192, %v3196
      %v3198 = vshrl.u32 %v3053, 16
      %v3200 = vrot.slane %v3198, 4
      %v3201 = vor.u32 %v3200, %v3196
      %v3202 = vrot.slane %v3201, 4
      %v3204 = vshll.u32 %v3054, 16
      %v3206 = vrot.slane %v3204, 5
      %v3207 = vsel %vm1189, %v3202, %v3206
      %v3209 = vshrl.u32 %v3055, 16
      %v3211 = vrot.slane %v3209, 4
      %v3212 = vshll.u32 %v3055, 16
      %v3214 = vrot.slane %v3212, 5
      %v3215 = vor.u32 %v3211, %v3214
      %v3216 = vrot.slane %v3215, 4
      %v3218 = vshll.u32 %v3056, 16
      %v3220 = vrot.slane %v3218, 5
      %v3221 = vsel %vm1189, %v3216, %v3220
      %v3222 = vshrl.u32 %v3056, 16
      %v3224 = vrot.slane %v3222, 4
      %v3225 = vor.u32 %v3224, %v3220
      %v3226 = vrot.slane %v3225, 4
      %v3228 = vshll.u32 %v3057, 16
      %v3230 = vrot.slane %v3228, 5
      %v3231 = vsel %vm1189, %v3226, %v3230
      %v3233 = vshrl.u32 %v3058, 16
      %v3235 = vrot.slane %v3233, 4
      %v3236 = vshll.u32 %v3058, 16
      %v3238 = vrot.slane %v3236, 5
      %v3239 = vor.u32 %v3235, %v3238
      %v3240 = vrot.slane %v3239, 4
      %v3242 = vshll.u32 %v3059, 16
      %v3244 = vrot.slane %v3242, 5
      %v3245 = vsel %vm1189, %v3240, %v3244
      %v3246 = vshrl.u32 %v3059, 16
      %v3248 = vrot.slane %v3246, 4
      %v3249 = vor.u32 %v3248, %v3244
      %v3250 = vrot.slane %v3249, 4
      %v3252 = vshll.u32 %v3060, 16
      %v3254 = vrot.slane %v3252, 5
      %v3255 = vsel %vm1189, %v3250, %v3254
      %v3257 = vshrl.u32 %v3061, 16
      %v3259 = vrot.slane %v3257, 4
      %v3260 = vshll.u32 %v3061, 16
      %v3262 = vrot.slane %v3260, 5
      %v3263 = vor.u32 %v3259, %v3262
      %v3264 = vrot.slane %v3263, 4
      %v3266 = vshll.u32 %v3062, 16
      %v3268 = vrot.slane %v3266, 5
      %v3269 = vsel %vm1189, %v3264, %v3268
      %v3270 = vshrl.u32 %v3062, 16
      %v3272 = vrot.slane %v3270, 4
      %v3273 = vor.u32 %v3272, %v3268
      %v3274 = vrot.slane %v3273, 4
      %v3276 = vshll.u32 %v3063, 16
      %v3278 = vrot.slane %v3276, 5
      %v3279 = vsel %vm1189, %v3274, %v3278
      %v3281 = vshrl.u32 %v3064, 16
      %v3283 = vrot.slane %v3281, 4
      %v3284 = vshll.u32 %v3064, 16
      %v3286 = vrot.slane %v3284, 5
      %v3287 = vor.u32 %v3283, %v3286
      %v3288 = vrot.slane %v3287, 4
      %v3290 = vshll.u32 %v3065, 16
      %v3292 = vrot.slane %v3290, 5
      %v3293 = vsel %vm1189, %v3288, %v3292
      %v3294 = vshrl.u32 %v3065, 16
      %v3296 = vrot.slane %v3294, 4
      %v3297 = vor.u32 %v3296, %v3292
      %v3298 = vrot.slane %v3297, 4
      %v3300 = vshll.u32 %v3066, 16
      %v3302 = vrot.slane %v3300, 5
      %v3303 = vsel %vm1189, %v3298, %v3302
      %v3305 = vshrl.u32 %v3067, 16
      %v3307 = vrot.slane %v3305, 4
      %v3308 = vshll.u32 %v3067, 16
      %v3310 = vrot.slane %v3308, 5
      %v3311 = vor.u32 %v3307, %v3310
      %v3312 = vrot.slane %v3311, 4
      %v3314 = vshll.u32 %v3068, 16
      %v3316 = vrot.slane %v3314, 5
      %v3317 = vsel %vm1189, %v3312, %v3316
      %v3318 = vshrl.u32 %v3068, 16
      %v3320 = vrot.slane %v3318, 4
      %v3321 = vor.u32 %v3320, %v3316
      %v3322 = vrot.slane %v3321, 4
      %v3324 = vshll.u32 %v3069, 16
      %v3326 = vrot.slane %v3324, 5
      %v3327 = vsel %vm1189, %v3322, %v3326
      %v3329 = vshrl.u32 %v3070, 16
      %v3331 = vrot.slane %v3329, 4
      %v3332 = vshll.u32 %v3070, 16
      %v3334 = vrot.slane %v3332, 5
      %v3335 = vor.u32 %v3331, %v3334
      %v3336 = vrot.slane %v3335, 4
      %v3338 = vshll.u32 %v3071, 16
      %v3340 = vrot.slane %v3338, 5
      %v3341 = vsel %vm1189, %v3336, %v3340
      %v3342 = vshrl.u32 %v3071, 16
      %v3344 = vrot.slane %v3342, 4
      %v3345 = vor.u32 %v3344, %v3340
      %v3346 = vrot.slane %v3345, 4
      %v3348 = vshll.u32 %v3072, 16
      %v3350 = vrot.slane %v3348, 5
      %v3351 = vsel %vm1189, %v3346, %v3350
      %v3353 = vshrl.u32 %v3073, 16
      %v3355 = vrot.slane %v3353, 4
      %v3356 = vshll.u32 %v3073, 16
      %v3358 = vrot.slane %v3356, 5
      %v3359 = vor.u32 %v3355, %v3358
      %v3360 = vrot.slane %v3359, 4
      %v3362 = vshll.u32 %v3074, 16
      %v3364 = vrot.slane %v3362, 5
      %v3365 = vsel %vm1189, %v3360, %v3364
      %v3366 = vshrl.u32 %v3074, 16
      %v3368 = vrot.slane %v3366, 4
      %v3369 = vor.u32 %v3368, %v3364
      %v3370 = vrot.slane %v3369, 4
      %v3372 = vshll.u32 %v3075, 16
      %v3374 = vrot.slane %v3372, 5
      %v3375 = vsel %vm1189, %v3370, %v3374
      %v3377 = vshrl.u32 %v3076, 16
      %v3379 = vrot.slane %v3377, 4
      %v3380 = vshll.u32 %v3076, 16
      %v3382 = vrot.slane %v3380, 5
      %v3383 = vor.u32 %v3379, %v3382
      %v3384 = vrot.slane %v3383, 4
      %v3386 = vshll.u32 %v3077, 16
      %v3388 = vrot.slane %v3386, 5
      %v3389 = vsel %vm1189, %v3384, %v3388
      %v3390 = vshrl.u32 %v3077, 16
      %v3392 = vrot.slane %v3390, 4
      %v3393 = vor.u32 %v3392, %v3388
      %v3394 = vrot.slane %v3393, 4
      %v3396 = vshll.u32 %v3078, 16
      %v3398 = vrot.slane %v3396, 5
      %v3399 = vsel %vm1189, %v3394, %v3398
      %v3401 = vshrl.u32 %v3079, 16
      %v3403 = vrot.slane %v3401, 4
      %v3404 = vshll.u32 %v3079, 16
      %v3406 = vrot.slane %v3404, 5
      %v3407 = vor.u32 %v3403, %v3406
      %v3408 = vrot.slane %v3407, 4
      %v3410 = vshll.u32 %v3080, 16
      %v3412 = vrot.slane %v3410, 5
      %v3413 = vsel %vm1189, %v3408, %v3412
      %v3414 = vshrl.u32 %v3080, 16
      %v3416 = vrot.slane %v3414, 4
      %v3417 = vor.u32 %v3416, %v3412
      %v3418 = vrot.slane %v3417, 4
      %v3420 = vshll.u32 %v3081, 16
      %v3422 = vrot.slane %v3420, 5
      %v3423 = vsel %vm1189, %v3418, %v3422
      %v3425 = vshrl.u32 %v3082, 16
      %v3427 = vrot.slane %v3425, 4
      %v3428 = vshll.u32 %v3082, 16
      %v3430 = vrot.slane %v3428, 5
      %v3431 = vor.u32 %v3427, %v3430
      %v3432 = vrot.slane %v3431, 4
      %v3434 = vshll.u32 %v3083, 16
      %v3436 = vrot.slane %v3434, 5
      %v3437 = vsel %vm1189, %v3432, %v3436
      %v3438 = vshrl.u32 %v3083, 16
      %v3440 = vrot.slane %v3438, 4
      %v3441 = vor.u32 %v3440, %v3436
      %v3442 = vrot.slane %v3441, 4
      %v3444 = vshll.u32 %v3084, 16
      %v3446 = vrot.slane %v3444, 5
      %v3447 = vsel %vm1189, %v3442, %v3446
      %v3449 = vshrl.u32 %v3085, 16
      %v3451 = vrot.slane %v3449, 4
      %v3452 = vshll.u32 %v3085, 16
      %v3454 = vrot.slane %v3452, 5
      %v3455 = vor.u32 %v3451, %v3454
      %v3456 = vrot.slane %v3455, 4
      %v3458 = vshll.u32 %v3086, 16
      %v3460 = vrot.slane %v3458, 5
      %v3461 = vsel %vm1189, %v3456, %v3460
      %v3462 = vshrl.u32 %v3086, 16
      %v3464 = vrot.slane %v3462, 4
      %v3465 = vor.u32 %v3464, %v3460
      %v3466 = vrot.slane %v3465, 4
      %v3468 = vshll.u32 %v3087, 16
      %v3470 = vrot.slane %v3468, 5
      %v3471 = vsel %vm1189, %v3466, %v3470
      %s3472 = scalar_lea.vmem %s1, 256
      %v3473 = vld [vmem:[%s3472] sm:$0xf]
      %v3474 = vld [vmem:[%s3472 + $0x4] sm:$0xf]
      %v3475 = vld [vmem:[%s3472 + $0x8] sm:$0xf]
      %v3476 = vld [vmem:[%s3472 + $0xc] sm:$0xf]
      %v3477 = vld [vmem:[%s3472 + $0x10] sm:$0xf]
      %v3478 = vld [vmem:[%s3472 + $0x14] sm:$0xf]
      %v3479 = vld [vmem:[%s3472 + $0x18] sm:$0xf]
      %v3480 = vld [vmem:[%s3472 + $0x1c] sm:$0xf]
      %v3481 = vld [vmem:[%s3472 + $0x20] sm:$0xf]
      %v3482 = vld [vmem:[%s3472 + $0x24] sm:$0xf]
      %v3483 = vld [vmem:[%s3472 + $0x28] sm:$0xf]
      %v3484 = vld [vmem:[%s3472 + $0x2c] sm:$0xf]
      %v3485 = vld [vmem:[%s3472 + $0x30] sm:$0xf]
      %v3486 = vld [vmem:[%s3472 + $0x34] sm:$0xf]
      %v3487 = vld [vmem:[%s3472 + $0x38] sm:$0xf]
      %v3488 = vld [vmem:[%s3472 + $0x3c] sm:$0xf]
      %v3489 = vunpack.c.l.b16 %v3101
      %v3490 = vunpack.c.l.b16 %v3111
      %v3491 = vunpack.c.l.b16 %v3125
      %v3492 = vunpack.c.l.b16 %v3135
      %v3493 = vunpack.c.l.b16 %v3149
      %v3494 = vunpack.c.l.b16 %v3159
      %v3495 = vunpack.c.l.b16 %v3173
      %v3496 = vunpack.c.l.b16 %v3183
      %v3497 = vunpack.c.l.b16 %v3197
      %v3498 = vunpack.c.l.b16 %v3207
      %v3499 = vunpack.c.l.b16 %v3221
      %v3500 = vunpack.c.l.b16 %v3231
      %v3501 = vunpack.c.l.b16 %v3245
      %v3502 = vunpack.c.l.b16 %v3255
      %v3503 = vunpack.c.l.b16 %v3269
      %v3504 = vunpack.c.l.b16 %v3279
      %v3505 = vunpack.c.l.b16 %v3293
      %v3506 = vunpack.c.l.b16 %v3303
      %v3507 = vunpack.c.l.b16 %v3317
      %v3508 = vunpack.c.l.b16 %v3327
      %v3509 = vunpack.c.l.b16 %v3341
      %v3510 = vunpack.c.l.b16 %v3351
      %v3511 = vunpack.c.l.b16 %v3365
      %v3512 = vunpack.c.l.b16 %v3375
      %v3513 = vunpack.c.l.b16 %v3389
      %v3514 = vunpack.c.l.b16 %v3399
      %v3515 = vunpack.c.l.b16 %v3413
      %v3516 = vunpack.c.l.b16 %v3423
      %v3517 = vunpack.c.l.b16 %v3437
      %v3518 = vunpack.c.l.b16 %v3447
      %v3519 = vunpack.c.l.b16 %v3461
      %v3520 = vunpack.c.l.b16 %v3471
      %v3521 = vpack.c.b16 %v3490, %v3489
      %v3522 = vpack.c.b16 %v3492, %v3491
      %v3523 = vpack.c.b16 %v3494, %v3493
      %v3524 = vpack.c.b16 %v3496, %v3495
      %v3525 = vpack.c.b16 %v3498, %v3497
      %v3526 = vpack.c.b16 %v3500, %v3499
      %v3527 = vpack.c.b16 %v3502, %v3501
      %v3528 = vpack.c.b16 %v3504, %v3503
      %v3529 = vpack.c.b16 %v3506, %v3505
      %v3530 = vpack.c.b16 %v3508, %v3507
      %v3531 = vpack.c.b16 %v3510, %v3509
      %v3532 = vpack.c.b16 %v3512, %v3511
      %v3533 = vpack.c.b16 %v3514, %v3513
      %v3534 = vpack.c.b16 %v3516, %v3515
      %v3535 = vpack.c.b16 %v3518, %v3517
      %v3536 = vpack.c.b16 %v3520, %v3519
      %v3569 = vunpack.c.l.b16 %v3473
      %v3570 = vunpack.c.l.b16 %v3474
      %v3571 = vunpack.c.l.b16 %v3475
      %v3572 = vunpack.c.l.b16 %v3476
      %v3573 = vunpack.c.l.b16 %v3477
      %v3574 = vunpack.c.l.b16 %v3478
      %v3575 = vunpack.c.l.b16 %v3479
      %v3576 = vunpack.c.l.b16 %v3480
      %v3577 = vunpack.c.l.b16 %v3481
      %v3578 = vunpack.c.l.b16 %v3482
      %v3579 = vunpack.c.l.b16 %v3483
      %v3580 = vunpack.c.l.b16 %v3484
      %v3581 = vunpack.c.l.b16 %v3485
      %v3582 = vunpack.c.l.b16 %v3486
      %v3583 = vunpack.c.l.b16 %v3487
      %v3584 = vunpack.c.l.b16 %v3488
      %v3585 = vpack.c.b16 %v3570, %v3569
      %v3586 = vpack.c.b16 %v3572, %v3571
      %v3587 = vpack.c.b16 %v3574, %v3573
      %v3588 = vpack.c.b16 %v3576, %v3575
      %v3589 = vpack.c.b16 %v3578, %v3577
      %v3590 = vpack.c.b16 %v3580, %v3579
      %v3591 = vpack.c.b16 %v3582, %v3581
      %v3592 = vpack.c.b16 %v3584, %v3583
      %3601 = vmatprep.subr.bf16.mxu0 0
      %3602 = vmatpush1.bf16.msra.mxu0 %v3592
      %3603 = vmatprep.subr.bf16.mxu0 0
      %3604 = vmatpush1.bf16.msra.mxu0 %v3591
      %3605 = vmatprep.subr.bf16.mxu0 0
      %3606 = vmatpush1.bf16.msra.mxu0 %v3590
      %3607 = vmatprep.subr.bf16.mxu0 0
      %3608 = vmatpush1.bf16.msra.mxu0 %v3589
      %3609 = vmatprep.subr.bf16.mxu0 0
      %3610 = vmatpush1.bf16.msra.mxu0 %v3588
      %3611 = vmatprep.subr.bf16.mxu0 0
      %3612 = vmatpush1.bf16.msra.mxu0 %v3587
      %3613 = vmatprep.subr.bf16.mxu0 0
      %3614 = vmatpush1.bf16.msra.mxu0 %v3586
      %3615 = vmatprep.subr.bf16.mxu0 0
      %3616 = vmatpush1.bf16.msra.mxu0 %v3585
      %3617 = vmatprep.subr.bf16.mxu0 0
      %3618 = vmatpush2.bf16.msra.mxu0 0
      %3619 = vmatprep.subr.bf16.mxu0 0
      %3620 = vmatpush2.bf16.msra.mxu0 0
      %3621 = vmatprep.subr.bf16.mxu0 0
      %3622 = vmatpush2.bf16.msra.mxu0 0
      %3623 = vmatprep.subr.bf16.mxu0 0
      %3624 = vmatpush2.bf16.msra.mxu0 0
      %3625 = vmatprep.subr.bf16.mxu0 0
      %3626 = vmatpush2.bf16.msra.mxu0 0
      %3627 = vmatprep.subr.bf16.mxu0 0
      %3628 = vmatpush2.bf16.msra.mxu0 0
      %3629 = vmatprep.subr.bf16.mxu0 0
      %3630 = vmatpush2.bf16.msra.mxu0 0
      %3631 = vmatprep.subr.bf16.mxu0 0
      %3632 = vmatpush2.bf16.msra.mxu0 0
      %3633 = vmatprep.mubr.bf16.mxu0 0
      %3634 = vmatmul.mubr.bf16.gmra.mxu0 %v3521
      %v3635 = vpop.f32.mrf.mxu0
      %v3636 = vadd.f32 0.0, %v3635
      %v3637 = vpop.f32.mrf.mxu0
      %v3638 = vpop.f32.mrf.mxu0
      %v3639 = vadd.f32 0.0, %v3638
      %v3640 = vpop.f32.mrf.mxu0
      %3641 = vmatprep.mubr.bf16.mxu0 0
      %3642 = vmatmul.mubr.bf16.gmra.mxu0 %v3522
      %v3643 = vpop.f32.mrf.mxu0
      %v3644 = vadd.f32 0.0, %v3643
      %v3645 = vpop.f32.mrf.mxu0
      %v3646 = vpop.f32.mrf.mxu0
      %v3647 = vadd.f32 0.0, %v3646
      %v3648 = vpop.f32.mrf.mxu0
      %3649 = vmatprep.mubr.bf16.mxu0 0
      %3650 = vmatmul.mubr.bf16.gmra.mxu0 %v3523
      %v3651 = vpop.f32.mrf.mxu0
      %v3652 = vadd.f32 0.0, %v3651
      %v3653 = vpop.f32.mrf.mxu0
      %v3654 = vpop.f32.mrf.mxu0
      %v3655 = vadd.f32 0.0, %v3654
      %v3656 = vpop.f32.mrf.mxu0
      %3657 = vmatprep.mubr.bf16.mxu0 0
      %3658 = vmatmul.mubr.bf16.gmra.mxu0 %v3524
      %v3659 = vpop.f32.mrf.mxu0
      %v3660 = vadd.f32 0.0, %v3659
      %v3661 = vpop.f32.mrf.mxu0
      %v3662 = vpop.f32.mrf.mxu0
      %v3663 = vadd.f32 0.0, %v3662
      %v3664 = vpop.f32.mrf.mxu0
      %3665 = vmatprep.mubr.bf16.mxu0 0
      %3666 = vmatmul.mubr.bf16.gmra.mxu0 %v3525
      %v3667 = vpop.f32.mrf.mxu0
      %v3668 = vadd.f32 0.0, %v3667
      %v3669 = vpop.f32.mrf.mxu0
      %v3670 = vpop.f32.mrf.mxu0
      %v3671 = vadd.f32 0.0, %v3670
      %v3672 = vpop.f32.mrf.mxu0
      %3673 = vmatprep.mubr.bf16.mxu0 0
      %3674 = vmatmul.mubr.bf16.gmra.mxu0 %v3526
      %v3675 = vpop.f32.mrf.mxu0
      %v3676 = vadd.f32 0.0, %v3675
      %v3677 = vpop.f32.mrf.mxu0
      %v3678 = vpop.f32.mrf.mxu0
      %v3679 = vadd.f32 0.0, %v3678
      %v3680 = vpop.f32.mrf.mxu0
      %3681 = vmatprep.mubr.bf16.mxu0 0
      %3682 = vmatmul.mubr.bf16.gmra.mxu0 %v3527
      %v3683 = vpop.f32.mrf.mxu0
      %v3684 = vadd.f32 0.0, %v3683
      %v3685 = vpop.f32.mrf.mxu0
      %v3686 = vpop.f32.mrf.mxu0
      %v3687 = vadd.f32 0.0, %v3686
      %v3688 = vpop.f32.mrf.mxu0
      %3689 = vmatprep.mubr.bf16.mxu0 0
      %3690 = vmatmul.mubr.bf16.gmra.mxu0 %v3528
      %v3691 = vpop.f32.mrf.mxu0
      %v3692 = vadd.f32 0.0, %v3691
      %v3693 = vpop.f32.mrf.mxu0
      %v3694 = vpop.f32.mrf.mxu0
      %v3695 = vadd.f32 0.0, %v3694
      %v3696 = vpop.f32.mrf.mxu0
      %3697 = vmatprep.mubr.bf16.mxu0 0
      %3698 = vmatmul.mubr.bf16.gmra.mxu0 %v3529
      %v3699 = vpop.f32.mrf.mxu0
      %v3700 = vadd.f32 0.0, %v3699
      %v3701 = vpop.f32.mrf.mxu0
      %v3702 = vpop.f32.mrf.mxu0
      %v3703 = vadd.f32 0.0, %v3702
      %v3704 = vpop.f32.mrf.mxu0
      %3705 = vmatprep.mubr.bf16.mxu0 0
      %3706 = vmatmul.mubr.bf16.gmra.mxu0 %v3530
      %v3707 = vpop.f32.mrf.mxu0
      %v3708 = vadd.f32 0.0, %v3707
      %v3709 = vpop.f32.mrf.mxu0
      %v3710 = vpop.f32.mrf.mxu0
      %v3711 = vadd.f32 0.0, %v3710
      %v3712 = vpop.f32.mrf.mxu0
      %3713 = vmatprep.mubr.bf16.mxu0 0
      %3714 = vmatmul.mubr.bf16.gmra.mxu0 %v3531
      %v3715 = vpop.f32.mrf.mxu0
      %v3716 = vadd.f32 0.0, %v3715
      %v3717 = vpop.f32.mrf.mxu0
      %v3718 = vpop.f32.mrf.mxu0
      %v3719 = vadd.f32 0.0, %v3718
      %v3720 = vpop.f32.mrf.mxu0
      %3721 = vmatprep.mubr.bf16.mxu0 0
      %3722 = vmatmul.mubr.bf16.gmra.mxu0 %v3532
      %v3723 = vpop.f32.mrf.mxu0
      %v3724 = vadd.f32 0.0, %v3723
      %v3725 = vpop.f32.mrf.mxu0
      %v3726 = vpop.f32.mrf.mxu0
      %v3727 = vadd.f32 0.0, %v3726
      %v3728 = vpop.f32.mrf.mxu0
      %3729 = vmatprep.mubr.bf16.mxu0 0
      %3730 = vmatmul.mubr.bf16.gmra.mxu0 %v3533
      %v3731 = vpop.f32.mrf.mxu0
      %v3732 = vadd.f32 0.0, %v3731
      %v3733 = vpop.f32.mrf.mxu0
      %v3734 = vpop.f32.mrf.mxu0
      %v3735 = vadd.f32 0.0, %v3734
      %v3736 = vpop.f32.mrf.mxu0
      %3737 = vmatprep.mubr.bf16.mxu0 0
      %3738 = vmatmul.mubr.bf16.gmra.mxu0 %v3534
      %v3739 = vpop.f32.mrf.mxu0
      %v3740 = vadd.f32 0.0, %v3739
      %v3741 = vpop.f32.mrf.mxu0
      %v3742 = vpop.f32.mrf.mxu0
      %v3743 = vadd.f32 0.0, %v3742
      %v3744 = vpop.f32.mrf.mxu0
      %3745 = vmatprep.mubr.bf16.mxu0 0
      %3746 = vmatmul.mubr.bf16.gmra.mxu0 %v3535
      %v3747 = vpop.f32.mrf.mxu0
      %v3748 = vadd.f32 0.0, %v3747
      %v3749 = vpop.f32.mrf.mxu0
      %v3750 = vpop.f32.mrf.mxu0
      %v3751 = vadd.f32 0.0, %v3750
      %v3752 = vpop.f32.mrf.mxu0
      %3753 = vmatprep.mubr.bf16.mxu0 0
      %3754 = vmatmul.mubr.bf16.gmra.mxu0 %v3536
      %v3755 = vpop.f32.mrf.mxu0
      %v3756 = vadd.f32 0.0, %v3755
      %v3757 = vpop.f32.mrf.mxu0
      %v3758 = vpop.f32.mrf.mxu0
      %v3759 = vadd.f32 0.0, %v3758
      %v3760 = vpop.f32.mrf.mxu0
      %3761 = vdwg.mxu0
      %v3762 = vadd.f32 %v3008, %v3636
      %v3763 = vadd.f32 %v3009, %v3639
      %v3764 = vadd.f32 %v3010, %v3644
      %v3765 = vadd.f32 %v3011, %v3647
      %v3766 = vadd.f32 %v3012, %v3652
      %v3767 = vadd.f32 %v3013, %v3655
      %v3768 = vadd.f32 %v3014, %v3660
      %v3769 = vadd.f32 %v3015, %v3663
      %v3770 = vadd.f32 %v3016, %v3668
      %v3771 = vadd.f32 %v3017, %v3671
      %v3772 = vadd.f32 %v3018, %v3676
      %v3773 = vadd.f32 %v3019, %v3679
      %v3774 = vadd.f32 %v3020, %v3684
      %v3775 = vadd.f32 %v3021, %v3687
      %v3776 = vadd.f32 %v3022, %v3692
      %v3777 = vadd.f32 %v3023, %v3695
      %v3778 = vadd.f32 %v3024, %v3700
      %v3779 = vadd.f32 %v3025, %v3703
      %v3780 = vadd.f32 %v3026, %v3708
      %v3781 = vadd.f32 %v3027, %v3711
      %v3782 = vadd.f32 %v3028, %v3716
      %v3783 = vadd.f32 %v3029, %v3719
      %v3784 = vadd.f32 %v3030, %v3724
      %v3785 = vadd.f32 %v3031, %v3727
      %v3786 = vadd.f32 %v3032, %v3732
      %v3787 = vadd.f32 %v3033, %v3735
      %v3788 = vadd.f32 %v3034, %v3740
      %v3789 = vadd.f32 %v3035, %v3743
      %v3790 = vadd.f32 %v3036, %v3748
      %v3791 = vadd.f32 %v3037, %v3751
      %v3792 = vadd.f32 %v3038, %v3756
      %v3793 = vadd.f32 %v3039, %v3759
      %v3794 = vld [vmem:[%s1005] sm:$0xe]
      %v3795 = vld [vmem:[%s1005 + $0xc] sm:$0xe]
      %v3796 = vld [vmem:[%s1005 + $0x18] sm:$0xe]
      %v3797 = vld [vmem:[%s1005 + $0x24] sm:$0xe]
      %v3798 = vld [vmem:[%s1005 + $0x30] sm:$0xe]
      %v3799 = vld [vmem:[%s1005 + $0x3c] sm:$0xe]
      %v3800 = vld [vmem:[%s1005 + $0x48] sm:$0xe]
      %v3801 = vld [vmem:[%s1005 + $0x54] sm:$0xe]
      %v3802 = vld [vmem:[%s1005 + $0x60] sm:$0xe]
      %v3803 = vld [vmem:[%s1005 + $0x6c] sm:$0xe]
      %v3804 = vld [vmem:[%s1005 + $0x78] sm:$0xe]
      %v3805 = vld [vmem:[%s1005 + $0x84] sm:$0xe]
      %v3806 = vld [vmem:[%s1005 + $0x90] sm:$0xe]
      %v3807 = vld [vmem:[%s1005 + $0x9c] sm:$0xe]
      %v3808 = vld [vmem:[%s1005 + $0xa8] sm:$0xe]
      %v3809 = vld [vmem:[%s1005 + $0xb4] sm:$0xe]
      %v3858 = vrot.slane %v3794, 5
      %v3859 = vrot.slane %v3858, 4
      %v3860 = vrot.slane %v3041, 5
      %v3861 = vsel %vm2219, %v3859, %v3860
      %v3862 = vrot.slane %v3860, 4
      %v3863 = vrot.slane %v3042, 5
      %v3864 = vsel %vm2219, %v3862, %v3863
      %v3865 = vrot.slane %v3795, 5
      %v3866 = vrot.slane %v3865, 4
      %v3867 = vrot.slane %v3044, 5
      %v3868 = vsel %vm2219, %v3866, %v3867
      %v3869 = vrot.slane %v3867, 4
      %v3870 = vrot.slane %v3045, 5
      %v3871 = vsel %vm2219, %v3869, %v3870
      %v3872 = vrot.slane %v3796, 5
      %v3873 = vrot.slane %v3872, 4
      %v3874 = vrot.slane %v3047, 5
      %v3875 = vsel %vm2219, %v3873, %v3874
      %v3876 = vrot.slane %v3874, 4
      %v3877 = vrot.slane %v3048, 5
      %v3878 = vsel %vm2219, %v3876, %v3877
      %v3879 = vrot.slane %v3797, 5
      %v3880 = vrot.slane %v3879, 4
      %v3881 = vrot.slane %v3050, 5
      %v3882 = vsel %vm2219, %v3880, %v3881
      %v3883 = vrot.slane %v3881, 4
      %v3884 = vrot.slane %v3051, 5
      %v3885 = vsel %vm2219, %v3883, %v3884
      %v3886 = vrot.slane %v3798, 5
      %v3887 = vrot.slane %v3886, 4
      %v3888 = vrot.slane %v3053, 5
      %v3889 = vsel %vm2219, %v3887, %v3888
      %v3890 = vrot.slane %v3888, 4
      %v3891 = vrot.slane %v3054, 5
      %v3892 = vsel %vm2219, %v3890, %v3891
      %v3893 = vrot.slane %v3799, 5
      %v3894 = vrot.slane %v3893, 4
      %v3895 = vrot.slane %v3056, 5
      %v3896 = vsel %vm2219, %v3894, %v3895
      %v3897 = vrot.slane %v3895, 4
      %v3898 = vrot.slane %v3057, 5
      %v3899 = vsel %vm2219, %v3897, %v3898
      %v3900 = vrot.slane %v3800, 5
      %v3901 = vrot.slane %v3900, 4
      %v3902 = vrot.slane %v3059, 5
      %v3903 = vsel %vm2219, %v3901, %v3902
      %v3904 = vrot.slane %v3902, 4
      %v3905 = vrot.slane %v3060, 5
      %v3906 = vsel %vm2219, %v3904, %v3905
      %v3907 = vrot.slane %v3801, 5
      %v3908 = vrot.slane %v3907, 4
      %v3909 = vrot.slane %v3062, 5
      %v3910 = vsel %vm2219, %v3908, %v3909
      %v3911 = vrot.slane %v3909, 4
      %v3912 = vrot.slane %v3063, 5
      %v3913 = vsel %vm2219, %v3911, %v3912
      %v3914 = vrot.slane %v3802, 5
      %v3915 = vrot.slane %v3914, 4
      %v3916 = vrot.slane %v3065, 5
      %v3917 = vsel %vm2219, %v3915, %v3916
      %v3918 = vrot.slane %v3916, 4
      %v3919 = vrot.slane %v3066, 5
      %v3920 = vsel %vm2219, %v3918, %v3919
      %v3921 = vrot.slane %v3803, 5
      %v3922 = vrot.slane %v3921, 4
      %v3923 = vrot.slane %v3068, 5
      %v3924 = vsel %vm2219, %v3922, %v3923
      %v3925 = vrot.slane %v3923, 4
      %v3926 = vrot.slane %v3069, 5
      %v3927 = vsel %vm2219, %v3925, %v3926
      %v3928 = vrot.slane %v3804, 5
      %v3929 = vrot.slane %v3928, 4
      %v3930 = vrot.slane %v3071, 5
      %v3931 = vsel %vm2219, %v3929, %v3930
      %v3932 = vrot.slane %v3930, 4
      %v3933 = vrot.slane %v3072, 5
      %v3934 = vsel %vm2219, %v3932, %v3933
      %v3935 = vrot.slane %v3805, 5
      %v3936 = vrot.slane %v3935, 4
      %v3937 = vrot.slane %v3074, 5
      %v3938 = vsel %vm2219, %v3936, %v3937
      %v3939 = vrot.slane %v3937, 4
      %v3940 = vrot.slane %v3075, 5
      %v3941 = vsel %vm2219, %v3939, %v3940
      %v3942 = vrot.slane %v3806, 5
      %v3943 = vrot.slane %v3942, 4
      %v3944 = vrot.slane %v3077, 5
      %v3945 = vsel %vm2219, %v3943, %v3944
      %v3946 = vrot.slane %v3944, 4
      %v3947 = vrot.slane %v3078, 5
      %v3948 = vsel %vm2219, %v3946, %v3947
      %v3949 = vrot.slane %v3807, 5
      %v3950 = vrot.slane %v3949, 4
      %v3951 = vrot.slane %v3080, 5
      %v3952 = vsel %vm2219, %v3950, %v3951
      %v3953 = vrot.slane %v3951, 4
      %v3954 = vrot.slane %v3081, 5
      %v3955 = vsel %vm2219, %v3953, %v3954
      %v3956 = vrot.slane %v3808, 5
      %v3957 = vrot.slane %v3956, 4
      %v3958 = vrot.slane %v3083, 5
      %v3959 = vsel %vm2219, %v3957, %v3958
      %v3960 = vrot.slane %v3958, 4
      %v3961 = vrot.slane %v3084, 5
      %v3962 = vsel %vm2219, %v3960, %v3961
      %v3963 = vrot.slane %v3809, 5
      %v3964 = vrot.slane %v3963, 4
      %v3965 = vrot.slane %v3086, 5
      %v3966 = vsel %vm2219, %v3964, %v3965
      %v3967 = vrot.slane %v3965, 4
      %v3968 = vrot.slane %v3087, 5
      %v3969 = vsel %vm2219, %v3967, %v3968
      %s3970 = scalar_lea.vmem %s1, 320
      %v3971 = vld [vmem:[%s3970] sm:$0xf]
      %v3972 = vld [vmem:[%s3970 + $0x4] sm:$0xf]
      %v3973 = vld [vmem:[%s3970 + $0x8] sm:$0xf]
      %v3974 = vld [vmem:[%s3970 + $0xc] sm:$0xf]
      %v3975 = vld [vmem:[%s3970 + $0x10] sm:$0xf]
      %v3976 = vld [vmem:[%s3970 + $0x14] sm:$0xf]
      %v3977 = vld [vmem:[%s3970 + $0x18] sm:$0xf]
      %v3978 = vld [vmem:[%s3970 + $0x1c] sm:$0xf]
      %v3979 = vld [vmem:[%s3970 + $0x20] sm:$0xf]
      %v3980 = vld [vmem:[%s3970 + $0x24] sm:$0xf]
      %v3981 = vld [vmem:[%s3970 + $0x28] sm:$0xf]
      %v3982 = vld [vmem:[%s3970 + $0x2c] sm:$0xf]
      %v3983 = vld [vmem:[%s3970 + $0x30] sm:$0xf]
      %v3984 = vld [vmem:[%s3970 + $0x34] sm:$0xf]
      %v3985 = vld [vmem:[%s3970 + $0x38] sm:$0xf]
      %v3986 = vld [vmem:[%s3970 + $0x3c] sm:$0xf]
      %v3987 = vunpack.c.l.b16 %v3861
      %v3988 = vunpack.c.l.b16 %v3864
      %v3989 = vunpack.c.l.b16 %v3868
      %v3990 = vunpack.c.l.b16 %v3871
      %v3991 = vunpack.c.l.b16 %v3875
      %v3992 = vunpack.c.l.b16 %v3878
      %v3993 = vunpack.c.l.b16 %v3882
      %v3994 = vunpack.c.l.b16 %v3885
      %v3995 = vunpack.c.l.b16 %v3889
      %v3996 = vunpack.c.l.b16 %v3892
      %v3997 = vunpack.c.l.b16 %v3896
      %v3998 = vunpack.c.l.b16 %v3899
      %v3999 = vunpack.c.l.b16 %v3903
      %v4000 = vunpack.c.l.b16 %v3906
      %v4001 = vunpack.c.l.b16 %v3910
      %v4002 = vunpack.c.l.b16 %v3913
      %v4003 = vunpack.c.l.b16 %v3917
      %v4004 = vunpack.c.l.b16 %v3920
      %v4005 = vunpack.c.l.b16 %v3924
      %v4006 = vunpack.c.l.b16 %v3927
      %v4007 = vunpack.c.l.b16 %v3931
      %v4008 = vunpack.c.l.b16 %v3934
      %v4009 = vunpack.c.l.b16 %v3938
      %v4010 = vunpack.c.l.b16 %v3941
      %v4011 = vunpack.c.l.b16 %v3945
      %v4012 = vunpack.c.l.b16 %v3948
      %v4013 = vunpack.c.l.b16 %v3952
      %v4014 = vunpack.c.l.b16 %v3955
      %v4015 = vunpack.c.l.b16 %v3959
      %v4016 = vunpack.c.l.b16 %v3962
      %v4017 = vunpack.c.l.b16 %v3966
      %v4018 = vunpack.c.l.b16 %v3969
      %v4019 = vpack.c.b16 %v3988, %v3987
      %v4020 = vpack.c.b16 %v3990, %v3989
      %v4021 = vpack.c.b16 %v3992, %v3991
      %v4022 = vpack.c.b16 %v3994, %v3993
      %v4023 = vpack.c.b16 %v3996, %v3995
      %v4024 = vpack.c.b16 %v3998, %v3997
      %v4025 = vpack.c.b16 %v4000, %v3999
      %v4026 = vpack.c.b16 %v4002, %v4001
      %v4027 = vpack.c.b16 %v4004, %v4003
      %v4028 = vpack.c.b16 %v4006, %v4005
      %v4029 = vpack.c.b16 %v4008, %v4007
      %v4030 = vpack.c.b16 %v4010, %v4009
      %v4031 = vpack.c.b16 %v4012, %v4011
      %v4032 = vpack.c.b16 %v4014, %v4013
      %v4033 = vpack.c.b16 %v4016, %v4015
      %v4034 = vpack.c.b16 %v4018, %v4017
      %v4067 = vunpack.c.l.b16 %v3971
      %v4068 = vunpack.c.l.b16 %v3972
      %v4069 = vunpack.c.l.b16 %v3973
      %v4070 = vunpack.c.l.b16 %v3974
      %v4071 = vunpack.c.l.b16 %v3975
      %v4072 = vunpack.c.l.b16 %v3976
      %v4073 = vunpack.c.l.b16 %v3977
      %v4074 = vunpack.c.l.b16 %v3978
      %v4075 = vunpack.c.l.b16 %v3979
      %v4076 = vunpack.c.l.b16 %v3980
      %v4077 = vunpack.c.l.b16 %v3981
      %v4078 = vunpack.c.l.b16 %v3982
      %v4079 = vunpack.c.l.b16 %v3983
      %v4080 = vunpack.c.l.b16 %v3984
      %v4081 = vunpack.c.l.b16 %v3985
      %v4082 = vunpack.c.l.b16 %v3986
      %v4083 = vpack.c.b16 %v4068, %v4067
      %v4084 = vpack.c.b16 %v4070, %v4069
      %v4085 = vpack.c.b16 %v4072, %v4071
      %v4086 = vpack.c.b16 %v4074, %v4073
      %v4087 = vpack.c.b16 %v4076, %v4075
      %v4088 = vpack.c.b16 %v4078, %v4077
      %v4089 = vpack.c.b16 %v4080, %v4079
      %v4090 = vpack.c.b16 %v4082, %v4081
      %4099 = vmatprep.subr.bf16.mxu0 0
      %4100 = vmatpush1.bf16.msra.mxu0 %v4090
      %4101 = vmatprep.subr.bf16.mxu0 0
      %4102 = vmatpush1.bf16.msra.mxu0 %v4089
      %4103 = vmatprep.subr.bf16.mxu0 0
      %4104 = vmatpush1.bf16.msra.mxu0 %v4088
      %4105 = vmatprep.subr.bf16.mxu0 0
      %4106 = vmatpush1.bf16.msra.mxu0 %v4087
      %4107 = vmatprep.subr.bf16.mxu0 0
      %4108 = vmatpush1.bf16.msra.mxu0 %v4086
      %4109 = vmatprep.subr.bf16.mxu0 0
      %4110 = vmatpush1.bf16.msra.mxu0 %v4085
      %4111 = vmatprep.subr.bf16.mxu0 0
      %4112 = vmatpush1.bf16.msra.mxu0 %v4084
      %4113 = vmatprep.subr.bf16.mxu0 0
      %4114 = vmatpush1.bf16.msra.mxu0 %v4083
      %4115 = vmatprep.subr.bf16.mxu0 0
      %4116 = vmatpush2.bf16.msra.mxu0 0
      %4117 = vmatprep.subr.bf16.mxu0 0
      %4118 = vmatpush2.bf16.msra.mxu0 0
      %4119 = vmatprep.subr.bf16.mxu0 0
      %4120 = vmatpush2.bf16.msra.mxu0 0
      %4121 = vmatprep.subr.bf16.mxu0 0
      %4122 = vmatpush2.bf16.msra.mxu0 0
      %4123 = vmatprep.subr.bf16.mxu0 0
      %4124 = vmatpush2.bf16.msra.mxu0 0
      %4125 = vmatprep.subr.bf16.mxu0 0
      %4126 = vmatpush2.bf16.msra.mxu0 0
      %4127 = vmatprep.subr.bf16.mxu0 0
      %4128 = vmatpush2.bf16.msra.mxu0 0
      %4129 = vmatprep.subr.bf16.mxu0 0
      %4130 = vmatpush2.bf16.msra.mxu0 0
      %4131 = vmatprep.mubr.bf16.mxu0 0
      %4132 = vmatmul.mubr.bf16.gmra.mxu0 %v4019
      %v4133 = vpop.f32.mrf.mxu0
      %v4134 = vadd.f32 0.0, %v4133
      %v4135 = vpop.f32.mrf.mxu0
      %v4136 = vpop.f32.mrf.mxu0
      %v4137 = vadd.f32 0.0, %v4136
      %v4138 = vpop.f32.mrf.mxu0
      %4139 = vmatprep.mubr.bf16.mxu0 0
      %4140 = vmatmul.mubr.bf16.gmra.mxu0 %v4020
      %v4141 = vpop.f32.mrf.mxu0
      %v4142 = vadd.f32 0.0, %v4141
      %v4143 = vpop.f32.mrf.mxu0
      %v4144 = vpop.f32.mrf.mxu0
      %v4145 = vadd.f32 0.0, %v4144
      %v4146 = vpop.f32.mrf.mxu0
      %4147 = vmatprep.mubr.bf16.mxu0 0
      %4148 = vmatmul.mubr.bf16.gmra.mxu0 %v4021
      %v4149 = vpop.f32.mrf.mxu0
      %v4150 = vadd.f32 0.0, %v4149
      %v4151 = vpop.f32.mrf.mxu0
      %v4152 = vpop.f32.mrf.mxu0
      %v4153 = vadd.f32 0.0, %v4152
      %v4154 = vpop.f32.mrf.mxu0
      %4155 = vmatprep.mubr.bf16.mxu0 0
      %4156 = vmatmul.mubr.bf16.gmra.mxu0 %v4022
      %v4157 = vpop.f32.mrf.mxu0
      %v4158 = vadd.f32 0.0, %v4157
      %v4159 = vpop.f32.mrf.mxu0
      %v4160 = vpop.f32.mrf.mxu0
      %v4161 = vadd.f32 0.0, %v4160
      %v4162 = vpop.f32.mrf.mxu0
      %4163 = vmatprep.mubr.bf16.mxu0 0
      %4164 = vmatmul.mubr.bf16.gmra.mxu0 %v4023
      %v4165 = vpop.f32.mrf.mxu0
      %v4166 = vadd.f32 0.0, %v4165
      %v4167 = vpop.f32.mrf.mxu0
      %v4168 = vpop.f32.mrf.mxu0
      %v4169 = vadd.f32 0.0, %v4168
      %v4170 = vpop.f32.mrf.mxu0
      %4171 = vmatprep.mubr.bf16.mxu0 0
      %4172 = vmatmul.mubr.bf16.gmra.mxu0 %v4024
      %v4173 = vpop.f32.mrf.mxu0
      %v4174 = vadd.f32 0.0, %v4173
      %v4175 = vpop.f32.mrf.mxu0
      %v4176 = vpop.f32.mrf.mxu0
      %v4177 = vadd.f32 0.0, %v4176
      %v4178 = vpop.f32.mrf.mxu0
      %4179 = vmatprep.mubr.bf16.mxu0 0
      %4180 = vmatmul.mubr.bf16.gmra.mxu0 %v4025
      %v4181 = vpop.f32.mrf.mxu0
      %v4182 = vadd.f32 0.0, %v4181
      %v4183 = vpop.f32.mrf.mxu0
      %v4184 = vpop.f32.mrf.mxu0
      %v4185 = vadd.f32 0.0, %v4184
      %v4186 = vpop.f32.mrf.mxu0
      %4187 = vmatprep.mubr.bf16.mxu0 0
      %4188 = vmatmul.mubr.bf16.gmra.mxu0 %v4026
      %v4189 = vpop.f32.mrf.mxu0
      %v4190 = vadd.f32 0.0, %v4189
      %v4191 = vpop.f32.mrf.mxu0
      %v4192 = vpop.f32.mrf.mxu0
      %v4193 = vadd.f32 0.0, %v4192
      %v4194 = vpop.f32.mrf.mxu0
      %4195 = vmatprep.mubr.bf16.mxu0 0
      %4196 = vmatmul.mubr.bf16.gmra.mxu0 %v4027
      %v4197 = vpop.f32.mrf.mxu0
      %v4198 = vadd.f32 0.0, %v4197
      %v4199 = vpop.f32.mrf.mxu0
      %v4200 = vpop.f32.mrf.mxu0
      %v4201 = vadd.f32 0.0, %v4200
      %v4202 = vpop.f32.mrf.mxu0
      %4203 = vmatprep.mubr.bf16.mxu0 0
      %4204 = vmatmul.mubr.bf16.gmra.mxu0 %v4028
      %v4205 = vpop.f32.mrf.mxu0
      %v4206 = vadd.f32 0.0, %v4205
      %v4207 = vpop.f32.mrf.mxu0
      %v4208 = vpop.f32.mrf.mxu0
      %v4209 = vadd.f32 0.0, %v4208
      %v4210 = vpop.f32.mrf.mxu0
      %4211 = vmatprep.mubr.bf16.mxu0 0
      %4212 = vmatmul.mubr.bf16.gmra.mxu0 %v4029
      %v4213 = vpop.f32.mrf.mxu0
      %v4214 = vadd.f32 0.0, %v4213
      %v4215 = vpop.f32.mrf.mxu0
      %v4216 = vpop.f32.mrf.mxu0
      %v4217 = vadd.f32 0.0, %v4216
      %v4218 = vpop.f32.mrf.mxu0
      %4219 = vmatprep.mubr.bf16.mxu0 0
      %4220 = vmatmul.mubr.bf16.gmra.mxu0 %v4030
      %v4221 = vpop.f32.mrf.mxu0
      %v4222 = vadd.f32 0.0, %v4221
      %v4223 = vpop.f32.mrf.mxu0
      %v4224 = vpop.f32.mrf.mxu0
      %v4225 = vadd.f32 0.0, %v4224
      %v4226 = vpop.f32.mrf.mxu0
      %4227 = vmatprep.mubr.bf16.mxu0 0
      %4228 = vmatmul.mubr.bf16.gmra.mxu0 %v4031
      %v4229 = vpop.f32.mrf.mxu0
      %v4230 = vadd.f32 0.0, %v4229
      %v4231 = vpop.f32.mrf.mxu0
      %v4232 = vpop.f32.mrf.mxu0
      %v4233 = vadd.f32 0.0, %v4232
      %v4234 = vpop.f32.mrf.mxu0
      %4235 = vmatprep.mubr.bf16.mxu0 0
      %4236 = vmatmul.mubr.bf16.gmra.mxu0 %v4032
      %v4237 = vpop.f32.mrf.mxu0
      %v4238 = vadd.f32 0.0, %v4237
      %v4239 = vpop.f32.mrf.mxu0
      %v4240 = vpop.f32.mrf.mxu0
      %v4241 = vadd.f32 0.0, %v4240
      %v4242 = vpop.f32.mrf.mxu0
      %4243 = vmatprep.mubr.bf16.mxu0 0
      %4244 = vmatmul.mubr.bf16.gmra.mxu0 %v4033
      %v4245 = vpop.f32.mrf.mxu0
      %v4246 = vadd.f32 0.0, %v4245
      %v4247 = vpop.f32.mrf.mxu0
      %v4248 = vpop.f32.mrf.mxu0
      %v4249 = vadd.f32 0.0, %v4248
      %v4250 = vpop.f32.mrf.mxu0
      %4251 = vmatprep.mubr.bf16.mxu0 0
      %4252 = vmatmul.mubr.bf16.gmra.mxu0 %v4034
      %v4253 = vpop.f32.mrf.mxu0
      %v4254 = vadd.f32 0.0, %v4253
      %v4255 = vpop.f32.mrf.mxu0
      %v4256 = vpop.f32.mrf.mxu0
      %v4257 = vadd.f32 0.0, %v4256
      %v4258 = vpop.f32.mrf.mxu0
      %4259 = vdwg.mxu0
      %v4260 = vadd.f32 %v3762, %v4134
      %v4261 = vadd.f32 %v3763, %v4137
      %v4262 = vadd.f32 %v3764, %v4142
      %v4263 = vadd.f32 %v3765, %v4145
      %v4264 = vadd.f32 %v3766, %v4150
      %v4265 = vadd.f32 %v3767, %v4153
      %v4266 = vadd.f32 %v3768, %v4158
      %v4267 = vadd.f32 %v3769, %v4161
      %v4268 = vadd.f32 %v3770, %v4166
      %v4269 = vadd.f32 %v3771, %v4169
      %v4270 = vadd.f32 %v3772, %v4174
      %v4271 = vadd.f32 %v3773, %v4177
      %v4272 = vadd.f32 %v3774, %v4182
      %v4273 = vadd.f32 %v3775, %v4185
      %v4274 = vadd.f32 %v3776, %v4190
      %v4275 = vadd.f32 %v3777, %v4193
      %v4276 = vadd.f32 %v3778, %v4198
      %v4277 = vadd.f32 %v3779, %v4201
      %v4278 = vadd.f32 %v3780, %v4206
      %v4279 = vadd.f32 %v3781, %v4209
      %v4280 = vadd.f32 %v3782, %v4214
      %v4281 = vadd.f32 %v3783, %v4217
      %v4282 = vadd.f32 %v3784, %v4222
      %v4283 = vadd.f32 %v3785, %v4225
      %v4284 = vadd.f32 %v3786, %v4230
      %v4285 = vadd.f32 %v3787, %v4233
      %v4286 = vadd.f32 %v3788, %v4238
      %v4287 = vadd.f32 %v3789, %v4241
      %v4288 = vadd.f32 %v3790, %v4246
      %v4289 = vadd.f32 %v3791, %v4249
      %v4290 = vadd.f32 %v3792, %v4254
      %v4291 = vadd.f32 %v3793, %v4257
      %s4292 = scalar_lea.vmem [#allocation2], 24
      %v4293 = vld [vmem:[%s4292] sm:$0xf]
      %v4294 = vld [vmem:[%s4292 + $0x4] sm:$0xf]
      %v4295 = vld [vmem:[%s4292 + $0xc] sm:$0xf]
      %v4296 = vld [vmem:[%s4292 + $0x10] sm:$0xf]
      %v4297 = vld [vmem:[%s4292 + $0x18] sm:$0xf]
      %v4298 = vld [vmem:[%s4292 + $0x1c] sm:$0xf]
      %v4299 = vld [vmem:[%s4292 + $0x24] sm:$0xf]
      %v4300 = vld [vmem:[%s4292 + $0x28] sm:$0xf]
      %v4301 = vld [vmem:[%s4292 + $0x30] sm:$0xf]
      %v4302 = vld [vmem:[%s4292 + $0x34] sm:$0xf]
      %v4303 = vld [vmem:[%s4292 + $0x3c] sm:$0xf]
      %v4304 = vld [vmem:[%s4292 + $0x40] sm:$0xf]
      %v4305 = vld [vmem:[%s4292 + $0x48] sm:$0xf]
      %v4306 = vld [vmem:[%s4292 + $0x4c] sm:$0xf]
      %v4307 = vld [vmem:[%s4292 + $0x54] sm:$0xf]
      %v4308 = vld [vmem:[%s4292 + $0x58] sm:$0xf]
      %v4309 = vld [vmem:[%s4292 + $0x60] sm:$0xf]
      %v4310 = vld [vmem:[%s4292 + $0x64] sm:$0xf]
      %v4311 = vld [vmem:[%s4292 + $0x6c] sm:$0xf]
      %v4312 = vld [vmem:[%s4292 + $0x70] sm:$0xf]
      %v4313 = vld [vmem:[%s4292 + $0x78] sm:$0xf]
      %v4314 = vld [vmem:[%s4292 + $0x7c] sm:$0xf]
      %v4315 = vld [vmem:[%s4292 + $0x84] sm:$0xf]
      %v4316 = vld [vmem:[%s4292 + $0x88] sm:$0xf]
      %v4317 = vld [vmem:[%s4292 + $0x90] sm:$0xf]
      %v4318 = vld [vmem:[%s4292 + $0x94] sm:$0xf]
      %v4319 = vld [vmem:[%s4292 + $0x9c] sm:$0xf]
      %v4320 = vld [vmem:[%s4292 + $0xa0] sm:$0xf]
      %v4321 = vld [vmem:[%s4292 + $0xa8] sm:$0xf]
      %v4322 = vld [vmem:[%s4292 + $0xac] sm:$0xf]
      %v4323 = vld [vmem:[%s4292 + $0xb4] sm:$0xf]
      %v4324 = vld [vmem:[%s4292 + $0xb8] sm:$0xf]
      %s4325 = scalar_lea.vmem %s1, 384
      %v4326 = vld [vmem:[%s4325] sm:$0xf]
      %v4327 = vld [vmem:[%s4325 + $0x4] sm:$0xf]
      %v4328 = vld [vmem:[%s4325 + $0x8] sm:$0xf]
      %v4329 = vld [vmem:[%s4325 + $0xc] sm:$0xf]
      %v4330 = vld [vmem:[%s4325 + $0x10] sm:$0xf]
      %v4331 = vld [vmem:[%s4325 + $0x14] sm:$0xf]
      %v4332 = vld [vmem:[%s4325 + $0x18] sm:$0xf]
      %v4333 = vld [vmem:[%s4325 + $0x1c] sm:$0xf]
      %v4334 = vld [vmem:[%s4325 + $0x20] sm:$0xf]
      %v4335 = vld [vmem:[%s4325 + $0x24] sm:$0xf]
      %v4336 = vld [vmem:[%s4325 + $0x28] sm:$0xf]
      %v4337 = vld [vmem:[%s4325 + $0x2c] sm:$0xf]
      %v4338 = vld [vmem:[%s4325 + $0x30] sm:$0xf]
      %v4339 = vld [vmem:[%s4325 + $0x34] sm:$0xf]
      %v4340 = vld [vmem:[%s4325 + $0x38] sm:$0xf]
      %v4341 = vld [vmem:[%s4325 + $0x3c] sm:$0xf]
      %v4374 = vunpack.c.l.b16 %v4293
      %v4375 = vunpack.c.l.b16 %v4294
      %v4376 = vunpack.c.l.b16 %v4295
      %v4377 = vunpack.c.l.b16 %v4296
      %v4378 = vunpack.c.l.b16 %v4297
      %v4379 = vunpack.c.l.b16 %v4298
      %v4380 = vunpack.c.l.b16 %v4299
      %v4381 = vunpack.c.l.b16 %v4300
      %v4382 = vunpack.c.l.b16 %v4301
      %v4383 = vunpack.c.l.b16 %v4302
      %v4384 = vunpack.c.l.b16 %v4303
      %v4385 = vunpack.c.l.b16 %v4304
      %v4386 = vunpack.c.l.b16 %v4305
      %v4387 = vunpack.c.l.b16 %v4306
      %v4388 = vunpack.c.l.b16 %v4307
      %v4389 = vunpack.c.l.b16 %v4308
      %v4390 = vunpack.c.l.b16 %v4309
      %v4391 = vunpack.c.l.b16 %v4310
      %v4392 = vunpack.c.l.b16 %v4311
      %v4393 = vunpack.c.l.b16 %v4312
      %v4394 = vunpack.c.l.b16 %v4313
      %v4395 = vunpack.c.l.b16 %v4314
      %v4396 = vunpack.c.l.b16 %v4315
      %v4397 = vunpack.c.l.b16 %v4316
      %v4398 = vunpack.c.l.b16 %v4317
      %v4399 = vunpack.c.l.b16 %v4318
      %v4400 = vunpack.c.l.b16 %v4319
      %v4401 = vunpack.c.l.b16 %v4320
      %v4402 = vunpack.c.l.b16 %v4321
      %v4403 = vunpack.c.l.b16 %v4322
      %v4404 = vunpack.c.l.b16 %v4323
      %v4405 = vunpack.c.l.b16 %v4324
      %v4406 = vpack.c.b16 %v4375, %v4374
      %v4407 = vpack.c.b16 %v4377, %v4376
      %v4408 = vpack.c.b16 %v4379, %v4378
      %v4409 = vpack.c.b16 %v4381, %v4380
      %v4410 = vpack.c.b16 %v4383, %v4382
      %v4411 = vpack.c.b16 %v4385, %v4384
      %v4412 = vpack.c.b16 %v4387, %v4386
      %v4413 = vpack.c.b16 %v4389, %v4388
      %v4414 = vpack.c.b16 %v4391, %v4390
      %v4415 = vpack.c.b16 %v4393, %v4392
      %v4416 = vpack.c.b16 %v4395, %v4394
      %v4417 = vpack.c.b16 %v4397, %v4396
      %v4418 = vpack.c.b16 %v4399, %v4398
      %v4419 = vpack.c.b16 %v4401, %v4400
      %v4420 = vpack.c.b16 %v4403, %v4402
      %v4421 = vpack.c.b16 %v4405, %v4404
      %v4454 = vunpack.c.l.b16 %v4326
      %v4455 = vunpack.c.l.b16 %v4327
      %v4456 = vunpack.c.l.b16 %v4328
      %v4457 = vunpack.c.l.b16 %v4329
      %v4458 = vunpack.c.l.b16 %v4330
      %v4459 = vunpack.c.l.b16 %v4331
      %v4460 = vunpack.c.l.b16 %v4332
      %v4461 = vunpack.c.l.b16 %v4333
      %v4462 = vunpack.c.l.b16 %v4334
      %v4463 = vunpack.c.l.b16 %v4335
      %v4464 = vunpack.c.l.b16 %v4336
      %v4465 = vunpack.c.l.b16 %v4337
      %v4466 = vunpack.c.l.b16 %v4338
      %v4467 = vunpack.c.l.b16 %v4339
      %v4468 = vunpack.c.l.b16 %v4340
      %v4469 = vunpack.c.l.b16 %v4341
      %v4470 = vpack.c.b16 %v4455, %v4454
      %v4471 = vpack.c.b16 %v4457, %v4456
      %v4472 = vpack.c.b16 %v4459, %v4458
      %v4473 = vpack.c.b16 %v4461, %v4460
      %v4474 = vpack.c.b16 %v4463, %v4462
      %v4475 = vpack.c.b16 %v4465, %v4464
      %v4476 = vpack.c.b16 %v4467, %v4466
      %v4477 = vpack.c.b16 %v4469, %v4468
      %4486 = vmatprep.subr.bf16.mxu0 0
      %4487 = vmatpush1.bf16.msra.mxu0 %v4477
      %4488 = vmatprep.subr.bf16.mxu0 0
      %4489 = vmatpush1.bf16.msra.mxu0 %v4476
      %4490 = vmatprep.subr.bf16.mxu0 0
      %4491 = vmatpush1.bf16.msra.mxu0 %v4475
      %4492 = vmatprep.subr.bf16.mxu0 0
      %4493 = vmatpush1.bf16.msra.mxu0 %v4474
      %4494 = vmatprep.subr.bf16.mxu0 0
      %4495 = vmatpush1.bf16.msra.mxu0 %v4473
      %4496 = vmatprep.subr.bf16.mxu0 0
      %4497 = vmatpush1.bf16.msra.mxu0 %v4472
      %4498 = vmatprep.subr.bf16.mxu0 0
      %4499 = vmatpush1.bf16.msra.mxu0 %v4471
      %4500 = vmatprep.subr.bf16.mxu0 0
      %4501 = vmatpush1.bf16.msra.mxu0 %v4470
      %4502 = vmatprep.subr.bf16.mxu0 0
      %4503 = vmatpush2.bf16.msra.mxu0 0
      %4504 = vmatprep.subr.bf16.mxu0 0
      %4505 = vmatpush2.bf16.msra.mxu0 0
      %4506 = vmatprep.subr.bf16.mxu0 0
      %4507 = vmatpush2.bf16.msra.mxu0 0
      %4508 = vmatprep.subr.bf16.mxu0 0
      %4509 = vmatpush2.bf16.msra.mxu0 0
      %4510 = vmatprep.subr.bf16.mxu0 0
      %4511 = vmatpush2.bf16.msra.mxu0 0
      %4512 = vmatprep.subr.bf16.mxu0 0
      %4513 = vmatpush2.bf16.msra.mxu0 0
      %4514 = vmatprep.subr.bf16.mxu0 0
      %4515 = vmatpush2.bf16.msra.mxu0 0
      %4516 = vmatprep.subr.bf16.mxu0 0
      %4517 = vmatpush2.bf16.msra.mxu0 0
      %4518 = vmatprep.mubr.bf16.mxu0 0
      %4519 = vmatmul.mubr.bf16.gmra.mxu0 %v4406
      %v4520 = vpop.f32.mrf.mxu0
      %v4521 = vadd.f32 0.0, %v4520
      %v4522 = vpop.f32.mrf.mxu0
      %v4523 = vpop.f32.mrf.mxu0
      %v4524 = vadd.f32 0.0, %v4523
      %v4525 = vpop.f32.mrf.mxu0
      %4526 = vmatprep.mubr.bf16.mxu0 0
      %4527 = vmatmul.mubr.bf16.gmra.mxu0 %v4407
      %v4528 = vpop.f32.mrf.mxu0
      %v4529 = vadd.f32 0.0, %v4528
      %v4530 = vpop.f32.mrf.mxu0
      %v4531 = vpop.f32.mrf.mxu0
      %v4532 = vadd.f32 0.0, %v4531
      %v4533 = vpop.f32.mrf.mxu0
      %4534 = vmatprep.mubr.bf16.mxu0 0
      %4535 = vmatmul.mubr.bf16.gmra.mxu0 %v4408
      %v4536 = vpop.f32.mrf.mxu0
      %v4537 = vadd.f32 0.0, %v4536
      %v4538 = vpop.f32.mrf.mxu0
      %v4539 = vpop.f32.mrf.mxu0
      %v4540 = vadd.f32 0.0, %v4539
      %v4541 = vpop.f32.mrf.mxu0
      %4542 = vmatprep.mubr.bf16.mxu0 0
      %4543 = vmatmul.mubr.bf16.gmra.mxu0 %v4409
      %v4544 = vpop.f32.mrf.mxu0
      %v4545 = vadd.f32 0.0, %v4544
      %v4546 = vpop.f32.mrf.mxu0
      %v4547 = vpop.f32.mrf.mxu0
      %v4548 = vadd.f32 0.0, %v4547
      %v4549 = vpop.f32.mrf.mxu0
      %4550 = vmatprep.mubr.bf16.mxu0 0
      %4551 = vmatmul.mubr.bf16.gmra.mxu0 %v4410
      %v4552 = vpop.f32.mrf.mxu0
      %v4553 = vadd.f32 0.0, %v4552
      %v4554 = vpop.f32.mrf.mxu0
      %v4555 = vpop.f32.mrf.mxu0
      %v4556 = vadd.f32 0.0, %v4555
      %v4557 = vpop.f32.mrf.mxu0
      %4558 = vmatprep.mubr.bf16.mxu0 0
      %4559 = vmatmul.mubr.bf16.gmra.mxu0 %v4411
      %v4560 = vpop.f32.mrf.mxu0
      %v4561 = vadd.f32 0.0, %v4560
      %v4562 = vpop.f32.mrf.mxu0
      %v4563 = vpop.f32.mrf.mxu0
      %v4564 = vadd.f32 0.0, %v4563
      %v4565 = vpop.f32.mrf.mxu0
      %4566 = vmatprep.mubr.bf16.mxu0 0
      %4567 = vmatmul.mubr.bf16.gmra.mxu0 %v4412
      %v4568 = vpop.f32.mrf.mxu0
      %v4569 = vadd.f32 0.0, %v4568
      %v4570 = vpop.f32.mrf.mxu0
      %v4571 = vpop.f32.mrf.mxu0
      %v4572 = vadd.f32 0.0, %v4571
      %v4573 = vpop.f32.mrf.mxu0
      %4574 = vmatprep.mubr.bf16.mxu0 0
      %4575 = vmatmul.mubr.bf16.gmra.mxu0 %v4413
      %v4576 = vpop.f32.mrf.mxu0
      %v4577 = vadd.f32 0.0, %v4576
      %v4578 = vpop.f32.mrf.mxu0
      %v4579 = vpop.f32.mrf.mxu0
      %v4580 = vadd.f32 0.0, %v4579
      %v4581 = vpop.f32.mrf.mxu0
      %4582 = vmatprep.mubr.bf16.mxu0 0
      %4583 = vmatmul.mubr.bf16.gmra.mxu0 %v4414
      %v4584 = vpop.f32.mrf.mxu0
      %v4585 = vadd.f32 0.0, %v4584
      %v4586 = vpop.f32.mrf.mxu0
      %v4587 = vpop.f32.mrf.mxu0
      %v4588 = vadd.f32 0.0, %v4587
      %v4589 = vpop.f32.mrf.mxu0
      %4590 = vmatprep.mubr.bf16.mxu0 0
      %4591 = vmatmul.mubr.bf16.gmra.mxu0 %v4415
      %v4592 = vpop.f32.mrf.mxu0
      %v4593 = vadd.f32 0.0, %v4592
      %v4594 = vpop.f32.mrf.mxu0
      %v4595 = vpop.f32.mrf.mxu0
      %v4596 = vadd.f32 0.0, %v4595
      %v4597 = vpop.f32.mrf.mxu0
      %4598 = vmatprep.mubr.bf16.mxu0 0
      %4599 = vmatmul.mubr.bf16.gmra.mxu0 %v4416
      %v4600 = vpop.f32.mrf.mxu0
      %v4601 = vadd.f32 0.0, %v4600
      %v4602 = vpop.f32.mrf.mxu0
      %v4603 = vpop.f32.mrf.mxu0
      %v4604 = vadd.f32 0.0, %v4603
      %v4605 = vpop.f32.mrf.mxu0
      %4606 = vmatprep.mubr.bf16.mxu0 0
      %4607 = vmatmul.mubr.bf16.gmra.mxu0 %v4417
      %v4608 = vpop.f32.mrf.mxu0
      %v4609 = vadd.f32 0.0, %v4608
      %v4610 = vpop.f32.mrf.mxu0
      %v4611 = vpop.f32.mrf.mxu0
      %v4612 = vadd.f32 0.0, %v4611
      %v4613 = vpop.f32.mrf.mxu0
      %4614 = vmatprep.mubr.bf16.mxu0 0
      %4615 = vmatmul.mubr.bf16.gmra.mxu0 %v4418
      %v4616 = vpop.f32.mrf.mxu0
      %v4617 = vadd.f32 0.0, %v4616
      %v4618 = vpop.f32.mrf.mxu0
      %v4619 = vpop.f32.mrf.mxu0
      %v4620 = vadd.f32 0.0, %v4619
      %v4621 = vpop.f32.mrf.mxu0
      %4622 = vmatprep.mubr.bf16.mxu0 0
      %4623 = vmatmul.mubr.bf16.gmra.mxu0 %v4419
      %v4624 = vpop.f32.mrf.mxu0
      %v4625 = vadd.f32 0.0, %v4624
      %v4626 = vpop.f32.mrf.mxu0
      %v4627 = vpop.f32.mrf.mxu0
      %v4628 = vadd.f32 0.0, %v4627
      %v4629 = vpop.f32.mrf.mxu0
      %4630 = vmatprep.mubr.bf16.mxu0 0
      %4631 = vmatmul.mubr.bf16.gmra.mxu0 %v4420
      %v4632 = vpop.f32.mrf.mxu0
      %v4633 = vadd.f32 0.0, %v4632
      %v4634 = vpop.f32.mrf.mxu0
      %v4635 = vpop.f32.mrf.mxu0
      %v4636 = vadd.f32 0.0, %v4635
      %v4637 = vpop.f32.mrf.mxu0
      %4638 = vmatprep.mubr.bf16.mxu0 0
      %4639 = vmatmul.mubr.bf16.gmra.mxu0 %v4421
      %v4640 = vpop.f32.mrf.mxu0
      %v4641 = vadd.f32 0.0, %v4640
      %v4642 = vpop.f32.mrf.mxu0
      %v4643 = vpop.f32.mrf.mxu0
      %v4644 = vadd.f32 0.0, %v4643
      %v4645 = vpop.f32.mrf.mxu0
      %4646 = vdwg.mxu0
      %v4647 = vadd.f32 %v4260, %v4521
      %v4648 = vadd.f32 %v4261, %v4524
      %v4649 = vadd.f32 %v4262, %v4529
      %v4650 = vadd.f32 %v4263, %v4532
      %v4651 = vadd.f32 %v4264, %v4537
      %v4652 = vadd.f32 %v4265, %v4540
      %v4653 = vadd.f32 %v4266, %v4545
      %v4654 = vadd.f32 %v4267, %v4548
      %v4655 = vadd.f32 %v4268, %v4553
      %v4656 = vadd.f32 %v4269, %v4556
      %v4657 = vadd.f32 %v4270, %v4561
      %v4658 = vadd.f32 %v4271, %v4564
      %v4659 = vadd.f32 %v4272, %v4569
      %v4660 = vadd.f32 %v4273, %v4572
      %v4661 = vadd.f32 %v4274, %v4577
      %v4662 = vadd.f32 %v4275, %v4580
      %v4663 = vadd.f32 %v4276, %v4585
      %v4664 = vadd.f32 %v4277, %v4588
      %v4665 = vadd.f32 %v4278, %v4593
      %v4666 = vadd.f32 %v4279, %v4596
      %v4667 = vadd.f32 %v4280, %v4601
      %v4668 = vadd.f32 %v4281, %v4604
      %v4669 = vadd.f32 %v4282, %v4609
      %v4670 = vadd.f32 %v4283, %v4612
      %v4671 = vadd.f32 %v4284, %v4617
      %v4672 = vadd.f32 %v4285, %v4620
      %v4673 = vadd.f32 %v4286, %v4625
      %v4674 = vadd.f32 %v4287, %v4628
      %v4675 = vadd.f32 %v4288, %v4633
      %v4676 = vadd.f32 %v4289, %v4636
      %v4677 = vadd.f32 %v4290, %v4641
      %v4678 = vadd.f32 %v4291, %v4644
      %v4679 = vld [vmem:[%s4292] sm:$0xf]
      %v4680 = vld [vmem:[%s4292 + $0x4] sm:$0xf]
      %v4681 = vld [vmem:[%s4292 + $0x8] sm:$0x1]
      %v4682 = vld [vmem:[%s4292 + $0xc] sm:$0xf]
      %v4683 = vld [vmem:[%s4292 + $0x10] sm:$0xf]
      %v4684 = vld [vmem:[%s4292 + $0x14] sm:$0x1]
      %v4685 = vld [vmem:[%s4292 + $0x18] sm:$0xf]
      %v4686 = vld [vmem:[%s4292 + $0x1c] sm:$0xf]
      %v4687 = vld [vmem:[%s4292 + $0x20] sm:$0x1]
      %v4688 = vld [vmem:[%s4292 + $0x24] sm:$0xf]
      %v4689 = vld [vmem:[%s4292 + $0x28] sm:$0xf]
      %v4690 = vld [vmem:[%s4292 + $0x2c] sm:$0x1]
      %v4691 = vld [vmem:[%s4292 + $0x30] sm:$0xf]
      %v4692 = vld [vmem:[%s4292 + $0x34] sm:$0xf]
      %v4693 = vld [vmem:[%s4292 + $0x38] sm:$0x1]
      %v4694 = vld [vmem:[%s4292 + $0x3c] sm:$0xf]
      %v4695 = vld [vmem:[%s4292 + $0x40] sm:$0xf]
      %v4696 = vld [vmem:[%s4292 + $0x44] sm:$0x1]
      %v4697 = vld [vmem:[%s4292 + $0x48] sm:$0xf]
      %v4698 = vld [vmem:[%s4292 + $0x4c] sm:$0xf]
      %v4699 = vld [vmem:[%s4292 + $0x50] sm:$0x1]
      %v4700 = vld [vmem:[%s4292 + $0x54] sm:$0xf]
      %v4701 = vld [vmem:[%s4292 + $0x58] sm:$0xf]
      %v4702 = vld [vmem:[%s4292 + $0x5c] sm:$0x1]
      %v4703 = vld [vmem:[%s4292 + $0x60] sm:$0xf]
      %v4704 = vld [vmem:[%s4292 + $0x64] sm:$0xf]
      %v4705 = vld [vmem:[%s4292 + $0x68] sm:$0x1]
      %v4706 = vld [vmem:[%s4292 + $0x6c] sm:$0xf]
      %v4707 = vld [vmem:[%s4292 + $0x70] sm:$0xf]
      %v4708 = vld [vmem:[%s4292 + $0x74] sm:$0x1]
      %v4709 = vld [vmem:[%s4292 + $0x78] sm:$0xf]
      %v4710 = vld [vmem:[%s4292 + $0x7c] sm:$0xf]
      %v4711 = vld [vmem:[%s4292 + $0x80] sm:$0x1]
      %v4712 = vld [vmem:[%s4292 + $0x84] sm:$0xf]
      %v4713 = vld [vmem:[%s4292 + $0x88] sm:$0xf]
      %v4714 = vld [vmem:[%s4292 + $0x8c] sm:$0x1]
      %v4715 = vld [vmem:[%s4292 + $0x90] sm:$0xf]
      %v4716 = vld [vmem:[%s4292 + $0x94] sm:$0xf]
      %v4717 = vld [vmem:[%s4292 + $0x98] sm:$0x1]
      %v4718 = vld [vmem:[%s4292 + $0x9c] sm:$0xf]
      %v4719 = vld [vmem:[%s4292 + $0xa0] sm:$0xf]
      %v4720 = vld [vmem:[%s4292 + $0xa4] sm:$0x1]
      %v4721 = vld [vmem:[%s4292 + $0xa8] sm:$0xf]
      %v4722 = vld [vmem:[%s4292 + $0xac] sm:$0xf]
      %v4723 = vld [vmem:[%s4292 + $0xb0] sm:$0x1]
      %v4724 = vld [vmem:[%s4292 + $0xb4] sm:$0xf]
      %v4725 = vld [vmem:[%s4292 + $0xb8] sm:$0xf]
      %v4726 = vld [vmem:[%s4292 + $0xbc] sm:$0x1]
      %v4728 = vshrl.u32 %v4679, 16
      %v4730 = vrot.slane %v4728, 4
      %v4731 = vshll.u32 %v4679, 16
      %v4733 = vrot.slane %v4731, 5
      %v4734 = vor.u32 %v4730, %v4733
      %v4735 = vrot.slane %v4734, 4
      %v4737 = vshll.u32 %v4680, 16
      %v4739 = vrot.slane %v4737, 5
      %v4740 = vsel %vm1189, %v4735, %v4739
      %v4741 = vshrl.u32 %v4680, 16
      %v4743 = vrot.slane %v4741, 4
      %v4744 = vor.u32 %v4743, %v4739
      %v4745 = vrot.slane %v4744, 4
      %v4747 = vshll.u32 %v4681, 16
      %v4749 = vrot.slane %v4747, 5
      %v4750 = vsel %vm1189, %v4745, %v4749
      %v4752 = vshrl.u32 %v4682, 16
      %v4754 = vrot.slane %v4752, 4
      %v4755 = vshll.u32 %v4682, 16
      %v4757 = vrot.slane %v4755, 5
      %v4758 = vor.u32 %v4754, %v4757
      %v4759 = vrot.slane %v4758, 4
      %v4761 = vshll.u32 %v4683, 16
      %v4763 = vrot.slane %v4761, 5
      %v4764 = vsel %vm1189, %v4759, %v4763
      %v4765 = vshrl.u32 %v4683, 16
      %v4767 = vrot.slane %v4765, 4
      %v4768 = vor.u32 %v4767, %v4763
      %v4769 = vrot.slane %v4768, 4
      %v4771 = vshll.u32 %v4684, 16
      %v4773 = vrot.slane %v4771, 5
      %v4774 = vsel %vm1189, %v4769, %v4773
      %v4776 = vshrl.u32 %v4685, 16
      %v4778 = vrot.slane %v4776, 4
      %v4779 = vshll.u32 %v4685, 16
      %v4781 = vrot.slane %v4779, 5
      %v4782 = vor.u32 %v4778, %v4781
      %v4783 = vrot.slane %v4782, 4
      %v4785 = vshll.u32 %v4686, 16
      %v4787 = vrot.slane %v4785, 5
      %v4788 = vsel %vm1189, %v4783, %v4787
      %v4789 = vshrl.u32 %v4686, 16
      %v4791 = vrot.slane %v4789, 4
      %v4792 = vor.u32 %v4791, %v4787
      %v4793 = vrot.slane %v4792, 4
      %v4795 = vshll.u32 %v4687, 16
      %v4797 = vrot.slane %v4795, 5
      %v4798 = vsel %vm1189, %v4793, %v4797
      %v4800 = vshrl.u32 %v4688, 16
      %v4802 = vrot.slane %v4800, 4
      %v4803 = vshll.u32 %v4688, 16
      %v4805 = vrot.slane %v4803, 5
      %v4806 = vor.u32 %v4802, %v4805
      %v4807 = vrot.slane %v4806, 4
      %v4809 = vshll.u32 %v4689, 16
      %v4811 = vrot.slane %v4809, 5
      %v4812 = vsel %vm1189, %v4807, %v4811
      %v4813 = vshrl.u32 %v4689, 16
      %v4815 = vrot.slane %v4813, 4
      %v4816 = vor.u32 %v4815, %v4811
      %v4817 = vrot.slane %v4816, 4
      %v4819 = vshll.u32 %v4690, 16
      %v4821 = vrot.slane %v4819, 5
      %v4822 = vsel %vm1189, %v4817, %v4821
      %v4824 = vshrl.u32 %v4691, 16
      %v4826 = vrot.slane %v4824, 4
      %v4827 = vshll.u32 %v4691, 16
      %v4829 = vrot.slane %v4827, 5
      %v4830 = vor.u32 %v4826, %v4829
      %v4831 = vrot.slane %v4830, 4
      %v4833 = vshll.u32 %v4692, 16
      %v4835 = vrot.slane %v4833, 5
      %v4836 = vsel %vm1189, %v4831, %v4835
      %v4837 = vshrl.u32 %v4692, 16
      %v4839 = vrot.slane %v4837, 4
      %v4840 = vor.u32 %v4839, %v4835
      %v4841 = vrot.slane %v4840, 4
      %v4843 = vshll.u32 %v4693, 16
      %v4845 = vrot.slane %v4843, 5
      %v4846 = vsel %vm1189, %v4841, %v4845
      %v4848 = vshrl.u32 %v4694, 16
      %v4850 = vrot.slane %v4848, 4
      %v4851 = vshll.u32 %v4694, 16
      %v4853 = vrot.slane %v4851, 5
      %v4854 = vor.u32 %v4850, %v4853
      %v4855 = vrot.slane %v4854, 4
      %v4857 = vshll.u32 %v4695, 16
      %v4859 = vrot.slane %v4857, 5
      %v4860 = vsel %vm1189, %v4855, %v4859
      %v4861 = vshrl.u32 %v4695, 16
      %v4863 = vrot.slane %v4861, 4
      %v4864 = vor.u32 %v4863, %v4859
      %v4865 = vrot.slane %v4864, 4
      %v4867 = vshll.u32 %v4696, 16
      %v4869 = vrot.slane %v4867, 5
      %v4870 = vsel %vm1189, %v4865, %v4869
      %v4872 = vshrl.u32 %v4697, 16
      %v4874 = vrot.slane %v4872, 4
      %v4875 = vshll.u32 %v4697, 16
      %v4877 = vrot.slane %v4875, 5
      %v4878 = vor.u32 %v4874, %v4877
      %v4879 = vrot.slane %v4878, 4
      %v4881 = vshll.u32 %v4698, 16
      %v4883 = vrot.slane %v4881, 5
      %v4884 = vsel %vm1189, %v4879, %v4883
      %v4885 = vshrl.u32 %v4698, 16
      %v4887 = vrot.slane %v4885, 4
      %v4888 = vor.u32 %v4887, %v4883
      %v4889 = vrot.slane %v4888, 4
      %v4891 = vshll.u32 %v4699, 16
      %v4893 = vrot.slane %v4891, 5
      %v4894 = vsel %vm1189, %v4889, %v4893
      %v4896 = vshrl.u32 %v4700, 16
      %v4898 = vrot.slane %v4896, 4
      %v4899 = vshll.u32 %v4700, 16
      %v4901 = vrot.slane %v4899, 5
      %v4902 = vor.u32 %v4898, %v4901
      %v4903 = vrot.slane %v4902, 4
      %v4905 = vshll.u32 %v4701, 16
      %v4907 = vrot.slane %v4905, 5
      %v4908 = vsel %vm1189, %v4903, %v4907
      %v4909 = vshrl.u32 %v4701, 16
      %v4911 = vrot.slane %v4909, 4
      %v4912 = vor.u32 %v4911, %v4907
      %v4913 = vrot.slane %v4912, 4
      %v4915 = vshll.u32 %v4702, 16
      %v4917 = vrot.slane %v4915, 5
      %v4918 = vsel %vm1189, %v4913, %v4917
      %v4920 = vshrl.u32 %v4703, 16
      %v4922 = vrot.slane %v4920, 4
      %v4923 = vshll.u32 %v4703, 16
      %v4925 = vrot.slane %v4923, 5
      %v4926 = vor.u32 %v4922, %v4925
      %v4927 = vrot.slane %v4926, 4
      %v4929 = vshll.u32 %v4704, 16
      %v4931 = vrot.slane %v4929, 5
      %v4932 = vsel %vm1189, %v4927, %v4931
      %v4933 = vshrl.u32 %v4704, 16
      %v4935 = vrot.slane %v4933, 4
      %v4936 = vor.u32 %v4935, %v4931
      %v4937 = vrot.slane %v4936, 4
      %v4939 = vshll.u32 %v4705, 16
      %v4941 = vrot.slane %v4939, 5
      %v4942 = vsel %vm1189, %v4937, %v4941
      %v4944 = vshrl.u32 %v4706, 16
      %v4946 = vrot.slane %v4944, 4
      %v4947 = vshll.u32 %v4706, 16
      %v4949 = vrot.slane %v4947, 5
      %v4950 = vor.u32 %v4946, %v4949
      %v4951 = vrot.slane %v4950, 4
      %v4953 = vshll.u32 %v4707, 16
      %v4955 = vrot.slane %v4953, 5
      %v4956 = vsel %vm1189, %v4951, %v4955
      %v4957 = vshrl.u32 %v4707, 16
      %v4959 = vrot.slane %v4957, 4
      %v4960 = vor.u32 %v4959, %v4955
      %v4961 = vrot.slane %v4960, 4
      %v4963 = vshll.u32 %v4708, 16
      %v4965 = vrot.slane %v4963, 5
      %v4966 = vsel %vm1189, %v4961, %v4965
      %v4968 = vshrl.u32 %v4709, 16
      %v4970 = vrot.slane %v4968, 4
      %v4971 = vshll.u32 %v4709, 16
      %v4973 = vrot.slane %v4971, 5
      %v4974 = vor.u32 %v4970, %v4973
      %v4975 = vrot.slane %v4974, 4
      %v4977 = vshll.u32 %v4710, 16
      %v4979 = vrot.slane %v4977, 5
      %v4980 = vsel %vm1189, %v4975, %v4979
      %v4981 = vshrl.u32 %v4710, 16
      %v4983 = vrot.slane %v4981, 4
      %v4984 = vor.u32 %v4983, %v4979
      %v4985 = vrot.slane %v4984, 4
      %v4987 = vshll.u32 %v4711, 16
      %v4989 = vrot.slane %v4987, 5
      %v4990 = vsel %vm1189, %v4985, %v4989
      %v4992 = vshrl.u32 %v4712, 16
      %v4994 = vrot.slane %v4992, 4
      %v4995 = vshll.u32 %v4712, 16
      %v4997 = vrot.slane %v4995, 5
      %v4998 = vor.u32 %v4994, %v4997
      %v4999 = vrot.slane %v4998, 4
      %v5001 = vshll.u32 %v4713, 16
      %v5003 = vrot.slane %v5001, 5
      %v5004 = vsel %vm1189, %v4999, %v5003
      %v5005 = vshrl.u32 %v4713, 16
      %v5007 = vrot.slane %v5005, 4
      %v5008 = vor.u32 %v5007, %v5003
      %v5009 = vrot.slane %v5008, 4
      %v5011 = vshll.u32 %v4714, 16
      %v5013 = vrot.slane %v5011, 5
      %v5014 = vsel %vm1189, %v5009, %v5013
      %v5016 = vshrl.u32 %v4715, 16
      %v5018 = vrot.slane %v5016, 4
      %v5019 = vshll.u32 %v4715, 16
      %v5021 = vrot.slane %v5019, 5
      %v5022 = vor.u32 %v5018, %v5021
      %v5023 = vrot.slane %v5022, 4
      %v5025 = vshll.u32 %v4716, 16
      %v5027 = vrot.slane %v5025, 5
      %v5028 = vsel %vm1189, %v5023, %v5027
      %v5029 = vshrl.u32 %v4716, 16
      %v5031 = vrot.slane %v5029, 4
      %v5032 = vor.u32 %v5031, %v5027
      %v5033 = vrot.slane %v5032, 4
      %v5035 = vshll.u32 %v4717, 16
      %v5037 = vrot.slane %v5035, 5
      %v5038 = vsel %vm1189, %v5033, %v5037
      %v5040 = vshrl.u32 %v4718, 16
      %v5042 = vrot.slane %v5040, 4
      %v5043 = vshll.u32 %v4718, 16
      %v5045 = vrot.slane %v5043, 5
      %v5046 = vor.u32 %v5042, %v5045
      %v5047 = vrot.slane %v5046, 4
      %v5049 = vshll.u32 %v4719, 16
      %v5051 = vrot.slane %v5049, 5
      %v5052 = vsel %vm1189, %v5047, %v5051
      %v5053 = vshrl.u32 %v4719, 16
      %v5055 = vrot.slane %v5053, 4
      %v5056 = vor.u32 %v5055, %v5051
      %v5057 = vrot.slane %v5056, 4
      %v5059 = vshll.u32 %v4720, 16
      %v5061 = vrot.slane %v5059, 5
      %v5062 = vsel %vm1189, %v5057, %v5061
      %v5064 = vshrl.u32 %v4721, 16
      %v5066 = vrot.slane %v5064, 4
      %v5067 = vshll.u32 %v4721, 16
      %v5069 = vrot.slane %v5067, 5
      %v5070 = vor.u32 %v5066, %v5069
      %v5071 = vrot.slane %v5070, 4
      %v5073 = vshll.u32 %v4722, 16
      %v5075 = vrot.slane %v5073, 5
      %v5076 = vsel %vm1189, %v5071, %v5075
      %v5077 = vshrl.u32 %v4722, 16
      %v5079 = vrot.slane %v5077, 4
      %v5080 = vor.u32 %v5079, %v5075
      %v5081 = vrot.slane %v5080, 4
      %v5083 = vshll.u32 %v4723, 16
      %v5085 = vrot.slane %v5083, 5
      %v5086 = vsel %vm1189, %v5081, %v5085
      %v5088 = vshrl.u32 %v4724, 16
      %v5090 = vrot.slane %v5088, 4
      %v5091 = vshll.u32 %v4724, 16
      %v5093 = vrot.slane %v5091, 5
      %v5094 = vor.u32 %v5090, %v5093
      %v5095 = vrot.slane %v5094, 4
      %v5097 = vshll.u32 %v4725, 16
      %v5099 = vrot.slane %v5097, 5
      %v5100 = vsel %vm1189, %v5095, %v5099
      %v5101 = vshrl.u32 %v4725, 16
      %v5103 = vrot.slane %v5101, 4
      %v5104 = vor.u32 %v5103, %v5099
      %v5105 = vrot.slane %v5104, 4
      %v5107 = vshll.u32 %v4726, 16
      %v5109 = vrot.slane %v5107, 5
      %v5110 = vsel %vm1189, %v5105, %v5109
      %s5111 = scalar_lea.vmem %s1, 448
      %v5112 = vld [vmem:[%s5111] sm:$0xf]
      %v5113 = vld [vmem:[%s5111 + $0x4] sm:$0xf]
      %v5114 = vld [vmem:[%s5111 + $0x8] sm:$0xf]
      %v5115 = vld [vmem:[%s5111 + $0xc] sm:$0xf]
      %v5116 = vld [vmem:[%s5111 + $0x10] sm:$0xf]
      %v5117 = vld [vmem:[%s5111 + $0x14] sm:$0xf]
      %v5118 = vld [vmem:[%s5111 + $0x18] sm:$0xf]
      %v5119 = vld [vmem:[%s5111 + $0x1c] sm:$0xf]
      %v5120 = vld [vmem:[%s5111 + $0x20] sm:$0xf]
      %v5121 = vld [vmem:[%s5111 + $0x24] sm:$0xf]
      %v5122 = vld [vmem:[%s5111 + $0x28] sm:$0xf]
      %v5123 = vld [vmem:[%s5111 + $0x2c] sm:$0xf]
      %v5124 = vld [vmem:[%s5111 + $0x30] sm:$0xf]
      %v5125 = vld [vmem:[%s5111 + $0x34] sm:$0xf]
      %v5126 = vld [vmem:[%s5111 + $0x38] sm:$0xf]
      %v5127 = vld [vmem:[%s5111 + $0x3c] sm:$0xf]
      %v5128 = vunpack.c.l.b16 %v4740
      %v5129 = vunpack.c.l.b16 %v4750
      %v5130 = vunpack.c.l.b16 %v4764
      %v5131 = vunpack.c.l.b16 %v4774
      %v5132 = vunpack.c.l.b16 %v4788
      %v5133 = vunpack.c.l.b16 %v4798
      %v5134 = vunpack.c.l.b16 %v4812
      %v5135 = vunpack.c.l.b16 %v4822
      %v5136 = vunpack.c.l.b16 %v4836
      %v5137 = vunpack.c.l.b16 %v4846
      %v5138 = vunpack.c.l.b16 %v4860
      %v5139 = vunpack.c.l.b16 %v4870
      %v5140 = vunpack.c.l.b16 %v4884
      %v5141 = vunpack.c.l.b16 %v4894
      %v5142 = vunpack.c.l.b16 %v4908
      %v5143 = vunpack.c.l.b16 %v4918
      %v5144 = vunpack.c.l.b16 %v4932
      %v5145 = vunpack.c.l.b16 %v4942
      %v5146 = vunpack.c.l.b16 %v4956
      %v5147 = vunpack.c.l.b16 %v4966
      %v5148 = vunpack.c.l.b16 %v4980
      %v5149 = vunpack.c.l.b16 %v4990
      %v5150 = vunpack.c.l.b16 %v5004
      %v5151 = vunpack.c.l.b16 %v5014
      %v5152 = vunpack.c.l.b16 %v5028
      %v5153 = vunpack.c.l.b16 %v5038
      %v5154 = vunpack.c.l.b16 %v5052
      %v5155 = vunpack.c.l.b16 %v5062
      %v5156 = vunpack.c.l.b16 %v5076
      %v5157 = vunpack.c.l.b16 %v5086
      %v5158 = vunpack.c.l.b16 %v5100
      %v5159 = vunpack.c.l.b16 %v5110
      %v5160 = vpack.c.b16 %v5129, %v5128
      %v5161 = vpack.c.b16 %v5131, %v5130
      %v5162 = vpack.c.b16 %v5133, %v5132
      %v5163 = vpack.c.b16 %v5135, %v5134
      %v5164 = vpack.c.b16 %v5137, %v5136
      %v5165 = vpack.c.b16 %v5139, %v5138
      %v5166 = vpack.c.b16 %v5141, %v5140
      %v5167 = vpack.c.b16 %v5143, %v5142
      %v5168 = vpack.c.b16 %v5145, %v5144
      %v5169 = vpack.c.b16 %v5147, %v5146
      %v5170 = vpack.c.b16 %v5149, %v5148
      %v5171 = vpack.c.b16 %v5151, %v5150
      %v5172 = vpack.c.b16 %v5153, %v5152
      %v5173 = vpack.c.b16 %v5155, %v5154
      %v5174 = vpack.c.b16 %v5157, %v5156
      %v5175 = vpack.c.b16 %v5159, %v5158
      %v5208 = vunpack.c.l.b16 %v5112
      %v5209 = vunpack.c.l.b16 %v5113
      %v5210 = vunpack.c.l.b16 %v5114
      %v5211 = vunpack.c.l.b16 %v5115
      %v5212 = vunpack.c.l.b16 %v5116
      %v5213 = vunpack.c.l.b16 %v5117
      %v5214 = vunpack.c.l.b16 %v5118
      %v5215 = vunpack.c.l.b16 %v5119
      %v5216 = vunpack.c.l.b16 %v5120
      %v5217 = vunpack.c.l.b16 %v5121
      %v5218 = vunpack.c.l.b16 %v5122
      %v5219 = vunpack.c.l.b16 %v5123
      %v5220 = vunpack.c.l.b16 %v5124
      %v5221 = vunpack.c.l.b16 %v5125
      %v5222 = vunpack.c.l.b16 %v5126
      %v5223 = vunpack.c.l.b16 %v5127
      %v5224 = vpack.c.b16 %v5209, %v5208
      %v5225 = vpack.c.b16 %v5211, %v5210
      %v5226 = vpack.c.b16 %v5213, %v5212
      %v5227 = vpack.c.b16 %v5215, %v5214
      %v5228 = vpack.c.b16 %v5217, %v5216
      %v5229 = vpack.c.b16 %v5219, %v5218
      %v5230 = vpack.c.b16 %v5221, %v5220
      %v5231 = vpack.c.b16 %v5223, %v5222
      %5240 = vmatprep.subr.bf16.mxu0 0
      %5241 = vmatpush1.bf16.msra.mxu0 %v5231
      %5242 = vmatprep.subr.bf16.mxu0 0
      %5243 = vmatpush1.bf16.msra.mxu0 %v5230
      %5244 = vmatprep.subr.bf16.mxu0 0
      %5245 = vmatpush1.bf16.msra.mxu0 %v5229
      %5246 = vmatprep.subr.bf16.mxu0 0
      %5247 = vmatpush1.bf16.msra.mxu0 %v5228
      %5248 = vmatprep.subr.bf16.mxu0 0
      %5249 = vmatpush1.bf16.msra.mxu0 %v5227
      %5250 = vmatprep.subr.bf16.mxu0 0
      %5251 = vmatpush1.bf16.msra.mxu0 %v5226
      %5252 = vmatprep.subr.bf16.mxu0 0
      %5253 = vmatpush1.bf16.msra.mxu0 %v5225
      %5254 = vmatprep.subr.bf16.mxu0 0
      %5255 = vmatpush1.bf16.msra.mxu0 %v5224
      %5256 = vmatprep.subr.bf16.mxu0 0
      %5257 = vmatpush2.bf16.msra.mxu0 0
      %5258 = vmatprep.subr.bf16.mxu0 0
      %5259 = vmatpush2.bf16.msra.mxu0 0
      %5260 = vmatprep.subr.bf16.mxu0 0
      %5261 = vmatpush2.bf16.msra.mxu0 0
      %5262 = vmatprep.subr.bf16.mxu0 0
      %5263 = vmatpush2.bf16.msra.mxu0 0
      %5264 = vmatprep.subr.bf16.mxu0 0
      %5265 = vmatpush2.bf16.msra.mxu0 0
      %5266 = vmatprep.subr.bf16.mxu0 0
      %5267 = vmatpush2.bf16.msra.mxu0 0
      %5268 = vmatprep.subr.bf16.mxu0 0
      %5269 = vmatpush2.bf16.msra.mxu0 0
      %5270 = vmatprep.subr.bf16.mxu0 0
      %5271 = vmatpush2.bf16.msra.mxu0 0
      %5272 = vmatprep.mubr.bf16.mxu0 0
      %5273 = vmatmul.mubr.bf16.gmra.mxu0 %v5160
      %v5274 = vpop.f32.mrf.mxu0
      %v5275 = vadd.f32 0.0, %v5274
      %v5276 = vpop.f32.mrf.mxu0
      %v5277 = vpop.f32.mrf.mxu0
      %v5278 = vadd.f32 0.0, %v5277
      %v5279 = vpop.f32.mrf.mxu0
      %5280 = vmatprep.mubr.bf16.mxu0 0
      %5281 = vmatmul.mubr.bf16.gmra.mxu0 %v5161
      %v5282 = vpop.f32.mrf.mxu0
      %v5283 = vadd.f32 0.0, %v5282
      %v5284 = vpop.f32.mrf.mxu0
      %v5285 = vpop.f32.mrf.mxu0
      %v5286 = vadd.f32 0.0, %v5285
      %v5287 = vpop.f32.mrf.mxu0
      %5288 = vmatprep.mubr.bf16.mxu0 0
      %5289 = vmatmul.mubr.bf16.gmra.mxu0 %v5162
      %v5290 = vpop.f32.mrf.mxu0
      %v5291 = vadd.f32 0.0, %v5290
      %v5292 = vpop.f32.mrf.mxu0
      %v5293 = vpop.f32.mrf.mxu0
      %v5294 = vadd.f32 0.0, %v5293
      %v5295 = vpop.f32.mrf.mxu0
      %5296 = vmatprep.mubr.bf16.mxu0 0
      %5297 = vmatmul.mubr.bf16.gmra.mxu0 %v5163
      %v5298 = vpop.f32.mrf.mxu0
      %v5299 = vadd.f32 0.0, %v5298
      %v5300 = vpop.f32.mrf.mxu0
      %v5301 = vpop.f32.mrf.mxu0
      %v5302 = vadd.f32 0.0, %v5301
      %v5303 = vpop.f32.mrf.mxu0
      %5304 = vmatprep.mubr.bf16.mxu0 0
      %5305 = vmatmul.mubr.bf16.gmra.mxu0 %v5164
      %v5306 = vpop.f32.mrf.mxu0
      %v5307 = vadd.f32 0.0, %v5306
      %v5308 = vpop.f32.mrf.mxu0
      %v5309 = vpop.f32.mrf.mxu0
      %v5310 = vadd.f32 0.0, %v5309
      %v5311 = vpop.f32.mrf.mxu0
      %5312 = vmatprep.mubr.bf16.mxu0 0
      %5313 = vmatmul.mubr.bf16.gmra.mxu0 %v5165
      %v5314 = vpop.f32.mrf.mxu0
      %v5315 = vadd.f32 0.0, %v5314
      %v5316 = vpop.f32.mrf.mxu0
      %v5317 = vpop.f32.mrf.mxu0
      %v5318 = vadd.f32 0.0, %v5317
      %v5319 = vpop.f32.mrf.mxu0
      %5320 = vmatprep.mubr.bf16.mxu0 0
      %5321 = vmatmul.mubr.bf16.gmra.mxu0 %v5166
      %v5322 = vpop.f32.mrf.mxu0
      %v5323 = vadd.f32 0.0, %v5322
      %v5324 = vpop.f32.mrf.mxu0
      %v5325 = vpop.f32.mrf.mxu0
      %v5326 = vadd.f32 0.0, %v5325
      %v5327 = vpop.f32.mrf.mxu0
      %5328 = vmatprep.mubr.bf16.mxu0 0
      %5329 = vmatmul.mubr.bf16.gmra.mxu0 %v5167
      %v5330 = vpop.f32.mrf.mxu0
      %v5331 = vadd.f32 0.0, %v5330
      %v5332 = vpop.f32.mrf.mxu0
      %v5333 = vpop.f32.mrf.mxu0
      %v5334 = vadd.f32 0.0, %v5333
      %v5335 = vpop.f32.mrf.mxu0
      %5336 = vmatprep.mubr.bf16.mxu0 0
      %5337 = vmatmul.mubr.bf16.gmra.mxu0 %v5168
      %v5338 = vpop.f32.mrf.mxu0
      %v5339 = vadd.f32 0.0, %v5338
      %v5340 = vpop.f32.mrf.mxu0
      %v5341 = vpop.f32.mrf.mxu0
      %v5342 = vadd.f32 0.0, %v5341
      %v5343 = vpop.f32.mrf.mxu0
      %5344 = vmatprep.mubr.bf16.mxu0 0
      %5345 = vmatmul.mubr.bf16.gmra.mxu0 %v5169
      %v5346 = vpop.f32.mrf.mxu0
      %v5347 = vadd.f32 0.0, %v5346
      %v5348 = vpop.f32.mrf.mxu0
      %v5349 = vpop.f32.mrf.mxu0
      %v5350 = vadd.f32 0.0, %v5349
      %v5351 = vpop.f32.mrf.mxu0
      %5352 = vmatprep.mubr.bf16.mxu0 0
      %5353 = vmatmul.mubr.bf16.gmra.mxu0 %v5170
      %v5354 = vpop.f32.mrf.mxu0
      %v5355 = vadd.f32 0.0, %v5354
      %v5356 = vpop.f32.mrf.mxu0
      %v5357 = vpop.f32.mrf.mxu0
      %v5358 = vadd.f32 0.0, %v5357
      %v5359 = vpop.f32.mrf.mxu0
      %5360 = vmatprep.mubr.bf16.mxu0 0
      %5361 = vmatmul.mubr.bf16.gmra.mxu0 %v5171
      %v5362 = vpop.f32.mrf.mxu0
      %v5363 = vadd.f32 0.0, %v5362
      %v5364 = vpop.f32.mrf.mxu0
      %v5365 = vpop.f32.mrf.mxu0
      %v5366 = vadd.f32 0.0, %v5365
      %v5367 = vpop.f32.mrf.mxu0
      %5368 = vmatprep.mubr.bf16.mxu0 0
      %5369 = vmatmul.mubr.bf16.gmra.mxu0 %v5172
      %v5370 = vpop.f32.mrf.mxu0
      %v5371 = vadd.f32 0.0, %v5370
      %v5372 = vpop.f32.mrf.mxu0
      %v5373 = vpop.f32.mrf.mxu0
      %v5374 = vadd.f32 0.0, %v5373
      %v5375 = vpop.f32.mrf.mxu0
      %5376 = vmatprep.mubr.bf16.mxu0 0
      %5377 = vmatmul.mubr.bf16.gmra.mxu0 %v5173
      %v5378 = vpop.f32.mrf.mxu0
      %v5379 = vadd.f32 0.0, %v5378
      %v5380 = vpop.f32.mrf.mxu0
      %v5381 = vpop.f32.mrf.mxu0
      %v5382 = vadd.f32 0.0, %v5381
      %v5383 = vpop.f32.mrf.mxu0
      %5384 = vmatprep.mubr.bf16.mxu0 0
      %5385 = vmatmul.mubr.bf16.gmra.mxu0 %v5174
      %v5386 = vpop.f32.mrf.mxu0
      %v5387 = vadd.f32 0.0, %v5386
      %v5388 = vpop.f32.mrf.mxu0
      %v5389 = vpop.f32.mrf.mxu0
      %v5390 = vadd.f32 0.0, %v5389
      %v5391 = vpop.f32.mrf.mxu0
      %5392 = vmatprep.mubr.bf16.mxu0 0
      %5393 = vmatmul.mubr.bf16.gmra.mxu0 %v5175
      %v5394 = vpop.f32.mrf.mxu0
      %v5395 = vadd.f32 0.0, %v5394
      %v5396 = vpop.f32.mrf.mxu0
      %v5397 = vpop.f32.mrf.mxu0
      %v5398 = vadd.f32 0.0, %v5397
      %v5399 = vpop.f32.mrf.mxu0
      %5400 = vdwg.mxu0
      %v5401 = vadd.f32 %v4647, %v5275
      %v5402 = vadd.f32 %v4648, %v5278
      %v5403 = vadd.f32 %v4649, %v5283
      %v5404 = vadd.f32 %v4650, %v5286
      %v5405 = vadd.f32 %v4651, %v5291
      %v5406 = vadd.f32 %v4652, %v5294
      %v5407 = vadd.f32 %v4653, %v5299
      %v5408 = vadd.f32 %v4654, %v5302
      %v5409 = vadd.f32 %v4655, %v5307
      %v5410 = vadd.f32 %v4656, %v5310
      %v5411 = vadd.f32 %v4657, %v5315
      %v5412 = vadd.f32 %v4658, %v5318
      %v5413 = vadd.f32 %v4659, %v5323
      %v5414 = vadd.f32 %v4660, %v5326
      %v5415 = vadd.f32 %v4661, %v5331
      %v5416 = vadd.f32 %v4662, %v5334
      %v5417 = vadd.f32 %v4663, %v5339
      %v5418 = vadd.f32 %v4664, %v5342
      %v5419 = vadd.f32 %v4665, %v5347
      %v5420 = vadd.f32 %v4666, %v5350
      %v5421 = vadd.f32 %v4667, %v5355
      %v5422 = vadd.f32 %v4668, %v5358
      %v5423 = vadd.f32 %v4669, %v5363
      %v5424 = vadd.f32 %v4670, %v5366
      %v5425 = vadd.f32 %v4671, %v5371
      %v5426 = vadd.f32 %v4672, %v5374
      %v5427 = vadd.f32 %v4673, %v5379
      %v5428 = vadd.f32 %v4674, %v5382
      %v5429 = vadd.f32 %v4675, %v5387
      %v5430 = vadd.f32 %v4676, %v5390
      %v5431 = vadd.f32 %v4677, %v5395
      %v5432 = vadd.f32 %v4678, %v5398
      %v5433 = vld [vmem:[%s4292] sm:$0xe]
      %v5434 = vld [vmem:[%s4292 + $0xc] sm:$0xe]
      %v5435 = vld [vmem:[%s4292 + $0x18] sm:$0xe]
      %v5436 = vld [vmem:[%s4292 + $0x24] sm:$0xe]
      %v5437 = vld [vmem:[%s4292 + $0x30] sm:$0xe]
      %v5438 = vld [vmem:[%s4292 + $0x3c] sm:$0xe]
      %v5439 = vld [vmem:[%s4292 + $0x48] sm:$0xe]
      %v5440 = vld [vmem:[%s4292 + $0x54] sm:$0xe]
      %v5441 = vld [vmem:[%s4292 + $0x60] sm:$0xe]
      %v5442 = vld [vmem:[%s4292 + $0x6c] sm:$0xe]
      %v5443 = vld [vmem:[%s4292 + $0x78] sm:$0xe]
      %v5444 = vld [vmem:[%s4292 + $0x84] sm:$0xe]
      %v5445 = vld [vmem:[%s4292 + $0x90] sm:$0xe]
      %v5446 = vld [vmem:[%s4292 + $0x9c] sm:$0xe]
      %v5447 = vld [vmem:[%s4292 + $0xa8] sm:$0xe]
      %v5448 = vld [vmem:[%s4292 + $0xb4] sm:$0xe]
      %v5497 = vrot.slane %v5433, 5
      %v5498 = vrot.slane %v5497, 4
      %v5499 = vrot.slane %v4680, 5
      %v5500 = vsel %vm2219, %v5498, %v5499
      %v5501 = vrot.slane %v5499, 4
      %v5502 = vrot.slane %v4681, 5
      %v5503 = vsel %vm2219, %v5501, %v5502
      %v5504 = vrot.slane %v5434, 5
      %v5505 = vrot.slane %v5504, 4
      %v5506 = vrot.slane %v4683, 5
      %v5507 = vsel %vm2219, %v5505, %v5506
      %v5508 = vrot.slane %v5506, 4
      %v5509 = vrot.slane %v4684, 5
      %v5510 = vsel %vm2219, %v5508, %v5509
      %v5511 = vrot.slane %v5435, 5
      %v5512 = vrot.slane %v5511, 4
      %v5513 = vrot.slane %v4686, 5
      %v5514 = vsel %vm2219, %v5512, %v5513
      %v5515 = vrot.slane %v5513, 4
      %v5516 = vrot.slane %v4687, 5
      %v5517 = vsel %vm2219, %v5515, %v5516
      %v5518 = vrot.slane %v5436, 5
      %v5519 = vrot.slane %v5518, 4
      %v5520 = vrot.slane %v4689, 5
      %v5521 = vsel %vm2219, %v5519, %v5520
      %v5522 = vrot.slane %v5520, 4
      %v5523 = vrot.slane %v4690, 5
      %v5524 = vsel %vm2219, %v5522, %v5523
      %v5525 = vrot.slane %v5437, 5
      %v5526 = vrot.slane %v5525, 4
      %v5527 = vrot.slane %v4692, 5
      %v5528 = vsel %vm2219, %v5526, %v5527
      %v5529 = vrot.slane %v5527, 4
      %v5530 = vrot.slane %v4693, 5
      %v5531 = vsel %vm2219, %v5529, %v5530
      %v5532 = vrot.slane %v5438, 5
      %v5533 = vrot.slane %v5532, 4
      %v5534 = vrot.slane %v4695, 5
      %v5535 = vsel %vm2219, %v5533, %v5534
      %v5536 = vrot.slane %v5534, 4
      %v5537 = vrot.slane %v4696, 5
      %v5538 = vsel %vm2219, %v5536, %v5537
      %v5539 = vrot.slane %v5439, 5
      %v5540 = vrot.slane %v5539, 4
      %v5541 = vrot.slane %v4698, 5
      %v5542 = vsel %vm2219, %v5540, %v5541
      %v5543 = vrot.slane %v5541, 4
      %v5544 = vrot.slane %v4699, 5
      %v5545 = vsel %vm2219, %v5543, %v5544
      %v5546 = vrot.slane %v5440, 5
      %v5547 = vrot.slane %v5546, 4
      %v5548 = vrot.slane %v4701, 5
      %v5549 = vsel %vm2219, %v5547, %v5548
      %v5550 = vrot.slane %v5548, 4
      %v5551 = vrot.slane %v4702, 5
      %v5552 = vsel %vm2219, %v5550, %v5551
      %v5553 = vrot.slane %v5441, 5
      %v5554 = vrot.slane %v5553, 4
      %v5555 = vrot.slane %v4704, 5
      %v5556 = vsel %vm2219, %v5554, %v5555
      %v5557 = vrot.slane %v5555, 4
      %v5558 = vrot.slane %v4705, 5
      %v5559 = vsel %vm2219, %v5557, %v5558
      %v5560 = vrot.slane %v5442, 5
      %v5561 = vrot.slane %v5560, 4
      %v5562 = vrot.slane %v4707, 5
      %v5563 = vsel %vm2219, %v5561, %v5562
      %v5564 = vrot.slane %v5562, 4
      %v5565 = vrot.slane %v4708, 5
      %v5566 = vsel %vm2219, %v5564, %v5565
      %v5567 = vrot.slane %v5443, 5
      %v5568 = vrot.slane %v5567, 4
      %v5569 = vrot.slane %v4710, 5
      %v5570 = vsel %vm2219, %v5568, %v5569
      %v5571 = vrot.slane %v5569, 4
      %v5572 = vrot.slane %v4711, 5
      %v5573 = vsel %vm2219, %v5571, %v5572
      %v5574 = vrot.slane %v5444, 5
      %v5575 = vrot.slane %v5574, 4
      %v5576 = vrot.slane %v4713, 5
      %v5577 = vsel %vm2219, %v5575, %v5576
      %v5578 = vrot.slane %v5576, 4
      %v5579 = vrot.slane %v4714, 5
      %v5580 = vsel %vm2219, %v5578, %v5579
      %v5581 = vrot.slane %v5445, 5
      %v5582 = vrot.slane %v5581, 4
      %v5583 = vrot.slane %v4716, 5
      %v5584 = vsel %vm2219, %v5582, %v5583
      %v5585 = vrot.slane %v5583, 4
      %v5586 = vrot.slane %v4717, 5
      %v5587 = vsel %vm2219, %v5585, %v5586
      %v5588 = vrot.slane %v5446, 5
      %v5589 = vrot.slane %v5588, 4
      %v5590 = vrot.slane %v4719, 5
      %v5591 = vsel %vm2219, %v5589, %v5590
      %v5592 = vrot.slane %v5590, 4
      %v5593 = vrot.slane %v4720, 5
      %v5594 = vsel %vm2219, %v5592, %v5593
      %v5595 = vrot.slane %v5447, 5
      %v5596 = vrot.slane %v5595, 4
      %v5597 = vrot.slane %v4722, 5
      %v5598 = vsel %vm2219, %v5596, %v5597
      %v5599 = vrot.slane %v5597, 4
      %v5600 = vrot.slane %v4723, 5
      %v5601 = vsel %vm2219, %v5599, %v5600
      %v5602 = vrot.slane %v5448, 5
      %v5603 = vrot.slane %v5602, 4
      %v5604 = vrot.slane %v4725, 5
      %v5605 = vsel %vm2219, %v5603, %v5604
      %v5606 = vrot.slane %v5604, 4
      %v5607 = vrot.slane %v4726, 5
      %v5608 = vsel %vm2219, %v5606, %v5607
      %s5609 = scalar_lea.vmem %s1, 512
      %v5610 = vld [vmem:[%s5609] sm:$0xf]
      %v5611 = vld [vmem:[%s5609 + $0x4] sm:$0xf]
      %v5612 = vld [vmem:[%s5609 + $0x8] sm:$0xf]
      %v5613 = vld [vmem:[%s5609 + $0xc] sm:$0xf]
      %v5614 = vld [vmem:[%s5609 + $0x10] sm:$0xf]
      %v5615 = vld [vmem:[%s5609 + $0x14] sm:$0xf]
      %v5616 = vld [vmem:[%s5609 + $0x18] sm:$0xf]
      %v5617 = vld [vmem:[%s5609 + $0x1c] sm:$0xf]
      %v5618 = vld [vmem:[%s5609 + $0x20] sm:$0xf]
      %v5619 = vld [vmem:[%s5609 + $0x24] sm:$0xf]
      %v5620 = vld [vmem:[%s5609 + $0x28] sm:$0xf]
      %v5621 = vld [vmem:[%s5609 + $0x2c] sm:$0xf]
      %v5622 = vld [vmem:[%s5609 + $0x30] sm:$0xf]
      %v5623 = vld [vmem:[%s5609 + $0x34] sm:$0xf]
      %v5624 = vld [vmem:[%s5609 + $0x38] sm:$0xf]
      %v5625 = vld [vmem:[%s5609 + $0x3c] sm:$0xf]
      %v5626 = vunpack.c.l.b16 %v5500
      %v5627 = vunpack.c.l.b16 %v5503
      %v5628 = vunpack.c.l.b16 %v5507
      %v5629 = vunpack.c.l.b16 %v5510
      %v5630 = vunpack.c.l.b16 %v5514
      %v5631 = vunpack.c.l.b16 %v5517
      %v5632 = vunpack.c.l.b16 %v5521
      %v5633 = vunpack.c.l.b16 %v5524
      %v5634 = vunpack.c.l.b16 %v5528
      %v5635 = vunpack.c.l.b16 %v5531
      %v5636 = vunpack.c.l.b16 %v5535
      %v5637 = vunpack.c.l.b16 %v5538
      %v5638 = vunpack.c.l.b16 %v5542
      %v5639 = vunpack.c.l.b16 %v5545
      %v5640 = vunpack.c.l.b16 %v5549
      %v5641 = vunpack.c.l.b16 %v5552
      %v5642 = vunpack.c.l.b16 %v5556
      %v5643 = vunpack.c.l.b16 %v5559
      %v5644 = vunpack.c.l.b16 %v5563
      %v5645 = vunpack.c.l.b16 %v5566
      %v5646 = vunpack.c.l.b16 %v5570
      %v5647 = vunpack.c.l.b16 %v5573
      %v5648 = vunpack.c.l.b16 %v5577
      %v5649 = vunpack.c.l.b16 %v5580
      %v5650 = vunpack.c.l.b16 %v5584
      %v5651 = vunpack.c.l.b16 %v5587
      %v5652 = vunpack.c.l.b16 %v5591
      %v5653 = vunpack.c.l.b16 %v5594
      %v5654 = vunpack.c.l.b16 %v5598
      %v5655 = vunpack.c.l.b16 %v5601
      %v5656 = vunpack.c.l.b16 %v5605
      %v5657 = vunpack.c.l.b16 %v5608
      %v5658 = vpack.c.b16 %v5627, %v5626
      %v5659 = vpack.c.b16 %v5629, %v5628
      %v5660 = vpack.c.b16 %v5631, %v5630
      %v5661 = vpack.c.b16 %v5633, %v5632
      %v5662 = vpack.c.b16 %v5635, %v5634
      %v5663 = vpack.c.b16 %v5637, %v5636
      %v5664 = vpack.c.b16 %v5639, %v5638
      %v5665 = vpack.c.b16 %v5641, %v5640
      %v5666 = vpack.c.b16 %v5643, %v5642
      %v5667 = vpack.c.b16 %v5645, %v5644
      %v5668 = vpack.c.b16 %v5647, %v5646
      %v5669 = vpack.c.b16 %v5649, %v5648
      %v5670 = vpack.c.b16 %v5651, %v5650
      %v5671 = vpack.c.b16 %v5653, %v5652
      %v5672 = vpack.c.b16 %v5655, %v5654
      %v5673 = vpack.c.b16 %v5657, %v5656
      %v5706 = vunpack.c.l.b16 %v5610
      %v5707 = vunpack.c.l.b16 %v5611
      %v5708 = vunpack.c.l.b16 %v5612
      %v5709 = vunpack.c.l.b16 %v5613
      %v5710 = vunpack.c.l.b16 %v5614
      %v5711 = vunpack.c.l.b16 %v5615
      %v5712 = vunpack.c.l.b16 %v5616
      %v5713 = vunpack.c.l.b16 %v5617
      %v5714 = vunpack.c.l.b16 %v5618
      %v5715 = vunpack.c.l.b16 %v5619
      %v5716 = vunpack.c.l.b16 %v5620
      %v5717 = vunpack.c.l.b16 %v5621
      %v5718 = vunpack.c.l.b16 %v5622
      %v5719 = vunpack.c.l.b16 %v5623
      %v5720 = vunpack.c.l.b16 %v5624
      %v5721 = vunpack.c.l.b16 %v5625
      %v5722 = vpack.c.b16 %v5707, %v5706
      %v5723 = vpack.c.b16 %v5709, %v5708
      %v5724 = vpack.c.b16 %v5711, %v5710
      %v5725 = vpack.c.b16 %v5713, %v5712
      %v5726 = vpack.c.b16 %v5715, %v5714
      %v5727 = vpack.c.b16 %v5717, %v5716
      %v5728 = vpack.c.b16 %v5719, %v5718
      %v5729 = vpack.c.b16 %v5721, %v5720
      %5738 = vmatprep.subr.bf16.mxu0 0
      %5739 = vmatpush1.bf16.msra.mxu0 %v5729
      %5740 = vmatprep.subr.bf16.mxu0 0
      %5741 = vmatpush1.bf16.msra.mxu0 %v5728
      %5742 = vmatprep.subr.bf16.mxu0 0
      %5743 = vmatpush1.bf16.msra.mxu0 %v5727
      %5744 = vmatprep.subr.bf16.mxu0 0
      %5745 = vmatpush1.bf16.msra.mxu0 %v5726
      %5746 = vmatprep.subr.bf16.mxu0 0
      %5747 = vmatpush1.bf16.msra.mxu0 %v5725
      %5748 = vmatprep.subr.bf16.mxu0 0
      %5749 = vmatpush1.bf16.msra.mxu0 %v5724
      %5750 = vmatprep.subr.bf16.mxu0 0
      %5751 = vmatpush1.bf16.msra.mxu0 %v5723
      %5752 = vmatprep.subr.bf16.mxu0 0
      %5753 = vmatpush1.bf16.msra.mxu0 %v5722
      %5754 = vmatprep.subr.bf16.mxu0 0
      %5755 = vmatpush2.bf16.msra.mxu0 0
      %5756 = vmatprep.subr.bf16.mxu0 0
      %5757 = vmatpush2.bf16.msra.mxu0 0
      %5758 = vmatprep.subr.bf16.mxu0 0
      %5759 = vmatpush2.bf16.msra.mxu0 0
      %5760 = vmatprep.subr.bf16.mxu0 0
      %5761 = vmatpush2.bf16.msra.mxu0 0
      %5762 = vmatprep.subr.bf16.mxu0 0
      %5763 = vmatpush2.bf16.msra.mxu0 0
      %5764 = vmatprep.subr.bf16.mxu0 0
      %5765 = vmatpush2.bf16.msra.mxu0 0
      %5766 = vmatprep.subr.bf16.mxu0 0
      %5767 = vmatpush2.bf16.msra.mxu0 0
      %5768 = vmatprep.subr.bf16.mxu0 0
      %5769 = vmatpush2.bf16.msra.mxu0 0
      %5770 = vmatprep.mubr.bf16.mxu0 0
      %5771 = vmatmul.mubr.bf16.gmra.mxu0 %v5658
      %v5772 = vpop.f32.mrf.mxu0
      %v5773 = vadd.f32 0.0, %v5772
      %v5774 = vpop.f32.mrf.mxu0
      %v5775 = vpop.f32.mrf.mxu0
      %v5776 = vadd.f32 0.0, %v5775
      %v5777 = vpop.f32.mrf.mxu0
      %5778 = vmatprep.mubr.bf16.mxu0 0
      %5779 = vmatmul.mubr.bf16.gmra.mxu0 %v5659
      %v5780 = vpop.f32.mrf.mxu0
      %v5781 = vadd.f32 0.0, %v5780
      %v5782 = vpop.f32.mrf.mxu0
      %v5783 = vpop.f32.mrf.mxu0
      %v5784 = vadd.f32 0.0, %v5783
      %v5785 = vpop.f32.mrf.mxu0
      %5786 = vmatprep.mubr.bf16.mxu0 0
      %5787 = vmatmul.mubr.bf16.gmra.mxu0 %v5660
      %v5788 = vpop.f32.mrf.mxu0
      %v5789 = vadd.f32 0.0, %v5788
      %v5790 = vpop.f32.mrf.mxu0
      %v5791 = vpop.f32.mrf.mxu0
      %v5792 = vadd.f32 0.0, %v5791
      %v5793 = vpop.f32.mrf.mxu0
      %5794 = vmatprep.mubr.bf16.mxu0 0
      %5795 = vmatmul.mubr.bf16.gmra.mxu0 %v5661
      %v5796 = vpop.f32.mrf.mxu0
      %v5797 = vadd.f32 0.0, %v5796
      %v5798 = vpop.f32.mrf.mxu0
      %v5799 = vpop.f32.mrf.mxu0
      %v5800 = vadd.f32 0.0, %v5799
      %v5801 = vpop.f32.mrf.mxu0
      %5802 = vmatprep.mubr.bf16.mxu0 0
      %5803 = vmatmul.mubr.bf16.gmra.mxu0 %v5662
      %v5804 = vpop.f32.mrf.mxu0
      %v5805 = vadd.f32 0.0, %v5804
      %v5806 = vpop.f32.mrf.mxu0
      %v5807 = vpop.f32.mrf.mxu0
      %v5808 = vadd.f32 0.0, %v5807
      %v5809 = vpop.f32.mrf.mxu0
      %5810 = vmatprep.mubr.bf16.mxu0 0
      %5811 = vmatmul.mubr.bf16.gmra.mxu0 %v5663
      %v5812 = vpop.f32.mrf.mxu0
      %v5813 = vadd.f32 0.0, %v5812
      %v5814 = vpop.f32.mrf.mxu0
      %v5815 = vpop.f32.mrf.mxu0
      %v5816 = vadd.f32 0.0, %v5815
      %v5817 = vpop.f32.mrf.mxu0
      %5818 = vmatprep.mubr.bf16.mxu0 0
      %5819 = vmatmul.mubr.bf16.gmra.mxu0 %v5664
      %v5820 = vpop.f32.mrf.mxu0
      %v5821 = vadd.f32 0.0, %v5820
      %v5822 = vpop.f32.mrf.mxu0
      %v5823 = vpop.f32.mrf.mxu0
      %v5824 = vadd.f32 0.0, %v5823
      %v5825 = vpop.f32.mrf.mxu0
      %5826 = vmatprep.mubr.bf16.mxu0 0
      %5827 = vmatmul.mubr.bf16.gmra.mxu0 %v5665
      %v5828 = vpop.f32.mrf.mxu0
      %v5829 = vadd.f32 0.0, %v5828
      %v5830 = vpop.f32.mrf.mxu0
      %v5831 = vpop.f32.mrf.mxu0
      %v5832 = vadd.f32 0.0, %v5831
      %v5833 = vpop.f32.mrf.mxu0
      %5834 = vmatprep.mubr.bf16.mxu0 0
      %5835 = vmatmul.mubr.bf16.gmra.mxu0 %v5666
      %v5836 = vpop.f32.mrf.mxu0
      %v5837 = vadd.f32 0.0, %v5836
      %v5838 = vpop.f32.mrf.mxu0
      %v5839 = vpop.f32.mrf.mxu0
      %v5840 = vadd.f32 0.0, %v5839
      %v5841 = vpop.f32.mrf.mxu0
      %5842 = vmatprep.mubr.bf16.mxu0 0
      %5843 = vmatmul.mubr.bf16.gmra.mxu0 %v5667
      %v5844 = vpop.f32.mrf.mxu0
      %v5845 = vadd.f32 0.0, %v5844
      %v5846 = vpop.f32.mrf.mxu0
      %v5847 = vpop.f32.mrf.mxu0
      %v5848 = vadd.f32 0.0, %v5847
      %v5849 = vpop.f32.mrf.mxu0
      %5850 = vmatprep.mubr.bf16.mxu0 0
      %5851 = vmatmul.mubr.bf16.gmra.mxu0 %v5668
      %v5852 = vpop.f32.mrf.mxu0
      %v5853 = vadd.f32 0.0, %v5852
      %v5854 = vpop.f32.mrf.mxu0
      %v5855 = vpop.f32.mrf.mxu0
      %v5856 = vadd.f32 0.0, %v5855
      %v5857 = vpop.f32.mrf.mxu0
      %5858 = vmatprep.mubr.bf16.mxu0 0
      %5859 = vmatmul.mubr.bf16.gmra.mxu0 %v5669
      %v5860 = vpop.f32.mrf.mxu0
      %v5861 = vadd.f32 0.0, %v5860
      %v5862 = vpop.f32.mrf.mxu0
      %v5863 = vpop.f32.mrf.mxu0
      %v5864 = vadd.f32 0.0, %v5863
      %v5865 = vpop.f32.mrf.mxu0
      %5866 = vmatprep.mubr.bf16.mxu0 0
      %5867 = vmatmul.mubr.bf16.gmra.mxu0 %v5670
      %v5868 = vpop.f32.mrf.mxu0
      %v5869 = vadd.f32 0.0, %v5868
      %v5870 = vpop.f32.mrf.mxu0
      %v5871 = vpop.f32.mrf.mxu0
      %v5872 = vadd.f32 0.0, %v5871
      %v5873 = vpop.f32.mrf.mxu0
      %5874 = vmatprep.mubr.bf16.mxu0 0
      %5875 = vmatmul.mubr.bf16.gmra.mxu0 %v5671
      %v5876 = vpop.f32.mrf.mxu0
      %v5877 = vadd.f32 0.0, %v5876
      %v5878 = vpop.f32.mrf.mxu0
      %v5879 = vpop.f32.mrf.mxu0
      %v5880 = vadd.f32 0.0, %v5879
      %v5881 = vpop.f32.mrf.mxu0
      %5882 = vmatprep.mubr.bf16.mxu0 0
      %5883 = vmatmul.mubr.bf16.gmra.mxu0 %v5672
      %v5884 = vpop.f32.mrf.mxu0
      %v5885 = vadd.f32 0.0, %v5884
      %v5886 = vpop.f32.mrf.mxu0
      %v5887 = vpop.f32.mrf.mxu0
      %v5888 = vadd.f32 0.0, %v5887
      %v5889 = vpop.f32.mrf.mxu0
      %5890 = vmatprep.mubr.bf16.mxu0 0
      %5891 = vmatmul.mubr.bf16.gmra.mxu0 %v5673
      %v5892 = vpop.f32.mrf.mxu0
      %v5893 = vadd.f32 0.0, %v5892
      %v5894 = vpop.f32.mrf.mxu0
      %v5895 = vpop.f32.mrf.mxu0
      %v5896 = vadd.f32 0.0, %v5895
      %v5897 = vpop.f32.mrf.mxu0
      %5898 = vdwg.mxu0
      %v5899 = vadd.f32 %v5401, %v5773
      %v5900 = vadd.f32 %v5402, %v5776
      %v5901 = vadd.f32 %v5403, %v5781
      %v5902 = vadd.f32 %v5404, %v5784
      %v5903 = vadd.f32 %v5405, %v5789
      %v5904 = vadd.f32 %v5406, %v5792
      %v5905 = vadd.f32 %v5407, %v5797
      %v5906 = vadd.f32 %v5408, %v5800
      %v5907 = vadd.f32 %v5409, %v5805
      %v5908 = vadd.f32 %v5410, %v5808
      %v5909 = vadd.f32 %v5411, %v5813
      %v5910 = vadd.f32 %v5412, %v5816
      %v5911 = vadd.f32 %v5413, %v5821
      %v5912 = vadd.f32 %v5414, %v5824
      %v5913 = vadd.f32 %v5415, %v5829
      %v5914 = vadd.f32 %v5416, %v5832
      %v5915 = vadd.f32 %v5417, %v5837
      %v5916 = vadd.f32 %v5418, %v5840
      %v5917 = vadd.f32 %v5419, %v5845
      %v5918 = vadd.f32 %v5420, %v5848
      %v5919 = vadd.f32 %v5421, %v5853
      %v5920 = vadd.f32 %v5422, %v5856
      %v5921 = vadd.f32 %v5423, %v5861
      %v5922 = vadd.f32 %v5424, %v5864
      %v5923 = vadd.f32 %v5425, %v5869
      %v5924 = vadd.f32 %v5426, %v5872
      %v5925 = vadd.f32 %v5427, %v5877
      %v5926 = vadd.f32 %v5428, %v5880
      %v5927 = vadd.f32 %v5429, %v5885
      %v5928 = vadd.f32 %v5430, %v5888
      %v5929 = vadd.f32 %v5431, %v5893
      %v5930 = vadd.f32 %v5432, %v5896
      %v5931 = vld [vmem:[%s2] sm:$0x1]
      %v5933 = vlaneseq
      %v5934 = vshrl.u32 %v5933, 7
      %v5935 = vsub.s32 0, %v5934
      %v5936 = vrot.slane %v5931, %v5935
      %v5938 = vadd.f32 %v5899, %v5936
      %v5939 = vadd.f32 %v5900, %v5936
      %v5940 = vadd.f32 %v5901, %v5936
      %v5941 = vadd.f32 %v5902, %v5936
      %v5942 = vadd.f32 %v5903, %v5936
      %v5943 = vadd.f32 %v5904, %v5936
      %v5944 = vadd.f32 %v5905, %v5936
      %v5945 = vadd.f32 %v5906, %v5936
      %v5946 = vadd.f32 %v5907, %v5936
      %v5947 = vadd.f32 %v5908, %v5936
      %v5948 = vadd.f32 %v5909, %v5936
      %v5949 = vadd.f32 %v5910, %v5936
      %v5950 = vadd.f32 %v5911, %v5936
      %v5951 = vadd.f32 %v5912, %v5936
      %v5952 = vadd.f32 %v5913, %v5936
      %v5953 = vadd.f32 %v5914, %v5936
      %v5954 = vadd.f32 %v5915, %v5936
      %v5955 = vadd.f32 %v5916, %v5936
      %v5956 = vadd.f32 %v5917, %v5936
      %v5957 = vadd.f32 %v5918, %v5936
      %v5958 = vadd.f32 %v5919, %v5936
      %v5959 = vadd.f32 %v5920, %v5936
      %v5960 = vadd.f32 %v5921, %v5936
      %v5961 = vadd.f32 %v5922, %v5936
      %v5962 = vadd.f32 %v5923, %v5936
      %v5963 = vadd.f32 %v5924, %v5936
      %v5964 = vadd.f32 %v5925, %v5936
      %v5965 = vadd.f32 %v5926, %v5936
      %v5966 = vadd.f32 %v5927, %v5936
      %v5967 = vadd.f32 %v5928, %v5936
      %v5968 = vadd.f32 %v5929, %v5936
      %v5969 = vadd.f32 %v5930, %v5936
      %v5970 = vadd.f32 %v5938, %v5939
      %v5971 = vadd.f32 %v5970, %v5940
      %v5972 = vadd.f32 %v5971, %v5941
      %v5973 = vadd.f32 %v5972, %v5942
      %v5974 = vadd.f32 %v5973, %v5943
      %v5975 = vadd.f32 %v5974, %v5944
      %v5976 = vadd.f32 %v5975, %v5945
      %v5977 = vadd.f32 %v5976, %v5946
      %v5978 = vadd.f32 %v5977, %v5947
      %v5979 = vadd.f32 %v5978, %v5948
      %v5980 = vadd.f32 %v5979, %v5949
      %v5981 = vadd.f32 %v5980, %v5950
      %v5982 = vadd.f32 %v5981, %v5951
      %v5983 = vadd.f32 %v5982, %v5952
      %v5984 = vadd.f32 %v5983, %v5953
      %v5985 = vadd.f32 %v5984, %v5954
      %v5986 = vadd.f32 %v5985, %v5955
      %v5987 = vadd.f32 %v5986, %v5956
      %v5988 = vadd.f32 %v5987, %v5957
      %v5989 = vadd.f32 %v5988, %v5958
      %v5990 = vadd.f32 %v5989, %v5959
      %v5991 = vadd.f32 %v5990, %v5960
      %v5992 = vadd.f32 %v5991, %v5961
      %v5993 = vadd.f32 %v5992, %v5962
      %v5994 = vadd.f32 %v5993, %v5963
      %v5995 = vadd.f32 %v5994, %v5964
      %v5996 = vadd.f32 %v5995, %v5965
      %v5997 = vadd.f32 %v5996, %v5966
      %v5998 = vadd.f32 %v5997, %v5967
      %v5999 = vadd.f32 %v5998, %v5968
      %v6000 = vadd.f32 %v5999, %v5969
      %v6001 = vrot.slane %v6000, 4
      %v6002 = vadd.f32 %v6000, %v6001
      %v6003 = vrot.slane %v6002, 2
      %v6004 = vadd.f32 %v6002, %v6003
      %v6005 = vrot.slane %v6004, 1
      %v6006 = vadd.f32 %v6004, %v6005
      %6007 = vst [vmem:[%s290] sm:$0x1] %v6006
      %v6008 = vmul.f32 %v5938, %v5938
      %v6009 = vmul.f32 %v5939, %v5939
      %v6010 = vmul.f32 %v5940, %v5940
      %v6011 = vmul.f32 %v5941, %v5941
      %v6012 = vmul.f32 %v5942, %v5942
      %v6013 = vmul.f32 %v5943, %v5943
      %v6014 = vmul.f32 %v5944, %v5944
      %v6015 = vmul.f32 %v5945, %v5945
      %v6016 = vmul.f32 %v5946, %v5946
      %v6017 = vmul.f32 %v5947, %v5947
      %v6018 = vmul.f32 %v5948, %v5948
      %v6019 = vmul.f32 %v5949, %v5949
      %v6020 = vmul.f32 %v5950, %v5950
      %v6021 = vmul.f32 %v5951, %v5951
      %v6022 = vmul.f32 %v5952, %v5952
      %v6023 = vmul.f32 %v5953, %v5953
      %v6024 = vmul.f32 %v5954, %v5954
      %v6025 = vmul.f32 %v5955, %v5955
      %v6026 = vmul.f32 %v5956, %v5956
      %v6027 = vmul.f32 %v5957, %v5957
      %v6028 = vmul.f32 %v5958, %v5958
      %v6029 = vmul.f32 %v5959, %v5959
      %v6030 = vmul.f32 %v5960, %v5960
      %v6031 = vmul.f32 %v5961, %v5961
      %v6032 = vmul.f32 %v5962, %v5962
      %v6033 = vmul.f32 %v5963, %v5963
      %v6034 = vmul.f32 %v5964, %v5964
      %v6035 = vmul.f32 %v5965, %v5965
      %v6036 = vmul.f32 %v5966, %v5966
      %v6037 = vmul.f32 %v5967, %v5967
      %v6038 = vmul.f32 %v5968, %v5968
      %v6039 = vmul.f32 %v5969, %v5969
      %v6040 = vadd.f32 %v6008, %v6009
      %v6041 = vadd.f32 %v6040, %v6010
      %v6042 = vadd.f32 %v6041, %v6011
      %v6043 = vadd.f32 %v6042, %v6012
      %v6044 = vadd.f32 %v6043, %v6013
      %v6045 = vadd.f32 %v6044, %v6014
      %v6046 = vadd.f32 %v6045, %v6015
      %v6047 = vadd.f32 %v6046, %v6016
      %v6048 = vadd.f32 %v6047, %v6017
      %v6049 = vadd.f32 %v6048, %v6018
      %v6050 = vadd.f32 %v6049, %v6019
      %v6051 = vadd.f32 %v6050, %v6020
      %v6052 = vadd.f32 %v6051, %v6021
      %v6053 = vadd.f32 %v6052, %v6022
      %v6054 = vadd.f32 %v6053, %v6023
      %v6055 = vadd.f32 %v6054, %v6024
      %v6056 = vadd.f32 %v6055, %v6025
      %v6057 = vadd.f32 %v6056, %v6026
      %v6058 = vadd.f32 %v6057, %v6027
      %v6059 = vadd.f32 %v6058, %v6028
      %v6060 = vadd.f32 %v6059, %v6029
      %v6061 = vadd.f32 %v6060, %v6030
      %v6062 = vadd.f32 %v6061, %v6031
      %v6063 = vadd.f32 %v6062, %v6032
      %v6064 = vadd.f32 %v6063, %v6033
      %v6065 = vadd.f32 %v6064, %v6034
      %v6066 = vadd.f32 %v6065, %v6035
      %v6067 = vadd.f32 %v6066, %v6036
      %v6068 = vadd.f32 %v6067, %v6037
      %v6069 = vadd.f32 %v6068, %v6038
      %v6070 = vadd.f32 %v6069, %v6039
      %v6071 = vrot.slane %v6070, 4
      %v6072 = vadd.f32 %v6070, %v6071
      %v6073 = vrot.slane %v6072, 2
      %v6074 = vadd.f32 %v6072, %v6073
      %v6075 = vrot.slane %v6074, 1
      %v6076 = vadd.f32 %v6074, %v6075
      %6077 = vst [vmem:[%s290 + $0x1] sm:$0x1] %v6076
      %v6078 = vpack.c.bf16 %v5939, %v5938
      %v6079 = vpack.c.bf16 %v5941, %v5940
      %v6080 = vpack.c.bf16 %v5943, %v5942
      %v6081 = vpack.c.bf16 %v5945, %v5944
      %v6082 = vpack.c.bf16 %v5947, %v5946
      %v6083 = vpack.c.bf16 %v5949, %v5948
      %v6084 = vpack.c.bf16 %v5951, %v5950
      %v6085 = vpack.c.bf16 %v5953, %v5952
      %v6086 = vpack.c.bf16 %v5955, %v5954
      %v6087 = vpack.c.bf16 %v5957, %v5956
      %v6088 = vpack.c.bf16 %v5959, %v5958
      %v6089 = vpack.c.bf16 %v5961, %v5960
      %v6090 = vpack.c.bf16 %v5963, %v5962
      %v6091 = vpack.c.bf16 %v5965, %v5964
      %v6092 = vpack.c.bf16 %v5967, %v5966
      %v6093 = vpack.c.bf16 %v5969, %v5968
      %v6110 = vunpack.c.l.b16 %v6078
      %v6111 = vunpack.c.h.b16 %v6078
      %v6112 = vunpack.c.l.b16 %v6079
      %v6113 = vunpack.c.h.b16 %v6079
      %v6114 = vunpack.c.l.b16 %v6080
      %v6115 = vunpack.c.h.b16 %v6080
      %v6116 = vunpack.c.l.b16 %v6081
      %v6117 = vunpack.c.h.b16 %v6081
      %v6118 = vunpack.c.l.b16 %v6082
      %v6119 = vunpack.c.h.b16 %v6082
      %v6120 = vunpack.c.l.b16 %v6083
      %v6121 = vunpack.c.h.b16 %v6083
      %v6122 = vunpack.c.l.b16 %v6084
      %v6123 = vunpack.c.h.b16 %v6084
      %v6124 = vunpack.c.l.b16 %v6085
      %v6125 = vunpack.c.h.b16 %v6085
      %v6126 = vunpack.c.l.b16 %v6086
      %v6127 = vunpack.c.h.b16 %v6086
      %v6128 = vunpack.c.l.b16 %v6087
      %v6129 = vunpack.c.h.b16 %v6087
      %v6130 = vunpack.c.l.b16 %v6088
      %v6131 = vunpack.c.h.b16 %v6088
      %v6132 = vunpack.c.l.b16 %v6089
      %v6133 = vunpack.c.h.b16 %v6089
      %v6134 = vunpack.c.l.b16 %v6090
      %v6135 = vunpack.c.h.b16 %v6090
      %v6136 = vunpack.c.l.b16 %v6091
      %v6137 = vunpack.c.h.b16 %v6091
      %v6138 = vunpack.c.l.b16 %v6092
      %v6139 = vunpack.c.h.b16 %v6092
      %v6140 = vunpack.c.l.b16 %v6093
      %v6141 = vunpack.c.h.b16 %v6093
      %v6142 = vpack.c.b16 %v6110, %v6110
      %v6143 = vpack.c.b16 %v6111, %v6111
      %v6144 = vpack.c.b16 %v6112, %v6112
      %v6145 = vpack.c.b16 %v6113, %v6113
      %v6146 = vpack.c.b16 %v6114, %v6114
      %v6147 = vpack.c.b16 %v6115, %v6115
      %v6148 = vpack.c.b16 %v6116, %v6116
      %v6149 = vpack.c.b16 %v6117, %v6117
      %v6150 = vpack.c.b16 %v6118, %v6118
      %v6151 = vpack.c.b16 %v6119, %v6119
      %v6152 = vpack.c.b16 %v6120, %v6120
      %v6153 = vpack.c.b16 %v6121, %v6121
      %v6154 = vpack.c.b16 %v6122, %v6122
      %v6155 = vpack.c.b16 %v6123, %v6123
      %v6156 = vpack.c.b16 %v6124, %v6124
      %v6157 = vpack.c.b16 %v6125, %v6125
      %v6158 = vpack.c.b16 %v6126, %v6126
      %v6159 = vpack.c.b16 %v6127, %v6127
      %v6160 = vpack.c.b16 %v6128, %v6128
      %v6161 = vpack.c.b16 %v6129, %v6129
      %v6162 = vpack.c.b16 %v6130, %v6130
      %v6163 = vpack.c.b16 %v6131, %v6131
      %v6164 = vpack.c.b16 %v6132, %v6132
      %v6165 = vpack.c.b16 %v6133, %v6133
      %v6166 = vpack.c.b16 %v6134, %v6134
      %v6167 = vpack.c.b16 %v6135, %v6135
      %v6168 = vpack.c.b16 %v6136, %v6136
      %v6169 = vpack.c.b16 %v6137, %v6137
      %v6170 = vpack.c.b16 %v6138, %v6138
      %v6171 = vpack.c.b16 %v6139, %v6139
      %v6172 = vpack.c.b16 %v6140, %v6140
      %v6173 = vpack.c.b16 %v6141, %v6141
      %6206 = vst [vmem:[%s286] sm:$0xf] %v6142
      %6207 = vst [vmem:[%s286 + $0x4] sm:$0xf] %v6143
      %6208 = vst [vmem:[%s286 + $0x8] sm:$0xf] %v6144
      %6209 = vst [vmem:[%s286 + $0xc] sm:$0xf] %v6145
      %6210 = vst [vmem:[%s286 + $0x10] sm:$0xf] %v6146
      %6211 = vst [vmem:[%s286 + $0x14] sm:$0xf] %v6147
      %6212 = vst [vmem:[%s286 + $0x18] sm:$0xf] %v6148
      %6213 = vst [vmem:[%s286 + $0x1c] sm:$0xf] %v6149
      %6214 = vst [vmem:[%s286 + $0x20] sm:$0xf] %v6150
      %6215 = vst [vmem:[%s286 + $0x24] sm:$0xf] %v6151
      %6216 = vst [vmem:[%s286 + $0x28] sm:$0xf] %v6152
      %6217 = vst [vmem:[%s286 + $0x2c] sm:$0xf] %v6153
      %6218 = vst [vmem:[%s286 + $0x30] sm:$0xf] %v6154
      %6219 = vst [vmem:[%s286 + $0x34] sm:$0xf] %v6155
      %6220 = vst [vmem:[%s286 + $0x38] sm:$0xf] %v6156
      %6221 = vst [vmem:[%s286 + $0x3c] sm:$0xf] %v6157
      %6222 = vst [vmem:[%s286 + $0x40] sm:$0xf] %v6158
      %6223 = vst [vmem:[%s286 + $0x44] sm:$0xf] %v6159
      %6224 = vst [vmem:[%s286 + $0x48] sm:$0xf] %v6160
      %6225 = vst [vmem:[%s286 + $0x4c] sm:$0xf] %v6161
      %6226 = vst [vmem:[%s286 + $0x50] sm:$0xf] %v6162
      %6227 = vst [vmem:[%s286 + $0x54] sm:$0xf] %v6163
      %6228 = vst [vmem:[%s286 + $0x58] sm:$0xf] %v6164
      %6229 = vst [vmem:[%s286 + $0x5c] sm:$0xf] %v6165
      %6230 = vst [vmem:[%s286 + $0x60] sm:$0xf] %v6166
      %6231 = vst [vmem:[%s286 + $0x64] sm:$0xf] %v6167
      %6232 = vst [vmem:[%s286 + $0x68] sm:$0xf] %v6168
      %6233 = vst [vmem:[%s286 + $0x6c] sm:$0xf] %v6169
      %6234 = vst [vmem:[%s286 + $0x70] sm:$0xf] %v6170
      %6235 = vst [vmem:[%s286 + $0x74] sm:$0xf] %v6171
      %6236 = vst [vmem:[%s286 + $0x78] sm:$0xf] %v6172
      %6237 = vst [vmem:[%s286 + $0x7c] sm:$0xf] %v6173
      %p6238 = scmp.lt.s32.totalorder %s20, 1
      %s6239 = scalar_select %p6238, %s20, 1
      %s6240 = smul.addr %s6239, 32
      %s6241 = smul.addr %s6240, 4
      %s6242 = scalar_lea.vmem %s6, %s6241
      %p6243 = scmp.lt.s32.totalorder %s20, 1
      %s6244 = scalar_select %p6243, %s20, 1
      %s6245 = smul.addr %s6244, 2
      %s6246 = scalar_lea.vmem %s7, %s6245
      // Predicated region
      $region45: #{bottleneck_forward.4} parent=43 // pred_check
        %p6247 = pneg %p169
      $region46: #{bottleneck_forward.4} parent=43 // pred_check_branch
        %6249 = sbr.rel (%p6247) target = $region48
      $region47: #{bottleneck_forward.4} parent=43 // pred_region
        _
      $region48: #{bottleneck_forward.4} parent=43 // pred_fallthru
        _
      // Predicated region
      $region49: #{bottleneck_forward.4} parent=43 // pred_check
        %p6250 = pneg %p195
      $region50: #{bottleneck_forward.4} parent=43 // pred_check_branch
        %6252 = sbr.rel (%p6250) target = $region52
      $region51: #{bottleneck_forward.4} parent=43 // pred_region
        _
      $region52: #{bottleneck_forward.4} parent=43 // pred_fallthru
        _
    $region44: #{bottleneck_forward.4} parent=5 // pred_fallthru
      _
    %p6253 = scmp.le.s32.totalorder 2, %s15
    // Predicated region
    $region53: #{bottleneck_forward.4} parent=5 // pred_check
      %p6254 = pneg %p6253
    $region54: #{bottleneck_forward.4} parent=5 // pred_check_branch
      %6256 = sbr.rel (%p6254) target = $region56
    $region55: #{bottleneck_forward.4} parent=5 // pred_region
      %s6257 = ssub.s32 %s15, 2
      // Predicated region
      $region57: #{bottleneck_forward.4} parent=55 // pred_check
        %p6258 = pneg %p175
      $region58: #{bottleneck_forward.4} parent=55 // pred_check_branch
        %6260 = sbr.rel (%p6258) target = $region60
      $region59: #{bottleneck_forward.4} parent=55 // pred_region
        %p6261 = scmp.lt.s32.totalorder %s21, 1
        %s6262 = scalar_select %p6261, %s21, 1
        %s6263 = smul.addr %s6262, 32
        %s6264 = smul.addr %s6263, 4
        %s6265 = scalar_lea.vmem %s6, %s6264
      $region60: #{bottleneck_forward.4} parent=55 // pred_fallthru
        _
      // Predicated region
      $region61: #{bottleneck_forward.4} parent=55 // pred_check
        %p6266 = pneg %p201
      $region62: #{bottleneck_forward.4} parent=55 // pred_check_branch
        %6268 = sbr.rel (%p6266) target = $region64
      $region63: #{bottleneck_forward.4} parent=55 // pred_region
        %p6269 = scmp.lt.s32.totalorder %s21, 1
        %s6270 = scalar_select %p6269, %s21, 1
        %s6271 = smul.addr %s6270, 2
        %s6272 = scalar_lea.vmem %s7, %s6271
      $region64: #{bottleneck_forward.4} parent=55 // pred_fallthru
        _
    $region56: #{bottleneck_forward.4} parent=5 // pred_fallthru
      _
  $region6: #{bottleneck_forward.4} parent=0 // loop_footer
    %s19 = sadd.s32 1, %s15
  $region7: #{bottleneck_forward.4} parent=0 // loop_footer_branch
    %14 = sbr.rel target = $region3
  $region8: #{bottleneck_forward.4} parent=0 // loop_exit
    _

</llo_original>
